<compile_context>
chip_gen: v6e
topology: v6e:2x2x1
jax: 0.10.0
libtpu: 0.0.40
codegen_flags: <defaults>
</compile_context>

<pallas_src>
import functools
import math

import jax
import jax.numpy as jnp
import numpy as np
from jax.experimental import pallas as pl
from jax.experimental.pallas import tpu as pltpu


def _conv_accum(h2d, w_ref, b_ref, m_ref, *, ksize, width):
    """k x k 'same' conv of row-major activations h2d: (rows, Cp) -> (rows, Cp) f32."""
    p = ksize // 2
    n_rows, cp = h2d.shape
    acc = jnp.zeros((n_rows, cp), jnp.float32)
    for dy in range(ksize):
        for dx in range(ksize):
            t = dy * ksize + dx
            pt = jnp.dot(h2d, w_ref[t], preferred_element_type=jnp.float32)
            # flattened-row offset of this tap: output row r takes input row r + s
            s = (dy - p) * width + (dx - p)
            if s != 0:
                pt = pltpu.roll(pt, shift=(-s) % n_rows, axis=0)
            if dy != p or dx != p:
                pt = pt * m_ref[t]          # (rows, 1) zero-padding boundary mask
            acc = acc + pt
    return acc + b_ref[...]                 # (1, Cp) bias broadcast


def _resblock_kernel(x_ref, w1_ref, b1_ref, w2_ref, b2_ref, m_ref, o_ref,
                     *, ksize, width, res_scale):
    x2d = x_ref[...]                                      # (rows, Cp)
    c1 = _conv_accum(x2d, w1_ref, b1_ref, m_ref, ksize=ksize, width=width)
    h1 = jnp.maximum(c1, 0.0).astype(x2d.dtype)           # ReLU, back to MXU dtype
    c2 = _conv_accum(h1, w2_ref, b2_ref, m_ref, ksize=ksize, width=width)
    if res_scale != 1.0:
        c2 = c2 * res_scale
    o_ref[...] = (c2 + x2d.astype(jnp.float32)).astype(o_ref.dtype)


def _tap_masks(ksize, height, width, imgs_per_tile):
    """(k*k, imgs_per_tile*H*W, 1) float32 0/1 masks implementing zero 'same' padding."""
    p = ksize // 2
    hw = height * width
    h_i = np.arange(hw) // width
    w_i = np.arange(hw) % width
    masks = np.empty((ksize * ksize, hw), np.float32)
    for dy in range(ksize):
        for dx in range(ksize):
            oy, ox = dy - p, dx - p
            ok = ((h_i + oy >= 0) & (h_i + oy < height) &
                  (w_i + ox >= 0) & (w_i + ox < width))
            masks[dy * ksize + dx] = ok.astype(np.float32)
    masks = np.tile(masks, (1, imgs_per_tile))   # same pattern for every image in a tile
    return jnp.asarray(masks[:, :, None])


def resblock_forward(x, params, *, res_scale=1.0, max_tile_rows=2048):
    """x: (B, C, H, W) NCHW. params = (w1, b1, w2, b2) in PyTorch Conv2d layout
    (w: (Cout, Cin, k, k), b: (Cout,)). Returns (B, C, H, W)."""
    w1, b1, w2, b2 = params
    B, C, H, W = x.shape
    ksize = w1.shape[-1]
    assert w1.shape == (C, C, ksize, ksize) and ksize % 2 == 1
    cp = pl.cdiv(C, 128) * 128                   # lane-dense channel padding

    # NCHW -> row-major (B*H*W, Cp), channels on lanes.
    xr = jnp.transpose(x, (0, 2, 3, 1)).reshape(B * H * W, C)
    if cp != C:
        xr = jnp.pad(xr, ((0, 0), (0, cp - C)))

    def pack_w(w):
        wt = jnp.transpose(w, (2, 3, 1, 0)).reshape(ksize * ksize, C, C)  # (tap, Cin, Cout)
        if cp != C:
            wt = jnp.pad(wt, ((0, 0), (0, cp - C), (0, cp - C)))
        return wt.astype(x.dtype)

    def pack_b(b):
        bb = b.reshape(1, C).astype(jnp.float32)
        return jnp.pad(bb, ((0, 0), (0, cp - C))) if cp != C else bb

    w1p, b1p, w2p, b2p = pack_w(w1), pack_b(b1), pack_w(w2), pack_b(b2)

    # Tile the row axis at whole-image granularity (so the static rolls never leak
    # across images at unmasked positions). Target ~max_tile_rows rows per step, but
    # keep >=2 grid steps when the batch allows, for v7x 2-TC sharding.
    hw = H * W
    ipt = max(1, min(B, max_tile_rows // hw)) if hw <= max_tile_rows else 1
    if B >= 2 and B // ipt < 2:
        ipt = max(1, B // 2)
    while B % ipt:
        ipt -= 1
    tile_rows = ipt * hw
    n_tiles = B // ipt
    # TODO(synk): for very large H*W, tile over H with a 2-row halo instead of whole
    # images so the per-step block stays comfortably inside VMEM.

    masks = _tap_masks(ksize, H, W, ipt)

    kernel = functools.partial(_resblock_kernel, ksize=ksize, width=W,
                               res_scale=float(res_scale))

    itemsize = jnp.dtype(x.dtype).itemsize
    cost = pl.CostEstimate(
        flops=2 * 2 * B * hw * ksize * ksize * cp * cp,        # two convs, 2 flops/MAC
        transcendentals=0,
        bytes_accessed=2 * B * hw * cp * itemsize + (w1p.size + w2p.size) * itemsize,
    )

    out = pl.pallas_call(
        kernel,
        out_shape=jax.ShapeDtypeStruct((B * hw, cp), x.dtype),
        grid_spec=pltpu.PrefetchScalarGridSpec(
            num_scalar_prefetch=0,
            grid=(n_tiles,),
            in_specs=[
                pl.BlockSpec((tile_rows, cp), lambda i: (i, 0)),              # x rows
                pl.BlockSpec((ksize * ksize, cp, cp), lambda i: (0, 0, 0)),   # w1 (resident)
                pl.BlockSpec((1, cp), lambda i: (0, 0)),                      # b1
                pl.BlockSpec((ksize * ksize, cp, cp), lambda i: (0, 0, 0)),   # w2
                pl.BlockSpec((1, cp), lambda i: (0, 0)),                      # b2
                pl.BlockSpec((ksize * ksize, tile_rows, 1), lambda i: (0, 0, 0)),  # masks
            ],
            out_specs=pl.BlockSpec((tile_rows, cp), lambda i: (i, 0)),
        ),
        compiler_params=pltpu.CompilerParams(
            dimension_semantics=("parallel",)),
        cost_estimate=cost,
    )(xr, w1p, b1p, w2p, b2p, masks)

    out = out[:, :C].reshape(B, H, W, C)
    return jnp.transpose(out, (0, 3, 1, 2))


def resblock_reference(x, params, *, res_scale=1.0):
    """Pure-JAX reference of the PyTorch ResBlock forward (bn=False)."""
    w1, b1, w2, b2 = params
    dn = ('NCHW', 'OIHW', 'NCHW')

    def conv(h, w, b):
        y = jax.lax.conv_general_dilated(h, w, (1, 1), 'SAME', dimension_numbers=dn)
        return y + b.reshape(1, -1, 1, 1)

    h = jnp.maximum(conv(x, w1, b1), 0.0)
    return conv(h, w2, b2) * res_scale + x


if __name__ == "__main__":
    key = jax.random.PRNGKey(0)
    B, C, H, W, ksz = 2, 4, 16, 16, 3
    res_scale = 1.0

    kx, ka, kb, kc, kd = jax.random.split(key, 5)
    x = jax.random.normal(kx, (B, C, H, W), jnp.float32)
    bound = 1.0 / math.sqrt(C * ksz * ksz)     # nn.Conv2d default init range
    w1 = jax.random.uniform(ka, (C, C, ksz, ksz), jnp.float32, -bound, bound)
    b1 = jax.random.uniform(kb, (C,), jnp.float32, -bound, bound)
    w2 = jax.random.uniform(kc, (C, C, ksz, ksz), jnp.float32, -bound, bound)
    b2 = jax.random.uniform(kd, (C,), jnp.float32, -bound, bound)
    params = (w1, b1, w2, b2)

    fwd = jax.jit(functools.partial(resblock_forward, res_scale=res_scale))
    out = fwd(x, params)
    jax.block_until_ready(out)

    ref = resblock_reference(x, params, res_scale=res_scale)
    assert out.shape == x.shape, out.shape
    max_err = float(jnp.max(jnp.abs(out - ref)))
    assert jnp.allclose(out, ref, atol=1e-4, rtol=1e-4), max_err

    print("KERNEL_OK")
</pallas_src>

<mosaic_0001>
module attributes {stable_mosaic.version = 11 : i64} {
  func.func @_resblock_kernel(%arg0: i32, %arg1: memref<256x128xf32, #tpu.memory_space<vmem>>, %arg2: memref<9x128x128xf32, #tpu.memory_space<vmem>>, %arg3: memref<1x128xf32, #tpu.memory_space<vmem>>, %arg4: memref<9x128x128xf32, #tpu.memory_space<vmem>>, %arg5: memref<1x128xf32, #tpu.memory_space<vmem>>, %arg6: memref<9x256x1xf32, #tpu.memory_space<vmem>>, %arg7: memref<256x128xf32, #tpu.memory_space<vmem>>) attributes {dimension_semantics = [#tpu.dimension_semantics<parallel>], iteration_bounds = array<i64: 2>, scalar_prefetch = 0 : i64, scratch_operands = 0 : i64, tpu.core_type = #tpu.core_type<tc>, window_params = [{transform_indices = @transform_0, window_bounds = array<i64: 256, 128>}, {pipeline_mode = #tpu.pipeline_mode<synchronous>, transform_indices = @transform_1, window_bounds = array<i64: 9, 128, 128>}, {pipeline_mode = #tpu.pipeline_mode<synchronous>, transform_indices = @transform_2, window_bounds = array<i64: 1, 128>}, {pipeline_mode = #tpu.pipeline_mode<synchronous>, transform_indices = @transform_3, window_bounds = array<i64: 9, 128, 128>}, {pipeline_mode = #tpu.pipeline_mode<synchronous>, transform_indices = @transform_4, window_bounds = array<i64: 1, 128>}, {pipeline_mode = #tpu.pipeline_mode<synchronous>, transform_indices = @transform_5, window_bounds = array<i64: 9, 256, 1>}, {transform_indices = @transform_6, window_bounds = array<i64: 256, 128>}]} {
    %c0 = arith.constant 0 : index
    %c0_0 = arith.constant 0 : index
    %0 = vector.load %arg1[%c0, %c0_0] : memref<256x128xf32, #tpu.memory_space<vmem>>, vector<256x128xf32>
    %cst = arith.constant 0.000000e+00 : f32
    %1 = vector.broadcast %cst : f32 to vector<256x128xf32>
    %c0_1 = arith.constant 0 : index
    %c0_2 = arith.constant 0 : index
    %c0_3 = arith.constant 0 : index
    %2 = vector.load %arg2[%c0_1, %c0_2, %c0_3] : memref<9x128x128xf32, #tpu.memory_space<vmem>>, vector<1x128x128xf32>
    %3 = vector.shape_cast %2 : vector<1x128x128xf32> to vector<128x128xf32>
    %cst_4 = arith.constant dense<0.000000e+00> : vector<256x128xf32>
    %4 = tpu.matmul %0, %3, %cst_4 {dimension_numbers = #tpu.dot_dimension_numbers<[1], [0], [0], [1], [0, 0, 1, 1], [], []>} : vector<256x128xf32>, vector<128x128xf32>, vector<256x128xf32> -> vector<256x128xf32>
    %c17_i32 = arith.constant 17 : i32
    %5 = tpu.dynamic_rotate %4 by %c17_i32 dim 0 : vector<256x128xf32>, i32 -> vector<256x128xf32>
    %c0_5 = arith.constant 0 : index
    %c0_6 = arith.constant 0 : index
    %c0_7 = arith.constant 0 : index
    %6 = vector.load %arg6[%c0_5, %c0_6, %c0_7] : memref<9x256x1xf32, #tpu.memory_space<vmem>>, vector<1x256x1xf32>
    %7 = vector.shape_cast %6 : vector<1x256x1xf32> to vector<256x1xf32>
    %8 = vector.broadcast %7 : vector<256x1xf32> to vector<256x128xf32>
    %9 = arith.mulf %5, %8 : vector<256x128xf32>
    %10 = arith.addf %1, %9 : vector<256x128xf32>
    %c1 = arith.constant 1 : index
    %c0_8 = arith.constant 0 : index
    %c0_9 = arith.constant 0 : index
    %11 = vector.load %arg2[%c1, %c0_8, %c0_9] : memref<9x128x128xf32, #tpu.memory_space<vmem>>, vector<1x128x128xf32>
    %12 = vector.shape_cast %11 : vector<1x128x128xf32> to vector<128x128xf32>
    %cst_10 = arith.constant dense<0.000000e+00> : vector<256x128xf32>
    %13 = tpu.matmul %0, %12, %cst_10 {dimension_numbers = #tpu.dot_dimension_numbers<[1], [0], [0], [1], [0, 0, 1, 1], [], []>} : vector<256x128xf32>, vector<128x128xf32>, vector<256x128xf32> -> vector<256x128xf32>
    %c16_i32 = arith.constant 16 : i32
    %14 = tpu.dynamic_rotate %13 by %c16_i32 dim 0 : vector<256x128xf32>, i32 -> vector<256x128xf32>
    %c1_11 = arith.constant 1 : index
    %c0_12 = arith.constant 0 : index
    %c0_13 = arith.constant 0 : index
    %15 = vector.load %arg6[%c1_11, %c0_12, %c0_13] : memref<9x256x1xf32, #tpu.memory_space<vmem>>, vector<1x256x1xf32>
    %16 = vector.shape_cast %15 : vector<1x256x1xf32> to vector<256x1xf32>
    %17 = vector.broadcast %16 : vector<256x1xf32> to vector<256x128xf32>
    %18 = arith.mulf %14, %17 : vector<256x128xf32>
    %19 = arith.addf %10, %18 : vector<256x128xf32>
    %c2 = arith.constant 2 : index
    %c0_14 = arith.constant 0 : index
    %c0_15 = arith.constant 0 : index
    %20 = vector.load %arg2[%c2, %c0_14, %c0_15] : memref<9x128x128xf32, #tpu.memory_space<vmem>>, vector<1x128x128xf32>
    %21 = vector.shape_cast %20 : vector<1x128x128xf32> to vector<128x128xf32>
    %cst_16 = arith.constant dense<0.000000e+00> : vector<256x128xf32>
    %22 = tpu.matmul %0, %21, %cst_16 {dimension_numbers = #tpu.dot_dimension_numbers<[1], [0], [0], [1], [0, 0, 1, 1], [], []>} : vector<256x128xf32>, vector<128x128xf32>, vector<256x128xf32> -> vector<256x128xf32>
    %c15_i32 = arith.constant 15 : i32
    %23 = tpu.dynamic_rotate %22 by %c15_i32 dim 0 : vector<256x128xf32>, i32 -> vector<256x128xf32>
    %c2_17 = arith.constant 2 : index
    %c0_18 = arith.constant 0 : index
    %c0_19 = arith.constant 0 : index
    %24 = vector.load %arg6[%c2_17, %c0_18, %c0_19] : memref<9x256x1xf32, #tpu.memory_space<vmem>>, vector<1x256x1xf32>
    %25 = vector.shape_cast %24 : vector<1x256x1xf32> to vector<256x1xf32>
    %26 = vector.broadcast %25 : vector<256x1xf32> to vector<256x128xf32>
    %27 = arith.mulf %23, %26 : vector<256x128xf32>
    %28 = arith.addf %19, %27 : vector<256x128xf32>
    %c3 = arith.constant 3 : index
    %c0_20 = arith.constant 0 : index
    %c0_21 = arith.constant 0 : index
    %29 = vector.load %arg2[%c3, %c0_20, %c0_21] : memref<9x128x128xf32, #tpu.memory_space<vmem>>, vector<1x128x128xf32>
    %30 = vector.shape_cast %29 : vector<1x128x128xf32> to vector<128x128xf32>
    %cst_22 = arith.constant dense<0.000000e+00> : vector<256x128xf32>
    %31 = tpu.matmul %0, %30, %cst_22 {dimension_numbers = #tpu.dot_dimension_numbers<[1], [0], [0], [1], [0, 0, 1, 1], [], []>} : vector<256x128xf32>, vector<128x128xf32>, vector<256x128xf32> -> vector<256x128xf32>
    %c1_i32 = arith.constant 1 : i32
    %32 = tpu.dynamic_rotate %31 by %c1_i32 dim 0 : vector<256x128xf32>, i32 -> vector<256x128xf32>
    %c3_23 = arith.constant 3 : index
    %c0_24 = arith.constant 0 : index
    %c0_25 = arith.constant 0 : index
    %33 = vector.load %arg6[%c3_23, %c0_24, %c0_25] : memref<9x256x1xf32, #tpu.memory_space<vmem>>, vector<1x256x1xf32>
    %34 = vector.shape_cast %33 : vector<1x256x1xf32> to vector<256x1xf32>
    %35 = vector.broadcast %34 : vector<256x1xf32> to vector<256x128xf32>
    %36 = arith.mulf %32, %35 : vector<256x128xf32>
    %37 = arith.addf %28, %36 : vector<256x128xf32>
    %c4 = arith.constant 4 : index
    %c0_26 = arith.constant 0 : index
    %c0_27 = arith.constant 0 : index
    %38 = vector.load %arg2[%c4, %c0_26, %c0_27] : memref<9x128x128xf32, #tpu.memory_space<vmem>>, vector<1x128x128xf32>
    %39 = vector.shape_cast %38 : vector<1x128x128xf32> to vector<128x128xf32>
    %cst_28 = arith.constant dense<0.000000e+00> : vector<256x128xf32>
    %40 = tpu.matmul %0, %39, %cst_28 {dimension_numbers = #tpu.dot_dimension_numbers<[1], [0], [0], [1], [0, 0, 1, 1], [], []>} : vector<256x128xf32>, vector<128x128xf32>, vector<256x128xf32> -> vector<256x128xf32>
    %41 = arith.addf %37, %40 : vector<256x128xf32>
    %c5 = arith.constant 5 : index
    %c0_29 = arith.constant 0 : index
    %c0_30 = arith.constant 0 : index
    %42 = vector.load %arg2[%c5, %c0_29, %c0_30] : memref<9x128x128xf32, #tpu.memory_space<vmem>>, vector<1x128x128xf32>
    %43 = vector.shape_cast %42 : vector<1x128x128xf32> to vector<128x128xf32>
    %cst_31 = arith.constant dense<0.000000e+00> : vector<256x128xf32>
    %44 = tpu.matmul %0, %43, %cst_31 {dimension_numbers = #tpu.dot_dimension_numbers<[1], [0], [0], [1], [0, 0, 1, 1], [], []>} : vector<256x128xf32>, vector<128x128xf32>, vector<256x128xf32> -> vector<256x128xf32>
    %c255_i32 = arith.constant 255 : i32
    %45 = tpu.dynamic_rotate %44 by %c255_i32 dim 0 : vector<256x128xf32>, i32 -> vector<256x128xf32>
    %c5_32 = arith.constant 5 : index
    %c0_33 = arith.constant 0 : index
    %c0_34 = arith.constant 0 : index
    %46 = vector.load %arg6[%c5_32, %c0_33, %c0_34] : memref<9x256x1xf32, #tpu.memory_space<vmem>>, vector<1x256x1xf32>
    %47 = vector.shape_cast %46 : vector<1x256x1xf32> to vector<256x1xf32>
    %48 = vector.broadcast %47 : vector<256x1xf32> to vector<256x128xf32>
    %49 = arith.mulf %45, %48 : vector<256x128xf32>
    %50 = arith.addf %41, %49 : vector<256x128xf32>
    %c6 = arith.constant 6 : index
    %c0_35 = arith.constant 0 : index
    %c0_36 = arith.constant 0 : index
    %51 = vector.load %arg2[%c6, %c0_35, %c0_36] : memref<9x128x128xf32, #tpu.memory_space<vmem>>, vector<1x128x128xf32>
    %52 = vector.shape_cast %51 : vector<1x128x128xf32> to vector<128x128xf32>
    %cst_37 = arith.constant dense<0.000000e+00> : vector<256x128xf32>
    %53 = tpu.matmul %0, %52, %cst_37 {dimension_numbers = #tpu.dot_dimension_numbers<[1], [0], [0], [1], [0, 0, 1, 1], [], []>} : vector<256x128xf32>, vector<128x128xf32>, vector<256x128xf32> -> vector<256x128xf32>
    %c241_i32 = arith.constant 241 : i32
    %54 = tpu.dynamic_rotate %53 by %c241_i32 dim 0 : vector<256x128xf32>, i32 -> vector<256x128xf32>
    %c6_38 = arith.constant 6 : index
    %c0_39 = arith.constant 0 : index
    %c0_40 = arith.constant 0 : index
    %55 = vector.load %arg6[%c6_38, %c0_39, %c0_40] : memref<9x256x1xf32, #tpu.memory_space<vmem>>, vector<1x256x1xf32>
    %56 = vector.shape_cast %55 : vector<1x256x1xf32> to vector<256x1xf32>
    %57 = vector.broadcast %56 : vector<256x1xf32> to vector<256x128xf32>
    %58 = arith.mulf %54, %57 : vector<256x128xf32>
    %59 = arith.addf %50, %58 : vector<256x128xf32>
    %c7 = arith.constant 7 : index
    %c0_41 = arith.constant 0 : index
    %c0_42 = arith.constant 0 : index
    %60 = vector.load %arg2[%c7, %c0_41, %c0_42] : memref<9x128x128xf32, #tpu.memory_space<vmem>>, vector<1x128x128xf32>
    %61 = vector.shape_cast %60 : vector<1x128x128xf32> to vector<128x128xf32>
    %cst_43 = arith.constant dense<0.000000e+00> : vector<256x128xf32>
    %62 = tpu.matmul %0, %61, %cst_43 {dimension_numbers = #tpu.dot_dimension_numbers<[1], [0], [0], [1], [0, 0, 1, 1], [], []>} : vector<256x128xf32>, vector<128x128xf32>, vector<256x128xf32> -> vector<256x128xf32>
    %c240_i32 = arith.constant 240 : i32
    %63 = tpu.dynamic_rotate %62 by %c240_i32 dim 0 : vector<256x128xf32>, i32 -> vector<256x128xf32>
    %c7_44 = arith.constant 7 : index
    %c0_45 = arith.constant 0 : index
    %c0_46 = arith.constant 0 : index
    %64 = vector.load %arg6[%c7_44, %c0_45, %c0_46] : memref<9x256x1xf32, #tpu.memory_space<vmem>>, vector<1x256x1xf32>
    %65 = vector.shape_cast %64 : vector<1x256x1xf32> to vector<256x1xf32>
    %66 = vector.broadcast %65 : vector<256x1xf32> to vector<256x128xf32>
    %67 = arith.mulf %63, %66 : vector<256x128xf32>
    %68 = arith.addf %59, %67 : vector<256x128xf32>
    %c8 = arith.constant 8 : index
    %c0_47 = arith.constant 0 : index
    %c0_48 = arith.constant 0 : index
    %69 = vector.load %arg2[%c8, %c0_47, %c0_48] : memref<9x128x128xf32, #tpu.memory_space<vmem>>, vector<1x128x128xf32>
    %70 = vector.shape_cast %69 : vector<1x128x128xf32> to vector<128x128xf32>
    %cst_49 = arith.constant dense<0.000000e+00> : vector<256x128xf32>
    %71 = tpu.matmul %0, %70, %cst_49 {dimension_numbers = #tpu.dot_dimension_numbers<[1], [0], [0], [1], [0, 0, 1, 1], [], []>} : vector<256x128xf32>, vector<128x128xf32>, vector<256x128xf32> -> vector<256x128xf32>
    %c239_i32 = arith.constant 239 : i32
    %72 = tpu.dynamic_rotate %71 by %c239_i32 dim 0 : vector<256x128xf32>, i32 -> vector<256x128xf32>
    %c8_50 = arith.constant 8 : index
    %c0_51 = arith.constant 0 : index
    %c0_52 = arith.constant 0 : index
    %73 = vector.load %arg6[%c8_50, %c0_51, %c0_52] : memref<9x256x1xf32, #tpu.memory_space<vmem>>, vector<1x256x1xf32>
    %74 = vector.shape_cast %73 : vector<1x256x1xf32> to vector<256x1xf32>
    %75 = vector.broadcast %74 : vector<256x1xf32> to vector<256x128xf32>
    %76 = arith.mulf %72, %75 : vector<256x128xf32>
    %77 = arith.addf %68, %76 : vector<256x128xf32>
    %c0_53 = arith.constant 0 : index
    %c0_54 = arith.constant 0 : index
    %78 = vector.load %arg3[%c0_53, %c0_54] : memref<1x128xf32, #tpu.memory_space<vmem>>, vector<1x128xf32>
    %79 = vector.broadcast %78 : vector<1x128xf32> to vector<256x128xf32>
    %80 = arith.addf %77, %79 : vector<256x128xf32>
    %cst_55 = arith.constant 0.000000e+00 : f32
    %81 = vector.broadcast %cst_55 : f32 to vector<256x128xf32>
    %82 = arith.maximumf %80, %81 : vector<256x128xf32>
    %cst_56 = arith.constant 0.000000e+00 : f32
    %83 = vector.broadcast %cst_56 : f32 to vector<256x128xf32>
    %c0_57 = arith.constant 0 : index
    %c0_58 = arith.constant 0 : index
    %c0_59 = arith.constant 0 : index
    %84 = vector.load %arg4[%c0_57, %c0_58, %c0_59] : memref<9x128x128xf32, #tpu.memory_space<vmem>>, vector<1x128x128xf32>
    %85 = vector.shape_cast %84 : vector<1x128x128xf32> to vector<128x128xf32>
    %cst_60 = arith.constant dense<0.000000e+00> : vector<256x128xf32>
    %86 = tpu.matmul %82, %85, %cst_60 {dimension_numbers = #tpu.dot_dimension_numbers<[1], [0], [0], [1], [0, 0, 1, 1], [], []>} : vector<256x128xf32>, vector<128x128xf32>, vector<256x128xf32> -> vector<256x128xf32>
    %c17_i32_61 = arith.constant 17 : i32
    %87 = tpu.dynamic_rotate %86 by %c17_i32_61 dim 0 : vector<256x128xf32>, i32 -> vector<256x128xf32>
    %c0_62 = arith.constant 0 : index
    %c0_63 = arith.constant 0 : index
    %c0_64 = arith.constant 0 : index
    %88 = vector.load %arg6[%c0_62, %c0_63, %c0_64] : memref<9x256x1xf32, #tpu.memory_space<vmem>>, vector<1x256x1xf32>
    %89 = vector.shape_cast %88 : vector<1x256x1xf32> to vector<256x1xf32>
    %90 = vector.broadcast %89 : vector<256x1xf32> to vector<256x128xf32>
    %91 = arith.mulf %87, %90 : vector<256x128xf32>
    %92 = arith.addf %83, %91 : vector<256x128xf32>
    %c1_65 = arith.constant 1 : index
    %c0_66 = arith.constant 0 : index
    %c0_67 = arith.constant 0 : index
    %93 = vector.load %arg4[%c1_65, %c0_66, %c0_67] : memref<9x128x128xf32, #tpu.memory_space<vmem>>, vector<1x128x128xf32>
    %94 = vector.shape_cast %93 : vector<1x128x128xf32> to vector<128x128xf32>
    %cst_68 = arith.constant dense<0.000000e+00> : vector<256x128xf32>
    %95 = tpu.matmul %82, %94, %cst_68 {dimension_numbers = #tpu.dot_dimension_numbers<[1], [0], [0], [1], [0, 0, 1, 1], [], []>} : vector<256x128xf32>, vector<128x128xf32>, vector<256x128xf32> -> vector<256x128xf32>
    %c16_i32_69 = arith.constant 16 : i32
    %96 = tpu.dynamic_rotate %95 by %c16_i32_69 dim 0 : vector<256x128xf32>, i32 -> vector<256x128xf32>
    %c1_70 = arith.constant 1 : index
    %c0_71 = arith.constant 0 : index
    %c0_72 = arith.constant 0 : index
    %97 = vector.load %arg6[%c1_70, %c0_71, %c0_72] : memref<9x256x1xf32, #tpu.memory_space<vmem>>, vector<1x256x1xf32>
    %98 = vector.shape_cast %97 : vector<1x256x1xf32> to vector<256x1xf32>
    %99 = vector.broadcast %98 : vector<256x1xf32> to vector<256x128xf32>
    %100 = arith.mulf %96, %99 : vector<256x128xf32>
    %101 = arith.addf %92, %100 : vector<256x128xf32>
    %c2_73 = arith.constant 2 : index
    %c0_74 = arith.constant 0 : index
    %c0_75 = arith.constant 0 : index
    %102 = vector.load %arg4[%c2_73, %c0_74, %c0_75] : memref<9x128x128xf32, #tpu.memory_space<vmem>>, vector<1x128x128xf32>
    %103 = vector.shape_cast %102 : vector<1x128x128xf32> to vector<128x128xf32>
    %cst_76 = arith.constant dense<0.000000e+00> : vector<256x128xf32>
    %104 = tpu.matmul %82, %103, %cst_76 {dimension_numbers = #tpu.dot_dimension_numbers<[1], [0], [0], [1], [0, 0, 1, 1], [], []>} : vector<256x128xf32>, vector<128x128xf32>, vector<256x128xf32> -> vector<256x128xf32>
    %c15_i32_77 = arith.constant 15 : i32
    %105 = tpu.dynamic_rotate %104 by %c15_i32_77 dim 0 : vector<256x128xf32>, i32 -> vector<256x128xf32>
    %c2_78 = arith.constant 2 : index
    %c0_79 = arith.constant 0 : index
    %c0_80 = arith.constant 0 : index
    %106 = vector.load %arg6[%c2_78, %c0_79, %c0_80] : memref<9x256x1xf32, #tpu.memory_space<vmem>>, vector<1x256x1xf32>
    %107 = vector.shape_cast %106 : vector<1x256x1xf32> to vector<256x1xf32>
    %108 = vector.broadcast %107 : vector<256x1xf32> to vector<256x128xf32>
    %109 = arith.mulf %105, %108 : vector<256x128xf32>
    %110 = arith.addf %101, %109 : vector<256x128xf32>
    %c3_81 = arith.constant 3 : index
    %c0_82 = arith.constant 0 : index
    %c0_83 = arith.constant 0 : index
    %111 = vector.load %arg4[%c3_81, %c0_82, %c0_83] : memref<9x128x128xf32, #tpu.memory_space<vmem>>, vector<1x128x128xf32>
    %112 = vector.shape_cast %111 : vector<1x128x128xf32> to vector<128x128xf32>
    %cst_84 = arith.constant dense<0.000000e+00> : vector<256x128xf32>
    %113 = tpu.matmul %82, %112, %cst_84 {dimension_numbers = #tpu.dot_dimension_numbers<[1], [0], [0], [1], [0, 0, 1, 1], [], []>} : vector<256x128xf32>, vector<128x128xf32>, vector<256x128xf32> -> vector<256x128xf32>
    %c1_i32_85 = arith.constant 1 : i32
    %114 = tpu.dynamic_rotate %113 by %c1_i32_85 dim 0 : vector<256x128xf32>, i32 -> vector<256x128xf32>
    %c3_86 = arith.constant 3 : index
    %c0_87 = arith.constant 0 : index
    %c0_88 = arith.constant 0 : index
    %115 = vector.load %arg6[%c3_86, %c0_87, %c0_88] : memref<9x256x1xf32, #tpu.memory_space<vmem>>, vector<1x256x1xf32>
    %116 = vector.shape_cast %115 : vector<1x256x1xf32> to vector<256x1xf32>
    %117 = vector.broadcast %116 : vector<256x1xf32> to vector<256x128xf32>
    %118 = arith.mulf %114, %117 : vector<256x128xf32>
    %119 = arith.addf %110, %118 : vector<256x128xf32>
    %c4_89 = arith.constant 4 : index
    %c0_90 = arith.constant 0 : index
    %c0_91 = arith.constant 0 : index
    %120 = vector.load %arg4[%c4_89, %c0_90, %c0_91] : memref<9x128x128xf32, #tpu.memory_space<vmem>>, vector<1x128x128xf32>
    %121 = vector.shape_cast %120 : vector<1x128x128xf32> to vector<128x128xf32>
    %cst_92 = arith.constant dense<0.000000e+00> : vector<256x128xf32>
    %122 = tpu.matmul %82, %121, %cst_92 {dimension_numbers = #tpu.dot_dimension_numbers<[1], [0], [0], [1], [0, 0, 1, 1], [], []>} : vector<256x128xf32>, vector<128x128xf32>, vector<256x128xf32> -> vector<256x128xf32>
    %123 = arith.addf %119, %122 : vector<256x128xf32>
    %c5_93 = arith.constant 5 : index
    %c0_94 = arith.constant 0 : index
    %c0_95 = arith.constant 0 : index
    %124 = vector.load %arg4[%c5_93, %c0_94, %c0_95] : memref<9x128x128xf32, #tpu.memory_space<vmem>>, vector<1x128x128xf32>
    %125 = vector.shape_cast %124 : vector<1x128x128xf32> to vector<128x128xf32>
    %cst_96 = arith.constant dense<0.000000e+00> : vector<256x128xf32>
    %126 = tpu.matmul %82, %125, %cst_96 {dimension_numbers = #tpu.dot_dimension_numbers<[1], [0], [0], [1], [0, 0, 1, 1], [], []>} : vector<256x128xf32>, vector<128x128xf32>, vector<256x128xf32> -> vector<256x128xf32>
    %c255_i32_97 = arith.constant 255 : i32
    %127 = tpu.dynamic_rotate %126 by %c255_i32_97 dim 0 : vector<256x128xf32>, i32 -> vector<256x128xf32>
    %c5_98 = arith.constant 5 : index
    %c0_99 = arith.constant 0 : index
    %c0_100 = arith.constant 0 : index
    %128 = vector.load %arg6[%c5_98, %c0_99, %c0_100] : memref<9x256x1xf32, #tpu.memory_space<vmem>>, vector<1x256x1xf32>
    %129 = vector.shape_cast %128 : vector<1x256x1xf32> to vector<256x1xf32>
    %130 = vector.broadcast %129 : vector<256x1xf32> to vector<256x128xf32>
    %131 = arith.mulf %127, %130 : vector<256x128xf32>
    %132 = arith.addf %123, %131 : vector<256x128xf32>
    %c6_101 = arith.constant 6 : index
    %c0_102 = arith.constant 0 : index
    %c0_103 = arith.constant 0 : index
    %133 = vector.load %arg4[%c6_101, %c0_102, %c0_103] : memref<9x128x128xf32, #tpu.memory_space<vmem>>, vector<1x128x128xf32>
    %134 = vector.shape_cast %133 : vector<1x128x128xf32> to vector<128x128xf32>
    %cst_104 = arith.constant dense<0.000000e+00> : vector<256x128xf32>
    %135 = tpu.matmul %82, %134, %cst_104 {dimension_numbers = #tpu.dot_dimension_numbers<[1], [0], [0], [1], [0, 0, 1, 1], [], []>} : vector<256x128xf32>, vector<128x128xf32>, vector<256x128xf32> -> vector<256x128xf32>
    %c241_i32_105 = arith.constant 241 : i32
    %136 = tpu.dynamic_rotate %135 by %c241_i32_105 dim 0 : vector<256x128xf32>, i32 -> vector<256x128xf32>
    %c6_106 = arith.constant 6 : index
    %c0_107 = arith.constant 0 : index
    %c0_108 = arith.constant 0 : index
    %137 = vector.load %arg6[%c6_106, %c0_107, %c0_108] : memref<9x256x1xf32, #tpu.memory_space<vmem>>, vector<1x256x1xf32>
    %138 = vector.shape_cast %137 : vector<1x256x1xf32> to vector<256x1xf32>
    %139 = vector.broadcast %138 : vector<256x1xf32> to vector<256x128xf32>
    %140 = arith.mulf %136, %139 : vector<256x128xf32>
    %141 = arith.addf %132, %140 : vector<256x128xf32>
    %c7_109 = arith.constant 7 : index
    %c0_110 = arith.constant 0 : index
    %c0_111 = arith.constant 0 : index
    %142 = vector.load %arg4[%c7_109, %c0_110, %c0_111] : memref<9x128x128xf32, #tpu.memory_space<vmem>>, vector<1x128x128xf32>
    %143 = vector.shape_cast %142 : vector<1x128x128xf32> to vector<128x128xf32>
    %cst_112 = arith.constant dense<0.000000e+00> : vector<256x128xf32>
    %144 = tpu.matmul %82, %143, %cst_112 {dimension_numbers = #tpu.dot_dimension_numbers<[1], [0], [0], [1], [0, 0, 1, 1], [], []>} : vector<256x128xf32>, vector<128x128xf32>, vector<256x128xf32> -> vector<256x128xf32>
    %c240_i32_113 = arith.constant 240 : i32
    %145 = tpu.dynamic_rotate %144 by %c240_i32_113 dim 0 : vector<256x128xf32>, i32 -> vector<256x128xf32>
    %c7_114 = arith.constant 7 : index
    %c0_115 = arith.constant 0 : index
    %c0_116 = arith.constant 0 : index
    %146 = vector.load %arg6[%c7_114, %c0_115, %c0_116] : memref<9x256x1xf32, #tpu.memory_space<vmem>>, vector<1x256x1xf32>
    %147 = vector.shape_cast %146 : vector<1x256x1xf32> to vector<256x1xf32>
    %148 = vector.broadcast %147 : vector<256x1xf32> to vector<256x128xf32>
    %149 = arith.mulf %145, %148 : vector<256x128xf32>
    %150 = arith.addf %141, %149 : vector<256x128xf32>
    %c8_117 = arith.constant 8 : index
    %c0_118 = arith.constant 0 : index
    %c0_119 = arith.constant 0 : index
    %151 = vector.load %arg4[%c8_117, %c0_118, %c0_119] : memref<9x128x128xf32, #tpu.memory_space<vmem>>, vector<1x128x128xf32>
    %152 = vector.shape_cast %151 : vector<1x128x128xf32> to vector<128x128xf32>
    %cst_120 = arith.constant dense<0.000000e+00> : vector<256x128xf32>
    %153 = tpu.matmul %82, %152, %cst_120 {dimension_numbers = #tpu.dot_dimension_numbers<[1], [0], [0], [1], [0, 0, 1, 1], [], []>} : vector<256x128xf32>, vector<128x128xf32>, vector<256x128xf32> -> vector<256x128xf32>
    %c239_i32_121 = arith.constant 239 : i32
    %154 = tpu.dynamic_rotate %153 by %c239_i32_121 dim 0 : vector<256x128xf32>, i32 -> vector<256x128xf32>
    %c8_122 = arith.constant 8 : index
    %c0_123 = arith.constant 0 : index
    %c0_124 = arith.constant 0 : index
    %155 = vector.load %arg6[%c8_122, %c0_123, %c0_124] : memref<9x256x1xf32, #tpu.memory_space<vmem>>, vector<1x256x1xf32>
    %156 = vector.shape_cast %155 : vector<1x256x1xf32> to vector<256x1xf32>
    %157 = vector.broadcast %156 : vector<256x1xf32> to vector<256x128xf32>
    %158 = arith.mulf %154, %157 : vector<256x128xf32>
    %159 = arith.addf %150, %158 : vector<256x128xf32>
    %c0_125 = arith.constant 0 : index
    %c0_126 = arith.constant 0 : index
    %160 = vector.load %arg5[%c0_125, %c0_126] : memref<1x128xf32, #tpu.memory_space<vmem>>, vector<1x128xf32>
    %161 = vector.broadcast %160 : vector<1x128xf32> to vector<256x128xf32>
    %162 = arith.addf %159, %161 : vector<256x128xf32>
    %163 = arith.addf %162, %0 : vector<256x128xf32>
    %c0_127 = arith.constant 0 : index
    %c0_128 = arith.constant 0 : index
    %164 = vector.load %arg7[%c0_127, %c0_128] : memref<256x128xf32, #tpu.memory_space<vmem>>, vector<256x128xf32>
    tpu.vector_store %arg7[%c0_127, %c0_128], %163 {strides = array<i32>} : memref<256x128xf32, #tpu.memory_space<vmem>>, vector<256x128xf32>,
    return
  }
  func.func @transform_0(%arg0: i32) -> (i32, i32) {
    %c0_i32 = arith.constant 0 : i32
    %c0_i32_0 = arith.constant 0 : i32
    return %arg0, %c0_i32 : i32, i32
  }
  func.func @transform_1(%arg0: i32) -> (i32, i32, i32) {
    %c0_i32 = arith.constant 0 : i32
    %c0_i32_0 = arith.constant 0 : i32
    %c0_i32_1 = arith.constant 0 : i32
    %c0_i32_2 = arith.constant 0 : i32
    return %c0_i32, %c0_i32_0, %c0_i32_1 : i32, i32, i32
  }
  func.func @transform_2(%arg0: i32) -> (i32, i32) {
    %c0_i32 = arith.constant 0 : i32
    %c0_i32_0 = arith.constant 0 : i32
    %c0_i32_1 = arith.constant 0 : i32
    return %c0_i32, %c0_i32_0 : i32, i32
  }
  func.func @transform_3(%arg0: i32) -> (i32, i32, i32) {
    %c0_i32 = arith.constant 0 : i32
    %c0_i32_0 = arith.constant 0 : i32
    %c0_i32_1 = arith.constant 0 : i32
    %c0_i32_2 = arith.constant 0 : i32
    return %c0_i32, %c0_i32_0, %c0_i32_1 : i32, i32, i32
  }
  func.func @transform_4(%arg0: i32) -> (i32, i32) {
    %c0_i32 = arith.constant 0 : i32
    %c0_i32_0 = arith.constant 0 : i32
    %c0_i32_1 = arith.constant 0 : i32
    return %c0_i32, %c0_i32_0 : i32, i32
  }
  func.func @transform_5(%arg0: i32) -> (i32, i32, i32) {
    %c0_i32 = arith.constant 0 : i32
    %c0_i32_0 = arith.constant 0 : i32
    %c0_i32_1 = arith.constant 0 : i32
    %c0_i32_2 = arith.constant 0 : i32
    return %c0_i32, %c0_i32_0, %c0_i32_1 : i32, i32, i32
  }
  func.func @transform_6(%arg0: i32) -> (i32, i32) {
    %c0_i32 = arith.constant 0 : i32
    %c0_i32_0 = arith.constant 0 : i32
    return %arg0, %c0_i32 : i32, i32
  }
}

</mosaic_0001>

<llo_original>
// kernel: resblock_forward.1
$region0: #{resblock_forward.1}
  #allocation0 [shape = 'u32[]', space=smem, size = 0x4, offset = 0x4, fixed_abs, tag = 'smem constant byte address 0x4 - core index']
  #allocation1 [shape = 'u32[144,128]{1,0:T(1,128)}', space=vmem, size = 0x12000, scoped, tag = 'internal scratch']
  %s0 = inlined_call_operand.vmem [shape: f32[512,128], index: 0, kind: input, shape index: {}]
  %s1 = inlined_call_operand.vmem [shape: f32[9,128,128], index: 1, kind: input, shape index: {}]
  %s2 = inlined_call_operand.vmem [shape: f32[1,128], index: 2, kind: input, shape index: {}]
  %s3 = inlined_call_operand.vmem [shape: f32[9,128,128], index: 3, kind: input, shape index: {}]
  %s4 = inlined_call_operand.vmem [shape: f32[1,128], index: 4, kind: input, shape index: {}]
  %s5 = inlined_call_operand.vmem [shape: f32[9,256,1], index: 5, kind: input, shape index: {}]
  %s6 = inlined_call_operand.vmem [shape: f32[512,128], index: 6, kind: output, shape index: {}]
  %s7 = sld [smem:[#allocation0]]
  $region57: #{resblock_forward.1} parent=0
    _
  %s9 = ssub.s32 1, %s7
  %s10 = scalar_select 0, %s9, %s7
  loop: start=0, step=1, limit=4
  $region2: #{resblock_forward.1} parent=0 // loop_pre_header
    _
  $region3: #{resblock_forward.1} parent=0 // loop_header
    %s12 = sphi 0, %s16
    %p13 = scmp.ge.s32.totalorder %s12, 4
    %s22 = sphi 0, %s24
    %s25 = sphi 0, %s22
    %s26 = sphi 0, %s25
    %s42 = sphi 0, %s26
    %s46 = sphi 0, %s46
    %s48 = sphi 0, %s46
    %s49 = sphi 0, %s48
    %s63 = sphi 0, %s49
    %s67 = sphi 0, %s67
    %s69 = sphi 0, %s67
    %s70 = sphi 0, %s69
    %s84 = sphi 0, %s70
    %s88 = sphi 0, %s88
    %s90 = sphi 0, %s88
    %s91 = sphi 0, %s90
    %s105 = sphi 0, %s91
    %s109 = sphi 0, %s109
    %s111 = sphi 0, %s109
    %s112 = sphi 0, %s111
    %s126 = sphi 0, %s112
    %s130 = sphi 0, %s130
    %s132 = sphi 0, %s130
    %s133 = sphi 0, %s132
    %s147 = sphi 0, %s133
    %s153 = sphi 0, %s155
    %s156 = sphi 0, %s153
    %s157 = sphi 0, %s156
    %s173 = sphi 0, %s157
  $region4: #{resblock_forward.1} parent=0 // loop_header_branch
    %15 = sbr.rel (%p13) target = $region8
  $region5: #{resblock_forward.1} parent=0 // loop_body
    %s17 = ssub.s32 %s12, 1
    %s18 = ssub.s32 %s12, 2
    %s19 = sadd.s32 %s12, 1
    %s20 = ssub.s32 %s12, %s19
    %p21 = scmp.eq.s32.totalorder %s20, 0
    %s23 = sadd.s32 %s22, 1
    %s24 = scalar_select %p21, %s22, %s23
    %p27 = pneg %p21
    %p28 = scmp.eq.s32.totalorder %s12, 1
    %p29 = por %p27, %p28
    %p30 = scmp.ne.s32.totalorder %s22, %s25
    %p31 = scmp.eq.s32.totalorder %s12, 0
    %p32 = por %p30, %p31
    %p33 = scmp.ne.s32.totalorder %s22, %s25
    %p34 = scmp.eq.s32.totalorder %s17, 1
    %p35 = por %p33, %p34
    %p36 = scmp.ne.s32.totalorder %s25, %s26
    %p37 = scmp.eq.s32.totalorder %s17, 0
    %p38 = por %p36, %p37
    %p39 = scmp.ne.s32.totalorder %s25, %s26
    %p40 = scmp.eq.s32.totalorder %s18, 1
    %p41 = por %p39, %p40
    %p43 = scmp.ne.s32.totalorder %s26, %s42
    %p44 = scmp.eq.s32.totalorder %s18, 0
    %p45 = por %p43, %p44
    %s47 = sadd.s32 %s46, 1
    %p50 = scmp.eq.s32.totalorder %s12, 1
    %p51 = scmp.ne.s32.totalorder %s46, %s48
    %p52 = scmp.eq.s32.totalorder %s12, 0
    %p53 = por %p51, %p52
    %p54 = scmp.ne.s32.totalorder %s46, %s48
    %p55 = scmp.eq.s32.totalorder %s17, 1
    %p56 = por %p54, %p55
    %p57 = scmp.ne.s32.totalorder %s48, %s49
    %p58 = scmp.eq.s32.totalorder %s17, 0
    %p59 = por %p57, %p58
    %p60 = scmp.ne.s32.totalorder %s48, %s49
    %p61 = scmp.eq.s32.totalorder %s18, 1
    %p62 = por %p60, %p61
    %p64 = scmp.ne.s32.totalorder %s49, %s63
    %p65 = scmp.eq.s32.totalorder %s18, 0
    %p66 = por %p64, %p65
    %s68 = sadd.s32 %s67, 1
    %p71 = scmp.eq.s32.totalorder %s12, 1
    %p72 = scmp.ne.s32.totalorder %s67, %s69
    %p73 = scmp.eq.s32.totalorder %s12, 0
    %p74 = por %p72, %p73
    %p75 = scmp.ne.s32.totalorder %s67, %s69
    %p76 = scmp.eq.s32.totalorder %s17, 1
    %p77 = por %p75, %p76
    %p78 = scmp.ne.s32.totalorder %s69, %s70
    %p79 = scmp.eq.s32.totalorder %s17, 0
    %p80 = por %p78, %p79
    %p81 = scmp.ne.s32.totalorder %s69, %s70
    %p82 = scmp.eq.s32.totalorder %s18, 1
    %p83 = por %p81, %p82
    %p85 = scmp.ne.s32.totalorder %s70, %s84
    %p86 = scmp.eq.s32.totalorder %s18, 0
    %p87 = por %p85, %p86
    %s89 = sadd.s32 %s88, 1
    %p92 = scmp.eq.s32.totalorder %s12, 1
    %p93 = scmp.ne.s32.totalorder %s88, %s90
    %p94 = scmp.eq.s32.totalorder %s12, 0
    %p95 = por %p93, %p94
    %p96 = scmp.ne.s32.totalorder %s88, %s90
    %p97 = scmp.eq.s32.totalorder %s17, 1
    %p98 = por %p96, %p97
    %p99 = scmp.ne.s32.totalorder %s90, %s91
    %p100 = scmp.eq.s32.totalorder %s17, 0
    %p101 = por %p99, %p100
    %p102 = scmp.ne.s32.totalorder %s90, %s91
    %p103 = scmp.eq.s32.totalorder %s18, 1
    %p104 = por %p102, %p103
    %p106 = scmp.ne.s32.totalorder %s91, %s105
    %p107 = scmp.eq.s32.totalorder %s18, 0
    %p108 = por %p106, %p107
    %s110 = sadd.s32 %s109, 1
    %p113 = scmp.eq.s32.totalorder %s12, 1
    %p114 = scmp.ne.s32.totalorder %s109, %s111
    %p115 = scmp.eq.s32.totalorder %s12, 0
    %p116 = por %p114, %p115
    %p117 = scmp.ne.s32.totalorder %s109, %s111
    %p118 = scmp.eq.s32.totalorder %s17, 1
    %p119 = por %p117, %p118
    %p120 = scmp.ne.s32.totalorder %s111, %s112
    %p121 = scmp.eq.s32.totalorder %s17, 0
    %p122 = por %p120, %p121
    %p123 = scmp.ne.s32.totalorder %s111, %s112
    %p124 = scmp.eq.s32.totalorder %s18, 1
    %p125 = por %p123, %p124
    %p127 = scmp.ne.s32.totalorder %s112, %s126
    %p128 = scmp.eq.s32.totalorder %s18, 0
    %p129 = por %p127, %p128
    %s131 = sadd.s32 %s130, 1
    %p134 = scmp.eq.s32.totalorder %s12, 1
    %p135 = scmp.ne.s32.totalorder %s130, %s132
    %p136 = scmp.eq.s32.totalorder %s12, 0
    %p137 = por %p135, %p136
    %p138 = scmp.ne.s32.totalorder %s130, %s132
    %p139 = scmp.eq.s32.totalorder %s17, 1
    %p140 = por %p138, %p139
    %p141 = scmp.ne.s32.totalorder %s132, %s133
    %p142 = scmp.eq.s32.totalorder %s17, 0
    %p143 = por %p141, %p142
    %p144 = scmp.ne.s32.totalorder %s132, %s133
    %p145 = scmp.eq.s32.totalorder %s18, 1
    %p146 = por %p144, %p145
    %p148 = scmp.ne.s32.totalorder %s133, %s147
    %p149 = scmp.eq.s32.totalorder %s18, 0
    %p150 = por %p148, %p149
    %s151 = ssub.s32 %s12, %s19
    %p152 = scmp.eq.s32.totalorder %s151, 0
    %s154 = sadd.s32 %s153, 1
    %s155 = scalar_select %p152, %s153, %s154
    %p158 = pneg %p152
    %p159 = scmp.eq.s32.totalorder %s12, 1
    %p160 = por %p158, %p159
    %p161 = scmp.ne.s32.totalorder %s153, %s156
    %p162 = scmp.eq.s32.totalorder %s12, 0
    %p163 = por %p161, %p162
    %p164 = scmp.ne.s32.totalorder %s153, %s156
    %p165 = scmp.eq.s32.totalorder %s17, 1
    %p166 = por %p164, %p165
    %p167 = scmp.ne.s32.totalorder %s156, %s157
    %p168 = scmp.eq.s32.totalorder %s17, 0
    %p169 = por %p167, %p168
    %p170 = scmp.ne.s32.totalorder %s156, %s157
    %p171 = scmp.eq.s32.totalorder %s18, 1
    %p172 = por %p170, %p171
    %p174 = scmp.ne.s32.totalorder %s157, %s173
    %p175 = scmp.eq.s32.totalorder %s18, 0
    %p176 = por %p174, %p175
    %p177 = scmp.le.s32.totalorder 1, %s12
    %p178 = scmp.lt.s32.totalorder %s12, 3
    %p179 = pnand %p177, %p178
    %p180 = pneg %p179
    // Predicated region
    $region9: #{resblock_forward.1} parent=5 // pred_check
      _
    $region10: #{resblock_forward.1} parent=5 // pred_check_branch
      %182 = sbr.rel (%p179) target = $region12
    $region11: #{resblock_forward.1} parent=5 // pred_region
      %s183 = ssub.s32 %s12, 1
      // Predicated region
      $region13: #{resblock_forward.1} parent=11 // pred_check
        %p184 = pneg %p59
      $region14: #{resblock_forward.1} parent=11 // pred_check_branch
        %186 = sbr.rel (%p184) target = $region16
      $region15: #{resblock_forward.1} parent=11 // pred_region
        _
      $region16: #{resblock_forward.1} parent=11 // pred_fallthru
        _
      // Predicated region
      $region17: #{resblock_forward.1} parent=11 // pred_check
        %p187 = pneg %p80
      $region18: #{resblock_forward.1} parent=11 // pred_check_branch
        %189 = sbr.rel (%p187) target = $region20
      $region19: #{resblock_forward.1} parent=11 // pred_region
        _
      $region20: #{resblock_forward.1} parent=11 // pred_fallthru
        _
      // Predicated region
      $region21: #{resblock_forward.1} parent=11 // pred_check
        %p190 = pneg %p101
      $region22: #{resblock_forward.1} parent=11 // pred_check_branch
        %192 = sbr.rel (%p190) target = $region24
      $region23: #{resblock_forward.1} parent=11 // pred_region
        _
      $region24: #{resblock_forward.1} parent=11 // pred_fallthru
        _
      // Predicated region
      $region25: #{resblock_forward.1} parent=11 // pred_check
        %p193 = pneg %p122
      $region26: #{resblock_forward.1} parent=11 // pred_check_branch
        %195 = sbr.rel (%p193) target = $region28
      $region27: #{resblock_forward.1} parent=11 // pred_region
        _
      $region28: #{resblock_forward.1} parent=11 // pred_fallthru
        _
      // Predicated region
      $region29: #{resblock_forward.1} parent=11 // pred_check
        %p196 = pneg %p143
      $region30: #{resblock_forward.1} parent=11 // pred_check_branch
        %198 = sbr.rel (%p196) target = $region32
      $region31: #{resblock_forward.1} parent=11 // pred_region
        _
      $region32: #{resblock_forward.1} parent=11 // pred_fallthru
        _
    $region12: #{resblock_forward.1} parent=5 // pred_fallthru
      _
    %p199 = scmp.lt.s32.totalorder %s12, 2
    // Predicated region
    $region33: #{resblock_forward.1} parent=5 // pred_check
      %p200 = pneg %p199
    $region34: #{resblock_forward.1} parent=5 // pred_check_branch
      %202 = sbr.rel (%p200) target = $region36
    $region35: #{resblock_forward.1} parent=5 // pred_region
      // Predicated region
      $region37: #{resblock_forward.1} parent=35 // pred_check
        %p203 = pneg %p32
      $region38: #{resblock_forward.1} parent=35 // pred_check_branch
        %205 = sbr.rel (%p203) target = $region40
      $region39: #{resblock_forward.1} parent=35 // pred_region
        %s206 = smul.u32 32, %s12
        %p207 = scmp.lt.s32.totalorder %s206, 63
        %s208 = scalar_select %p207, %s206, 63
        %s209 = smul.addr %s208, 8
        %s210 = scalar_lea.vmem %s0, %s209
        %s211 = smul.u32 32, %s12
      $region40: #{resblock_forward.1} parent=35 // pred_fallthru
        _
    $region36: #{resblock_forward.1} parent=5 // pred_fallthru
      _
    %p212 = scmp.le.s32.totalorder 1, %s12
    %p213 = scmp.lt.s32.totalorder %s12, 3
    %p214 = pnand %p212, %p213
    %p215 = pneg %p214
    // Predicated region
    $region41: #{resblock_forward.1} parent=5 // pred_check
      _
    $region42: #{resblock_forward.1} parent=5 // pred_check_branch
      %217 = sbr.rel (%p214) target = $region44
    $region43: #{resblock_forward.1} parent=5 // pred_region
      %s218 = ssub.s32 %s12, 1
      %s219 = smul.u32 32, %s17
      %p220 = scmp.lt.s32.totalorder %s219, 63
      %s221 = scalar_select %p220, %s219, 63
      %s222 = smul.addr %s221, 8
      %s223 = scalar_lea.vmem %s0, %s222
      %p224 = pneg %p38
      %p225 = pneg %p35
      %p226 = pneg %p59
      %p227 = pneg %p56
      %p228 = pneg %p80
      %p229 = pneg %p77
      %p230 = pneg %p101
      %p231 = pneg %p98
      %p232 = pneg %p122
      %p233 = pneg %p119
      %p234 = pneg %p143
      %p235 = pneg %p140
      %p236 = pneg %p169
      %p237 = pneg %p166
      %s238 = smul.u32 32, %s17
      %p239 = scmp.lt.s32.totalorder %s238, 63
      %s240 = scalar_select %p239, %s238, 63
      %s241 = smul.addr %s240, 8
      %s242 = scalar_lea.vmem %s6, %s241
      %s243 = smul.u32 32, %s17
      %p244 = scmp.lt.s32.totalorder %s243, 63
      %s245 = scalar_select %p244, %s243, 63
      %s246 = smul.addr %s245, 8
      %s247 = scalar_lea.vmem %s0, %s246
      %s248 = smul.u32 32, %s17
      %s249 = smul.u32 32, %s17
      %p250 = scmp.lt.s32.totalorder %s249, 63
      %s251 = scalar_select %p250, %s249, 63
      %s252 = smul.addr %s251, 8
      %s253 = scalar_lea.vmem %s6, %s252
      %s254 = smul.u32 32, %s17
      %v255 = vld [vmem:[%s247] sm:$0xff]
      %v256 = vld [vmem:[%s247 + $0x8] sm:$0xff]
      %v257 = vld [vmem:[%s247 + $0x10] sm:$0xff]
      %v258 = vld [vmem:[%s247 + $0x18] sm:$0xff]
      %v259 = vld [vmem:[%s247 + $0x20] sm:$0xff]
      %v260 = vld [vmem:[%s247 + $0x28] sm:$0xff]
      %v261 = vld [vmem:[%s247 + $0x30] sm:$0xff]
      %v262 = vld [vmem:[%s247 + $0x38] sm:$0xff]
      %v263 = vld [vmem:[%s247 + $0x40] sm:$0xff]
      %v264 = vld [vmem:[%s247 + $0x48] sm:$0xff]
      %v265 = vld [vmem:[%s247 + $0x50] sm:$0xff]
      %v266 = vld [vmem:[%s247 + $0x58] sm:$0xff]
      %v267 = vld [vmem:[%s247 + $0x60] sm:$0xff]
      %v268 = vld [vmem:[%s247 + $0x68] sm:$0xff]
      %v269 = vld [vmem:[%s247 + $0x70] sm:$0xff]
      %v270 = vld [vmem:[%s247 + $0x78] sm:$0xff]
      %v271 = vld [vmem:[%s247 + $0x80] sm:$0xff]
      %v272 = vld [vmem:[%s247 + $0x88] sm:$0xff]
      %v273 = vld [vmem:[%s247 + $0x90] sm:$0xff]
      %v274 = vld [vmem:[%s247 + $0x98] sm:$0xff]
      %v275 = vld [vmem:[%s247 + $0xa0] sm:$0xff]
      %v276 = vld [vmem:[%s247 + $0xa8] sm:$0xff]
      %v277 = vld [vmem:[%s247 + $0xb0] sm:$0xff]
      %v278 = vld [vmem:[%s247 + $0xb8] sm:$0xff]
      %v279 = vld [vmem:[%s247 + $0xc0] sm:$0xff]
      %v280 = vld [vmem:[%s247 + $0xc8] sm:$0xff]
      %v281 = vld [vmem:[%s247 + $0xd0] sm:$0xff]
      %v282 = vld [vmem:[%s247 + $0xd8] sm:$0xff]
      %v283 = vld [vmem:[%s247 + $0xe0] sm:$0xff]
      %v284 = vld [vmem:[%s247 + $0xe8] sm:$0xff]
      %v285 = vld [vmem:[%s247 + $0xf0] sm:$0xff]
      %v286 = vld [vmem:[%s247 + $0xf8] sm:$0xff]
      %v287 = vld [vmem:[%s1] sm:$0xff]
      %v288 = vld [vmem:[%s1 + $0x8] sm:$0xff]
      %v289 = vld [vmem:[%s1 + $0x10] sm:$0xff]
      %v290 = vld [vmem:[%s1 + $0x18] sm:$0xff]
      %v291 = vld [vmem:[%s1 + $0x20] sm:$0xff]
      %v292 = vld [vmem:[%s1 + $0x28] sm:$0xff]
      %v293 = vld [vmem:[%s1 + $0x30] sm:$0xff]
      %v294 = vld [vmem:[%s1 + $0x38] sm:$0xff]
      %v295 = vld [vmem:[%s1 + $0x40] sm:$0xff]
      %v296 = vld [vmem:[%s1 + $0x48] sm:$0xff]
      %v297 = vld [vmem:[%s1 + $0x50] sm:$0xff]
      %v298 = vld [vmem:[%s1 + $0x58] sm:$0xff]
      %v299 = vld [vmem:[%s1 + $0x60] sm:$0xff]
      %v300 = vld [vmem:[%s1 + $0x68] sm:$0xff]
      %v301 = vld [vmem:[%s1 + $0x70] sm:$0xff]
      %v302 = vld [vmem:[%s1 + $0x78] sm:$0xff]
      %303 = vmatprep.subr.mxu0 0.0
      %304 = vmatpush1.msra.mxu0 %v302
      %305 = vmatprep.subr.mxu0 0.0
      %306 = vmatpush1.msra.mxu0 %v301
      %307 = vmatprep.subr.mxu0 0.0
      %308 = vmatpush1.msra.mxu0 %v300
      %309 = vmatprep.subr.mxu0 0.0
      %310 = vmatpush1.msra.mxu0 %v299
      %311 = vmatprep.subr.mxu0 0.0
      %312 = vmatpush1.msra.mxu0 %v298
      %313 = vmatprep.subr.mxu0 0.0
      %314 = vmatpush1.msra.mxu0 %v297
      %315 = vmatprep.subr.mxu0 0.0
      %316 = vmatpush1.msra.mxu0 %v296
      %317 = vmatprep.subr.mxu0 0.0
      %318 = vmatpush1.msra.mxu0 %v295
      %319 = vmatprep.subr.mxu0 0.0
      %320 = vmatpush1.msra.mxu0 %v294
      %321 = vmatprep.subr.mxu0 0.0
      %322 = vmatpush1.msra.mxu0 %v293
      %323 = vmatprep.subr.mxu0 0.0
      %324 = vmatpush1.msra.mxu0 %v292
      %325 = vmatprep.subr.mxu0 0.0
      %326 = vmatpush1.msra.mxu0 %v291
      %327 = vmatprep.subr.mxu0 0.0
      %328 = vmatpush1.msra.mxu0 %v290
      %329 = vmatprep.subr.mxu0 0.0
      %330 = vmatpush1.msra.mxu0 %v289
      %331 = vmatprep.subr.mxu0 0.0
      %332 = vmatpush1.msra.mxu0 %v288
      %333 = vmatprep.subr.mxu0 0.0
      %334 = vmatpush1.msra.mxu0 %v287
      %335 = vmatprep.subr.mxu0 0.0
      %336 = vmatpush2.msra.mxu0 0.0
      %337 = vmatprep.subr.mxu0 0.0
      %338 = vmatpush2.msra.mxu0 0.0
      %339 = vmatprep.subr.mxu0 0.0
      %340 = vmatpush2.msra.mxu0 0.0
      %341 = vmatprep.subr.mxu0 0.0
      %342 = vmatpush2.msra.mxu0 0.0
      %343 = vmatprep.subr.mxu0 0.0
      %344 = vmatpush2.msra.mxu0 0.0
      %345 = vmatprep.subr.mxu0 0.0
      %346 = vmatpush2.msra.mxu0 0.0
      %347 = vmatprep.subr.mxu0 0.0
      %348 = vmatpush2.msra.mxu0 0.0
      %349 = vmatprep.subr.mxu0 0.0
      %350 = vmatpush2.msra.mxu0 0.0
      %351 = vmatprep.subr.mxu0 0.0
      %352 = vmatpush2.msra.mxu0 0.0
      %353 = vmatprep.subr.mxu0 0.0
      %354 = vmatpush2.msra.mxu0 0.0
      %355 = vmatprep.subr.mxu0 0.0
      %356 = vmatpush2.msra.mxu0 0.0
      %357 = vmatprep.subr.mxu0 0.0
      %358 = vmatpush2.msra.mxu0 0.0
      %359 = vmatprep.subr.mxu0 0.0
      %360 = vmatpush2.msra.mxu0 0.0
      %361 = vmatprep.subr.mxu0 0.0
      %362 = vmatpush2.msra.mxu0 0.0
      %363 = vmatprep.subr.mxu0 0.0
      %364 = vmatpush2.msra.mxu0 0.0
      %365 = vmatprep.subr.mxu0 0.0
      %366 = vmatpush2.msra.mxu0 0.0
      %367 = vmatprep.mubr.f32.mxu0 0.0
      %368 = vmatmul.mubr.f32.gmra.mxu0 %v255
      %v369 = vpop.f32.mrf.mxu0
      %v370 = vadd.f32 0.0, %v369
      %v371 = vpop.f32.mrf.mxu0
      %372 = vmatprep.mubr.f32.mxu0 0.0
      %373 = vmatmul.mubr.f32.gmra.mxu0 %v256
      %v374 = vpop.f32.mrf.mxu0
      %v375 = vadd.f32 0.0, %v374
      %v376 = vpop.f32.mrf.mxu0
      %377 = vmatprep.mubr.f32.mxu0 0.0
      %378 = vmatmul.mubr.f32.gmra.mxu0 %v257
      %v379 = vpop.f32.mrf.mxu0
      %v380 = vadd.f32 0.0, %v379
      %v381 = vpop.f32.mrf.mxu0
      %382 = vmatprep.mubr.f32.mxu0 0.0
      %383 = vmatmul.mubr.f32.gmra.mxu0 %v258
      %v384 = vpop.f32.mrf.mxu0
      %v385 = vadd.f32 0.0, %v384
      %v386 = vpop.f32.mrf.mxu0
      %387 = vmatprep.mubr.f32.mxu0 0.0
      %388 = vmatmul.mubr.f32.gmra.mxu0 %v259
      %v389 = vpop.f32.mrf.mxu0
      %v390 = vadd.f32 0.0, %v389
      %v391 = vpop.f32.mrf.mxu0
      %392 = vmatprep.mubr.f32.mxu0 0.0
      %393 = vmatmul.mubr.f32.gmra.mxu0 %v260
      %v394 = vpop.f32.mrf.mxu0
      %v395 = vadd.f32 0.0, %v394
      %v396 = vpop.f32.mrf.mxu0
      %397 = vmatprep.mubr.f32.mxu0 0.0
      %398 = vmatmul.mubr.f32.gmra.mxu0 %v261
      %v399 = vpop.f32.mrf.mxu0
      %v400 = vadd.f32 0.0, %v399
      %v401 = vpop.f32.mrf.mxu0
      %402 = vmatprep.mubr.f32.mxu0 0.0
      %403 = vmatmul.mubr.f32.gmra.mxu0 %v262
      %v404 = vpop.f32.mrf.mxu0
      %v405 = vadd.f32 0.0, %v404
      %v406 = vpop.f32.mrf.mxu0
      %407 = vmatprep.mubr.f32.mxu0 0.0
      %408 = vmatmul.mubr.f32.gmra.mxu0 %v263
      %v409 = vpop.f32.mrf.mxu0
      %v410 = vadd.f32 0.0, %v409
      %v411 = vpop.f32.mrf.mxu0
      %412 = vmatprep.mubr.f32.mxu0 0.0
      %413 = vmatmul.mubr.f32.gmra.mxu0 %v264
      %v414 = vpop.f32.mrf.mxu0
      %v415 = vadd.f32 0.0, %v414
      %v416 = vpop.f32.mrf.mxu0
      %417 = vmatprep.mubr.f32.mxu0 0.0
      %418 = vmatmul.mubr.f32.gmra.mxu0 %v265
      %v419 = vpop.f32.mrf.mxu0
      %v420 = vadd.f32 0.0, %v419
      %v421 = vpop.f32.mrf.mxu0
      %422 = vmatprep.mubr.f32.mxu0 0.0
      %423 = vmatmul.mubr.f32.gmra.mxu0 %v266
      %v424 = vpop.f32.mrf.mxu0
      %v425 = vadd.f32 0.0, %v424
      %v426 = vpop.f32.mrf.mxu0
      %427 = vmatprep.mubr.f32.mxu0 0.0
      %428 = vmatmul.mubr.f32.gmra.mxu0 %v267
      %v429 = vpop.f32.mrf.mxu0
      %v430 = vadd.f32 0.0, %v429
      %v431 = vpop.f32.mrf.mxu0
      %432 = vmatprep.mubr.f32.mxu0 0.0
      %433 = vmatmul.mubr.f32.gmra.mxu0 %v268
      %v434 = vpop.f32.mrf.mxu0
      %v435 = vadd.f32 0.0, %v434
      %v436 = vpop.f32.mrf.mxu0
      %437 = vmatprep.mubr.f32.mxu0 0.0
      %438 = vmatmul.mubr.f32.gmra.mxu0 %v269
      %v439 = vpop.f32.mrf.mxu0
      %v440 = vadd.f32 0.0, %v439
      %v441 = vpop.f32.mrf.mxu0
      %442 = vmatprep.mubr.f32.mxu0 0.0
      %443 = vmatmul.mubr.f32.gmra.mxu0 %v270
      %v444 = vpop.f32.mrf.mxu0
      %v445 = vadd.f32 0.0, %v444
      %v446 = vpop.f32.mrf.mxu0
      %447 = vmatprep.mubr.f32.mxu0 0.0
      %448 = vmatmul.mubr.f32.gmra.mxu0 %v271
      %v449 = vpop.f32.mrf.mxu0
      %v450 = vadd.f32 0.0, %v449
      %v451 = vpop.f32.mrf.mxu0
      %452 = vmatprep.mubr.f32.mxu0 0.0
      %453 = vmatmul.mubr.f32.gmra.mxu0 %v272
      %v454 = vpop.f32.mrf.mxu0
      %v455 = vadd.f32 0.0, %v454
      %v456 = vpop.f32.mrf.mxu0
      %457 = vmatprep.mubr.f32.mxu0 0.0
      %458 = vmatmul.mubr.f32.gmra.mxu0 %v273
      %v459 = vpop.f32.mrf.mxu0
      %v460 = vadd.f32 0.0, %v459
      %v461 = vpop.f32.mrf.mxu0
      %462 = vmatprep.mubr.f32.mxu0 0.0
      %463 = vmatmul.mubr.f32.gmra.mxu0 %v274
      %v464 = vpop.f32.mrf.mxu0
      %v465 = vadd.f32 0.0, %v464
      %v466 = vpop.f32.mrf.mxu0
      %467 = vmatprep.mubr.f32.mxu0 0.0
      %468 = vmatmul.mubr.f32.gmra.mxu0 %v275
      %v469 = vpop.f32.mrf.mxu0
      %v470 = vadd.f32 0.0, %v469
      %v471 = vpop.f32.mrf.mxu0
      %472 = vmatprep.mubr.f32.mxu0 0.0
      %473 = vmatmul.mubr.f32.gmra.mxu0 %v276
      %v474 = vpop.f32.mrf.mxu0
      %v475 = vadd.f32 0.0, %v474
      %v476 = vpop.f32.mrf.mxu0
      %477 = vmatprep.mubr.f32.mxu0 0.0
      %478 = vmatmul.mubr.f32.gmra.mxu0 %v277
      %v479 = vpop.f32.mrf.mxu0
      %v480 = vadd.f32 0.0, %v479
      %v481 = vpop.f32.mrf.mxu0
      %482 = vmatprep.mubr.f32.mxu0 0.0
      %483 = vmatmul.mubr.f32.gmra.mxu0 %v278
      %v484 = vpop.f32.mrf.mxu0
      %v485 = vadd.f32 0.0, %v484
      %v486 = vpop.f32.mrf.mxu0
      %487 = vmatprep.mubr.f32.mxu0 0.0
      %488 = vmatmul.mubr.f32.gmra.mxu0 %v279
      %v489 = vpop.f32.mrf.mxu0
      %v490 = vadd.f32 0.0, %v489
      %v491 = vpop.f32.mrf.mxu0
      %492 = vmatprep.mubr.f32.mxu0 0.0
      %493 = vmatmul.mubr.f32.gmra.mxu0 %v280
      %v494 = vpop.f32.mrf.mxu0
      %v495 = vadd.f32 0.0, %v494
      %v496 = vpop.f32.mrf.mxu0
      %497 = vmatprep.mubr.f32.mxu0 0.0
      %498 = vmatmul.mubr.f32.gmra.mxu0 %v281
      %v499 = vpop.f32.mrf.mxu0
      %v500 = vadd.f32 0.0, %v499
      %v501 = vpop.f32.mrf.mxu0
      %502 = vmatprep.mubr.f32.mxu0 0.0
      %503 = vmatmul.mubr.f32.gmra.mxu0 %v282
      %v504 = vpop.f32.mrf.mxu0
      %v505 = vadd.f32 0.0, %v504
      %v506 = vpop.f32.mrf.mxu0
      %507 = vmatprep.mubr.f32.mxu0 0.0
      %508 = vmatmul.mubr.f32.gmra.mxu0 %v283
      %v509 = vpop.f32.mrf.mxu0
      %v510 = vadd.f32 0.0, %v509
      %v511 = vpop.f32.mrf.mxu0
      %512 = vmatprep.mubr.f32.mxu0 0.0
      %513 = vmatmul.mubr.f32.gmra.mxu0 %v284
      %v514 = vpop.f32.mrf.mxu0
      %v515 = vadd.f32 0.0, %v514
      %v516 = vpop.f32.mrf.mxu0
      %517 = vmatprep.mubr.f32.mxu0 0.0
      %518 = vmatmul.mubr.f32.gmra.mxu0 %v285
      %v519 = vpop.f32.mrf.mxu0
      %v520 = vadd.f32 0.0, %v519
      %v521 = vpop.f32.mrf.mxu0
      %522 = vmatprep.mubr.f32.mxu0 0.0
      %523 = vmatmul.mubr.f32.gmra.mxu0 %v286
      %v524 = vpop.f32.mrf.mxu0
      %v525 = vadd.f32 0.0, %v524
      %v526 = vpop.f32.mrf.mxu0
      %527 = vdwg.mxu0
      %v528 = vrot.slane %v370, 7
      %v529 = vrot.slane %v375, 7
      %v530 = vrot.slane %v380, 7
      %v531 = vrot.slane %v385, 7
      %v532 = vrot.slane %v390, 7
      %v533 = vrot.slane %v395, 7
      %v534 = vrot.slane %v400, 7
      %v535 = vrot.slane %v405, 7
      %v536 = vrot.slane %v410, 7
      %v537 = vrot.slane %v415, 7
      %v538 = vrot.slane %v420, 7
      %v539 = vrot.slane %v425, 7
      %v540 = vrot.slane %v430, 7
      %v541 = vrot.slane %v435, 7
      %v542 = vrot.slane %v440, 7
      %v543 = vrot.slane %v445, 7
      %v544 = vrot.slane %v450, 7
      %v545 = vrot.slane %v455, 7
      %v546 = vrot.slane %v460, 7
      %v547 = vrot.slane %v465, 7
      %v548 = vrot.slane %v470, 7
      %v549 = vrot.slane %v475, 7
      %v550 = vrot.slane %v480, 7
      %v551 = vrot.slane %v485, 7
      %v552 = vrot.slane %v490, 7
      %v553 = vrot.slane %v495, 7
      %v554 = vrot.slane %v500, 7
      %v555 = vrot.slane %v505, 7
      %v556 = vrot.slane %v510, 7
      %v557 = vrot.slane %v515, 7
      %v558 = vrot.slane %v520, 7
      %v559 = vrot.slane %v525, 7
      %v560 = vlaneseq
      %v561 = vshrl.u32 %v560, 7
      %vm562 = vcmp.lt.s32.totalorder %v561, 1
      %v563 = vsel %vm562, %v558, %v559
      %v564 = vsel %vm562, %v557, %v558
      %v565 = vsel %vm562, %v556, %v557
      %v566 = vsel %vm562, %v555, %v556
      %v567 = vsel %vm562, %v554, %v555
      %v568 = vsel %vm562, %v553, %v554
      %v569 = vsel %vm562, %v552, %v553
      %v570 = vsel %vm562, %v551, %v552
      %v571 = vsel %vm562, %v550, %v551
      %v572 = vsel %vm562, %v549, %v550
      %v573 = vsel %vm562, %v548, %v549
      %v574 = vsel %vm562, %v547, %v548
      %v575 = vsel %vm562, %v546, %v547
      %v576 = vsel %vm562, %v545, %v546
      %v577 = vsel %vm562, %v544, %v545
      %v578 = vsel %vm562, %v543, %v544
      %v579 = vsel %vm562, %v542, %v543
      %v580 = vsel %vm562, %v541, %v542
      %v581 = vsel %vm562, %v540, %v541
      %v582 = vsel %vm562, %v539, %v540
      %v583 = vsel %vm562, %v538, %v539
      %v584 = vsel %vm562, %v537, %v538
      %v585 = vsel %vm562, %v536, %v537
      %v586 = vsel %vm562, %v535, %v536
      %v587 = vsel %vm562, %v534, %v535
      %v588 = vsel %vm562, %v533, %v534
      %v589 = vsel %vm562, %v532, %v533
      %v590 = vsel %vm562, %v531, %v532
      %v591 = vsel %vm562, %v530, %v531
      %v592 = vsel %vm562, %v529, %v530
      %v593 = vsel %vm562, %v528, %v529
      %v594 = vsel %vm562, %v559, %v528
      %v595 = vld [vmem:[%s5] sm:$0xff]
      %v596 = vld [vmem:[%s5 + $0x8] sm:$0xff]
      %v597 = vld [vmem:[%s5 + $0x10] sm:$0xff]
      %v598 = vld [vmem:[%s5 + $0x18] sm:$0xff]
      %v599 = vld [vmem:[%s5 + $0x20] sm:$0xff]
      %v600 = vld [vmem:[%s5 + $0x28] sm:$0xff]
      %v601 = vld [vmem:[%s5 + $0x30] sm:$0xff]
      %v602 = vld [vmem:[%s5 + $0x38] sm:$0xff]
      %v603 = vld [vmem:[%s5 + $0x40] sm:$0xff]
      %v604 = vld [vmem:[%s5 + $0x48] sm:$0xff]
      %v605 = vld [vmem:[%s5 + $0x50] sm:$0xff]
      %v606 = vld [vmem:[%s5 + $0x58] sm:$0xff]
      %v607 = vld [vmem:[%s5 + $0x60] sm:$0xff]
      %v608 = vld [vmem:[%s5 + $0x68] sm:$0xff]
      %v609 = vld [vmem:[%s5 + $0x70] sm:$0xff]
      %v610 = vld [vmem:[%s5 + $0x78] sm:$0xff]
      %v611 = vld [vmem:[%s5 + $0x80] sm:$0xff]
      %v612 = vld [vmem:[%s5 + $0x88] sm:$0xff]
      %v613 = vld [vmem:[%s5 + $0x90] sm:$0xff]
      %v614 = vld [vmem:[%s5 + $0x98] sm:$0xff]
      %v615 = vld [vmem:[%s5 + $0xa0] sm:$0xff]
      %v616 = vld [vmem:[%s5 + $0xa8] sm:$0xff]
      %v617 = vld [vmem:[%s5 + $0xb0] sm:$0xff]
      %v618 = vld [vmem:[%s5 + $0xb8] sm:$0xff]
      %v619 = vld [vmem:[%s5 + $0xc0] sm:$0xff]
      %v620 = vld [vmem:[%s5 + $0xc8] sm:$0xff]
      %v621 = vld [vmem:[%s5 + $0xd0] sm:$0xff]
      %v622 = vld [vmem:[%s5 + $0xd8] sm:$0xff]
      %v623 = vld [vmem:[%s5 + $0xe0] sm:$0xff]
      %v624 = vld [vmem:[%s5 + $0xe8] sm:$0xff]
      %v625 = vld [vmem:[%s5 + $0xf0] sm:$0xff]
      %v626 = vld [vmem:[%s5 + $0xf8] sm:$0xff]
      %628 = vset.pattern.permute.xlu0 0
      %629 = vperm.xlu0 %628, %v595
      %v630 = vpop.permute.xlu0 %629
      %633 = vset.pattern.permute.xlu0 0
      %634 = vperm.xlu0 %633, %v596
      %v635 = vpop.permute.xlu0 %634
      %638 = vset.pattern.permute.xlu0 0
      %639 = vperm.xlu0 %638, %v597
      %v640 = vpop.permute.xlu0 %639
      %643 = vset.pattern.permute.xlu0 0
      %644 = vperm.xlu0 %643, %v598
      %v645 = vpop.permute.xlu0 %644
      %648 = vset.pattern.permute.xlu0 0
      %649 = vperm.xlu0 %648, %v599
      %v650 = vpop.permute.xlu0 %649
      %653 = vset.pattern.permute.xlu0 0
      %654 = vperm.xlu0 %653, %v600
      %v655 = vpop.permute.xlu0 %654
      %658 = vset.pattern.permute.xlu0 0
      %659 = vperm.xlu0 %658, %v601
      %v660 = vpop.permute.xlu0 %659
      %663 = vset.pattern.permute.xlu0 0
      %664 = vperm.xlu0 %663, %v602
      %v665 = vpop.permute.xlu0 %664
      %668 = vset.pattern.permute.xlu0 0
      %669 = vperm.xlu0 %668, %v603
      %v670 = vpop.permute.xlu0 %669
      %673 = vset.pattern.permute.xlu0 0
      %674 = vperm.xlu0 %673, %v604
      %v675 = vpop.permute.xlu0 %674
      %678 = vset.pattern.permute.xlu0 0
      %679 = vperm.xlu0 %678, %v605
      %v680 = vpop.permute.xlu0 %679
      %683 = vset.pattern.permute.xlu0 0
      %684 = vperm.xlu0 %683, %v606
      %v685 = vpop.permute.xlu0 %684
      %688 = vset.pattern.permute.xlu0 0
      %689 = vperm.xlu0 %688, %v607
      %v690 = vpop.permute.xlu0 %689
      %693 = vset.pattern.permute.xlu0 0
      %694 = vperm.xlu0 %693, %v608
      %v695 = vpop.permute.xlu0 %694
      %698 = vset.pattern.permute.xlu0 0
      %699 = vperm.xlu0 %698, %v609
      %v700 = vpop.permute.xlu0 %699
      %703 = vset.pattern.permute.xlu0 0
      %704 = vperm.xlu0 %703, %v610
      %v705 = vpop.permute.xlu0 %704
      %708 = vset.pattern.permute.xlu0 0
      %709 = vperm.xlu0 %708, %v611
      %v710 = vpop.permute.xlu0 %709
      %713 = vset.pattern.permute.xlu0 0
      %714 = vperm.xlu0 %713, %v612
      %v715 = vpop.permute.xlu0 %714
      %718 = vset.pattern.permute.xlu0 0
      %719 = vperm.xlu0 %718, %v613
      %v720 = vpop.permute.xlu0 %719
      %723 = vset.pattern.permute.xlu0 0
      %724 = vperm.xlu0 %723, %v614
      %v725 = vpop.permute.xlu0 %724
      %728 = vset.pattern.permute.xlu0 0
      %729 = vperm.xlu0 %728, %v615
      %v730 = vpop.permute.xlu0 %729
      %733 = vset.pattern.permute.xlu0 0
      %734 = vperm.xlu0 %733, %v616
      %v735 = vpop.permute.xlu0 %734
      %738 = vset.pattern.permute.xlu0 0
      %739 = vperm.xlu0 %738, %v617
      %v740 = vpop.permute.xlu0 %739
      %743 = vset.pattern.permute.xlu0 0
      %744 = vperm.xlu0 %743, %v618
      %v745 = vpop.permute.xlu0 %744
      %748 = vset.pattern.permute.xlu0 0
      %749 = vperm.xlu0 %748, %v619
      %v750 = vpop.permute.xlu0 %749
      %753 = vset.pattern.permute.xlu0 0
      %754 = vperm.xlu0 %753, %v620
      %v755 = vpop.permute.xlu0 %754
      %758 = vset.pattern.permute.xlu0 0
      %759 = vperm.xlu0 %758, %v621
      %v760 = vpop.permute.xlu0 %759
      %763 = vset.pattern.permute.xlu0 0
      %764 = vperm.xlu0 %763, %v622
      %v765 = vpop.permute.xlu0 %764
      %768 = vset.pattern.permute.xlu0 0
      %769 = vperm.xlu0 %768, %v623
      %v770 = vpop.permute.xlu0 %769
      %773 = vset.pattern.permute.xlu0 0
      %774 = vperm.xlu0 %773, %v624
      %v775 = vpop.permute.xlu0 %774
      %778 = vset.pattern.permute.xlu0 0
      %779 = vperm.xlu0 %778, %v625
      %v780 = vpop.permute.xlu0 %779
      %783 = vset.pattern.permute.xlu0 0
      %784 = vperm.xlu0 %783, %v626
      %v785 = vpop.permute.xlu0 %784
      %v787 = vmul.f32 %v564, %v630
      %v788 = vmul.f32 %v563, %v635
      %v789 = vmul.f32 %v594, %v640
      %v790 = vmul.f32 %v593, %v645
      %v791 = vmul.f32 %v592, %v650
      %v792 = vmul.f32 %v591, %v655
      %v793 = vmul.f32 %v590, %v660
      %v794 = vmul.f32 %v589, %v665
      %v795 = vmul.f32 %v588, %v670
      %v796 = vmul.f32 %v587, %v675
      %v797 = vmul.f32 %v586, %v680
      %v798 = vmul.f32 %v585, %v685
      %v799 = vmul.f32 %v584, %v690
      %v800 = vmul.f32 %v583, %v695
      %v801 = vmul.f32 %v582, %v700
      %v802 = vmul.f32 %v581, %v705
      %v803 = vmul.f32 %v580, %v710
      %v804 = vmul.f32 %v579, %v715
      %v805 = vmul.f32 %v578, %v720
      %v806 = vmul.f32 %v577, %v725
      %v807 = vmul.f32 %v576, %v730
      %v808 = vmul.f32 %v575, %v735
      %v809 = vmul.f32 %v574, %v740
      %v810 = vmul.f32 %v573, %v745
      %v811 = vmul.f32 %v572, %v750
      %v812 = vmul.f32 %v571, %v755
      %v813 = vmul.f32 %v570, %v760
      %v814 = vmul.f32 %v569, %v765
      %v815 = vmul.f32 %v568, %v770
      %v816 = vmul.f32 %v567, %v775
      %v817 = vmul.f32 %v566, %v780
      %v818 = vmul.f32 %v565, %v785
      %v819 = vadd.f32 %v787, 0.0
      %v820 = vadd.f32 %v788, 0.0
      %v821 = vadd.f32 %v789, 0.0
      %v822 = vadd.f32 %v790, 0.0
      %v823 = vadd.f32 %v791, 0.0
      %v824 = vadd.f32 %v792, 0.0
      %v825 = vadd.f32 %v793, 0.0
      %v826 = vadd.f32 %v794, 0.0
      %v827 = vadd.f32 %v795, 0.0
      %v828 = vadd.f32 %v796, 0.0
      %v829 = vadd.f32 %v797, 0.0
      %v830 = vadd.f32 %v798, 0.0
      %v831 = vadd.f32 %v799, 0.0
      %v832 = vadd.f32 %v800, 0.0
      %v833 = vadd.f32 %v801, 0.0
      %v834 = vadd.f32 %v802, 0.0
      %v835 = vadd.f32 %v803, 0.0
      %v836 = vadd.f32 %v804, 0.0
      %v837 = vadd.f32 %v805, 0.0
      %v838 = vadd.f32 %v806, 0.0
      %v839 = vadd.f32 %v807, 0.0
      %v840 = vadd.f32 %v808, 0.0
      %v841 = vadd.f32 %v809, 0.0
      %v842 = vadd.f32 %v810, 0.0
      %v843 = vadd.f32 %v811, 0.0
      %v844 = vadd.f32 %v812, 0.0
      %v845 = vadd.f32 %v813, 0.0
      %v846 = vadd.f32 %v814, 0.0
      %v847 = vadd.f32 %v815, 0.0
      %v848 = vadd.f32 %v816, 0.0
      %v849 = vadd.f32 %v817, 0.0
      %v850 = vadd.f32 %v818, 0.0
      %s851 = scalar_lea.vmem %s1, 128
      %v852 = vld [vmem:[%s851] sm:$0xff]
      %v853 = vld [vmem:[%s851 + $0x8] sm:$0xff]
      %v854 = vld [vmem:[%s851 + $0x10] sm:$0xff]
      %v855 = vld [vmem:[%s851 + $0x18] sm:$0xff]
      %v856 = vld [vmem:[%s851 + $0x20] sm:$0xff]
      %v857 = vld [vmem:[%s851 + $0x28] sm:$0xff]
      %v858 = vld [vmem:[%s851 + $0x30] sm:$0xff]
      %v859 = vld [vmem:[%s851 + $0x38] sm:$0xff]
      %v860 = vld [vmem:[%s851 + $0x40] sm:$0xff]
      %v861 = vld [vmem:[%s851 + $0x48] sm:$0xff]
      %v862 = vld [vmem:[%s851 + $0x50] sm:$0xff]
      %v863 = vld [vmem:[%s851 + $0x58] sm:$0xff]
      %v864 = vld [vmem:[%s851 + $0x60] sm:$0xff]
      %v865 = vld [vmem:[%s851 + $0x68] sm:$0xff]
      %v866 = vld [vmem:[%s851 + $0x70] sm:$0xff]
      %v867 = vld [vmem:[%s851 + $0x78] sm:$0xff]
      %868 = vmatprep.subr.mxu0 0.0
      %869 = vmatpush1.msra.mxu0 %v867
      %870 = vmatprep.subr.mxu0 0.0
      %871 = vmatpush1.msra.mxu0 %v866
      %872 = vmatprep.subr.mxu0 0.0
      %873 = vmatpush1.msra.mxu0 %v865
      %874 = vmatprep.subr.mxu0 0.0
      %875 = vmatpush1.msra.mxu0 %v864
      %876 = vmatprep.subr.mxu0 0.0
      %877 = vmatpush1.msra.mxu0 %v863
      %878 = vmatprep.subr.mxu0 0.0
      %879 = vmatpush1.msra.mxu0 %v862
      %880 = vmatprep.subr.mxu0 0.0
      %881 = vmatpush1.msra.mxu0 %v861
      %882 = vmatprep.subr.mxu0 0.0
      %883 = vmatpush1.msra.mxu0 %v860
      %884 = vmatprep.subr.mxu0 0.0
      %885 = vmatpush1.msra.mxu0 %v859
      %886 = vmatprep.subr.mxu0 0.0
      %887 = vmatpush1.msra.mxu0 %v858
      %888 = vmatprep.subr.mxu0 0.0
      %889 = vmatpush1.msra.mxu0 %v857
      %890 = vmatprep.subr.mxu0 0.0
      %891 = vmatpush1.msra.mxu0 %v856
      %892 = vmatprep.subr.mxu0 0.0
      %893 = vmatpush1.msra.mxu0 %v855
      %894 = vmatprep.subr.mxu0 0.0
      %895 = vmatpush1.msra.mxu0 %v854
      %896 = vmatprep.subr.mxu0 0.0
      %897 = vmatpush1.msra.mxu0 %v853
      %898 = vmatprep.subr.mxu0 0.0
      %899 = vmatpush1.msra.mxu0 %v852
      %900 = vmatprep.subr.mxu0 0.0
      %901 = vmatpush2.msra.mxu0 0.0
      %902 = vmatprep.subr.mxu0 0.0
      %903 = vmatpush2.msra.mxu0 0.0
      %904 = vmatprep.subr.mxu0 0.0
      %905 = vmatpush2.msra.mxu0 0.0
      %906 = vmatprep.subr.mxu0 0.0
      %907 = vmatpush2.msra.mxu0 0.0
      %908 = vmatprep.subr.mxu0 0.0
      %909 = vmatpush2.msra.mxu0 0.0
      %910 = vmatprep.subr.mxu0 0.0
      %911 = vmatpush2.msra.mxu0 0.0
      %912 = vmatprep.subr.mxu0 0.0
      %913 = vmatpush2.msra.mxu0 0.0
      %914 = vmatprep.subr.mxu0 0.0
      %915 = vmatpush2.msra.mxu0 0.0
      %916 = vmatprep.subr.mxu0 0.0
      %917 = vmatpush2.msra.mxu0 0.0
      %918 = vmatprep.subr.mxu0 0.0
      %919 = vmatpush2.msra.mxu0 0.0
      %920 = vmatprep.subr.mxu0 0.0
      %921 = vmatpush2.msra.mxu0 0.0
      %922 = vmatprep.subr.mxu0 0.0
      %923 = vmatpush2.msra.mxu0 0.0
      %924 = vmatprep.subr.mxu0 0.0
      %925 = vmatpush2.msra.mxu0 0.0
      %926 = vmatprep.subr.mxu0 0.0
      %927 = vmatpush2.msra.mxu0 0.0
      %928 = vmatprep.subr.mxu0 0.0
      %929 = vmatpush2.msra.mxu0 0.0
      %930 = vmatprep.subr.mxu0 0.0
      %931 = vmatpush2.msra.mxu0 0.0
      %932 = vmatprep.mubr.f32.mxu0 0.0
      %933 = vmatmul.mubr.f32.gmra.mxu0 %v255
      %v934 = vpop.f32.mrf.mxu0
      %v935 = vadd.f32 0.0, %v934
      %v936 = vpop.f32.mrf.mxu0
      %937 = vmatprep.mubr.f32.mxu0 0.0
      %938 = vmatmul.mubr.f32.gmra.mxu0 %v256
      %v939 = vpop.f32.mrf.mxu0
      %v940 = vadd.f32 0.0, %v939
      %v941 = vpop.f32.mrf.mxu0
      %942 = vmatprep.mubr.f32.mxu0 0.0
      %943 = vmatmul.mubr.f32.gmra.mxu0 %v257
      %v944 = vpop.f32.mrf.mxu0
      %v945 = vadd.f32 0.0, %v944
      %v946 = vpop.f32.mrf.mxu0
      %947 = vmatprep.mubr.f32.mxu0 0.0
      %948 = vmatmul.mubr.f32.gmra.mxu0 %v258
      %v949 = vpop.f32.mrf.mxu0
      %v950 = vadd.f32 0.0, %v949
      %v951 = vpop.f32.mrf.mxu0
      %952 = vmatprep.mubr.f32.mxu0 0.0
      %953 = vmatmul.mubr.f32.gmra.mxu0 %v259
      %v954 = vpop.f32.mrf.mxu0
      %v955 = vadd.f32 0.0, %v954
      %v956 = vpop.f32.mrf.mxu0
      %957 = vmatprep.mubr.f32.mxu0 0.0
      %958 = vmatmul.mubr.f32.gmra.mxu0 %v260
      %v959 = vpop.f32.mrf.mxu0
      %v960 = vadd.f32 0.0, %v959
      %v961 = vpop.f32.mrf.mxu0
      %962 = vmatprep.mubr.f32.mxu0 0.0
      %963 = vmatmul.mubr.f32.gmra.mxu0 %v261
      %v964 = vpop.f32.mrf.mxu0
      %v965 = vadd.f32 0.0, %v964
      %v966 = vpop.f32.mrf.mxu0
      %967 = vmatprep.mubr.f32.mxu0 0.0
      %968 = vmatmul.mubr.f32.gmra.mxu0 %v262
      %v969 = vpop.f32.mrf.mxu0
      %v970 = vadd.f32 0.0, %v969
      %v971 = vpop.f32.mrf.mxu0
      %972 = vmatprep.mubr.f32.mxu0 0.0
      %973 = vmatmul.mubr.f32.gmra.mxu0 %v263
      %v974 = vpop.f32.mrf.mxu0
      %v975 = vadd.f32 0.0, %v974
      %v976 = vpop.f32.mrf.mxu0
      %977 = vmatprep.mubr.f32.mxu0 0.0
      %978 = vmatmul.mubr.f32.gmra.mxu0 %v264
      %v979 = vpop.f32.mrf.mxu0
      %v980 = vadd.f32 0.0, %v979
      %v981 = vpop.f32.mrf.mxu0
      %982 = vmatprep.mubr.f32.mxu0 0.0
      %983 = vmatmul.mubr.f32.gmra.mxu0 %v265
      %v984 = vpop.f32.mrf.mxu0
      %v985 = vadd.f32 0.0, %v984
      %v986 = vpop.f32.mrf.mxu0
      %987 = vmatprep.mubr.f32.mxu0 0.0
      %988 = vmatmul.mubr.f32.gmra.mxu0 %v266
      %v989 = vpop.f32.mrf.mxu0
      %v990 = vadd.f32 0.0, %v989
      %v991 = vpop.f32.mrf.mxu0
      %992 = vmatprep.mubr.f32.mxu0 0.0
      %993 = vmatmul.mubr.f32.gmra.mxu0 %v267
      %v994 = vpop.f32.mrf.mxu0
      %v995 = vadd.f32 0.0, %v994
      %v996 = vpop.f32.mrf.mxu0
      %997 = vmatprep.mubr.f32.mxu0 0.0
      %998 = vmatmul.mubr.f32.gmra.mxu0 %v268
      %v999 = vpop.f32.mrf.mxu0
      %v1000 = vadd.f32 0.0, %v999
      %v1001 = vpop.f32.mrf.mxu0
      %1002 = vmatprep.mubr.f32.mxu0 0.0
      %1003 = vmatmul.mubr.f32.gmra.mxu0 %v269
      %v1004 = vpop.f32.mrf.mxu0
      %v1005 = vadd.f32 0.0, %v1004
      %v1006 = vpop.f32.mrf.mxu0
      %1007 = vmatprep.mubr.f32.mxu0 0.0
      %1008 = vmatmul.mubr.f32.gmra.mxu0 %v270
      %v1009 = vpop.f32.mrf.mxu0
      %v1010 = vadd.f32 0.0, %v1009
      %v1011 = vpop.f32.mrf.mxu0
      %1012 = vmatprep.mubr.f32.mxu0 0.0
      %1013 = vmatmul.mubr.f32.gmra.mxu0 %v271
      %v1014 = vpop.f32.mrf.mxu0
      %v1015 = vadd.f32 0.0, %v1014
      %v1016 = vpop.f32.mrf.mxu0
      %1017 = vmatprep.mubr.f32.mxu0 0.0
      %1018 = vmatmul.mubr.f32.gmra.mxu0 %v272
      %v1019 = vpop.f32.mrf.mxu0
      %v1020 = vadd.f32 0.0, %v1019
      %v1021 = vpop.f32.mrf.mxu0
      %1022 = vmatprep.mubr.f32.mxu0 0.0
      %1023 = vmatmul.mubr.f32.gmra.mxu0 %v273
      %v1024 = vpop.f32.mrf.mxu0
      %v1025 = vadd.f32 0.0, %v1024
      %v1026 = vpop.f32.mrf.mxu0
      %1027 = vmatprep.mubr.f32.mxu0 0.0
      %1028 = vmatmul.mubr.f32.gmra.mxu0 %v274
      %v1029 = vpop.f32.mrf.mxu0
      %v1030 = vadd.f32 0.0, %v1029
      %v1031 = vpop.f32.mrf.mxu0
      %1032 = vmatprep.mubr.f32.mxu0 0.0
      %1033 = vmatmul.mubr.f32.gmra.mxu0 %v275
      %v1034 = vpop.f32.mrf.mxu0
      %v1035 = vadd.f32 0.0, %v1034
      %v1036 = vpop.f32.mrf.mxu0
      %1037 = vmatprep.mubr.f32.mxu0 0.0
      %1038 = vmatmul.mubr.f32.gmra.mxu0 %v276
      %v1039 = vpop.f32.mrf.mxu0
      %v1040 = vadd.f32 0.0, %v1039
      %v1041 = vpop.f32.mrf.mxu0
      %1042 = vmatprep.mubr.f32.mxu0 0.0
      %1043 = vmatmul.mubr.f32.gmra.mxu0 %v277
      %v1044 = vpop.f32.mrf.mxu0
      %v1045 = vadd.f32 0.0, %v1044
      %v1046 = vpop.f32.mrf.mxu0
      %1047 = vmatprep.mubr.f32.mxu0 0.0
      %1048 = vmatmul.mubr.f32.gmra.mxu0 %v278
      %v1049 = vpop.f32.mrf.mxu0
      %v1050 = vadd.f32 0.0, %v1049
      %v1051 = vpop.f32.mrf.mxu0
      %1052 = vmatprep.mubr.f32.mxu0 0.0
      %1053 = vmatmul.mubr.f32.gmra.mxu0 %v279
      %v1054 = vpop.f32.mrf.mxu0
      %v1055 = vadd.f32 0.0, %v1054
      %v1056 = vpop.f32.mrf.mxu0
      %1057 = vmatprep.mubr.f32.mxu0 0.0
      %1058 = vmatmul.mubr.f32.gmra.mxu0 %v280
      %v1059 = vpop.f32.mrf.mxu0
      %v1060 = vadd.f32 0.0, %v1059
      %v1061 = vpop.f32.mrf.mxu0
      %1062 = vmatprep.mubr.f32.mxu0 0.0
      %1063 = vmatmul.mubr.f32.gmra.mxu0 %v281
      %v1064 = vpop.f32.mrf.mxu0
      %v1065 = vadd.f32 0.0, %v1064
      %v1066 = vpop.f32.mrf.mxu0
      %1067 = vmatprep.mubr.f32.mxu0 0.0
      %1068 = vmatmul.mubr.f32.gmra.mxu0 %v282
      %v1069 = vpop.f32.mrf.mxu0
      %v1070 = vadd.f32 0.0, %v1069
      %v1071 = vpop.f32.mrf.mxu0
      %1072 = vmatprep.mubr.f32.mxu0 0.0
      %1073 = vmatmul.mubr.f32.gmra.mxu0 %v283
      %v1074 = vpop.f32.mrf.mxu0
      %v1075 = vadd.f32 0.0, %v1074
      %v1076 = vpop.f32.mrf.mxu0
      %1077 = vmatprep.mubr.f32.mxu0 0.0
      %1078 = vmatmul.mubr.f32.gmra.mxu0 %v284
      %v1079 = vpop.f32.mrf.mxu0
      %v1080 = vadd.f32 0.0, %v1079
      %v1081 = vpop.f32.mrf.mxu0
      %1082 = vmatprep.mubr.f32.mxu0 0.0
      %1083 = vmatmul.mubr.f32.gmra.mxu0 %v285
      %v1084 = vpop.f32.mrf.mxu0
      %v1085 = vadd.f32 0.0, %v1084
      %v1086 = vpop.f32.mrf.mxu0
      %1087 = vmatprep.mubr.f32.mxu0 0.0
      %1088 = vmatmul.mubr.f32.gmra.mxu0 %v286
      %v1089 = vpop.f32.mrf.mxu0
      %v1090 = vadd.f32 0.0, %v1089
      %v1091 = vpop.f32.mrf.mxu0
      %1092 = vdwg.mxu0
      %s1093 = scalar_lea.vmem %s5, 256
      %v1094 = vld [vmem:[%s1093] sm:$0xff]
      %v1095 = vld [vmem:[%s1093 + $0x8] sm:$0xff]
      %v1096 = vld [vmem:[%s1093 + $0x10] sm:$0xff]
      %v1097 = vld [vmem:[%s1093 + $0x18] sm:$0xff]
      %v1098 = vld [vmem:[%s1093 + $0x20] sm:$0xff]
      %v1099 = vld [vmem:[%s1093 + $0x28] sm:$0xff]
      %v1100 = vld [vmem:[%s1093 + $0x30] sm:$0xff]
      %v1101 = vld [vmem:[%s1093 + $0x38] sm:$0xff]
      %v1102 = vld [vmem:[%s1093 + $0x40] sm:$0xff]
      %v1103 = vld [vmem:[%s1093 + $0x48] sm:$0xff]
      %v1104 = vld [vmem:[%s1093 + $0x50] sm:$0xff]
      %v1105 = vld [vmem:[%s1093 + $0x58] sm:$0xff]
      %v1106 = vld [vmem:[%s1093 + $0x60] sm:$0xff]
      %v1107 = vld [vmem:[%s1093 + $0x68] sm:$0xff]
      %v1108 = vld [vmem:[%s1093 + $0x70] sm:$0xff]
      %v1109 = vld [vmem:[%s1093 + $0x78] sm:$0xff]
      %v1110 = vld [vmem:[%s1093 + $0x80] sm:$0xff]
      %v1111 = vld [vmem:[%s1093 + $0x88] sm:$0xff]
      %v1112 = vld [vmem:[%s1093 + $0x90] sm:$0xff]
      %v1113 = vld [vmem:[%s1093 + $0x98] sm:$0xff]
      %v1114 = vld [vmem:[%s1093 + $0xa0] sm:$0xff]
      %v1115 = vld [vmem:[%s1093 + $0xa8] sm:$0xff]
      %v1116 = vld [vmem:[%s1093 + $0xb0] sm:$0xff]
      %v1117 = vld [vmem:[%s1093 + $0xb8] sm:$0xff]
      %v1118 = vld [vmem:[%s1093 + $0xc0] sm:$0xff]
      %v1119 = vld [vmem:[%s1093 + $0xc8] sm:$0xff]
      %v1120 = vld [vmem:[%s1093 + $0xd0] sm:$0xff]
      %v1121 = vld [vmem:[%s1093 + $0xd8] sm:$0xff]
      %v1122 = vld [vmem:[%s1093 + $0xe0] sm:$0xff]
      %v1123 = vld [vmem:[%s1093 + $0xe8] sm:$0xff]
      %v1124 = vld [vmem:[%s1093 + $0xf0] sm:$0xff]
      %v1125 = vld [vmem:[%s1093 + $0xf8] sm:$0xff]
      %1127 = vset.pattern.permute.xlu0 0
      %1128 = vperm.xlu0 %1127, %v1094
      %v1129 = vpop.permute.xlu0 %1128
      %1132 = vset.pattern.permute.xlu0 0
      %1133 = vperm.xlu0 %1132, %v1095
      %v1134 = vpop.permute.xlu0 %1133
      %1137 = vset.pattern.permute.xlu0 0
      %1138 = vperm.xlu0 %1137, %v1096
      %v1139 = vpop.permute.xlu0 %1138
      %1142 = vset.pattern.permute.xlu0 0
      %1143 = vperm.xlu0 %1142, %v1097
      %v1144 = vpop.permute.xlu0 %1143
      %1147 = vset.pattern.permute.xlu0 0
      %1148 = vperm.xlu0 %1147, %v1098
      %v1149 = vpop.permute.xlu0 %1148
      %1152 = vset.pattern.permute.xlu0 0
      %1153 = vperm.xlu0 %1152, %v1099
      %v1154 = vpop.permute.xlu0 %1153
      %1157 = vset.pattern.permute.xlu0 0
      %1158 = vperm.xlu0 %1157, %v1100
      %v1159 = vpop.permute.xlu0 %1158
      %1162 = vset.pattern.permute.xlu0 0
      %1163 = vperm.xlu0 %1162, %v1101
      %v1164 = vpop.permute.xlu0 %1163
      %1167 = vset.pattern.permute.xlu0 0
      %1168 = vperm.xlu0 %1167, %v1102
      %v1169 = vpop.permute.xlu0 %1168
      %1172 = vset.pattern.permute.xlu0 0
      %1173 = vperm.xlu0 %1172, %v1103
      %v1174 = vpop.permute.xlu0 %1173
      %1177 = vset.pattern.permute.xlu0 0
      %1178 = vperm.xlu0 %1177, %v1104
      %v1179 = vpop.permute.xlu0 %1178
      %1182 = vset.pattern.permute.xlu0 0
      %1183 = vperm.xlu0 %1182, %v1105
      %v1184 = vpop.permute.xlu0 %1183
      %1187 = vset.pattern.permute.xlu0 0
      %1188 = vperm.xlu0 %1187, %v1106
      %v1189 = vpop.permute.xlu0 %1188
      %1192 = vset.pattern.permute.xlu0 0
      %1193 = vperm.xlu0 %1192, %v1107
      %v1194 = vpop.permute.xlu0 %1193
      %1197 = vset.pattern.permute.xlu0 0
      %1198 = vperm.xlu0 %1197, %v1108
      %v1199 = vpop.permute.xlu0 %1198
      %1202 = vset.pattern.permute.xlu0 0
      %1203 = vperm.xlu0 %1202, %v1109
      %v1204 = vpop.permute.xlu0 %1203
      %1207 = vset.pattern.permute.xlu0 0
      %1208 = vperm.xlu0 %1207, %v1110
      %v1209 = vpop.permute.xlu0 %1208
      %1212 = vset.pattern.permute.xlu0 0
      %1213 = vperm.xlu0 %1212, %v1111
      %v1214 = vpop.permute.xlu0 %1213
      %1217 = vset.pattern.permute.xlu0 0
      %1218 = vperm.xlu0 %1217, %v1112
      %v1219 = vpop.permute.xlu0 %1218
      %1222 = vset.pattern.permute.xlu0 0
      %1223 = vperm.xlu0 %1222, %v1113
      %v1224 = vpop.permute.xlu0 %1223
      %1227 = vset.pattern.permute.xlu0 0
      %1228 = vperm.xlu0 %1227, %v1114
      %v1229 = vpop.permute.xlu0 %1228
      %1232 = vset.pattern.permute.xlu0 0
      %1233 = vperm.xlu0 %1232, %v1115
      %v1234 = vpop.permute.xlu0 %1233
      %1237 = vset.pattern.permute.xlu0 0
      %1238 = vperm.xlu0 %1237, %v1116
      %v1239 = vpop.permute.xlu0 %1238
      %1242 = vset.pattern.permute.xlu0 0
      %1243 = vperm.xlu0 %1242, %v1117
      %v1244 = vpop.permute.xlu0 %1243
      %1247 = vset.pattern.permute.xlu0 0
      %1248 = vperm.xlu0 %1247, %v1118
      %v1249 = vpop.permute.xlu0 %1248
      %1252 = vset.pattern.permute.xlu0 0
      %1253 = vperm.xlu0 %1252, %v1119
      %v1254 = vpop.permute.xlu0 %1253
      %1257 = vset.pattern.permute.xlu0 0
      %1258 = vperm.xlu0 %1257, %v1120
      %v1259 = vpop.permute.xlu0 %1258
      %1262 = vset.pattern.permute.xlu0 0
      %1263 = vperm.xlu0 %1262, %v1121
      %v1264 = vpop.permute.xlu0 %1263
      %1267 = vset.pattern.permute.xlu0 0
      %1268 = vperm.xlu0 %1267, %v1122
      %v1269 = vpop.permute.xlu0 %1268
      %1272 = vset.pattern.permute.xlu0 0
      %1273 = vperm.xlu0 %1272, %v1123
      %v1274 = vpop.permute.xlu0 %1273
      %1277 = vset.pattern.permute.xlu0 0
      %1278 = vperm.xlu0 %1277, %v1124
      %v1279 = vpop.permute.xlu0 %1278
      %1282 = vset.pattern.permute.xlu0 0
      %1283 = vperm.xlu0 %1282, %v1125
      %v1284 = vpop.permute.xlu0 %1283
      %v1286 = vmul.f32 %v1085, %v1129
      %v1287 = vmul.f32 %v1090, %v1134
      %v1288 = vmul.f32 %v935, %v1139
      %v1289 = vmul.f32 %v940, %v1144
      %v1290 = vmul.f32 %v945, %v1149
      %v1291 = vmul.f32 %v950, %v1154
      %v1292 = vmul.f32 %v955, %v1159
      %v1293 = vmul.f32 %v960, %v1164
      %v1294 = vmul.f32 %v965, %v1169
      %v1295 = vmul.f32 %v970, %v1174
      %v1296 = vmul.f32 %v975, %v1179
      %v1297 = vmul.f32 %v980, %v1184
      %v1298 = vmul.f32 %v985, %v1189
      %v1299 = vmul.f32 %v990, %v1194
      %v1300 = vmul.f32 %v995, %v1199
      %v1301 = vmul.f32 %v1000, %v1204
      %v1302 = vmul.f32 %v1005, %v1209
      %v1303 = vmul.f32 %v1010, %v1214
      %v1304 = vmul.f32 %v1015, %v1219
      %v1305 = vmul.f32 %v1020, %v1224
      %v1306 = vmul.f32 %v1025, %v1229
      %v1307 = vmul.f32 %v1030, %v1234
      %v1308 = vmul.f32 %v1035, %v1239
      %v1309 = vmul.f32 %v1040, %v1244
      %v1310 = vmul.f32 %v1045, %v1249
      %v1311 = vmul.f32 %v1050, %v1254
      %v1312 = vmul.f32 %v1055, %v1259
      %v1313 = vmul.f32 %v1060, %v1264
      %v1314 = vmul.f32 %v1065, %v1269
      %v1315 = vmul.f32 %v1070, %v1274
      %v1316 = vmul.f32 %v1075, %v1279
      %v1317 = vmul.f32 %v1080, %v1284
      %v1318 = vadd.f32 %v819, %v1286
      %v1319 = vadd.f32 %v820, %v1287
      %v1320 = vadd.f32 %v821, %v1288
      %v1321 = vadd.f32 %v822, %v1289
      %v1322 = vadd.f32 %v823, %v1290
      %v1323 = vadd.f32 %v824, %v1291
      %v1324 = vadd.f32 %v825, %v1292
      %v1325 = vadd.f32 %v826, %v1293
      %v1326 = vadd.f32 %v827, %v1294
      %v1327 = vadd.f32 %v828, %v1295
      %v1328 = vadd.f32 %v829, %v1296
      %v1329 = vadd.f32 %v830, %v1297
      %v1330 = vadd.f32 %v831, %v1298
      %v1331 = vadd.f32 %v832, %v1299
      %v1332 = vadd.f32 %v833, %v1300
      %v1333 = vadd.f32 %v834, %v1301
      %v1334 = vadd.f32 %v835, %v1302
      %v1335 = vadd.f32 %v836, %v1303
      %v1336 = vadd.f32 %v837, %v1304
      %v1337 = vadd.f32 %v838, %v1305
      %v1338 = vadd.f32 %v839, %v1306
      %v1339 = vadd.f32 %v840, %v1307
      %v1340 = vadd.f32 %v841, %v1308
      %v1341 = vadd.f32 %v842, %v1309
      %v1342 = vadd.f32 %v843, %v1310
      %v1343 = vadd.f32 %v844, %v1311
      %v1344 = vadd.f32 %v845, %v1312
      %v1345 = vadd.f32 %v846, %v1313
      %v1346 = vadd.f32 %v847, %v1314
      %v1347 = vadd.f32 %v848, %v1315
      %v1348 = vadd.f32 %v849, %v1316
      %v1349 = vadd.f32 %v850, %v1317
      %s1350 = scalar_lea.vmem %s1, 256
      %v1351 = vld [vmem:[%s1350] sm:$0xff]
      %v1352 = vld [vmem:[%s1350 + $0x8] sm:$0xff]
      %v1353 = vld [vmem:[%s1350 + $0x10] sm:$0xff]
      %v1354 = vld [vmem:[%s1350 + $0x18] sm:$0xff]
      %v1355 = vld [vmem:[%s1350 + $0x20] sm:$0xff]
      %v1356 = vld [vmem:[%s1350 + $0x28] sm:$0xff]
      %v1357 = vld [vmem:[%s1350 + $0x30] sm:$0xff]
      %v1358 = vld [vmem:[%s1350 + $0x38] sm:$0xff]
      %v1359 = vld [vmem:[%s1350 + $0x40] sm:$0xff]
      %v1360 = vld [vmem:[%s1350 + $0x48] sm:$0xff]
      %v1361 = vld [vmem:[%s1350 + $0x50] sm:$0xff]
      %v1362 = vld [vmem:[%s1350 + $0x58] sm:$0xff]
      %v1363 = vld [vmem:[%s1350 + $0x60] sm:$0xff]
      %v1364 = vld [vmem:[%s1350 + $0x68] sm:$0xff]
      %v1365 = vld [vmem:[%s1350 + $0x70] sm:$0xff]
      %v1366 = vld [vmem:[%s1350 + $0x78] sm:$0xff]
      %1367 = vmatprep.subr.mxu0 0.0
      %1368 = vmatpush1.msra.mxu0 %v1366
      %1369 = vmatprep.subr.mxu0 0.0
      %1370 = vmatpush1.msra.mxu0 %v1365
      %1371 = vmatprep.subr.mxu0 0.0
      %1372 = vmatpush1.msra.mxu0 %v1364
      %1373 = vmatprep.subr.mxu0 0.0
      %1374 = vmatpush1.msra.mxu0 %v1363
      %1375 = vmatprep.subr.mxu0 0.0
      %1376 = vmatpush1.msra.mxu0 %v1362
      %1377 = vmatprep.subr.mxu0 0.0
      %1378 = vmatpush1.msra.mxu0 %v1361
      %1379 = vmatprep.subr.mxu0 0.0
      %1380 = vmatpush1.msra.mxu0 %v1360
      %1381 = vmatprep.subr.mxu0 0.0
      %1382 = vmatpush1.msra.mxu0 %v1359
      %1383 = vmatprep.subr.mxu0 0.0
      %1384 = vmatpush1.msra.mxu0 %v1358
      %1385 = vmatprep.subr.mxu0 0.0
      %1386 = vmatpush1.msra.mxu0 %v1357
      %1387 = vmatprep.subr.mxu0 0.0
      %1388 = vmatpush1.msra.mxu0 %v1356
      %1389 = vmatprep.subr.mxu0 0.0
      %1390 = vmatpush1.msra.mxu0 %v1355
      %1391 = vmatprep.subr.mxu0 0.0
      %1392 = vmatpush1.msra.mxu0 %v1354
      %1393 = vmatprep.subr.mxu0 0.0
      %1394 = vmatpush1.msra.mxu0 %v1353
      %1395 = vmatprep.subr.mxu0 0.0
      %1396 = vmatpush1.msra.mxu0 %v1352
      %1397 = vmatprep.subr.mxu0 0.0
      %1398 = vmatpush1.msra.mxu0 %v1351
      %1399 = vmatprep.subr.mxu0 0.0
      %1400 = vmatpush2.msra.mxu0 0.0
      %1401 = vmatprep.subr.mxu0 0.0
      %1402 = vmatpush2.msra.mxu0 0.0
      %1403 = vmatprep.subr.mxu0 0.0
      %1404 = vmatpush2.msra.mxu0 0.0
      %1405 = vmatprep.subr.mxu0 0.0
      %1406 = vmatpush2.msra.mxu0 0.0
      %1407 = vmatprep.subr.mxu0 0.0
      %1408 = vmatpush2.msra.mxu0 0.0
      %1409 = vmatprep.subr.mxu0 0.0
      %1410 = vmatpush2.msra.mxu0 0.0
      %1411 = vmatprep.subr.mxu0 0.0
      %1412 = vmatpush2.msra.mxu0 0.0
      %1413 = vmatprep.subr.mxu0 0.0
      %1414 = vmatpush2.msra.mxu0 0.0
      %1415 = vmatprep.subr.mxu0 0.0
      %1416 = vmatpush2.msra.mxu0 0.0
      %1417 = vmatprep.subr.mxu0 0.0
      %1418 = vmatpush2.msra.mxu0 0.0
      %1419 = vmatprep.subr.mxu0 0.0
      %1420 = vmatpush2.msra.mxu0 0.0
      %1421 = vmatprep.subr.mxu0 0.0
      %1422 = vmatpush2.msra.mxu0 0.0
      %1423 = vmatprep.subr.mxu0 0.0
      %1424 = vmatpush2.msra.mxu0 0.0
      %1425 = vmatprep.subr.mxu0 0.0
      %1426 = vmatpush2.msra.mxu0 0.0
      %1427 = vmatprep.subr.mxu0 0.0
      %1428 = vmatpush2.msra.mxu0 0.0
      %1429 = vmatprep.subr.mxu0 0.0
      %1430 = vmatpush2.msra.mxu0 0.0
      %1431 = vmatprep.mubr.f32.mxu0 0.0
      %1432 = vmatmul.mubr.f32.gmra.mxu0 %v255
      %v1433 = vpop.f32.mrf.mxu0
      %v1434 = vadd.f32 0.0, %v1433
      %v1435 = vpop.f32.mrf.mxu0
      %1436 = vmatprep.mubr.f32.mxu0 0.0
      %1437 = vmatmul.mubr.f32.gmra.mxu0 %v256
      %v1438 = vpop.f32.mrf.mxu0
      %v1439 = vadd.f32 0.0, %v1438
      %v1440 = vpop.f32.mrf.mxu0
      %1441 = vmatprep.mubr.f32.mxu0 0.0
      %1442 = vmatmul.mubr.f32.gmra.mxu0 %v257
      %v1443 = vpop.f32.mrf.mxu0
      %v1444 = vadd.f32 0.0, %v1443
      %v1445 = vpop.f32.mrf.mxu0
      %1446 = vmatprep.mubr.f32.mxu0 0.0
      %1447 = vmatmul.mubr.f32.gmra.mxu0 %v258
      %v1448 = vpop.f32.mrf.mxu0
      %v1449 = vadd.f32 0.0, %v1448
      %v1450 = vpop.f32.mrf.mxu0
      %1451 = vmatprep.mubr.f32.mxu0 0.0
      %1452 = vmatmul.mubr.f32.gmra.mxu0 %v259
      %v1453 = vpop.f32.mrf.mxu0
      %v1454 = vadd.f32 0.0, %v1453
      %v1455 = vpop.f32.mrf.mxu0
      %1456 = vmatprep.mubr.f32.mxu0 0.0
      %1457 = vmatmul.mubr.f32.gmra.mxu0 %v260
      %v1458 = vpop.f32.mrf.mxu0
      %v1459 = vadd.f32 0.0, %v1458
      %v1460 = vpop.f32.mrf.mxu0
      %1461 = vmatprep.mubr.f32.mxu0 0.0
      %1462 = vmatmul.mubr.f32.gmra.mxu0 %v261
      %v1463 = vpop.f32.mrf.mxu0
      %v1464 = vadd.f32 0.0, %v1463
      %v1465 = vpop.f32.mrf.mxu0
      %1466 = vmatprep.mubr.f32.mxu0 0.0
      %1467 = vmatmul.mubr.f32.gmra.mxu0 %v262
      %v1468 = vpop.f32.mrf.mxu0
      %v1469 = vadd.f32 0.0, %v1468
      %v1470 = vpop.f32.mrf.mxu0
      %1471 = vmatprep.mubr.f32.mxu0 0.0
      %1472 = vmatmul.mubr.f32.gmra.mxu0 %v263
      %v1473 = vpop.f32.mrf.mxu0
      %v1474 = vadd.f32 0.0, %v1473
      %v1475 = vpop.f32.mrf.mxu0
      %1476 = vmatprep.mubr.f32.mxu0 0.0
      %1477 = vmatmul.mubr.f32.gmra.mxu0 %v264
      %v1478 = vpop.f32.mrf.mxu0
      %v1479 = vadd.f32 0.0, %v1478
      %v1480 = vpop.f32.mrf.mxu0
      %1481 = vmatprep.mubr.f32.mxu0 0.0
      %1482 = vmatmul.mubr.f32.gmra.mxu0 %v265
      %v1483 = vpop.f32.mrf.mxu0
      %v1484 = vadd.f32 0.0, %v1483
      %v1485 = vpop.f32.mrf.mxu0
      %1486 = vmatprep.mubr.f32.mxu0 0.0
      %1487 = vmatmul.mubr.f32.gmra.mxu0 %v266
      %v1488 = vpop.f32.mrf.mxu0
      %v1489 = vadd.f32 0.0, %v1488
      %v1490 = vpop.f32.mrf.mxu0
      %1491 = vmatprep.mubr.f32.mxu0 0.0
      %1492 = vmatmul.mubr.f32.gmra.mxu0 %v267
      %v1493 = vpop.f32.mrf.mxu0
      %v1494 = vadd.f32 0.0, %v1493
      %v1495 = vpop.f32.mrf.mxu0
      %1496 = vmatprep.mubr.f32.mxu0 0.0
      %1497 = vmatmul.mubr.f32.gmra.mxu0 %v268
      %v1498 = vpop.f32.mrf.mxu0
      %v1499 = vadd.f32 0.0, %v1498
      %v1500 = vpop.f32.mrf.mxu0
      %1501 = vmatprep.mubr.f32.mxu0 0.0
      %1502 = vmatmul.mubr.f32.gmra.mxu0 %v269
      %v1503 = vpop.f32.mrf.mxu0
      %v1504 = vadd.f32 0.0, %v1503
      %v1505 = vpop.f32.mrf.mxu0
      %1506 = vmatprep.mubr.f32.mxu0 0.0
      %1507 = vmatmul.mubr.f32.gmra.mxu0 %v270
      %v1508 = vpop.f32.mrf.mxu0
      %v1509 = vadd.f32 0.0, %v1508
      %v1510 = vpop.f32.mrf.mxu0
      %1511 = vmatprep.mubr.f32.mxu0 0.0
      %1512 = vmatmul.mubr.f32.gmra.mxu0 %v271
      %v1513 = vpop.f32.mrf.mxu0
      %v1514 = vadd.f32 0.0, %v1513
      %v1515 = vpop.f32.mrf.mxu0
      %1516 = vmatprep.mubr.f32.mxu0 0.0
      %1517 = vmatmul.mubr.f32.gmra.mxu0 %v272
      %v1518 = vpop.f32.mrf.mxu0
      %v1519 = vadd.f32 0.0, %v1518
      %v1520 = vpop.f32.mrf.mxu0
      %1521 = vmatprep.mubr.f32.mxu0 0.0
      %1522 = vmatmul.mubr.f32.gmra.mxu0 %v273
      %v1523 = vpop.f32.mrf.mxu0
      %v1524 = vadd.f32 0.0, %v1523
      %v1525 = vpop.f32.mrf.mxu0
      %1526 = vmatprep.mubr.f32.mxu0 0.0
      %1527 = vmatmul.mubr.f32.gmra.mxu0 %v274
      %v1528 = vpop.f32.mrf.mxu0
      %v1529 = vadd.f32 0.0, %v1528
      %v1530 = vpop.f32.mrf.mxu0
      %1531 = vmatprep.mubr.f32.mxu0 0.0
      %1532 = vmatmul.mubr.f32.gmra.mxu0 %v275
      %v1533 = vpop.f32.mrf.mxu0
      %v1534 = vadd.f32 0.0, %v1533
      %v1535 = vpop.f32.mrf.mxu0
      %1536 = vmatprep.mubr.f32.mxu0 0.0
      %1537 = vmatmul.mubr.f32.gmra.mxu0 %v276
      %v1538 = vpop.f32.mrf.mxu0
      %v1539 = vadd.f32 0.0, %v1538
      %v1540 = vpop.f32.mrf.mxu0
      %1541 = vmatprep.mubr.f32.mxu0 0.0
      %1542 = vmatmul.mubr.f32.gmra.mxu0 %v277
      %v1543 = vpop.f32.mrf.mxu0
      %v1544 = vadd.f32 0.0, %v1543
      %v1545 = vpop.f32.mrf.mxu0
      %1546 = vmatprep.mubr.f32.mxu0 0.0
      %1547 = vmatmul.mubr.f32.gmra.mxu0 %v278
      %v1548 = vpop.f32.mrf.mxu0
      %v1549 = vadd.f32 0.0, %v1548
      %v1550 = vpop.f32.mrf.mxu0
      %1551 = vmatprep.mubr.f32.mxu0 0.0
      %1552 = vmatmul.mubr.f32.gmra.mxu0 %v279
      %v1553 = vpop.f32.mrf.mxu0
      %v1554 = vadd.f32 0.0, %v1553
      %v1555 = vpop.f32.mrf.mxu0
      %1556 = vmatprep.mubr.f32.mxu0 0.0
      %1557 = vmatmul.mubr.f32.gmra.mxu0 %v280
      %v1558 = vpop.f32.mrf.mxu0
      %v1559 = vadd.f32 0.0, %v1558
      %v1560 = vpop.f32.mrf.mxu0
      %1561 = vmatprep.mubr.f32.mxu0 0.0
      %1562 = vmatmul.mubr.f32.gmra.mxu0 %v281
      %v1563 = vpop.f32.mrf.mxu0
      %v1564 = vadd.f32 0.0, %v1563
      %v1565 = vpop.f32.mrf.mxu0
      %1566 = vmatprep.mubr.f32.mxu0 0.0
      %1567 = vmatmul.mubr.f32.gmra.mxu0 %v282
      %v1568 = vpop.f32.mrf.mxu0
      %v1569 = vadd.f32 0.0, %v1568
      %v1570 = vpop.f32.mrf.mxu0
      %1571 = vmatprep.mubr.f32.mxu0 0.0
      %1572 = vmatmul.mubr.f32.gmra.mxu0 %v283
      %v1573 = vpop.f32.mrf.mxu0
      %v1574 = vadd.f32 0.0, %v1573
      %v1575 = vpop.f32.mrf.mxu0
      %1576 = vmatprep.mubr.f32.mxu0 0.0
      %1577 = vmatmul.mubr.f32.gmra.mxu0 %v284
      %v1578 = vpop.f32.mrf.mxu0
      %v1579 = vadd.f32 0.0, %v1578
      %v1580 = vpop.f32.mrf.mxu0
      %1581 = vmatprep.mubr.f32.mxu0 0.0
      %1582 = vmatmul.mubr.f32.gmra.mxu0 %v285
      %v1583 = vpop.f32.mrf.mxu0
      %v1584 = vadd.f32 0.0, %v1583
      %v1585 = vpop.f32.mrf.mxu0
      %1586 = vmatprep.mubr.f32.mxu0 0.0
      %1587 = vmatmul.mubr.f32.gmra.mxu0 %v286
      %v1588 = vpop.f32.mrf.mxu0
      %v1589 = vadd.f32 0.0, %v1588
      %v1590 = vpop.f32.mrf.mxu0
      %1591 = vdwg.mxu0
      %v1592 = vrot.slane %v1434, 1
      %v1593 = vrot.slane %v1439, 1
      %v1594 = vrot.slane %v1444, 1
      %v1595 = vrot.slane %v1449, 1
      %v1596 = vrot.slane %v1454, 1
      %v1597 = vrot.slane %v1459, 1
      %v1598 = vrot.slane %v1464, 1
      %v1599 = vrot.slane %v1469, 1
      %v1600 = vrot.slane %v1474, 1
      %v1601 = vrot.slane %v1479, 1
      %v1602 = vrot.slane %v1484, 1
      %v1603 = vrot.slane %v1489, 1
      %v1604 = vrot.slane %v1494, 1
      %v1605 = vrot.slane %v1499, 1
      %v1606 = vrot.slane %v1504, 1
      %v1607 = vrot.slane %v1509, 1
      %v1608 = vrot.slane %v1514, 1
      %v1609 = vrot.slane %v1519, 1
      %v1610 = vrot.slane %v1524, 1
      %v1611 = vrot.slane %v1529, 1
      %v1612 = vrot.slane %v1534, 1
      %v1613 = vrot.slane %v1539, 1
      %v1614 = vrot.slane %v1544, 1
      %v1615 = vrot.slane %v1549, 1
      %v1616 = vrot.slane %v1554, 1
      %v1617 = vrot.slane %v1559, 1
      %v1618 = vrot.slane %v1564, 1
      %v1619 = vrot.slane %v1569, 1
      %v1620 = vrot.slane %v1574, 1
      %v1621 = vrot.slane %v1579, 1
      %v1622 = vrot.slane %v1584, 1
      %v1623 = vrot.slane %v1589, 1
      %vm1624 = vcmp.lt.s32.totalorder %v561, 7
      %v1625 = vsel %vm1624, %v1622, %v1623
      %v1626 = vsel %vm1624, %v1621, %v1622
      %v1627 = vsel %vm1624, %v1620, %v1621
      %v1628 = vsel %vm1624, %v1619, %v1620
      %v1629 = vsel %vm1624, %v1618, %v1619
      %v1630 = vsel %vm1624, %v1617, %v1618
      %v1631 = vsel %vm1624, %v1616, %v1617
      %v1632 = vsel %vm1624, %v1615, %v1616
      %v1633 = vsel %vm1624, %v1614, %v1615
      %v1634 = vsel %vm1624, %v1613, %v1614
      %v1635 = vsel %vm1624, %v1612, %v1613
      %v1636 = vsel %vm1624, %v1611, %v1612
      %v1637 = vsel %vm1624, %v1610, %v1611
      %v1638 = vsel %vm1624, %v1609, %v1610
      %v1639 = vsel %vm1624, %v1608, %v1609
      %v1640 = vsel %vm1624, %v1607, %v1608
      %v1641 = vsel %vm1624, %v1606, %v1607
      %v1642 = vsel %vm1624, %v1605, %v1606
      %v1643 = vsel %vm1624, %v1604, %v1605
      %v1644 = vsel %vm1624, %v1603, %v1604
      %v1645 = vsel %vm1624, %v1602, %v1603
      %v1646 = vsel %vm1624, %v1601, %v1602
      %v1647 = vsel %vm1624, %v1600, %v1601
      %v1648 = vsel %vm1624, %v1599, %v1600
      %v1649 = vsel %vm1624, %v1598, %v1599
      %v1650 = vsel %vm1624, %v1597, %v1598
      %v1651 = vsel %vm1624, %v1596, %v1597
      %v1652 = vsel %vm1624, %v1595, %v1596
      %v1653 = vsel %vm1624, %v1594, %v1595
      %v1654 = vsel %vm1624, %v1593, %v1594
      %v1655 = vsel %vm1624, %v1592, %v1593
      %v1656 = vsel %vm1624, %v1623, %v1592
      %s1657 = scalar_lea.vmem %s5, 512
      %v1658 = vld [vmem:[%s1657] sm:$0xff]
      %v1659 = vld [vmem:[%s1657 + $0x8] sm:$0xff]
      %v1660 = vld [vmem:[%s1657 + $0x10] sm:$0xff]
      %v1661 = vld [vmem:[%s1657 + $0x18] sm:$0xff]
      %v1662 = vld [vmem:[%s1657 + $0x20] sm:$0xff]
      %v1663 = vld [vmem:[%s1657 + $0x28] sm:$0xff]
      %v1664 = vld [vmem:[%s1657 + $0x30] sm:$0xff]
      %v1665 = vld [vmem:[%s1657 + $0x38] sm:$0xff]
      %v1666 = vld [vmem:[%s1657 + $0x40] sm:$0xff]
      %v1667 = vld [vmem:[%s1657 + $0x48] sm:$0xff]
      %v1668 = vld [vmem:[%s1657 + $0x50] sm:$0xff]
      %v1669 = vld [vmem:[%s1657 + $0x58] sm:$0xff]
      %v1670 = vld [vmem:[%s1657 + $0x60] sm:$0xff]
      %v1671 = vld [vmem:[%s1657 + $0x68] sm:$0xff]
      %v1672 = vld [vmem:[%s1657 + $0x70] sm:$0xff]
      %v1673 = vld [vmem:[%s1657 + $0x78] sm:$0xff]
      %v1674 = vld [vmem:[%s1657 + $0x80] sm:$0xff]
      %v1675 = vld [vmem:[%s1657 + $0x88] sm:$0xff]
      %v1676 = vld [vmem:[%s1657 + $0x90] sm:$0xff]
      %v1677 = vld [vmem:[%s1657 + $0x98] sm:$0xff]
      %v1678 = vld [vmem:[%s1657 + $0xa0] sm:$0xff]
      %v1679 = vld [vmem:[%s1657 + $0xa8] sm:$0xff]
      %v1680 = vld [vmem:[%s1657 + $0xb0] sm:$0xff]
      %v1681 = vld [vmem:[%s1657 + $0xb8] sm:$0xff]
      %v1682 = vld [vmem:[%s1657 + $0xc0] sm:$0xff]
      %v1683 = vld [vmem:[%s1657 + $0xc8] sm:$0xff]
      %v1684 = vld [vmem:[%s1657 + $0xd0] sm:$0xff]
      %v1685 = vld [vmem:[%s1657 + $0xd8] sm:$0xff]
      %v1686 = vld [vmem:[%s1657 + $0xe0] sm:$0xff]
      %v1687 = vld [vmem:[%s1657 + $0xe8] sm:$0xff]
      %v1688 = vld [vmem:[%s1657 + $0xf0] sm:$0xff]
      %v1689 = vld [vmem:[%s1657 + $0xf8] sm:$0xff]
      %1691 = vset.pattern.permute.xlu0 0
      %1692 = vperm.xlu0 %1691, %v1658
      %v1693 = vpop.permute.xlu0 %1692
      %1696 = vset.pattern.permute.xlu0 0
      %1697 = vperm.xlu0 %1696, %v1659
      %v1698 = vpop.permute.xlu0 %1697
      %1701 = vset.pattern.permute.xlu0 0
      %1702 = vperm.xlu0 %1701, %v1660
      %v1703 = vpop.permute.xlu0 %1702
      %1706 = vset.pattern.permute.xlu0 0
      %1707 = vperm.xlu0 %1706, %v1661
      %v1708 = vpop.permute.xlu0 %1707
      %1711 = vset.pattern.permute.xlu0 0
      %1712 = vperm.xlu0 %1711, %v1662
      %v1713 = vpop.permute.xlu0 %1712
      %1716 = vset.pattern.permute.xlu0 0
      %1717 = vperm.xlu0 %1716, %v1663
      %v1718 = vpop.permute.xlu0 %1717
      %1721 = vset.pattern.permute.xlu0 0
      %1722 = vperm.xlu0 %1721, %v1664
      %v1723 = vpop.permute.xlu0 %1722
      %1726 = vset.pattern.permute.xlu0 0
      %1727 = vperm.xlu0 %1726, %v1665
      %v1728 = vpop.permute.xlu0 %1727
      %1731 = vset.pattern.permute.xlu0 0
      %1732 = vperm.xlu0 %1731, %v1666
      %v1733 = vpop.permute.xlu0 %1732
      %1736 = vset.pattern.permute.xlu0 0
      %1737 = vperm.xlu0 %1736, %v1667
      %v1738 = vpop.permute.xlu0 %1737
      %1741 = vset.pattern.permute.xlu0 0
      %1742 = vperm.xlu0 %1741, %v1668
      %v1743 = vpop.permute.xlu0 %1742
      %1746 = vset.pattern.permute.xlu0 0
      %1747 = vperm.xlu0 %1746, %v1669
      %v1748 = vpop.permute.xlu0 %1747
      %1751 = vset.pattern.permute.xlu0 0
      %1752 = vperm.xlu0 %1751, %v1670
      %v1753 = vpop.permute.xlu0 %1752
      %1756 = vset.pattern.permute.xlu0 0
      %1757 = vperm.xlu0 %1756, %v1671
      %v1758 = vpop.permute.xlu0 %1757
      %1761 = vset.pattern.permute.xlu0 0
      %1762 = vperm.xlu0 %1761, %v1672
      %v1763 = vpop.permute.xlu0 %1762
      %1766 = vset.pattern.permute.xlu0 0
      %1767 = vperm.xlu0 %1766, %v1673
      %v1768 = vpop.permute.xlu0 %1767
      %1771 = vset.pattern.permute.xlu0 0
      %1772 = vperm.xlu0 %1771, %v1674
      %v1773 = vpop.permute.xlu0 %1772
      %1776 = vset.pattern.permute.xlu0 0
      %1777 = vperm.xlu0 %1776, %v1675
      %v1778 = vpop.permute.xlu0 %1777
      %1781 = vset.pattern.permute.xlu0 0
      %1782 = vperm.xlu0 %1781, %v1676
      %v1783 = vpop.permute.xlu0 %1782
      %1786 = vset.pattern.permute.xlu0 0
      %1787 = vperm.xlu0 %1786, %v1677
      %v1788 = vpop.permute.xlu0 %1787
      %1791 = vset.pattern.permute.xlu0 0
      %1792 = vperm.xlu0 %1791, %v1678
      %v1793 = vpop.permute.xlu0 %1792
      %1796 = vset.pattern.permute.xlu0 0
      %1797 = vperm.xlu0 %1796, %v1679
      %v1798 = vpop.permute.xlu0 %1797
      %1801 = vset.pattern.permute.xlu0 0
      %1802 = vperm.xlu0 %1801, %v1680
      %v1803 = vpop.permute.xlu0 %1802
      %1806 = vset.pattern.permute.xlu0 0
      %1807 = vperm.xlu0 %1806, %v1681
      %v1808 = vpop.permute.xlu0 %1807
      %1811 = vset.pattern.permute.xlu0 0
      %1812 = vperm.xlu0 %1811, %v1682
      %v1813 = vpop.permute.xlu0 %1812
      %1816 = vset.pattern.permute.xlu0 0
      %1817 = vperm.xlu0 %1816, %v1683
      %v1818 = vpop.permute.xlu0 %1817
      %1821 = vset.pattern.permute.xlu0 0
      %1822 = vperm.xlu0 %1821, %v1684
      %v1823 = vpop.permute.xlu0 %1822
      %1826 = vset.pattern.permute.xlu0 0
      %1827 = vperm.xlu0 %1826, %v1685
      %v1828 = vpop.permute.xlu0 %1827
      %1831 = vset.pattern.permute.xlu0 0
      %1832 = vperm.xlu0 %1831, %v1686
      %v1833 = vpop.permute.xlu0 %1832
      %1836 = vset.pattern.permute.xlu0 0
      %1837 = vperm.xlu0 %1836, %v1687
      %v1838 = vpop.permute.xlu0 %1837
      %1841 = vset.pattern.permute.xlu0 0
      %1842 = vperm.xlu0 %1841, %v1688
      %v1843 = vpop.permute.xlu0 %1842
      %1846 = vset.pattern.permute.xlu0 0
      %1847 = vperm.xlu0 %1846, %v1689
      %v1848 = vpop.permute.xlu0 %1847
      %v1850 = vmul.f32 %v1625, %v1693
      %v1851 = vmul.f32 %v1656, %v1698
      %v1852 = vmul.f32 %v1655, %v1703
      %v1853 = vmul.f32 %v1654, %v1708
      %v1854 = vmul.f32 %v1653, %v1713
      %v1855 = vmul.f32 %v1652, %v1718
      %v1856 = vmul.f32 %v1651, %v1723
      %v1857 = vmul.f32 %v1650, %v1728
      %v1858 = vmul.f32 %v1649, %v1733
      %v1859 = vmul.f32 %v1648, %v1738
      %v1860 = vmul.f32 %v1647, %v1743
      %v1861 = vmul.f32 %v1646, %v1748
      %v1862 = vmul.f32 %v1645, %v1753
      %v1863 = vmul.f32 %v1644, %v1758
      %v1864 = vmul.f32 %v1643, %v1763
      %v1865 = vmul.f32 %v1642, %v1768
      %v1866 = vmul.f32 %v1641, %v1773
      %v1867 = vmul.f32 %v1640, %v1778
      %v1868 = vmul.f32 %v1639, %v1783
      %v1869 = vmul.f32 %v1638, %v1788
      %v1870 = vmul.f32 %v1637, %v1793
      %v1871 = vmul.f32 %v1636, %v1798
      %v1872 = vmul.f32 %v1635, %v1803
      %v1873 = vmul.f32 %v1634, %v1808
      %v1874 = vmul.f32 %v1633, %v1813
      %v1875 = vmul.f32 %v1632, %v1818
      %v1876 = vmul.f32 %v1631, %v1823
      %v1877 = vmul.f32 %v1630, %v1828
      %v1878 = vmul.f32 %v1629, %v1833
      %v1879 = vmul.f32 %v1628, %v1838
      %v1880 = vmul.f32 %v1627, %v1843
      %v1881 = vmul.f32 %v1626, %v1848
      %v1882 = vadd.f32 %v1318, %v1850
      %v1883 = vadd.f32 %v1319, %v1851
      %v1884 = vadd.f32 %v1320, %v1852
      %v1885 = vadd.f32 %v1321, %v1853
      %v1886 = vadd.f32 %v1322, %v1854
      %v1887 = vadd.f32 %v1323, %v1855
      %v1888 = vadd.f32 %v1324, %v1856
      %v1889 = vadd.f32 %v1325, %v1857
      %v1890 = vadd.f32 %v1326, %v1858
      %v1891 = vadd.f32 %v1327, %v1859
      %v1892 = vadd.f32 %v1328, %v1860
      %v1893 = vadd.f32 %v1329, %v1861
      %v1894 = vadd.f32 %v1330, %v1862
      %v1895 = vadd.f32 %v1331, %v1863
      %v1896 = vadd.f32 %v1332, %v1864
      %v1897 = vadd.f32 %v1333, %v1865
      %v1898 = vadd.f32 %v1334, %v1866
      %v1899 = vadd.f32 %v1335, %v1867
      %v1900 = vadd.f32 %v1336, %v1868
      %v1901 = vadd.f32 %v1337, %v1869
      %v1902 = vadd.f32 %v1338, %v1870
      %v1903 = vadd.f32 %v1339, %v1871
      %v1904 = vadd.f32 %v1340, %v1872
      %v1905 = vadd.f32 %v1341, %v1873
      %v1906 = vadd.f32 %v1342, %v1874
      %v1907 = vadd.f32 %v1343, %v1875
      %v1908 = vadd.f32 %v1344, %v1876
      %v1909 = vadd.f32 %v1345, %v1877
      %v1910 = vadd.f32 %v1346, %v1878
      %v1911 = vadd.f32 %v1347, %v1879
      %v1912 = vadd.f32 %v1348, %v1880
      %v1913 = vadd.f32 %v1349, %v1881
      %s1914 = scalar_lea.vmem %s1, 384
      %v1915 = vld [vmem:[%s1914] sm:$0xff]
      %v1916 = vld [vmem:[%s1914 + $0x8] sm:$0xff]
      %v1917 = vld [vmem:[%s1914 + $0x10] sm:$0xff]
      %v1918 = vld [vmem:[%s1914 + $0x18] sm:$0xff]
      %v1919 = vld [vmem:[%s1914 + $0x20] sm:$0xff]
      %v1920 = vld [vmem:[%s1914 + $0x28] sm:$0xff]
      %v1921 = vld [vmem:[%s1914 + $0x30] sm:$0xff]
      %v1922 = vld [vmem:[%s1914 + $0x38] sm:$0xff]
      %v1923 = vld [vmem:[%s1914 + $0x40] sm:$0xff]
      %v1924 = vld [vmem:[%s1914 + $0x48] sm:$0xff]
      %v1925 = vld [vmem:[%s1914 + $0x50] sm:$0xff]
      %v1926 = vld [vmem:[%s1914 + $0x58] sm:$0xff]
      %v1927 = vld [vmem:[%s1914 + $0x60] sm:$0xff]
      %v1928 = vld [vmem:[%s1914 + $0x68] sm:$0xff]
      %v1929 = vld [vmem:[%s1914 + $0x70] sm:$0xff]
      %v1930 = vld [vmem:[%s1914 + $0x78] sm:$0xff]
      %1931 = vmatprep.subr.mxu0 0.0
      %1932 = vmatpush1.msra.mxu0 %v1930
      %1933 = vmatprep.subr.mxu0 0.0
      %1934 = vmatpush1.msra.mxu0 %v1929
      %1935 = vmatprep.subr.mxu0 0.0
      %1936 = vmatpush1.msra.mxu0 %v1928
      %1937 = vmatprep.subr.mxu0 0.0
      %1938 = vmatpush1.msra.mxu0 %v1927
      %1939 = vmatprep.subr.mxu0 0.0
      %1940 = vmatpush1.msra.mxu0 %v1926
      %1941 = vmatprep.subr.mxu0 0.0
      %1942 = vmatpush1.msra.mxu0 %v1925
      %1943 = vmatprep.subr.mxu0 0.0
      %1944 = vmatpush1.msra.mxu0 %v1924
      %1945 = vmatprep.subr.mxu0 0.0
      %1946 = vmatpush1.msra.mxu0 %v1923
      %1947 = vmatprep.subr.mxu0 0.0
      %1948 = vmatpush1.msra.mxu0 %v1922
      %1949 = vmatprep.subr.mxu0 0.0
      %1950 = vmatpush1.msra.mxu0 %v1921
      %1951 = vmatprep.subr.mxu0 0.0
      %1952 = vmatpush1.msra.mxu0 %v1920
      %1953 = vmatprep.subr.mxu0 0.0
      %1954 = vmatpush1.msra.mxu0 %v1919
      %1955 = vmatprep.subr.mxu0 0.0
      %1956 = vmatpush1.msra.mxu0 %v1918
      %1957 = vmatprep.subr.mxu0 0.0
      %1958 = vmatpush1.msra.mxu0 %v1917
      %1959 = vmatprep.subr.mxu0 0.0
      %1960 = vmatpush1.msra.mxu0 %v1916
      %1961 = vmatprep.subr.mxu0 0.0
      %1962 = vmatpush1.msra.mxu0 %v1915
      %1963 = vmatprep.subr.mxu0 0.0
      %1964 = vmatpush2.msra.mxu0 0.0
      %1965 = vmatprep.subr.mxu0 0.0
      %1966 = vmatpush2.msra.mxu0 0.0
      %1967 = vmatprep.subr.mxu0 0.0
      %1968 = vmatpush2.msra.mxu0 0.0
      %1969 = vmatprep.subr.mxu0 0.0
      %1970 = vmatpush2.msra.mxu0 0.0
      %1971 = vmatprep.subr.mxu0 0.0
      %1972 = vmatpush2.msra.mxu0 0.0
      %1973 = vmatprep.subr.mxu0 0.0
      %1974 = vmatpush2.msra.mxu0 0.0
      %1975 = vmatprep.subr.mxu0 0.0
      %1976 = vmatpush2.msra.mxu0 0.0
      %1977 = vmatprep.subr.mxu0 0.0
      %1978 = vmatpush2.msra.mxu0 0.0
      %1979 = vmatprep.subr.mxu0 0.0
      %1980 = vmatpush2.msra.mxu0 0.0
      %1981 = vmatprep.subr.mxu0 0.0
      %1982 = vmatpush2.msra.mxu0 0.0
      %1983 = vmatprep.subr.mxu0 0.0
      %1984 = vmatpush2.msra.mxu0 0.0
      %1985 = vmatprep.subr.mxu0 0.0
      %1986 = vmatpush2.msra.mxu0 0.0
      %1987 = vmatprep.subr.mxu0 0.0
      %1988 = vmatpush2.msra.mxu0 0.0
      %1989 = vmatprep.subr.mxu0 0.0
      %1990 = vmatpush2.msra.mxu0 0.0
      %1991 = vmatprep.subr.mxu0 0.0
      %1992 = vmatpush2.msra.mxu0 0.0
      %1993 = vmatprep.subr.mxu0 0.0
      %1994 = vmatpush2.msra.mxu0 0.0
      %1995 = vmatprep.mubr.f32.mxu0 0.0
      %1996 = vmatmul.mubr.f32.gmra.mxu0 %v255
      %v1997 = vpop.f32.mrf.mxu0
      %v1998 = vadd.f32 0.0, %v1997
      %v1999 = vpop.f32.mrf.mxu0
      %2000 = vmatprep.mubr.f32.mxu0 0.0
      %2001 = vmatmul.mubr.f32.gmra.mxu0 %v256
      %v2002 = vpop.f32.mrf.mxu0
      %v2003 = vadd.f32 0.0, %v2002
      %v2004 = vpop.f32.mrf.mxu0
      %2005 = vmatprep.mubr.f32.mxu0 0.0
      %2006 = vmatmul.mubr.f32.gmra.mxu0 %v257
      %v2007 = vpop.f32.mrf.mxu0
      %v2008 = vadd.f32 0.0, %v2007
      %v2009 = vpop.f32.mrf.mxu0
      %2010 = vmatprep.mubr.f32.mxu0 0.0
      %2011 = vmatmul.mubr.f32.gmra.mxu0 %v258
      %v2012 = vpop.f32.mrf.mxu0
      %v2013 = vadd.f32 0.0, %v2012
      %v2014 = vpop.f32.mrf.mxu0
      %2015 = vmatprep.mubr.f32.mxu0 0.0
      %2016 = vmatmul.mubr.f32.gmra.mxu0 %v259
      %v2017 = vpop.f32.mrf.mxu0
      %v2018 = vadd.f32 0.0, %v2017
      %v2019 = vpop.f32.mrf.mxu0
      %2020 = vmatprep.mubr.f32.mxu0 0.0
      %2021 = vmatmul.mubr.f32.gmra.mxu0 %v260
      %v2022 = vpop.f32.mrf.mxu0
      %v2023 = vadd.f32 0.0, %v2022
      %v2024 = vpop.f32.mrf.mxu0
      %2025 = vmatprep.mubr.f32.mxu0 0.0
      %2026 = vmatmul.mubr.f32.gmra.mxu0 %v261
      %v2027 = vpop.f32.mrf.mxu0
      %v2028 = vadd.f32 0.0, %v2027
      %v2029 = vpop.f32.mrf.mxu0
      %2030 = vmatprep.mubr.f32.mxu0 0.0
      %2031 = vmatmul.mubr.f32.gmra.mxu0 %v262
      %v2032 = vpop.f32.mrf.mxu0
      %v2033 = vadd.f32 0.0, %v2032
      %v2034 = vpop.f32.mrf.mxu0
      %2035 = vmatprep.mubr.f32.mxu0 0.0
      %2036 = vmatmul.mubr.f32.gmra.mxu0 %v263
      %v2037 = vpop.f32.mrf.mxu0
      %v2038 = vadd.f32 0.0, %v2037
      %v2039 = vpop.f32.mrf.mxu0
      %2040 = vmatprep.mubr.f32.mxu0 0.0
      %2041 = vmatmul.mubr.f32.gmra.mxu0 %v264
      %v2042 = vpop.f32.mrf.mxu0
      %v2043 = vadd.f32 0.0, %v2042
      %v2044 = vpop.f32.mrf.mxu0
      %2045 = vmatprep.mubr.f32.mxu0 0.0
      %2046 = vmatmul.mubr.f32.gmra.mxu0 %v265
      %v2047 = vpop.f32.mrf.mxu0
      %v2048 = vadd.f32 0.0, %v2047
      %v2049 = vpop.f32.mrf.mxu0
      %2050 = vmatprep.mubr.f32.mxu0 0.0
      %2051 = vmatmul.mubr.f32.gmra.mxu0 %v266
      %v2052 = vpop.f32.mrf.mxu0
      %v2053 = vadd.f32 0.0, %v2052
      %v2054 = vpop.f32.mrf.mxu0
      %2055 = vmatprep.mubr.f32.mxu0 0.0
      %2056 = vmatmul.mubr.f32.gmra.mxu0 %v267
      %v2057 = vpop.f32.mrf.mxu0
      %v2058 = vadd.f32 0.0, %v2057
      %v2059 = vpop.f32.mrf.mxu0
      %2060 = vmatprep.mubr.f32.mxu0 0.0
      %2061 = vmatmul.mubr.f32.gmra.mxu0 %v268
      %v2062 = vpop.f32.mrf.mxu0
      %v2063 = vadd.f32 0.0, %v2062
      %v2064 = vpop.f32.mrf.mxu0
      %2065 = vmatprep.mubr.f32.mxu0 0.0
      %2066 = vmatmul.mubr.f32.gmra.mxu0 %v269
      %v2067 = vpop.f32.mrf.mxu0
      %v2068 = vadd.f32 0.0, %v2067
      %v2069 = vpop.f32.mrf.mxu0
      %2070 = vmatprep.mubr.f32.mxu0 0.0
      %2071 = vmatmul.mubr.f32.gmra.mxu0 %v270
      %v2072 = vpop.f32.mrf.mxu0
      %v2073 = vadd.f32 0.0, %v2072
      %v2074 = vpop.f32.mrf.mxu0
      %2075 = vmatprep.mubr.f32.mxu0 0.0
      %2076 = vmatmul.mubr.f32.gmra.mxu0 %v271
      %v2077 = vpop.f32.mrf.mxu0
      %v2078 = vadd.f32 0.0, %v2077
      %v2079 = vpop.f32.mrf.mxu0
      %2080 = vmatprep.mubr.f32.mxu0 0.0
      %2081 = vmatmul.mubr.f32.gmra.mxu0 %v272
      %v2082 = vpop.f32.mrf.mxu0
      %v2083 = vadd.f32 0.0, %v2082
      %v2084 = vpop.f32.mrf.mxu0
      %2085 = vmatprep.mubr.f32.mxu0 0.0
      %2086 = vmatmul.mubr.f32.gmra.mxu0 %v273
      %v2087 = vpop.f32.mrf.mxu0
      %v2088 = vadd.f32 0.0, %v2087
      %v2089 = vpop.f32.mrf.mxu0
      %2090 = vmatprep.mubr.f32.mxu0 0.0
      %2091 = vmatmul.mubr.f32.gmra.mxu0 %v274
      %v2092 = vpop.f32.mrf.mxu0
      %v2093 = vadd.f32 0.0, %v2092
      %v2094 = vpop.f32.mrf.mxu0
      %2095 = vmatprep.mubr.f32.mxu0 0.0
      %2096 = vmatmul.mubr.f32.gmra.mxu0 %v275
      %v2097 = vpop.f32.mrf.mxu0
      %v2098 = vadd.f32 0.0, %v2097
      %v2099 = vpop.f32.mrf.mxu0
      %2100 = vmatprep.mubr.f32.mxu0 0.0
      %2101 = vmatmul.mubr.f32.gmra.mxu0 %v276
      %v2102 = vpop.f32.mrf.mxu0
      %v2103 = vadd.f32 0.0, %v2102
      %v2104 = vpop.f32.mrf.mxu0
      %2105 = vmatprep.mubr.f32.mxu0 0.0
      %2106 = vmatmul.mubr.f32.gmra.mxu0 %v277
      %v2107 = vpop.f32.mrf.mxu0
      %v2108 = vadd.f32 0.0, %v2107
      %v2109 = vpop.f32.mrf.mxu0
      %2110 = vmatprep.mubr.f32.mxu0 0.0
      %2111 = vmatmul.mubr.f32.gmra.mxu0 %v278
      %v2112 = vpop.f32.mrf.mxu0
      %v2113 = vadd.f32 0.0, %v2112
      %v2114 = vpop.f32.mrf.mxu0
      %2115 = vmatprep.mubr.f32.mxu0 0.0
      %2116 = vmatmul.mubr.f32.gmra.mxu0 %v279
      %v2117 = vpop.f32.mrf.mxu0
      %v2118 = vadd.f32 0.0, %v2117
      %v2119 = vpop.f32.mrf.mxu0
      %2120 = vmatprep.mubr.f32.mxu0 0.0
      %2121 = vmatmul.mubr.f32.gmra.mxu0 %v280
      %v2122 = vpop.f32.mrf.mxu0
      %v2123 = vadd.f32 0.0, %v2122
      %v2124 = vpop.f32.mrf.mxu0
      %2125 = vmatprep.mubr.f32.mxu0 0.0
      %2126 = vmatmul.mubr.f32.gmra.mxu0 %v281
      %v2127 = vpop.f32.mrf.mxu0
      %v2128 = vadd.f32 0.0, %v2127
      %v2129 = vpop.f32.mrf.mxu0
      %2130 = vmatprep.mubr.f32.mxu0 0.0
      %2131 = vmatmul.mubr.f32.gmra.mxu0 %v282
      %v2132 = vpop.f32.mrf.mxu0
      %v2133 = vadd.f32 0.0, %v2132
      %v2134 = vpop.f32.mrf.mxu0
      %2135 = vmatprep.mubr.f32.mxu0 0.0
      %2136 = vmatmul.mubr.f32.gmra.mxu0 %v283
      %v2137 = vpop.f32.mrf.mxu0
      %v2138 = vadd.f32 0.0, %v2137
      %v2139 = vpop.f32.mrf.mxu0
      %2140 = vmatprep.mubr.f32.mxu0 0.0
      %2141 = vmatmul.mubr.f32.gmra.mxu0 %v284
      %v2142 = vpop.f32.mrf.mxu0
      %v2143 = vadd.f32 0.0, %v2142
      %v2144 = vpop.f32.mrf.mxu0
      %2145 = vmatprep.mubr.f32.mxu0 0.0
      %2146 = vmatmul.mubr.f32.gmra.mxu0 %v285
      %v2147 = vpop.f32.mrf.mxu0
      %v2148 = vadd.f32 0.0, %v2147
      %v2149 = vpop.f32.mrf.mxu0
      %2150 = vmatprep.mubr.f32.mxu0 0.0
      %2151 = vmatmul.mubr.f32.gmra.mxu0 %v286
      %v2152 = vpop.f32.mrf.mxu0
      %v2153 = vadd.f32 0.0, %v2152
      %v2154 = vpop.f32.mrf.mxu0
      %2155 = vdwg.mxu0
      %v2156 = vrot.slane %v1998, 7
      %v2157 = vrot.slane %v2003, 7
      %v2158 = vrot.slane %v2008, 7
      %v2159 = vrot.slane %v2013, 7
      %v2160 = vrot.slane %v2018, 7
      %v2161 = vrot.slane %v2023, 7
      %v2162 = vrot.slane %v2028, 7
      %v2163 = vrot.slane %v2033, 7
      %v2164 = vrot.slane %v2038, 7
      %v2165 = vrot.slane %v2043, 7
      %v2166 = vrot.slane %v2048, 7
      %v2167 = vrot.slane %v2053, 7
      %v2168 = vrot.slane %v2058, 7
      %v2169 = vrot.slane %v2063, 7
      %v2170 = vrot.slane %v2068, 7
      %v2171 = vrot.slane %v2073, 7
      %v2172 = vrot.slane %v2078, 7
      %v2173 = vrot.slane %v2083, 7
      %v2174 = vrot.slane %v2088, 7
      %v2175 = vrot.slane %v2093, 7
      %v2176 = vrot.slane %v2098, 7
      %v2177 = vrot.slane %v2103, 7
      %v2178 = vrot.slane %v2108, 7
      %v2179 = vrot.slane %v2113, 7
      %v2180 = vrot.slane %v2118, 7
      %v2181 = vrot.slane %v2123, 7
      %v2182 = vrot.slane %v2128, 7
      %v2183 = vrot.slane %v2133, 7
      %v2184 = vrot.slane %v2138, 7
      %v2185 = vrot.slane %v2143, 7
      %v2186 = vrot.slane %v2148, 7
      %v2187 = vrot.slane %v2153, 7
      %v2188 = vsel %vm562, %v2186, %v2187
      %v2189 = vsel %vm562, %v2185, %v2186
      %v2190 = vsel %vm562, %v2184, %v2185
      %v2191 = vsel %vm562, %v2183, %v2184
      %v2192 = vsel %vm562, %v2182, %v2183
      %v2193 = vsel %vm562, %v2181, %v2182
      %v2194 = vsel %vm562, %v2180, %v2181
      %v2195 = vsel %vm562, %v2179, %v2180
      %v2196 = vsel %vm562, %v2178, %v2179
      %v2197 = vsel %vm562, %v2177, %v2178
      %v2198 = vsel %vm562, %v2176, %v2177
      %v2199 = vsel %vm562, %v2175, %v2176
      %v2200 = vsel %vm562, %v2174, %v2175
      %v2201 = vsel %vm562, %v2173, %v2174
      %v2202 = vsel %vm562, %v2172, %v2173
      %v2203 = vsel %vm562, %v2171, %v2172
      %v2204 = vsel %vm562, %v2170, %v2171
      %v2205 = vsel %vm562, %v2169, %v2170
      %v2206 = vsel %vm562, %v2168, %v2169
      %v2207 = vsel %vm562, %v2167, %v2168
      %v2208 = vsel %vm562, %v2166, %v2167
      %v2209 = vsel %vm562, %v2165, %v2166
      %v2210 = vsel %vm562, %v2164, %v2165
      %v2211 = vsel %vm562, %v2163, %v2164
      %v2212 = vsel %vm562, %v2162, %v2163
      %v2213 = vsel %vm562, %v2161, %v2162
      %v2214 = vsel %vm562, %v2160, %v2161
      %v2215 = vsel %vm562, %v2159, %v2160
      %v2216 = vsel %vm562, %v2158, %v2159
      %v2217 = vsel %vm562, %v2157, %v2158
      %v2218 = vsel %vm562, %v2156, %v2157
      %v2219 = vsel %vm562, %v2187, %v2156
      %s2220 = scalar_lea.vmem %s5, 768
      %v2221 = vld [vmem:[%s2220] sm:$0xff]
      %v2222 = vld [vmem:[%s2220 + $0x8] sm:$0xff]
      %v2223 = vld [vmem:[%s2220 + $0x10] sm:$0xff]
      %v2224 = vld [vmem:[%s2220 + $0x18] sm:$0xff]
      %v2225 = vld [vmem:[%s2220 + $0x20] sm:$0xff]
      %v2226 = vld [vmem:[%s2220 + $0x28] sm:$0xff]
      %v2227 = vld [vmem:[%s2220 + $0x30] sm:$0xff]
      %v2228 = vld [vmem:[%s2220 + $0x38] sm:$0xff]
      %v2229 = vld [vmem:[%s2220 + $0x40] sm:$0xff]
      %v2230 = vld [vmem:[%s2220 + $0x48] sm:$0xff]
      %v2231 = vld [vmem:[%s2220 + $0x50] sm:$0xff]
      %v2232 = vld [vmem:[%s2220 + $0x58] sm:$0xff]
      %v2233 = vld [vmem:[%s2220 + $0x60] sm:$0xff]
      %v2234 = vld [vmem:[%s2220 + $0x68] sm:$0xff]
      %v2235 = vld [vmem:[%s2220 + $0x70] sm:$0xff]
      %v2236 = vld [vmem:[%s2220 + $0x78] sm:$0xff]
      %v2237 = vld [vmem:[%s2220 + $0x80] sm:$0xff]
      %v2238 = vld [vmem:[%s2220 + $0x88] sm:$0xff]
      %v2239 = vld [vmem:[%s2220 + $0x90] sm:$0xff]
      %v2240 = vld [vmem:[%s2220 + $0x98] sm:$0xff]
      %v2241 = vld [vmem:[%s2220 + $0xa0] sm:$0xff]
      %v2242 = vld [vmem:[%s2220 + $0xa8] sm:$0xff]
      %v2243 = vld [vmem:[%s2220 + $0xb0] sm:$0xff]
      %v2244 = vld [vmem:[%s2220 + $0xb8] sm:$0xff]
      %v2245 = vld [vmem:[%s2220 + $0xc0] sm:$0xff]
      %v2246 = vld [vmem:[%s2220 + $0xc8] sm:$0xff]
      %v2247 = vld [vmem:[%s2220 + $0xd0] sm:$0xff]
      %v2248 = vld [vmem:[%s2220 + $0xd8] sm:$0xff]
      %v2249 = vld [vmem:[%s2220 + $0xe0] sm:$0xff]
      %v2250 = vld [vmem:[%s2220 + $0xe8] sm:$0xff]
      %v2251 = vld [vmem:[%s2220 + $0xf0] sm:$0xff]
      %v2252 = vld [vmem:[%s2220 + $0xf8] sm:$0xff]
      %2254 = vset.pattern.permute.xlu0 0
      %2255 = vperm.xlu0 %2254, %v2221
      %v2256 = vpop.permute.xlu0 %2255
      %2259 = vset.pattern.permute.xlu0 0
      %2260 = vperm.xlu0 %2259, %v2222
      %v2261 = vpop.permute.xlu0 %2260
      %2264 = vset.pattern.permute.xlu0 0
      %2265 = vperm.xlu0 %2264, %v2223
      %v2266 = vpop.permute.xlu0 %2265
      %2269 = vset.pattern.permute.xlu0 0
      %2270 = vperm.xlu0 %2269, %v2224
      %v2271 = vpop.permute.xlu0 %2270
      %2274 = vset.pattern.permute.xlu0 0
      %2275 = vperm.xlu0 %2274, %v2225
      %v2276 = vpop.permute.xlu0 %2275
      %2279 = vset.pattern.permute.xlu0 0
      %2280 = vperm.xlu0 %2279, %v2226
      %v2281 = vpop.permute.xlu0 %2280
      %2284 = vset.pattern.permute.xlu0 0
      %2285 = vperm.xlu0 %2284, %v2227
      %v2286 = vpop.permute.xlu0 %2285
      %2289 = vset.pattern.permute.xlu0 0
      %2290 = vperm.xlu0 %2289, %v2228
      %v2291 = vpop.permute.xlu0 %2290
      %2294 = vset.pattern.permute.xlu0 0
      %2295 = vperm.xlu0 %2294, %v2229
      %v2296 = vpop.permute.xlu0 %2295
      %2299 = vset.pattern.permute.xlu0 0
      %2300 = vperm.xlu0 %2299, %v2230
      %v2301 = vpop.permute.xlu0 %2300
      %2304 = vset.pattern.permute.xlu0 0
      %2305 = vperm.xlu0 %2304, %v2231
      %v2306 = vpop.permute.xlu0 %2305
      %2309 = vset.pattern.permute.xlu0 0
      %2310 = vperm.xlu0 %2309, %v2232
      %v2311 = vpop.permute.xlu0 %2310
      %2314 = vset.pattern.permute.xlu0 0
      %2315 = vperm.xlu0 %2314, %v2233
      %v2316 = vpop.permute.xlu0 %2315
      %2319 = vset.pattern.permute.xlu0 0
      %2320 = vperm.xlu0 %2319, %v2234
      %v2321 = vpop.permute.xlu0 %2320
      %2324 = vset.pattern.permute.xlu0 0
      %2325 = vperm.xlu0 %2324, %v2235
      %v2326 = vpop.permute.xlu0 %2325
      %2329 = vset.pattern.permute.xlu0 0
      %2330 = vperm.xlu0 %2329, %v2236
      %v2331 = vpop.permute.xlu0 %2330
      %2334 = vset.pattern.permute.xlu0 0
      %2335 = vperm.xlu0 %2334, %v2237
      %v2336 = vpop.permute.xlu0 %2335
      %2339 = vset.pattern.permute.xlu0 0
      %2340 = vperm.xlu0 %2339, %v2238
      %v2341 = vpop.permute.xlu0 %2340
      %2344 = vset.pattern.permute.xlu0 0
      %2345 = vperm.xlu0 %2344, %v2239
      %v2346 = vpop.permute.xlu0 %2345
      %2349 = vset.pattern.permute.xlu0 0
      %2350 = vperm.xlu0 %2349, %v2240
      %v2351 = vpop.permute.xlu0 %2350
      %2354 = vset.pattern.permute.xlu0 0
      %2355 = vperm.xlu0 %2354, %v2241
      %v2356 = vpop.permute.xlu0 %2355
      %2359 = vset.pattern.permute.xlu0 0
      %2360 = vperm.xlu0 %2359, %v2242
      %v2361 = vpop.permute.xlu0 %2360
      %2364 = vset.pattern.permute.xlu0 0
      %2365 = vperm.xlu0 %2364, %v2243
      %v2366 = vpop.permute.xlu0 %2365
      %2369 = vset.pattern.permute.xlu0 0
      %2370 = vperm.xlu0 %2369, %v2244
      %v2371 = vpop.permute.xlu0 %2370
      %2374 = vset.pattern.permute.xlu0 0
      %2375 = vperm.xlu0 %2374, %v2245
      %v2376 = vpop.permute.xlu0 %2375
      %2379 = vset.pattern.permute.xlu0 0
      %2380 = vperm.xlu0 %2379, %v2246
      %v2381 = vpop.permute.xlu0 %2380
      %2384 = vset.pattern.permute.xlu0 0
      %2385 = vperm.xlu0 %2384, %v2247
      %v2386 = vpop.permute.xlu0 %2385
      %2389 = vset.pattern.permute.xlu0 0
      %2390 = vperm.xlu0 %2389, %v2248
      %v2391 = vpop.permute.xlu0 %2390
      %2394 = vset.pattern.permute.xlu0 0
      %2395 = vperm.xlu0 %2394, %v2249
      %v2396 = vpop.permute.xlu0 %2395
      %2399 = vset.pattern.permute.xlu0 0
      %2400 = vperm.xlu0 %2399, %v2250
      %v2401 = vpop.permute.xlu0 %2400
      %2404 = vset.pattern.permute.xlu0 0
      %2405 = vperm.xlu0 %2404, %v2251
      %v2406 = vpop.permute.xlu0 %2405
      %2409 = vset.pattern.permute.xlu0 0
      %2410 = vperm.xlu0 %2409, %v2252
      %v2411 = vpop.permute.xlu0 %2410
      %v2413 = vmul.f32 %v2219, %v2256
      %v2414 = vmul.f32 %v2218, %v2261
      %v2415 = vmul.f32 %v2217, %v2266
      %v2416 = vmul.f32 %v2216, %v2271
      %v2417 = vmul.f32 %v2215, %v2276
      %v2418 = vmul.f32 %v2214, %v2281
      %v2419 = vmul.f32 %v2213, %v2286
      %v2420 = vmul.f32 %v2212, %v2291
      %v2421 = vmul.f32 %v2211, %v2296
      %v2422 = vmul.f32 %v2210, %v2301
      %v2423 = vmul.f32 %v2209, %v2306
      %v2424 = vmul.f32 %v2208, %v2311
      %v2425 = vmul.f32 %v2207, %v2316
      %v2426 = vmul.f32 %v2206, %v2321
      %v2427 = vmul.f32 %v2205, %v2326
      %v2428 = vmul.f32 %v2204, %v2331
      %v2429 = vmul.f32 %v2203, %v2336
      %v2430 = vmul.f32 %v2202, %v2341
      %v2431 = vmul.f32 %v2201, %v2346
      %v2432 = vmul.f32 %v2200, %v2351
      %v2433 = vmul.f32 %v2199, %v2356
      %v2434 = vmul.f32 %v2198, %v2361
      %v2435 = vmul.f32 %v2197, %v2366
      %v2436 = vmul.f32 %v2196, %v2371
      %v2437 = vmul.f32 %v2195, %v2376
      %v2438 = vmul.f32 %v2194, %v2381
      %v2439 = vmul.f32 %v2193, %v2386
      %v2440 = vmul.f32 %v2192, %v2391
      %v2441 = vmul.f32 %v2191, %v2396
      %v2442 = vmul.f32 %v2190, %v2401
      %v2443 = vmul.f32 %v2189, %v2406
      %v2444 = vmul.f32 %v2188, %v2411
      %v2445 = vadd.f32 %v1882, %v2413
      %v2446 = vadd.f32 %v1883, %v2414
      %v2447 = vadd.f32 %v1884, %v2415
      %v2448 = vadd.f32 %v1885, %v2416
      %v2449 = vadd.f32 %v1886, %v2417
      %v2450 = vadd.f32 %v1887, %v2418
      %v2451 = vadd.f32 %v1888, %v2419
      %v2452 = vadd.f32 %v1889, %v2420
      %v2453 = vadd.f32 %v1890, %v2421
      %v2454 = vadd.f32 %v1891, %v2422
      %v2455 = vadd.f32 %v1892, %v2423
      %v2456 = vadd.f32 %v1893, %v2424
      %v2457 = vadd.f32 %v1894, %v2425
      %v2458 = vadd.f32 %v1895, %v2426
      %v2459 = vadd.f32 %v1896, %v2427
      %v2460 = vadd.f32 %v1897, %v2428
      %v2461 = vadd.f32 %v1898, %v2429
      %v2462 = vadd.f32 %v1899, %v2430
      %v2463 = vadd.f32 %v1900, %v2431
      %v2464 = vadd.f32 %v1901, %v2432
      %v2465 = vadd.f32 %v1902, %v2433
      %v2466 = vadd.f32 %v1903, %v2434
      %v2467 = vadd.f32 %v1904, %v2435
      %v2468 = vadd.f32 %v1905, %v2436
      %v2469 = vadd.f32 %v1906, %v2437
      %v2470 = vadd.f32 %v1907, %v2438
      %v2471 = vadd.f32 %v1908, %v2439
      %v2472 = vadd.f32 %v1909, %v2440
      %v2473 = vadd.f32 %v1910, %v2441
      %v2474 = vadd.f32 %v1911, %v2442
      %v2475 = vadd.f32 %v1912, %v2443
      %v2476 = vadd.f32 %v1913, %v2444
      %s2477 = scalar_lea.vmem %s1, 512
      %v2478 = vld [vmem:[%s2477] sm:$0xff]
      %v2479 = vld [vmem:[%s2477 + $0x8] sm:$0xff]
      %v2480 = vld [vmem:[%s2477 + $0x10] sm:$0xff]
      %v2481 = vld [vmem:[%s2477 + $0x18] sm:$0xff]
      %v2482 = vld [vmem:[%s2477 + $0x20] sm:$0xff]
      %v2483 = vld [vmem:[%s2477 + $0x28] sm:$0xff]
      %v2484 = vld [vmem:[%s2477 + $0x30] sm:$0xff]
      %v2485 = vld [vmem:[%s2477 + $0x38] sm:$0xff]
      %v2486 = vld [vmem:[%s2477 + $0x40] sm:$0xff]
      %v2487 = vld [vmem:[%s2477 + $0x48] sm:$0xff]
      %v2488 = vld [vmem:[%s2477 + $0x50] sm:$0xff]
      %v2489 = vld [vmem:[%s2477 + $0x58] sm:$0xff]
      %v2490 = vld [vmem:[%s2477 + $0x60] sm:$0xff]
      %v2491 = vld [vmem:[%s2477 + $0x68] sm:$0xff]
      %v2492 = vld [vmem:[%s2477 + $0x70] sm:$0xff]
      %v2493 = vld [vmem:[%s2477 + $0x78] sm:$0xff]
      %2494 = vmatprep.subr.mxu0 0.0
      %2495 = vmatpush1.msra.mxu0 %v2493
      %2496 = vmatprep.subr.mxu0 0.0
      %2497 = vmatpush1.msra.mxu0 %v2492
      %2498 = vmatprep.subr.mxu0 0.0
      %2499 = vmatpush1.msra.mxu0 %v2491
      %2500 = vmatprep.subr.mxu0 0.0
      %2501 = vmatpush1.msra.mxu0 %v2490
      %2502 = vmatprep.subr.mxu0 0.0
      %2503 = vmatpush1.msra.mxu0 %v2489
      %2504 = vmatprep.subr.mxu0 0.0
      %2505 = vmatpush1.msra.mxu0 %v2488
      %2506 = vmatprep.subr.mxu0 0.0
      %2507 = vmatpush1.msra.mxu0 %v2487
      %2508 = vmatprep.subr.mxu0 0.0
      %2509 = vmatpush1.msra.mxu0 %v2486
      %2510 = vmatprep.subr.mxu0 0.0
      %2511 = vmatpush1.msra.mxu0 %v2485
      %2512 = vmatprep.subr.mxu0 0.0
      %2513 = vmatpush1.msra.mxu0 %v2484
      %2514 = vmatprep.subr.mxu0 0.0
      %2515 = vmatpush1.msra.mxu0 %v2483
      %2516 = vmatprep.subr.mxu0 0.0
      %2517 = vmatpush1.msra.mxu0 %v2482
      %2518 = vmatprep.subr.mxu0 0.0
      %2519 = vmatpush1.msra.mxu0 %v2481
      %2520 = vmatprep.subr.mxu0 0.0
      %2521 = vmatpush1.msra.mxu0 %v2480
      %2522 = vmatprep.subr.mxu0 0.0
      %2523 = vmatpush1.msra.mxu0 %v2479
      %2524 = vmatprep.subr.mxu0 0.0
      %2525 = vmatpush1.msra.mxu0 %v2478
      %2526 = vmatprep.subr.mxu0 0.0
      %2527 = vmatpush2.msra.mxu0 0.0
      %2528 = vmatprep.subr.mxu0 0.0
      %2529 = vmatpush2.msra.mxu0 0.0
      %2530 = vmatprep.subr.mxu0 0.0
      %2531 = vmatpush2.msra.mxu0 0.0
      %2532 = vmatprep.subr.mxu0 0.0
      %2533 = vmatpush2.msra.mxu0 0.0
      %2534 = vmatprep.subr.mxu0 0.0
      %2535 = vmatpush2.msra.mxu0 0.0
      %2536 = vmatprep.subr.mxu0 0.0
      %2537 = vmatpush2.msra.mxu0 0.0
      %2538 = vmatprep.subr.mxu0 0.0
      %2539 = vmatpush2.msra.mxu0 0.0
      %2540 = vmatprep.subr.mxu0 0.0
      %2541 = vmatpush2.msra.mxu0 0.0
      %2542 = vmatprep.subr.mxu0 0.0
      %2543 = vmatpush2.msra.mxu0 0.0
      %2544 = vmatprep.subr.mxu0 0.0
      %2545 = vmatpush2.msra.mxu0 0.0
      %2546 = vmatprep.subr.mxu0 0.0
      %2547 = vmatpush2.msra.mxu0 0.0
      %2548 = vmatprep.subr.mxu0 0.0
      %2549 = vmatpush2.msra.mxu0 0.0
      %2550 = vmatprep.subr.mxu0 0.0
      %2551 = vmatpush2.msra.mxu0 0.0
      %2552 = vmatprep.subr.mxu0 0.0
      %2553 = vmatpush2.msra.mxu0 0.0
      %2554 = vmatprep.subr.mxu0 0.0
      %2555 = vmatpush2.msra.mxu0 0.0
      %2556 = vmatprep.subr.mxu0 0.0
      %2557 = vmatpush2.msra.mxu0 0.0
      %2558 = vmatprep.mubr.f32.mxu0 0.0
      %2559 = vmatmul.mubr.f32.gmra.mxu0 %v255
      %v2560 = vpop.f32.mrf.mxu0
      %v2561 = vadd.f32 0.0, %v2560
      %v2562 = vpop.f32.mrf.mxu0
      %2563 = vmatprep.mubr.f32.mxu0 0.0
      %2564 = vmatmul.mubr.f32.gmra.mxu0 %v256
      %v2565 = vpop.f32.mrf.mxu0
      %v2566 = vadd.f32 0.0, %v2565
      %v2567 = vpop.f32.mrf.mxu0
      %2568 = vmatprep.mubr.f32.mxu0 0.0
      %2569 = vmatmul.mubr.f32.gmra.mxu0 %v257
      %v2570 = vpop.f32.mrf.mxu0
      %v2571 = vadd.f32 0.0, %v2570
      %v2572 = vpop.f32.mrf.mxu0
      %2573 = vmatprep.mubr.f32.mxu0 0.0
      %2574 = vmatmul.mubr.f32.gmra.mxu0 %v258
      %v2575 = vpop.f32.mrf.mxu0
      %v2576 = vadd.f32 0.0, %v2575
      %v2577 = vpop.f32.mrf.mxu0
      %2578 = vmatprep.mubr.f32.mxu0 0.0
      %2579 = vmatmul.mubr.f32.gmra.mxu0 %v259
      %v2580 = vpop.f32.mrf.mxu0
      %v2581 = vadd.f32 0.0, %v2580
      %v2582 = vpop.f32.mrf.mxu0
      %2583 = vmatprep.mubr.f32.mxu0 0.0
      %2584 = vmatmul.mubr.f32.gmra.mxu0 %v260
      %v2585 = vpop.f32.mrf.mxu0
      %v2586 = vadd.f32 0.0, %v2585
      %v2587 = vpop.f32.mrf.mxu0
      %2588 = vmatprep.mubr.f32.mxu0 0.0
      %2589 = vmatmul.mubr.f32.gmra.mxu0 %v261
      %v2590 = vpop.f32.mrf.mxu0
      %v2591 = vadd.f32 0.0, %v2590
      %v2592 = vpop.f32.mrf.mxu0
      %2593 = vmatprep.mubr.f32.mxu0 0.0
      %2594 = vmatmul.mubr.f32.gmra.mxu0 %v262
      %v2595 = vpop.f32.mrf.mxu0
      %v2596 = vadd.f32 0.0, %v2595
      %v2597 = vpop.f32.mrf.mxu0
      %2598 = vmatprep.mubr.f32.mxu0 0.0
      %2599 = vmatmul.mubr.f32.gmra.mxu0 %v263
      %v2600 = vpop.f32.mrf.mxu0
      %v2601 = vadd.f32 0.0, %v2600
      %v2602 = vpop.f32.mrf.mxu0
      %2603 = vmatprep.mubr.f32.mxu0 0.0
      %2604 = vmatmul.mubr.f32.gmra.mxu0 %v264
      %v2605 = vpop.f32.mrf.mxu0
      %v2606 = vadd.f32 0.0, %v2605
      %v2607 = vpop.f32.mrf.mxu0
      %2608 = vmatprep.mubr.f32.mxu0 0.0
      %2609 = vmatmul.mubr.f32.gmra.mxu0 %v265
      %v2610 = vpop.f32.mrf.mxu0
      %v2611 = vadd.f32 0.0, %v2610
      %v2612 = vpop.f32.mrf.mxu0
      %2613 = vmatprep.mubr.f32.mxu0 0.0
      %2614 = vmatmul.mubr.f32.gmra.mxu0 %v266
      %v2615 = vpop.f32.mrf.mxu0
      %v2616 = vadd.f32 0.0, %v2615
      %v2617 = vpop.f32.mrf.mxu0
      %2618 = vmatprep.mubr.f32.mxu0 0.0
      %2619 = vmatmul.mubr.f32.gmra.mxu0 %v267
      %v2620 = vpop.f32.mrf.mxu0
      %v2621 = vadd.f32 0.0, %v2620
      %v2622 = vpop.f32.mrf.mxu0
      %2623 = vmatprep.mubr.f32.mxu0 0.0
      %2624 = vmatmul.mubr.f32.gmra.mxu0 %v268
      %v2625 = vpop.f32.mrf.mxu0
      %v2626 = vadd.f32 0.0, %v2625
      %v2627 = vpop.f32.mrf.mxu0
      %2628 = vmatprep.mubr.f32.mxu0 0.0
      %2629 = vmatmul.mubr.f32.gmra.mxu0 %v269
      %v2630 = vpop.f32.mrf.mxu0
      %v2631 = vadd.f32 0.0, %v2630
      %v2632 = vpop.f32.mrf.mxu0
      %2633 = vmatprep.mubr.f32.mxu0 0.0
      %2634 = vmatmul.mubr.f32.gmra.mxu0 %v270
      %v2635 = vpop.f32.mrf.mxu0
      %v2636 = vadd.f32 0.0, %v2635
      %v2637 = vpop.f32.mrf.mxu0
      %2638 = vmatprep.mubr.f32.mxu0 0.0
      %2639 = vmatmul.mubr.f32.gmra.mxu0 %v271
      %v2640 = vpop.f32.mrf.mxu0
      %v2641 = vadd.f32 0.0, %v2640
      %v2642 = vpop.f32.mrf.mxu0
      %2643 = vmatprep.mubr.f32.mxu0 0.0
      %2644 = vmatmul.mubr.f32.gmra.mxu0 %v272
      %v2645 = vpop.f32.mrf.mxu0
      %v2646 = vadd.f32 0.0, %v2645
      %v2647 = vpop.f32.mrf.mxu0
      %2648 = vmatprep.mubr.f32.mxu0 0.0
      %2649 = vmatmul.mubr.f32.gmra.mxu0 %v273
      %v2650 = vpop.f32.mrf.mxu0
      %v2651 = vadd.f32 0.0, %v2650
      %v2652 = vpop.f32.mrf.mxu0
      %2653 = vmatprep.mubr.f32.mxu0 0.0
      %2654 = vmatmul.mubr.f32.gmra.mxu0 %v274
      %v2655 = vpop.f32.mrf.mxu0
      %v2656 = vadd.f32 0.0, %v2655
      %v2657 = vpop.f32.mrf.mxu0
      %2658 = vmatprep.mubr.f32.mxu0 0.0
      %2659 = vmatmul.mubr.f32.gmra.mxu0 %v275
      %v2660 = vpop.f32.mrf.mxu0
      %v2661 = vadd.f32 0.0, %v2660
      %v2662 = vpop.f32.mrf.mxu0
      %2663 = vmatprep.mubr.f32.mxu0 0.0
      %2664 = vmatmul.mubr.f32.gmra.mxu0 %v276
      %v2665 = vpop.f32.mrf.mxu0
      %v2666 = vadd.f32 0.0, %v2665
      %v2667 = vpop.f32.mrf.mxu0
      %2668 = vmatprep.mubr.f32.mxu0 0.0
      %2669 = vmatmul.mubr.f32.gmra.mxu0 %v277
      %v2670 = vpop.f32.mrf.mxu0
      %v2671 = vadd.f32 0.0, %v2670
      %v2672 = vpop.f32.mrf.mxu0
      %2673 = vmatprep.mubr.f32.mxu0 0.0
      %2674 = vmatmul.mubr.f32.gmra.mxu0 %v278
      %v2675 = vpop.f32.mrf.mxu0
      %v2676 = vadd.f32 0.0, %v2675
      %v2677 = vpop.f32.mrf.mxu0
      %2678 = vmatprep.mubr.f32.mxu0 0.0
      %2679 = vmatmul.mubr.f32.gmra.mxu0 %v279
      %v2680 = vpop.f32.mrf.mxu0
      %v2681 = vadd.f32 0.0, %v2680
      %v2682 = vpop.f32.mrf.mxu0
      %2683 = vmatprep.mubr.f32.mxu0 0.0
      %2684 = vmatmul.mubr.f32.gmra.mxu0 %v280
      %v2685 = vpop.f32.mrf.mxu0
      %v2686 = vadd.f32 0.0, %v2685
      %v2687 = vpop.f32.mrf.mxu0
      %2688 = vmatprep.mubr.f32.mxu0 0.0
      %2689 = vmatmul.mubr.f32.gmra.mxu0 %v281
      %v2690 = vpop.f32.mrf.mxu0
      %v2691 = vadd.f32 0.0, %v2690
      %v2692 = vpop.f32.mrf.mxu0
      %2693 = vmatprep.mubr.f32.mxu0 0.0
      %2694 = vmatmul.mubr.f32.gmra.mxu0 %v282
      %v2695 = vpop.f32.mrf.mxu0
      %v2696 = vadd.f32 0.0, %v2695
      %v2697 = vpop.f32.mrf.mxu0
      %2698 = vmatprep.mubr.f32.mxu0 0.0
      %2699 = vmatmul.mubr.f32.gmra.mxu0 %v283
      %v2700 = vpop.f32.mrf.mxu0
      %v2701 = vadd.f32 0.0, %v2700
      %v2702 = vpop.f32.mrf.mxu0
      %2703 = vmatprep.mubr.f32.mxu0 0.0
      %2704 = vmatmul.mubr.f32.gmra.mxu0 %v284
      %v2705 = vpop.f32.mrf.mxu0
      %v2706 = vadd.f32 0.0, %v2705
      %v2707 = vpop.f32.mrf.mxu0
      %2708 = vmatprep.mubr.f32.mxu0 0.0
      %2709 = vmatmul.mubr.f32.gmra.mxu0 %v285
      %v2710 = vpop.f32.mrf.mxu0
      %v2711 = vadd.f32 0.0, %v2710
      %v2712 = vpop.f32.mrf.mxu0
      %2713 = vmatprep.mubr.f32.mxu0 0.0
      %2714 = vmatmul.mubr.f32.gmra.mxu0 %v286
      %v2715 = vpop.f32.mrf.mxu0
      %v2716 = vadd.f32 0.0, %v2715
      %v2717 = vpop.f32.mrf.mxu0
      %2718 = vdwg.mxu0
      %v2719 = vadd.f32 %v2445, %v2561
      %v2720 = vadd.f32 %v2446, %v2566
      %v2721 = vadd.f32 %v2447, %v2571
      %v2722 = vadd.f32 %v2448, %v2576
      %v2723 = vadd.f32 %v2449, %v2581
      %v2724 = vadd.f32 %v2450, %v2586
      %v2725 = vadd.f32 %v2451, %v2591
      %v2726 = vadd.f32 %v2452, %v2596
      %v2727 = vadd.f32 %v2453, %v2601
      %v2728 = vadd.f32 %v2454, %v2606
      %v2729 = vadd.f32 %v2455, %v2611
      %v2730 = vadd.f32 %v2456, %v2616
      %v2731 = vadd.f32 %v2457, %v2621
      %v2732 = vadd.f32 %v2458, %v2626
      %v2733 = vadd.f32 %v2459, %v2631
      %v2734 = vadd.f32 %v2460, %v2636
      %v2735 = vadd.f32 %v2461, %v2641
      %v2736 = vadd.f32 %v2462, %v2646
      %v2737 = vadd.f32 %v2463, %v2651
      %v2738 = vadd.f32 %v2464, %v2656
      %v2739 = vadd.f32 %v2465, %v2661
      %v2740 = vadd.f32 %v2466, %v2666
      %v2741 = vadd.f32 %v2467, %v2671
      %v2742 = vadd.f32 %v2468, %v2676
      %v2743 = vadd.f32 %v2469, %v2681
      %v2744 = vadd.f32 %v2470, %v2686
      %v2745 = vadd.f32 %v2471, %v2691
      %v2746 = vadd.f32 %v2472, %v2696
      %v2747 = vadd.f32 %v2473, %v2701
      %v2748 = vadd.f32 %v2474, %v2706
      %v2749 = vadd.f32 %v2475, %v2711
      %v2750 = vadd.f32 %v2476, %v2716
      %s2751 = scalar_lea.vmem %s1, 640
      %v2752 = vld [vmem:[%s2751] sm:$0xff]
      %v2753 = vld [vmem:[%s2751 + $0x8] sm:$0xff]
      %v2754 = vld [vmem:[%s2751 + $0x10] sm:$0xff]
      %v2755 = vld [vmem:[%s2751 + $0x18] sm:$0xff]
      %v2756 = vld [vmem:[%s2751 + $0x20] sm:$0xff]
      %v2757 = vld [vmem:[%s2751 + $0x28] sm:$0xff]
      %v2758 = vld [vmem:[%s2751 + $0x30] sm:$0xff]
      %v2759 = vld [vmem:[%s2751 + $0x38] sm:$0xff]
      %v2760 = vld [vmem:[%s2751 + $0x40] sm:$0xff]
      %v2761 = vld [vmem:[%s2751 + $0x48] sm:$0xff]
      %v2762 = vld [vmem:[%s2751 + $0x50] sm:$0xff]
      %v2763 = vld [vmem:[%s2751 + $0x58] sm:$0xff]
      %v2764 = vld [vmem:[%s2751 + $0x60] sm:$0xff]
      %v2765 = vld [vmem:[%s2751 + $0x68] sm:$0xff]
      %v2766 = vld [vmem:[%s2751 + $0x70] sm:$0xff]
      %v2767 = vld [vmem:[%s2751 + $0x78] sm:$0xff]
      %2768 = vmatprep.subr.mxu0 0.0
      %2769 = vmatpush1.msra.mxu0 %v2767
      %2770 = vmatprep.subr.mxu0 0.0
      %2771 = vmatpush1.msra.mxu0 %v2766
      %2772 = vmatprep.subr.mxu0 0.0
      %2773 = vmatpush1.msra.mxu0 %v2765
      %2774 = vmatprep.subr.mxu0 0.0
      %2775 = vmatpush1.msra.mxu0 %v2764
      %2776 = vmatprep.subr.mxu0 0.0
      %2777 = vmatpush1.msra.mxu0 %v2763
      %2778 = vmatprep.subr.mxu0 0.0
      %2779 = vmatpush1.msra.mxu0 %v2762
      %2780 = vmatprep.subr.mxu0 0.0
      %2781 = vmatpush1.msra.mxu0 %v2761
      %2782 = vmatprep.subr.mxu0 0.0
      %2783 = vmatpush1.msra.mxu0 %v2760
      %2784 = vmatprep.subr.mxu0 0.0
      %2785 = vmatpush1.msra.mxu0 %v2759
      %2786 = vmatprep.subr.mxu0 0.0
      %2787 = vmatpush1.msra.mxu0 %v2758
      %2788 = vmatprep.subr.mxu0 0.0
      %2789 = vmatpush1.msra.mxu0 %v2757
      %2790 = vmatprep.subr.mxu0 0.0
      %2791 = vmatpush1.msra.mxu0 %v2756
      %2792 = vmatprep.subr.mxu0 0.0
      %2793 = vmatpush1.msra.mxu0 %v2755
      %2794 = vmatprep.subr.mxu0 0.0
      %2795 = vmatpush1.msra.mxu0 %v2754
      %2796 = vmatprep.subr.mxu0 0.0
      %2797 = vmatpush1.msra.mxu0 %v2753
      %2798 = vmatprep.subr.mxu0 0.0
      %2799 = vmatpush1.msra.mxu0 %v2752
      %2800 = vmatprep.subr.mxu0 0.0
      %2801 = vmatpush2.msra.mxu0 0.0
      %2802 = vmatprep.subr.mxu0 0.0
      %2803 = vmatpush2.msra.mxu0 0.0
      %2804 = vmatprep.subr.mxu0 0.0
      %2805 = vmatpush2.msra.mxu0 0.0
      %2806 = vmatprep.subr.mxu0 0.0
      %2807 = vmatpush2.msra.mxu0 0.0
      %2808 = vmatprep.subr.mxu0 0.0
      %2809 = vmatpush2.msra.mxu0 0.0
      %2810 = vmatprep.subr.mxu0 0.0
      %2811 = vmatpush2.msra.mxu0 0.0
      %2812 = vmatprep.subr.mxu0 0.0
      %2813 = vmatpush2.msra.mxu0 0.0
      %2814 = vmatprep.subr.mxu0 0.0
      %2815 = vmatpush2.msra.mxu0 0.0
      %2816 = vmatprep.subr.mxu0 0.0
      %2817 = vmatpush2.msra.mxu0 0.0
      %2818 = vmatprep.subr.mxu0 0.0
      %2819 = vmatpush2.msra.mxu0 0.0
      %2820 = vmatprep.subr.mxu0 0.0
      %2821 = vmatpush2.msra.mxu0 0.0
      %2822 = vmatprep.subr.mxu0 0.0
      %2823 = vmatpush2.msra.mxu0 0.0
      %2824 = vmatprep.subr.mxu0 0.0
      %2825 = vmatpush2.msra.mxu0 0.0
      %2826 = vmatprep.subr.mxu0 0.0
      %2827 = vmatpush2.msra.mxu0 0.0
      %2828 = vmatprep.subr.mxu0 0.0
      %2829 = vmatpush2.msra.mxu0 0.0
      %2830 = vmatprep.subr.mxu0 0.0
      %2831 = vmatpush2.msra.mxu0 0.0
      %2832 = vmatprep.mubr.f32.mxu0 0.0
      %2833 = vmatmul.mubr.f32.gmra.mxu0 %v255
      %v2834 = vpop.f32.mrf.mxu0
      %v2835 = vadd.f32 0.0, %v2834
      %v2836 = vpop.f32.mrf.mxu0
      %2837 = vmatprep.mubr.f32.mxu0 0.0
      %2838 = vmatmul.mubr.f32.gmra.mxu0 %v256
      %v2839 = vpop.f32.mrf.mxu0
      %v2840 = vadd.f32 0.0, %v2839
      %v2841 = vpop.f32.mrf.mxu0
      %2842 = vmatprep.mubr.f32.mxu0 0.0
      %2843 = vmatmul.mubr.f32.gmra.mxu0 %v257
      %v2844 = vpop.f32.mrf.mxu0
      %v2845 = vadd.f32 0.0, %v2844
      %v2846 = vpop.f32.mrf.mxu0
      %2847 = vmatprep.mubr.f32.mxu0 0.0
      %2848 = vmatmul.mubr.f32.gmra.mxu0 %v258
      %v2849 = vpop.f32.mrf.mxu0
      %v2850 = vadd.f32 0.0, %v2849
      %v2851 = vpop.f32.mrf.mxu0
      %2852 = vmatprep.mubr.f32.mxu0 0.0
      %2853 = vmatmul.mubr.f32.gmra.mxu0 %v259
      %v2854 = vpop.f32.mrf.mxu0
      %v2855 = vadd.f32 0.0, %v2854
      %v2856 = vpop.f32.mrf.mxu0
      %2857 = vmatprep.mubr.f32.mxu0 0.0
      %2858 = vmatmul.mubr.f32.gmra.mxu0 %v260
      %v2859 = vpop.f32.mrf.mxu0
      %v2860 = vadd.f32 0.0, %v2859
      %v2861 = vpop.f32.mrf.mxu0
      %2862 = vmatprep.mubr.f32.mxu0 0.0
      %2863 = vmatmul.mubr.f32.gmra.mxu0 %v261
      %v2864 = vpop.f32.mrf.mxu0
      %v2865 = vadd.f32 0.0, %v2864
      %v2866 = vpop.f32.mrf.mxu0
      %2867 = vmatprep.mubr.f32.mxu0 0.0
      %2868 = vmatmul.mubr.f32.gmra.mxu0 %v262
      %v2869 = vpop.f32.mrf.mxu0
      %v2870 = vadd.f32 0.0, %v2869
      %v2871 = vpop.f32.mrf.mxu0
      %2872 = vmatprep.mubr.f32.mxu0 0.0
      %2873 = vmatmul.mubr.f32.gmra.mxu0 %v263
      %v2874 = vpop.f32.mrf.mxu0
      %v2875 = vadd.f32 0.0, %v2874
      %v2876 = vpop.f32.mrf.mxu0
      %2877 = vmatprep.mubr.f32.mxu0 0.0
      %2878 = vmatmul.mubr.f32.gmra.mxu0 %v264
      %v2879 = vpop.f32.mrf.mxu0
      %v2880 = vadd.f32 0.0, %v2879
      %v2881 = vpop.f32.mrf.mxu0
      %2882 = vmatprep.mubr.f32.mxu0 0.0
      %2883 = vmatmul.mubr.f32.gmra.mxu0 %v265
      %v2884 = vpop.f32.mrf.mxu0
      %v2885 = vadd.f32 0.0, %v2884
      %v2886 = vpop.f32.mrf.mxu0
      %2887 = vmatprep.mubr.f32.mxu0 0.0
      %2888 = vmatmul.mubr.f32.gmra.mxu0 %v266
      %v2889 = vpop.f32.mrf.mxu0
      %v2890 = vadd.f32 0.0, %v2889
      %v2891 = vpop.f32.mrf.mxu0
      %2892 = vmatprep.mubr.f32.mxu0 0.0
      %2893 = vmatmul.mubr.f32.gmra.mxu0 %v267
      %v2894 = vpop.f32.mrf.mxu0
      %v2895 = vadd.f32 0.0, %v2894
      %v2896 = vpop.f32.mrf.mxu0
      %2897 = vmatprep.mubr.f32.mxu0 0.0
      %2898 = vmatmul.mubr.f32.gmra.mxu0 %v268
      %v2899 = vpop.f32.mrf.mxu0
      %v2900 = vadd.f32 0.0, %v2899
      %v2901 = vpop.f32.mrf.mxu0
      %2902 = vmatprep.mubr.f32.mxu0 0.0
      %2903 = vmatmul.mubr.f32.gmra.mxu0 %v269
      %v2904 = vpop.f32.mrf.mxu0
      %v2905 = vadd.f32 0.0, %v2904
      %v2906 = vpop.f32.mrf.mxu0
      %2907 = vmatprep.mubr.f32.mxu0 0.0
      %2908 = vmatmul.mubr.f32.gmra.mxu0 %v270
      %v2909 = vpop.f32.mrf.mxu0
      %v2910 = vadd.f32 0.0, %v2909
      %v2911 = vpop.f32.mrf.mxu0
      %2912 = vmatprep.mubr.f32.mxu0 0.0
      %2913 = vmatmul.mubr.f32.gmra.mxu0 %v271
      %v2914 = vpop.f32.mrf.mxu0
      %v2915 = vadd.f32 0.0, %v2914
      %v2916 = vpop.f32.mrf.mxu0
      %2917 = vmatprep.mubr.f32.mxu0 0.0
      %2918 = vmatmul.mubr.f32.gmra.mxu0 %v272
      %v2919 = vpop.f32.mrf.mxu0
      %v2920 = vadd.f32 0.0, %v2919
      %v2921 = vpop.f32.mrf.mxu0
      %2922 = vmatprep.mubr.f32.mxu0 0.0
      %2923 = vmatmul.mubr.f32.gmra.mxu0 %v273
      %v2924 = vpop.f32.mrf.mxu0
      %v2925 = vadd.f32 0.0, %v2924
      %v2926 = vpop.f32.mrf.mxu0
      %2927 = vmatprep.mubr.f32.mxu0 0.0
      %2928 = vmatmul.mubr.f32.gmra.mxu0 %v274
      %v2929 = vpop.f32.mrf.mxu0
      %v2930 = vadd.f32 0.0, %v2929
      %v2931 = vpop.f32.mrf.mxu0
      %2932 = vmatprep.mubr.f32.mxu0 0.0
      %2933 = vmatmul.mubr.f32.gmra.mxu0 %v275
      %v2934 = vpop.f32.mrf.mxu0
      %v2935 = vadd.f32 0.0, %v2934
      %v2936 = vpop.f32.mrf.mxu0
      %2937 = vmatprep.mubr.f32.mxu0 0.0
      %2938 = vmatmul.mubr.f32.gmra.mxu0 %v276
      %v2939 = vpop.f32.mrf.mxu0
      %v2940 = vadd.f32 0.0, %v2939
      %v2941 = vpop.f32.mrf.mxu0
      %2942 = vmatprep.mubr.f32.mxu0 0.0
      %2943 = vmatmul.mubr.f32.gmra.mxu0 %v277
      %v2944 = vpop.f32.mrf.mxu0
      %v2945 = vadd.f32 0.0, %v2944
      %v2946 = vpop.f32.mrf.mxu0
      %2947 = vmatprep.mubr.f32.mxu0 0.0
      %2948 = vmatmul.mubr.f32.gmra.mxu0 %v278
      %v2949 = vpop.f32.mrf.mxu0
      %v2950 = vadd.f32 0.0, %v2949
      %v2951 = vpop.f32.mrf.mxu0
      %2952 = vmatprep.mubr.f32.mxu0 0.0
      %2953 = vmatmul.mubr.f32.gmra.mxu0 %v279
      %v2954 = vpop.f32.mrf.mxu0
      %v2955 = vadd.f32 0.0, %v2954
      %v2956 = vpop.f32.mrf.mxu0
      %2957 = vmatprep.mubr.f32.mxu0 0.0
      %2958 = vmatmul.mubr.f32.gmra.mxu0 %v280
      %v2959 = vpop.f32.mrf.mxu0
      %v2960 = vadd.f32 0.0, %v2959
      %v2961 = vpop.f32.mrf.mxu0
      %2962 = vmatprep.mubr.f32.mxu0 0.0
      %2963 = vmatmul.mubr.f32.gmra.mxu0 %v281
      %v2964 = vpop.f32.mrf.mxu0
      %v2965 = vadd.f32 0.0, %v2964
      %v2966 = vpop.f32.mrf.mxu0
      %2967 = vmatprep.mubr.f32.mxu0 0.0
      %2968 = vmatmul.mubr.f32.gmra.mxu0 %v282
      %v2969 = vpop.f32.mrf.mxu0
      %v2970 = vadd.f32 0.0, %v2969
      %v2971 = vpop.f32.mrf.mxu0
      %2972 = vmatprep.mubr.f32.mxu0 0.0
      %2973 = vmatmul.mubr.f32.gmra.mxu0 %v283
      %v2974 = vpop.f32.mrf.mxu0
      %v2975 = vadd.f32 0.0, %v2974
      %v2976 = vpop.f32.mrf.mxu0
      %2977 = vmatprep.mubr.f32.mxu0 0.0
      %2978 = vmatmul.mubr.f32.gmra.mxu0 %v284
      %v2979 = vpop.f32.mrf.mxu0
      %v2980 = vadd.f32 0.0, %v2979
      %v2981 = vpop.f32.mrf.mxu0
      %2982 = vmatprep.mubr.f32.mxu0 0.0
      %2983 = vmatmul.mubr.f32.gmra.mxu0 %v285
      %v2984 = vpop.f32.mrf.mxu0
      %v2985 = vadd.f32 0.0, %v2984
      %v2986 = vpop.f32.mrf.mxu0
      %2987 = vmatprep.mubr.f32.mxu0 0.0
      %2988 = vmatmul.mubr.f32.gmra.mxu0 %v286
      %v2989 = vpop.f32.mrf.mxu0
      %v2990 = vadd.f32 0.0, %v2989
      %v2991 = vpop.f32.mrf.mxu0
      %2992 = vdwg.mxu0
      %v2993 = vrot.slane %v2835, 1
      %v2994 = vrot.slane %v2840, 1
      %v2995 = vrot.slane %v2845, 1
      %v2996 = vrot.slane %v2850, 1
      %v2997 = vrot.slane %v2855, 1
      %v2998 = vrot.slane %v2860, 1
      %v2999 = vrot.slane %v2865, 1
      %v3000 = vrot.slane %v2870, 1
      %v3001 = vrot.slane %v2875, 1
      %v3002 = vrot.slane %v2880, 1
      %v3003 = vrot.slane %v2885, 1
      %v3004 = vrot.slane %v2890, 1
      %v3005 = vrot.slane %v2895, 1
      %v3006 = vrot.slane %v2900, 1
      %v3007 = vrot.slane %v2905, 1
      %v3008 = vrot.slane %v2910, 1
      %v3009 = vrot.slane %v2915, 1
      %v3010 = vrot.slane %v2920, 1
      %v3011 = vrot.slane %v2925, 1
      %v3012 = vrot.slane %v2930, 1
      %v3013 = vrot.slane %v2935, 1
      %v3014 = vrot.slane %v2940, 1
      %v3015 = vrot.slane %v2945, 1
      %v3016 = vrot.slane %v2950, 1
      %v3017 = vrot.slane %v2955, 1
      %v3018 = vrot.slane %v2960, 1
      %v3019 = vrot.slane %v2965, 1
      %v3020 = vrot.slane %v2970, 1
      %v3021 = vrot.slane %v2975, 1
      %v3022 = vrot.slane %v2980, 1
      %v3023 = vrot.slane %v2985, 1
      %v3024 = vrot.slane %v2990, 1
      %v3025 = vsel %vm1624, %v3023, %v3024
      %v3026 = vsel %vm1624, %v3022, %v3023
      %v3027 = vsel %vm1624, %v3021, %v3022
      %v3028 = vsel %vm1624, %v3020, %v3021
      %v3029 = vsel %vm1624, %v3019, %v3020
      %v3030 = vsel %vm1624, %v3018, %v3019
      %v3031 = vsel %vm1624, %v3017, %v3018
      %v3032 = vsel %vm1624, %v3016, %v3017
      %v3033 = vsel %vm1624, %v3015, %v3016
      %v3034 = vsel %vm1624, %v3014, %v3015
      %v3035 = vsel %vm1624, %v3013, %v3014
      %v3036 = vsel %vm1624, %v3012, %v3013
      %v3037 = vsel %vm1624, %v3011, %v3012
      %v3038 = vsel %vm1624, %v3010, %v3011
      %v3039 = vsel %vm1624, %v3009, %v3010
      %v3040 = vsel %vm1624, %v3008, %v3009
      %v3041 = vsel %vm1624, %v3007, %v3008
      %v3042 = vsel %vm1624, %v3006, %v3007
      %v3043 = vsel %vm1624, %v3005, %v3006
      %v3044 = vsel %vm1624, %v3004, %v3005
      %v3045 = vsel %vm1624, %v3003, %v3004
      %v3046 = vsel %vm1624, %v3002, %v3003
      %v3047 = vsel %vm1624, %v3001, %v3002
      %v3048 = vsel %vm1624, %v3000, %v3001
      %v3049 = vsel %vm1624, %v2999, %v3000
      %v3050 = vsel %vm1624, %v2998, %v2999
      %v3051 = vsel %vm1624, %v2997, %v2998
      %v3052 = vsel %vm1624, %v2996, %v2997
      %v3053 = vsel %vm1624, %v2995, %v2996
      %v3054 = vsel %vm1624, %v2994, %v2995
      %v3055 = vsel %vm1624, %v2993, %v2994
      %v3056 = vsel %vm1624, %v3024, %v2993
      %s3057 = scalar_lea.vmem %s5, 1280
      %v3058 = vld [vmem:[%s3057] sm:$0xff]
      %v3059 = vld [vmem:[%s3057 + $0x8] sm:$0xff]
      %v3060 = vld [vmem:[%s3057 + $0x10] sm:$0xff]
      %v3061 = vld [vmem:[%s3057 + $0x18] sm:$0xff]
      %v3062 = vld [vmem:[%s3057 + $0x20] sm:$0xff]
      %v3063 = vld [vmem:[%s3057 + $0x28] sm:$0xff]
      %v3064 = vld [vmem:[%s3057 + $0x30] sm:$0xff]
      %v3065 = vld [vmem:[%s3057 + $0x38] sm:$0xff]
      %v3066 = vld [vmem:[%s3057 + $0x40] sm:$0xff]
      %v3067 = vld [vmem:[%s3057 + $0x48] sm:$0xff]
      %v3068 = vld [vmem:[%s3057 + $0x50] sm:$0xff]
      %v3069 = vld [vmem:[%s3057 + $0x58] sm:$0xff]
      %v3070 = vld [vmem:[%s3057 + $0x60] sm:$0xff]
      %v3071 = vld [vmem:[%s3057 + $0x68] sm:$0xff]
      %v3072 = vld [vmem:[%s3057 + $0x70] sm:$0xff]
      %v3073 = vld [vmem:[%s3057 + $0x78] sm:$0xff]
      %v3074 = vld [vmem:[%s3057 + $0x80] sm:$0xff]
      %v3075 = vld [vmem:[%s3057 + $0x88] sm:$0xff]
      %v3076 = vld [vmem:[%s3057 + $0x90] sm:$0xff]
      %v3077 = vld [vmem:[%s3057 + $0x98] sm:$0xff]
      %v3078 = vld [vmem:[%s3057 + $0xa0] sm:$0xff]
      %v3079 = vld [vmem:[%s3057 + $0xa8] sm:$0xff]
      %v3080 = vld [vmem:[%s3057 + $0xb0] sm:$0xff]
      %v3081 = vld [vmem:[%s3057 + $0xb8] sm:$0xff]
      %v3082 = vld [vmem:[%s3057 + $0xc0] sm:$0xff]
      %v3083 = vld [vmem:[%s3057 + $0xc8] sm:$0xff]
      %v3084 = vld [vmem:[%s3057 + $0xd0] sm:$0xff]
      %v3085 = vld [vmem:[%s3057 + $0xd8] sm:$0xff]
      %v3086 = vld [vmem:[%s3057 + $0xe0] sm:$0xff]
      %v3087 = vld [vmem:[%s3057 + $0xe8] sm:$0xff]
      %v3088 = vld [vmem:[%s3057 + $0xf0] sm:$0xff]
      %v3089 = vld [vmem:[%s3057 + $0xf8] sm:$0xff]
      %3091 = vset.pattern.permute.xlu0 0
      %3092 = vperm.xlu0 %3091, %v3058
      %v3093 = vpop.permute.xlu0 %3092
      %3096 = vset.pattern.permute.xlu0 0
      %3097 = vperm.xlu0 %3096, %v3059
      %v3098 = vpop.permute.xlu0 %3097
      %3101 = vset.pattern.permute.xlu0 0
      %3102 = vperm.xlu0 %3101, %v3060
      %v3103 = vpop.permute.xlu0 %3102
      %3106 = vset.pattern.permute.xlu0 0
      %3107 = vperm.xlu0 %3106, %v3061
      %v3108 = vpop.permute.xlu0 %3107
      %3111 = vset.pattern.permute.xlu0 0
      %3112 = vperm.xlu0 %3111, %v3062
      %v3113 = vpop.permute.xlu0 %3112
      %3116 = vset.pattern.permute.xlu0 0
      %3117 = vperm.xlu0 %3116, %v3063
      %v3118 = vpop.permute.xlu0 %3117
      %3121 = vset.pattern.permute.xlu0 0
      %3122 = vperm.xlu0 %3121, %v3064
      %v3123 = vpop.permute.xlu0 %3122
      %3126 = vset.pattern.permute.xlu0 0
      %3127 = vperm.xlu0 %3126, %v3065
      %v3128 = vpop.permute.xlu0 %3127
      %3131 = vset.pattern.permute.xlu0 0
      %3132 = vperm.xlu0 %3131, %v3066
      %v3133 = vpop.permute.xlu0 %3132
      %3136 = vset.pattern.permute.xlu0 0
      %3137 = vperm.xlu0 %3136, %v3067
      %v3138 = vpop.permute.xlu0 %3137
      %3141 = vset.pattern.permute.xlu0 0
      %3142 = vperm.xlu0 %3141, %v3068
      %v3143 = vpop.permute.xlu0 %3142
      %3146 = vset.pattern.permute.xlu0 0
      %3147 = vperm.xlu0 %3146, %v3069
      %v3148 = vpop.permute.xlu0 %3147
      %3151 = vset.pattern.permute.xlu0 0
      %3152 = vperm.xlu0 %3151, %v3070
      %v3153 = vpop.permute.xlu0 %3152
      %3156 = vset.pattern.permute.xlu0 0
      %3157 = vperm.xlu0 %3156, %v3071
      %v3158 = vpop.permute.xlu0 %3157
      %3161 = vset.pattern.permute.xlu0 0
      %3162 = vperm.xlu0 %3161, %v3072
      %v3163 = vpop.permute.xlu0 %3162
      %3166 = vset.pattern.permute.xlu0 0
      %3167 = vperm.xlu0 %3166, %v3073
      %v3168 = vpop.permute.xlu0 %3167
      %3171 = vset.pattern.permute.xlu0 0
      %3172 = vperm.xlu0 %3171, %v3074
      %v3173 = vpop.permute.xlu0 %3172
      %3176 = vset.pattern.permute.xlu0 0
      %3177 = vperm.xlu0 %3176, %v3075
      %v3178 = vpop.permute.xlu0 %3177
      %3181 = vset.pattern.permute.xlu0 0
      %3182 = vperm.xlu0 %3181, %v3076
      %v3183 = vpop.permute.xlu0 %3182
      %3186 = vset.pattern.permute.xlu0 0
      %3187 = vperm.xlu0 %3186, %v3077
      %v3188 = vpop.permute.xlu0 %3187
      %3191 = vset.pattern.permute.xlu0 0
      %3192 = vperm.xlu0 %3191, %v3078
      %v3193 = vpop.permute.xlu0 %3192
      %3196 = vset.pattern.permute.xlu0 0
      %3197 = vperm.xlu0 %3196, %v3079
      %v3198 = vpop.permute.xlu0 %3197
      %3201 = vset.pattern.permute.xlu0 0
      %3202 = vperm.xlu0 %3201, %v3080
      %v3203 = vpop.permute.xlu0 %3202
      %3206 = vset.pattern.permute.xlu0 0
      %3207 = vperm.xlu0 %3206, %v3081
      %v3208 = vpop.permute.xlu0 %3207
      %3211 = vset.pattern.permute.xlu0 0
      %3212 = vperm.xlu0 %3211, %v3082
      %v3213 = vpop.permute.xlu0 %3212
      %3216 = vset.pattern.permute.xlu0 0
      %3217 = vperm.xlu0 %3216, %v3083
      %v3218 = vpop.permute.xlu0 %3217
      %3221 = vset.pattern.permute.xlu0 0
      %3222 = vperm.xlu0 %3221, %v3084
      %v3223 = vpop.permute.xlu0 %3222
      %3226 = vset.pattern.permute.xlu0 0
      %3227 = vperm.xlu0 %3226, %v3085
      %v3228 = vpop.permute.xlu0 %3227
      %3231 = vset.pattern.permute.xlu0 0
      %3232 = vperm.xlu0 %3231, %v3086
      %v3233 = vpop.permute.xlu0 %3232
      %3236 = vset.pattern.permute.xlu0 0
      %3237 = vperm.xlu0 %3236, %v3087
      %v3238 = vpop.permute.xlu0 %3237
      %3241 = vset.pattern.permute.xlu0 0
      %3242 = vperm.xlu0 %3241, %v3088
      %v3243 = vpop.permute.xlu0 %3242
      %3246 = vset.pattern.permute.xlu0 0
      %3247 = vperm.xlu0 %3246, %v3089
      %v3248 = vpop.permute.xlu0 %3247
      %v3250 = vmul.f32 %v3055, %v3093
      %v3251 = vmul.f32 %v3054, %v3098
      %v3252 = vmul.f32 %v3053, %v3103
      %v3253 = vmul.f32 %v3052, %v3108
      %v3254 = vmul.f32 %v3051, %v3113
      %v3255 = vmul.f32 %v3050, %v3118
      %v3256 = vmul.f32 %v3049, %v3123
      %v3257 = vmul.f32 %v3048, %v3128
      %v3258 = vmul.f32 %v3047, %v3133
      %v3259 = vmul.f32 %v3046, %v3138
      %v3260 = vmul.f32 %v3045, %v3143
      %v3261 = vmul.f32 %v3044, %v3148
      %v3262 = vmul.f32 %v3043, %v3153
      %v3263 = vmul.f32 %v3042, %v3158
      %v3264 = vmul.f32 %v3041, %v3163
      %v3265 = vmul.f32 %v3040, %v3168
      %v3266 = vmul.f32 %v3039, %v3173
      %v3267 = vmul.f32 %v3038, %v3178
      %v3268 = vmul.f32 %v3037, %v3183
      %v3269 = vmul.f32 %v3036, %v3188
      %v3270 = vmul.f32 %v3035, %v3193
      %v3271 = vmul.f32 %v3034, %v3198
      %v3272 = vmul.f32 %v3033, %v3203
      %v3273 = vmul.f32 %v3032, %v3208
      %v3274 = vmul.f32 %v3031, %v3213
      %v3275 = vmul.f32 %v3030, %v3218
      %v3276 = vmul.f32 %v3029, %v3223
      %v3277 = vmul.f32 %v3028, %v3228
      %v3278 = vmul.f32 %v3027, %v3233
      %v3279 = vmul.f32 %v3026, %v3238
      %v3280 = vmul.f32 %v3025, %v3243
      %v3281 = vmul.f32 %v3056, %v3248
      %v3282 = vadd.f32 %v2719, %v3250
      %v3283 = vadd.f32 %v2720, %v3251
      %v3284 = vadd.f32 %v2721, %v3252
      %v3285 = vadd.f32 %v2722, %v3253
      %v3286 = vadd.f32 %v2723, %v3254
      %v3287 = vadd.f32 %v2724, %v3255
      %v3288 = vadd.f32 %v2725, %v3256
      %v3289 = vadd.f32 %v2726, %v3257
      %v3290 = vadd.f32 %v2727, %v3258
      %v3291 = vadd.f32 %v2728, %v3259
      %v3292 = vadd.f32 %v2729, %v3260
      %v3293 = vadd.f32 %v2730, %v3261
      %v3294 = vadd.f32 %v2731, %v3262
      %v3295 = vadd.f32 %v2732, %v3263
      %v3296 = vadd.f32 %v2733, %v3264
      %v3297 = vadd.f32 %v2734, %v3265
      %v3298 = vadd.f32 %v2735, %v3266
      %v3299 = vadd.f32 %v2736, %v3267
      %v3300 = vadd.f32 %v2737, %v3268
      %v3301 = vadd.f32 %v2738, %v3269
      %v3302 = vadd.f32 %v2739, %v3270
      %v3303 = vadd.f32 %v2740, %v3271
      %v3304 = vadd.f32 %v2741, %v3272
      %v3305 = vadd.f32 %v2742, %v3273
      %v3306 = vadd.f32 %v2743, %v3274
      %v3307 = vadd.f32 %v2744, %v3275
      %v3308 = vadd.f32 %v2745, %v3276
      %v3309 = vadd.f32 %v2746, %v3277
      %v3310 = vadd.f32 %v2747, %v3278
      %v3311 = vadd.f32 %v2748, %v3279
      %v3312 = vadd.f32 %v2749, %v3280
      %v3313 = vadd.f32 %v2750, %v3281
      %s3314 = scalar_lea.vmem %s1, 768
      %v3315 = vld [vmem:[%s3314] sm:$0xff]
      %v3316 = vld [vmem:[%s3314 + $0x8] sm:$0xff]
      %v3317 = vld [vmem:[%s3314 + $0x10] sm:$0xff]
      %v3318 = vld [vmem:[%s3314 + $0x18] sm:$0xff]
      %v3319 = vld [vmem:[%s3314 + $0x20] sm:$0xff]
      %v3320 = vld [vmem:[%s3314 + $0x28] sm:$0xff]
      %v3321 = vld [vmem:[%s3314 + $0x30] sm:$0xff]
      %v3322 = vld [vmem:[%s3314 + $0x38] sm:$0xff]
      %v3323 = vld [vmem:[%s3314 + $0x40] sm:$0xff]
      %v3324 = vld [vmem:[%s3314 + $0x48] sm:$0xff]
      %v3325 = vld [vmem:[%s3314 + $0x50] sm:$0xff]
      %v3326 = vld [vmem:[%s3314 + $0x58] sm:$0xff]
      %v3327 = vld [vmem:[%s3314 + $0x60] sm:$0xff]
      %v3328 = vld [vmem:[%s3314 + $0x68] sm:$0xff]
      %v3329 = vld [vmem:[%s3314 + $0x70] sm:$0xff]
      %v3330 = vld [vmem:[%s3314 + $0x78] sm:$0xff]
      %3331 = vmatprep.subr.mxu0 0.0
      %3332 = vmatpush1.msra.mxu0 %v3330
      %3333 = vmatprep.subr.mxu0 0.0
      %3334 = vmatpush1.msra.mxu0 %v3329
      %3335 = vmatprep.subr.mxu0 0.0
      %3336 = vmatpush1.msra.mxu0 %v3328
      %3337 = vmatprep.subr.mxu0 0.0
      %3338 = vmatpush1.msra.mxu0 %v3327
      %3339 = vmatprep.subr.mxu0 0.0
      %3340 = vmatpush1.msra.mxu0 %v3326
      %3341 = vmatprep.subr.mxu0 0.0
      %3342 = vmatpush1.msra.mxu0 %v3325
      %3343 = vmatprep.subr.mxu0 0.0
      %3344 = vmatpush1.msra.mxu0 %v3324
      %3345 = vmatprep.subr.mxu0 0.0
      %3346 = vmatpush1.msra.mxu0 %v3323
      %3347 = vmatprep.subr.mxu0 0.0
      %3348 = vmatpush1.msra.mxu0 %v3322
      %3349 = vmatprep.subr.mxu0 0.0
      %3350 = vmatpush1.msra.mxu0 %v3321
      %3351 = vmatprep.subr.mxu0 0.0
      %3352 = vmatpush1.msra.mxu0 %v3320
      %3353 = vmatprep.subr.mxu0 0.0
      %3354 = vmatpush1.msra.mxu0 %v3319
      %3355 = vmatprep.subr.mxu0 0.0
      %3356 = vmatpush1.msra.mxu0 %v3318
      %3357 = vmatprep.subr.mxu0 0.0
      %3358 = vmatpush1.msra.mxu0 %v3317
      %3359 = vmatprep.subr.mxu0 0.0
      %3360 = vmatpush1.msra.mxu0 %v3316
      %3361 = vmatprep.subr.mxu0 0.0
      %3362 = vmatpush1.msra.mxu0 %v3315
      %3363 = vmatprep.subr.mxu0 0.0
      %3364 = vmatpush2.msra.mxu0 0.0
      %3365 = vmatprep.subr.mxu0 0.0
      %3366 = vmatpush2.msra.mxu0 0.0
      %3367 = vmatprep.subr.mxu0 0.0
      %3368 = vmatpush2.msra.mxu0 0.0
      %3369 = vmatprep.subr.mxu0 0.0
      %3370 = vmatpush2.msra.mxu0 0.0
      %3371 = vmatprep.subr.mxu0 0.0
      %3372 = vmatpush2.msra.mxu0 0.0
      %3373 = vmatprep.subr.mxu0 0.0
      %3374 = vmatpush2.msra.mxu0 0.0
      %3375 = vmatprep.subr.mxu0 0.0
      %3376 = vmatpush2.msra.mxu0 0.0
      %3377 = vmatprep.subr.mxu0 0.0
      %3378 = vmatpush2.msra.mxu0 0.0
      %3379 = vmatprep.subr.mxu0 0.0
      %3380 = vmatpush2.msra.mxu0 0.0
      %3381 = vmatprep.subr.mxu0 0.0
      %3382 = vmatpush2.msra.mxu0 0.0
      %3383 = vmatprep.subr.mxu0 0.0
      %3384 = vmatpush2.msra.mxu0 0.0
      %3385 = vmatprep.subr.mxu0 0.0
      %3386 = vmatpush2.msra.mxu0 0.0
      %3387 = vmatprep.subr.mxu0 0.0
      %3388 = vmatpush2.msra.mxu0 0.0
      %3389 = vmatprep.subr.mxu0 0.0
      %3390 = vmatpush2.msra.mxu0 0.0
      %3391 = vmatprep.subr.mxu0 0.0
      %3392 = vmatpush2.msra.mxu0 0.0
      %3393 = vmatprep.subr.mxu0 0.0
      %3394 = vmatpush2.msra.mxu0 0.0
      %3395 = vmatprep.mubr.f32.mxu0 0.0
      %3396 = vmatmul.mubr.f32.gmra.mxu0 %v255
      %v3397 = vpop.f32.mrf.mxu0
      %v3398 = vadd.f32 0.0, %v3397
      %v3399 = vpop.f32.mrf.mxu0
      %3400 = vmatprep.mubr.f32.mxu0 0.0
      %3401 = vmatmul.mubr.f32.gmra.mxu0 %v256
      %v3402 = vpop.f32.mrf.mxu0
      %v3403 = vadd.f32 0.0, %v3402
      %v3404 = vpop.f32.mrf.mxu0
      %3405 = vmatprep.mubr.f32.mxu0 0.0
      %3406 = vmatmul.mubr.f32.gmra.mxu0 %v257
      %v3407 = vpop.f32.mrf.mxu0
      %v3408 = vadd.f32 0.0, %v3407
      %v3409 = vpop.f32.mrf.mxu0
      %3410 = vmatprep.mubr.f32.mxu0 0.0
      %3411 = vmatmul.mubr.f32.gmra.mxu0 %v258
      %v3412 = vpop.f32.mrf.mxu0
      %v3413 = vadd.f32 0.0, %v3412
      %v3414 = vpop.f32.mrf.mxu0
      %3415 = vmatprep.mubr.f32.mxu0 0.0
      %3416 = vmatmul.mubr.f32.gmra.mxu0 %v259
      %v3417 = vpop.f32.mrf.mxu0
      %v3418 = vadd.f32 0.0, %v3417
      %v3419 = vpop.f32.mrf.mxu0
      %3420 = vmatprep.mubr.f32.mxu0 0.0
      %3421 = vmatmul.mubr.f32.gmra.mxu0 %v260
      %v3422 = vpop.f32.mrf.mxu0
      %v3423 = vadd.f32 0.0, %v3422
      %v3424 = vpop.f32.mrf.mxu0
      %3425 = vmatprep.mubr.f32.mxu0 0.0
      %3426 = vmatmul.mubr.f32.gmra.mxu0 %v261
      %v3427 = vpop.f32.mrf.mxu0
      %v3428 = vadd.f32 0.0, %v3427
      %v3429 = vpop.f32.mrf.mxu0
      %3430 = vmatprep.mubr.f32.mxu0 0.0
      %3431 = vmatmul.mubr.f32.gmra.mxu0 %v262
      %v3432 = vpop.f32.mrf.mxu0
      %v3433 = vadd.f32 0.0, %v3432
      %v3434 = vpop.f32.mrf.mxu0
      %3435 = vmatprep.mubr.f32.mxu0 0.0
      %3436 = vmatmul.mubr.f32.gmra.mxu0 %v263
      %v3437 = vpop.f32.mrf.mxu0
      %v3438 = vadd.f32 0.0, %v3437
      %v3439 = vpop.f32.mrf.mxu0
      %3440 = vmatprep.mubr.f32.mxu0 0.0
      %3441 = vmatmul.mubr.f32.gmra.mxu0 %v264
      %v3442 = vpop.f32.mrf.mxu0
      %v3443 = vadd.f32 0.0, %v3442
      %v3444 = vpop.f32.mrf.mxu0
      %3445 = vmatprep.mubr.f32.mxu0 0.0
      %3446 = vmatmul.mubr.f32.gmra.mxu0 %v265
      %v3447 = vpop.f32.mrf.mxu0
      %v3448 = vadd.f32 0.0, %v3447
      %v3449 = vpop.f32.mrf.mxu0
      %3450 = vmatprep.mubr.f32.mxu0 0.0
      %3451 = vmatmul.mubr.f32.gmra.mxu0 %v266
      %v3452 = vpop.f32.mrf.mxu0
      %v3453 = vadd.f32 0.0, %v3452
      %v3454 = vpop.f32.mrf.mxu0
      %3455 = vmatprep.mubr.f32.mxu0 0.0
      %3456 = vmatmul.mubr.f32.gmra.mxu0 %v267
      %v3457 = vpop.f32.mrf.mxu0
      %v3458 = vadd.f32 0.0, %v3457
      %v3459 = vpop.f32.mrf.mxu0
      %3460 = vmatprep.mubr.f32.mxu0 0.0
      %3461 = vmatmul.mubr.f32.gmra.mxu0 %v268
      %v3462 = vpop.f32.mrf.mxu0
      %v3463 = vadd.f32 0.0, %v3462
      %v3464 = vpop.f32.mrf.mxu0
      %3465 = vmatprep.mubr.f32.mxu0 0.0
      %3466 = vmatmul.mubr.f32.gmra.mxu0 %v269
      %v3467 = vpop.f32.mrf.mxu0
      %v3468 = vadd.f32 0.0, %v3467
      %v3469 = vpop.f32.mrf.mxu0
      %3470 = vmatprep.mubr.f32.mxu0 0.0
      %3471 = vmatmul.mubr.f32.gmra.mxu0 %v270
      %v3472 = vpop.f32.mrf.mxu0
      %v3473 = vadd.f32 0.0, %v3472
      %v3474 = vpop.f32.mrf.mxu0
      %3475 = vmatprep.mubr.f32.mxu0 0.0
      %3476 = vmatmul.mubr.f32.gmra.mxu0 %v271
      %v3477 = vpop.f32.mrf.mxu0
      %v3478 = vadd.f32 0.0, %v3477
      %v3479 = vpop.f32.mrf.mxu0
      %3480 = vmatprep.mubr.f32.mxu0 0.0
      %3481 = vmatmul.mubr.f32.gmra.mxu0 %v272
      %v3482 = vpop.f32.mrf.mxu0
      %v3483 = vadd.f32 0.0, %v3482
      %v3484 = vpop.f32.mrf.mxu0
      %3485 = vmatprep.mubr.f32.mxu0 0.0
      %3486 = vmatmul.mubr.f32.gmra.mxu0 %v273
      %v3487 = vpop.f32.mrf.mxu0
      %v3488 = vadd.f32 0.0, %v3487
      %v3489 = vpop.f32.mrf.mxu0
      %3490 = vmatprep.mubr.f32.mxu0 0.0
      %3491 = vmatmul.mubr.f32.gmra.mxu0 %v274
      %v3492 = vpop.f32.mrf.mxu0
      %v3493 = vadd.f32 0.0, %v3492
      %v3494 = vpop.f32.mrf.mxu0
      %3495 = vmatprep.mubr.f32.mxu0 0.0
      %3496 = vmatmul.mubr.f32.gmra.mxu0 %v275
      %v3497 = vpop.f32.mrf.mxu0
      %v3498 = vadd.f32 0.0, %v3497
      %v3499 = vpop.f32.mrf.mxu0
      %3500 = vmatprep.mubr.f32.mxu0 0.0
      %3501 = vmatmul.mubr.f32.gmra.mxu0 %v276
      %v3502 = vpop.f32.mrf.mxu0
      %v3503 = vadd.f32 0.0, %v3502
      %v3504 = vpop.f32.mrf.mxu0
      %3505 = vmatprep.mubr.f32.mxu0 0.0
      %3506 = vmatmul.mubr.f32.gmra.mxu0 %v277
      %v3507 = vpop.f32.mrf.mxu0
      %v3508 = vadd.f32 0.0, %v3507
      %v3509 = vpop.f32.mrf.mxu0
      %3510 = vmatprep.mubr.f32.mxu0 0.0
      %3511 = vmatmul.mubr.f32.gmra.mxu0 %v278
      %v3512 = vpop.f32.mrf.mxu0
      %v3513 = vadd.f32 0.0, %v3512
      %v3514 = vpop.f32.mrf.mxu0
      %3515 = vmatprep.mubr.f32.mxu0 0.0
      %3516 = vmatmul.mubr.f32.gmra.mxu0 %v279
      %v3517 = vpop.f32.mrf.mxu0
      %v3518 = vadd.f32 0.0, %v3517
      %v3519 = vpop.f32.mrf.mxu0
      %3520 = vmatprep.mubr.f32.mxu0 0.0
      %3521 = vmatmul.mubr.f32.gmra.mxu0 %v280
      %v3522 = vpop.f32.mrf.mxu0
      %v3523 = vadd.f32 0.0, %v3522
      %v3524 = vpop.f32.mrf.mxu0
      %3525 = vmatprep.mubr.f32.mxu0 0.0
      %3526 = vmatmul.mubr.f32.gmra.mxu0 %v281
      %v3527 = vpop.f32.mrf.mxu0
      %v3528 = vadd.f32 0.0, %v3527
      %v3529 = vpop.f32.mrf.mxu0
      %3530 = vmatprep.mubr.f32.mxu0 0.0
      %3531 = vmatmul.mubr.f32.gmra.mxu0 %v282
      %v3532 = vpop.f32.mrf.mxu0
      %v3533 = vadd.f32 0.0, %v3532
      %v3534 = vpop.f32.mrf.mxu0
      %3535 = vmatprep.mubr.f32.mxu0 0.0
      %3536 = vmatmul.mubr.f32.gmra.mxu0 %v283
      %v3537 = vpop.f32.mrf.mxu0
      %v3538 = vadd.f32 0.0, %v3537
      %v3539 = vpop.f32.mrf.mxu0
      %3540 = vmatprep.mubr.f32.mxu0 0.0
      %3541 = vmatmul.mubr.f32.gmra.mxu0 %v284
      %v3542 = vpop.f32.mrf.mxu0
      %v3543 = vadd.f32 0.0, %v3542
      %v3544 = vpop.f32.mrf.mxu0
      %3545 = vmatprep.mubr.f32.mxu0 0.0
      %3546 = vmatmul.mubr.f32.gmra.mxu0 %v285
      %v3547 = vpop.f32.mrf.mxu0
      %v3548 = vadd.f32 0.0, %v3547
      %v3549 = vpop.f32.mrf.mxu0
      %3550 = vmatprep.mubr.f32.mxu0 0.0
      %3551 = vmatmul.mubr.f32.gmra.mxu0 %v286
      %v3552 = vpop.f32.mrf.mxu0
      %v3553 = vadd.f32 0.0, %v3552
      %v3554 = vpop.f32.mrf.mxu0
      %3555 = vdwg.mxu0
      %v3556 = vrot.slane %v3398, 7
      %v3557 = vrot.slane %v3403, 7
      %v3558 = vrot.slane %v3408, 7
      %v3559 = vrot.slane %v3413, 7
      %v3560 = vrot.slane %v3418, 7
      %v3561 = vrot.slane %v3423, 7
      %v3562 = vrot.slane %v3428, 7
      %v3563 = vrot.slane %v3433, 7
      %v3564 = vrot.slane %v3438, 7
      %v3565 = vrot.slane %v3443, 7
      %v3566 = vrot.slane %v3448, 7
      %v3567 = vrot.slane %v3453, 7
      %v3568 = vrot.slane %v3458, 7
      %v3569 = vrot.slane %v3463, 7
      %v3570 = vrot.slane %v3468, 7
      %v3571 = vrot.slane %v3473, 7
      %v3572 = vrot.slane %v3478, 7
      %v3573 = vrot.slane %v3483, 7
      %v3574 = vrot.slane %v3488, 7
      %v3575 = vrot.slane %v3493, 7
      %v3576 = vrot.slane %v3498, 7
      %v3577 = vrot.slane %v3503, 7
      %v3578 = vrot.slane %v3508, 7
      %v3579 = vrot.slane %v3513, 7
      %v3580 = vrot.slane %v3518, 7
      %v3581 = vrot.slane %v3523, 7
      %v3582 = vrot.slane %v3528, 7
      %v3583 = vrot.slane %v3533, 7
      %v3584 = vrot.slane %v3538, 7
      %v3585 = vrot.slane %v3543, 7
      %v3586 = vrot.slane %v3548, 7
      %v3587 = vrot.slane %v3553, 7
      %v3588 = vsel %vm562, %v3586, %v3587
      %v3589 = vsel %vm562, %v3585, %v3586
      %v3590 = vsel %vm562, %v3584, %v3585
      %v3591 = vsel %vm562, %v3583, %v3584
      %v3592 = vsel %vm562, %v3582, %v3583
      %v3593 = vsel %vm562, %v3581, %v3582
      %v3594 = vsel %vm562, %v3580, %v3581
      %v3595 = vsel %vm562, %v3579, %v3580
      %v3596 = vsel %vm562, %v3578, %v3579
      %v3597 = vsel %vm562, %v3577, %v3578
      %v3598 = vsel %vm562, %v3576, %v3577
      %v3599 = vsel %vm562, %v3575, %v3576
      %v3600 = vsel %vm562, %v3574, %v3575
      %v3601 = vsel %vm562, %v3573, %v3574
      %v3602 = vsel %vm562, %v3572, %v3573
      %v3603 = vsel %vm562, %v3571, %v3572
      %v3604 = vsel %vm562, %v3570, %v3571
      %v3605 = vsel %vm562, %v3569, %v3570
      %v3606 = vsel %vm562, %v3568, %v3569
      %v3607 = vsel %vm562, %v3567, %v3568
      %v3608 = vsel %vm562, %v3566, %v3567
      %v3609 = vsel %vm562, %v3565, %v3566
      %v3610 = vsel %vm562, %v3564, %v3565
      %v3611 = vsel %vm562, %v3563, %v3564
      %v3612 = vsel %vm562, %v3562, %v3563
      %v3613 = vsel %vm562, %v3561, %v3562
      %v3614 = vsel %vm562, %v3560, %v3561
      %v3615 = vsel %vm562, %v3559, %v3560
      %v3616 = vsel %vm562, %v3558, %v3559
      %v3617 = vsel %vm562, %v3557, %v3558
      %v3618 = vsel %vm562, %v3556, %v3557
      %v3619 = vsel %vm562, %v3587, %v3556
      %s3620 = scalar_lea.vmem %s5, 1536
      %v3621 = vld [vmem:[%s3620] sm:$0xff]
      %v3622 = vld [vmem:[%s3620 + $0x8] sm:$0xff]
      %v3623 = vld [vmem:[%s3620 + $0x10] sm:$0xff]
      %v3624 = vld [vmem:[%s3620 + $0x18] sm:$0xff]
      %v3625 = vld [vmem:[%s3620 + $0x20] sm:$0xff]
      %v3626 = vld [vmem:[%s3620 + $0x28] sm:$0xff]
      %v3627 = vld [vmem:[%s3620 + $0x30] sm:$0xff]
      %v3628 = vld [vmem:[%s3620 + $0x38] sm:$0xff]
      %v3629 = vld [vmem:[%s3620 + $0x40] sm:$0xff]
      %v3630 = vld [vmem:[%s3620 + $0x48] sm:$0xff]
      %v3631 = vld [vmem:[%s3620 + $0x50] sm:$0xff]
      %v3632 = vld [vmem:[%s3620 + $0x58] sm:$0xff]
      %v3633 = vld [vmem:[%s3620 + $0x60] sm:$0xff]
      %v3634 = vld [vmem:[%s3620 + $0x68] sm:$0xff]
      %v3635 = vld [vmem:[%s3620 + $0x70] sm:$0xff]
      %v3636 = vld [vmem:[%s3620 + $0x78] sm:$0xff]
      %v3637 = vld [vmem:[%s3620 + $0x80] sm:$0xff]
      %v3638 = vld [vmem:[%s3620 + $0x88] sm:$0xff]
      %v3639 = vld [vmem:[%s3620 + $0x90] sm:$0xff]
      %v3640 = vld [vmem:[%s3620 + $0x98] sm:$0xff]
      %v3641 = vld [vmem:[%s3620 + $0xa0] sm:$0xff]
      %v3642 = vld [vmem:[%s3620 + $0xa8] sm:$0xff]
      %v3643 = vld [vmem:[%s3620 + $0xb0] sm:$0xff]
      %v3644 = vld [vmem:[%s3620 + $0xb8] sm:$0xff]
      %v3645 = vld [vmem:[%s3620 + $0xc0] sm:$0xff]
      %v3646 = vld [vmem:[%s3620 + $0xc8] sm:$0xff]
      %v3647 = vld [vmem:[%s3620 + $0xd0] sm:$0xff]
      %v3648 = vld [vmem:[%s3620 + $0xd8] sm:$0xff]
      %v3649 = vld [vmem:[%s3620 + $0xe0] sm:$0xff]
      %v3650 = vld [vmem:[%s3620 + $0xe8] sm:$0xff]
      %v3651 = vld [vmem:[%s3620 + $0xf0] sm:$0xff]
      %v3652 = vld [vmem:[%s3620 + $0xf8] sm:$0xff]
      %3654 = vset.pattern.permute.xlu0 0
      %3655 = vperm.xlu0 %3654, %v3621
      %v3656 = vpop.permute.xlu0 %3655
      %3659 = vset.pattern.permute.xlu0 0
      %3660 = vperm.xlu0 %3659, %v3622
      %v3661 = vpop.permute.xlu0 %3660
      %3664 = vset.pattern.permute.xlu0 0
      %3665 = vperm.xlu0 %3664, %v3623
      %v3666 = vpop.permute.xlu0 %3665
      %3669 = vset.pattern.permute.xlu0 0
      %3670 = vperm.xlu0 %3669, %v3624
      %v3671 = vpop.permute.xlu0 %3670
      %3674 = vset.pattern.permute.xlu0 0
      %3675 = vperm.xlu0 %3674, %v3625
      %v3676 = vpop.permute.xlu0 %3675
      %3679 = vset.pattern.permute.xlu0 0
      %3680 = vperm.xlu0 %3679, %v3626
      %v3681 = vpop.permute.xlu0 %3680
      %3684 = vset.pattern.permute.xlu0 0
      %3685 = vperm.xlu0 %3684, %v3627
      %v3686 = vpop.permute.xlu0 %3685
      %3689 = vset.pattern.permute.xlu0 0
      %3690 = vperm.xlu0 %3689, %v3628
      %v3691 = vpop.permute.xlu0 %3690
      %3694 = vset.pattern.permute.xlu0 0
      %3695 = vperm.xlu0 %3694, %v3629
      %v3696 = vpop.permute.xlu0 %3695
      %3699 = vset.pattern.permute.xlu0 0
      %3700 = vperm.xlu0 %3699, %v3630
      %v3701 = vpop.permute.xlu0 %3700
      %3704 = vset.pattern.permute.xlu0 0
      %3705 = vperm.xlu0 %3704, %v3631
      %v3706 = vpop.permute.xlu0 %3705
      %3709 = vset.pattern.permute.xlu0 0
      %3710 = vperm.xlu0 %3709, %v3632
      %v3711 = vpop.permute.xlu0 %3710
      %3714 = vset.pattern.permute.xlu0 0
      %3715 = vperm.xlu0 %3714, %v3633
      %v3716 = vpop.permute.xlu0 %3715
      %3719 = vset.pattern.permute.xlu0 0
      %3720 = vperm.xlu0 %3719, %v3634
      %v3721 = vpop.permute.xlu0 %3720
      %3724 = vset.pattern.permute.xlu0 0
      %3725 = vperm.xlu0 %3724, %v3635
      %v3726 = vpop.permute.xlu0 %3725
      %3729 = vset.pattern.permute.xlu0 0
      %3730 = vperm.xlu0 %3729, %v3636
      %v3731 = vpop.permute.xlu0 %3730
      %3734 = vset.pattern.permute.xlu0 0
      %3735 = vperm.xlu0 %3734, %v3637
      %v3736 = vpop.permute.xlu0 %3735
      %3739 = vset.pattern.permute.xlu0 0
      %3740 = vperm.xlu0 %3739, %v3638
      %v3741 = vpop.permute.xlu0 %3740
      %3744 = vset.pattern.permute.xlu0 0
      %3745 = vperm.xlu0 %3744, %v3639
      %v3746 = vpop.permute.xlu0 %3745
      %3749 = vset.pattern.permute.xlu0 0
      %3750 = vperm.xlu0 %3749, %v3640
      %v3751 = vpop.permute.xlu0 %3750
      %3754 = vset.pattern.permute.xlu0 0
      %3755 = vperm.xlu0 %3754, %v3641
      %v3756 = vpop.permute.xlu0 %3755
      %3759 = vset.pattern.permute.xlu0 0
      %3760 = vperm.xlu0 %3759, %v3642
      %v3761 = vpop.permute.xlu0 %3760
      %3764 = vset.pattern.permute.xlu0 0
      %3765 = vperm.xlu0 %3764, %v3643
      %v3766 = vpop.permute.xlu0 %3765
      %3769 = vset.pattern.permute.xlu0 0
      %3770 = vperm.xlu0 %3769, %v3644
      %v3771 = vpop.permute.xlu0 %3770
      %3774 = vset.pattern.permute.xlu0 0
      %3775 = vperm.xlu0 %3774, %v3645
      %v3776 = vpop.permute.xlu0 %3775
      %3779 = vset.pattern.permute.xlu0 0
      %3780 = vperm.xlu0 %3779, %v3646
      %v3781 = vpop.permute.xlu0 %3780
      %3784 = vset.pattern.permute.xlu0 0
      %3785 = vperm.xlu0 %3784, %v3647
      %v3786 = vpop.permute.xlu0 %3785
      %3789 = vset.pattern.permute.xlu0 0
      %3790 = vperm.xlu0 %3789, %v3648
      %v3791 = vpop.permute.xlu0 %3790
      %3794 = vset.pattern.permute.xlu0 0
      %3795 = vperm.xlu0 %3794, %v3649
      %v3796 = vpop.permute.xlu0 %3795
      %3799 = vset.pattern.permute.xlu0 0
      %3800 = vperm.xlu0 %3799, %v3650
      %v3801 = vpop.permute.xlu0 %3800
      %3804 = vset.pattern.permute.xlu0 0
      %3805 = vperm.xlu0 %3804, %v3651
      %v3806 = vpop.permute.xlu0 %3805
      %3809 = vset.pattern.permute.xlu0 0
      %3810 = vperm.xlu0 %3809, %v3652
      %v3811 = vpop.permute.xlu0 %3810
      %v3813 = vmul.f32 %v3617, %v3656
      %v3814 = vmul.f32 %v3616, %v3661
      %v3815 = vmul.f32 %v3615, %v3666
      %v3816 = vmul.f32 %v3614, %v3671
      %v3817 = vmul.f32 %v3613, %v3676
      %v3818 = vmul.f32 %v3612, %v3681
      %v3819 = vmul.f32 %v3611, %v3686
      %v3820 = vmul.f32 %v3610, %v3691
      %v3821 = vmul.f32 %v3609, %v3696
      %v3822 = vmul.f32 %v3608, %v3701
      %v3823 = vmul.f32 %v3607, %v3706
      %v3824 = vmul.f32 %v3606, %v3711
      %v3825 = vmul.f32 %v3605, %v3716
      %v3826 = vmul.f32 %v3604, %v3721
      %v3827 = vmul.f32 %v3603, %v3726
      %v3828 = vmul.f32 %v3602, %v3731
      %v3829 = vmul.f32 %v3601, %v3736
      %v3830 = vmul.f32 %v3600, %v3741
      %v3831 = vmul.f32 %v3599, %v3746
      %v3832 = vmul.f32 %v3598, %v3751
      %v3833 = vmul.f32 %v3597, %v3756
      %v3834 = vmul.f32 %v3596, %v3761
      %v3835 = vmul.f32 %v3595, %v3766
      %v3836 = vmul.f32 %v3594, %v3771
      %v3837 = vmul.f32 %v3593, %v3776
      %v3838 = vmul.f32 %v3592, %v3781
      %v3839 = vmul.f32 %v3591, %v3786
      %v3840 = vmul.f32 %v3590, %v3791
      %v3841 = vmul.f32 %v3589, %v3796
      %v3842 = vmul.f32 %v3588, %v3801
      %v3843 = vmul.f32 %v3619, %v3806
      %v3844 = vmul.f32 %v3618, %v3811
      %v3845 = vadd.f32 %v3282, %v3813
      %v3846 = vadd.f32 %v3283, %v3814
      %v3847 = vadd.f32 %v3284, %v3815
      %v3848 = vadd.f32 %v3285, %v3816
      %v3849 = vadd.f32 %v3286, %v3817
      %v3850 = vadd.f32 %v3287, %v3818
      %v3851 = vadd.f32 %v3288, %v3819
      %v3852 = vadd.f32 %v3289, %v3820
      %v3853 = vadd.f32 %v3290, %v3821
      %v3854 = vadd.f32 %v3291, %v3822
      %v3855 = vadd.f32 %v3292, %v3823
      %v3856 = vadd.f32 %v3293, %v3824
      %v3857 = vadd.f32 %v3294, %v3825
      %v3858 = vadd.f32 %v3295, %v3826
      %v3859 = vadd.f32 %v3296, %v3827
      %v3860 = vadd.f32 %v3297, %v3828
      %v3861 = vadd.f32 %v3298, %v3829
      %v3862 = vadd.f32 %v3299, %v3830
      %v3863 = vadd.f32 %v3300, %v3831
      %v3864 = vadd.f32 %v3301, %v3832
      %v3865 = vadd.f32 %v3302, %v3833
      %v3866 = vadd.f32 %v3303, %v3834
      %v3867 = vadd.f32 %v3304, %v3835
      %v3868 = vadd.f32 %v3305, %v3836
      %v3869 = vadd.f32 %v3306, %v3837
      %v3870 = vadd.f32 %v3307, %v3838
      %v3871 = vadd.f32 %v3308, %v3839
      %v3872 = vadd.f32 %v3309, %v3840
      %v3873 = vadd.f32 %v3310, %v3841
      %v3874 = vadd.f32 %v3311, %v3842
      %v3875 = vadd.f32 %v3312, %v3843
      %v3876 = vadd.f32 %v3313, %v3844
      %s3877 = scalar_lea.vmem %s1, 896
      %v3878 = vld [vmem:[%s3877] sm:$0xff]
      %v3879 = vld [vmem:[%s3877 + $0x8] sm:$0xff]
      %v3880 = vld [vmem:[%s3877 + $0x10] sm:$0xff]
      %v3881 = vld [vmem:[%s3877 + $0x18] sm:$0xff]
      %v3882 = vld [vmem:[%s3877 + $0x20] sm:$0xff]
      %v3883 = vld [vmem:[%s3877 + $0x28] sm:$0xff]
      %v3884 = vld [vmem:[%s3877 + $0x30] sm:$0xff]
      %v3885 = vld [vmem:[%s3877 + $0x38] sm:$0xff]
      %v3886 = vld [vmem:[%s3877 + $0x40] sm:$0xff]
      %v3887 = vld [vmem:[%s3877 + $0x48] sm:$0xff]
      %v3888 = vld [vmem:[%s3877 + $0x50] sm:$0xff]
      %v3889 = vld [vmem:[%s3877 + $0x58] sm:$0xff]
      %v3890 = vld [vmem:[%s3877 + $0x60] sm:$0xff]
      %v3891 = vld [vmem:[%s3877 + $0x68] sm:$0xff]
      %v3892 = vld [vmem:[%s3877 + $0x70] sm:$0xff]
      %v3893 = vld [vmem:[%s3877 + $0x78] sm:$0xff]
      %3894 = vmatprep.subr.mxu0 0.0
      %3895 = vmatpush1.msra.mxu0 %v3893
      %3896 = vmatprep.subr.mxu0 0.0
      %3897 = vmatpush1.msra.mxu0 %v3892
      %3898 = vmatprep.subr.mxu0 0.0
      %3899 = vmatpush1.msra.mxu0 %v3891
      %3900 = vmatprep.subr.mxu0 0.0
      %3901 = vmatpush1.msra.mxu0 %v3890
      %3902 = vmatprep.subr.mxu0 0.0
      %3903 = vmatpush1.msra.mxu0 %v3889
      %3904 = vmatprep.subr.mxu0 0.0
      %3905 = vmatpush1.msra.mxu0 %v3888
      %3906 = vmatprep.subr.mxu0 0.0
      %3907 = vmatpush1.msra.mxu0 %v3887
      %3908 = vmatprep.subr.mxu0 0.0
      %3909 = vmatpush1.msra.mxu0 %v3886
      %3910 = vmatprep.subr.mxu0 0.0
      %3911 = vmatpush1.msra.mxu0 %v3885
      %3912 = vmatprep.subr.mxu0 0.0
      %3913 = vmatpush1.msra.mxu0 %v3884
      %3914 = vmatprep.subr.mxu0 0.0
      %3915 = vmatpush1.msra.mxu0 %v3883
      %3916 = vmatprep.subr.mxu0 0.0
      %3917 = vmatpush1.msra.mxu0 %v3882
      %3918 = vmatprep.subr.mxu0 0.0
      %3919 = vmatpush1.msra.mxu0 %v3881
      %3920 = vmatprep.subr.mxu0 0.0
      %3921 = vmatpush1.msra.mxu0 %v3880
      %3922 = vmatprep.subr.mxu0 0.0
      %3923 = vmatpush1.msra.mxu0 %v3879
      %3924 = vmatprep.subr.mxu0 0.0
      %3925 = vmatpush1.msra.mxu0 %v3878
      %3926 = vmatprep.subr.mxu0 0.0
      %3927 = vmatpush2.msra.mxu0 0.0
      %3928 = vmatprep.subr.mxu0 0.0
      %3929 = vmatpush2.msra.mxu0 0.0
      %3930 = vmatprep.subr.mxu0 0.0
      %3931 = vmatpush2.msra.mxu0 0.0
      %3932 = vmatprep.subr.mxu0 0.0
      %3933 = vmatpush2.msra.mxu0 0.0
      %3934 = vmatprep.subr.mxu0 0.0
      %3935 = vmatpush2.msra.mxu0 0.0
      %3936 = vmatprep.subr.mxu0 0.0
      %3937 = vmatpush2.msra.mxu0 0.0
      %3938 = vmatprep.subr.mxu0 0.0
      %3939 = vmatpush2.msra.mxu0 0.0
      %3940 = vmatprep.subr.mxu0 0.0
      %3941 = vmatpush2.msra.mxu0 0.0
      %3942 = vmatprep.subr.mxu0 0.0
      %3943 = vmatpush2.msra.mxu0 0.0
      %3944 = vmatprep.subr.mxu0 0.0
      %3945 = vmatpush2.msra.mxu0 0.0
      %3946 = vmatprep.subr.mxu0 0.0
      %3947 = vmatpush2.msra.mxu0 0.0
      %3948 = vmatprep.subr.mxu0 0.0
      %3949 = vmatpush2.msra.mxu0 0.0
      %3950 = vmatprep.subr.mxu0 0.0
      %3951 = vmatpush2.msra.mxu0 0.0
      %3952 = vmatprep.subr.mxu0 0.0
      %3953 = vmatpush2.msra.mxu0 0.0
      %3954 = vmatprep.subr.mxu0 0.0
      %3955 = vmatpush2.msra.mxu0 0.0
      %3956 = vmatprep.subr.mxu0 0.0
      %3957 = vmatpush2.msra.mxu0 0.0
      %3958 = vmatprep.mubr.f32.mxu0 0.0
      %3959 = vmatmul.mubr.f32.gmra.mxu0 %v255
      %v3960 = vpop.f32.mrf.mxu0
      %v3961 = vadd.f32 0.0, %v3960
      %v3962 = vpop.f32.mrf.mxu0
      %3963 = vmatprep.mubr.f32.mxu0 0.0
      %3964 = vmatmul.mubr.f32.gmra.mxu0 %v256
      %v3965 = vpop.f32.mrf.mxu0
      %v3966 = vadd.f32 0.0, %v3965
      %v3967 = vpop.f32.mrf.mxu0
      %3968 = vmatprep.mubr.f32.mxu0 0.0
      %3969 = vmatmul.mubr.f32.gmra.mxu0 %v257
      %v3970 = vpop.f32.mrf.mxu0
      %v3971 = vadd.f32 0.0, %v3970
      %v3972 = vpop.f32.mrf.mxu0
      %3973 = vmatprep.mubr.f32.mxu0 0.0
      %3974 = vmatmul.mubr.f32.gmra.mxu0 %v258
      %v3975 = vpop.f32.mrf.mxu0
      %v3976 = vadd.f32 0.0, %v3975
      %v3977 = vpop.f32.mrf.mxu0
      %3978 = vmatprep.mubr.f32.mxu0 0.0
      %3979 = vmatmul.mubr.f32.gmra.mxu0 %v259
      %v3980 = vpop.f32.mrf.mxu0
      %v3981 = vadd.f32 0.0, %v3980
      %v3982 = vpop.f32.mrf.mxu0
      %3983 = vmatprep.mubr.f32.mxu0 0.0
      %3984 = vmatmul.mubr.f32.gmra.mxu0 %v260
      %v3985 = vpop.f32.mrf.mxu0
      %v3986 = vadd.f32 0.0, %v3985
      %v3987 = vpop.f32.mrf.mxu0
      %3988 = vmatprep.mubr.f32.mxu0 0.0
      %3989 = vmatmul.mubr.f32.gmra.mxu0 %v261
      %v3990 = vpop.f32.mrf.mxu0
      %v3991 = vadd.f32 0.0, %v3990
      %v3992 = vpop.f32.mrf.mxu0
      %3993 = vmatprep.mubr.f32.mxu0 0.0
      %3994 = vmatmul.mubr.f32.gmra.mxu0 %v262
      %v3995 = vpop.f32.mrf.mxu0
      %v3996 = vadd.f32 0.0, %v3995
      %v3997 = vpop.f32.mrf.mxu0
      %3998 = vmatprep.mubr.f32.mxu0 0.0
      %3999 = vmatmul.mubr.f32.gmra.mxu0 %v263
      %v4000 = vpop.f32.mrf.mxu0
      %v4001 = vadd.f32 0.0, %v4000
      %v4002 = vpop.f32.mrf.mxu0
      %4003 = vmatprep.mubr.f32.mxu0 0.0
      %4004 = vmatmul.mubr.f32.gmra.mxu0 %v264
      %v4005 = vpop.f32.mrf.mxu0
      %v4006 = vadd.f32 0.0, %v4005
      %v4007 = vpop.f32.mrf.mxu0
      %4008 = vmatprep.mubr.f32.mxu0 0.0
      %4009 = vmatmul.mubr.f32.gmra.mxu0 %v265
      %v4010 = vpop.f32.mrf.mxu0
      %v4011 = vadd.f32 0.0, %v4010
      %v4012 = vpop.f32.mrf.mxu0
      %4013 = vmatprep.mubr.f32.mxu0 0.0
      %4014 = vmatmul.mubr.f32.gmra.mxu0 %v266
      %v4015 = vpop.f32.mrf.mxu0
      %v4016 = vadd.f32 0.0, %v4015
      %v4017 = vpop.f32.mrf.mxu0
      %4018 = vmatprep.mubr.f32.mxu0 0.0
      %4019 = vmatmul.mubr.f32.gmra.mxu0 %v267
      %v4020 = vpop.f32.mrf.mxu0
      %v4021 = vadd.f32 0.0, %v4020
      %v4022 = vpop.f32.mrf.mxu0
      %4023 = vmatprep.mubr.f32.mxu0 0.0
      %4024 = vmatmul.mubr.f32.gmra.mxu0 %v268
      %v4025 = vpop.f32.mrf.mxu0
      %v4026 = vadd.f32 0.0, %v4025
      %v4027 = vpop.f32.mrf.mxu0
      %4028 = vmatprep.mubr.f32.mxu0 0.0
      %4029 = vmatmul.mubr.f32.gmra.mxu0 %v269
      %v4030 = vpop.f32.mrf.mxu0
      %v4031 = vadd.f32 0.0, %v4030
      %v4032 = vpop.f32.mrf.mxu0
      %4033 = vmatprep.mubr.f32.mxu0 0.0
      %4034 = vmatmul.mubr.f32.gmra.mxu0 %v270
      %v4035 = vpop.f32.mrf.mxu0
      %v4036 = vadd.f32 0.0, %v4035
      %v4037 = vpop.f32.mrf.mxu0
      %4038 = vmatprep.mubr.f32.mxu0 0.0
      %4039 = vmatmul.mubr.f32.gmra.mxu0 %v271
      %v4040 = vpop.f32.mrf.mxu0
      %v4041 = vadd.f32 0.0, %v4040
      %v4042 = vpop.f32.mrf.mxu0
      %4043 = vmatprep.mubr.f32.mxu0 0.0
      %4044 = vmatmul.mubr.f32.gmra.mxu0 %v272
      %v4045 = vpop.f32.mrf.mxu0
      %v4046 = vadd.f32 0.0, %v4045
      %v4047 = vpop.f32.mrf.mxu0
      %4048 = vmatprep.mubr.f32.mxu0 0.0
      %4049 = vmatmul.mubr.f32.gmra.mxu0 %v273
      %v4050 = vpop.f32.mrf.mxu0
      %v4051 = vadd.f32 0.0, %v4050
      %v4052 = vpop.f32.mrf.mxu0
      %4053 = vmatprep.mubr.f32.mxu0 0.0
      %4054 = vmatmul.mubr.f32.gmra.mxu0 %v274
      %v4055 = vpop.f32.mrf.mxu0
      %v4056 = vadd.f32 0.0, %v4055
      %v4057 = vpop.f32.mrf.mxu0
      %4058 = vmatprep.mubr.f32.mxu0 0.0
      %4059 = vmatmul.mubr.f32.gmra.mxu0 %v275
      %v4060 = vpop.f32.mrf.mxu0
      %v4061 = vadd.f32 0.0, %v4060
      %v4062 = vpop.f32.mrf.mxu0
      %4063 = vmatprep.mubr.f32.mxu0 0.0
      %4064 = vmatmul.mubr.f32.gmra.mxu0 %v276
      %v4065 = vpop.f32.mrf.mxu0
      %v4066 = vadd.f32 0.0, %v4065
      %v4067 = vpop.f32.mrf.mxu0
      %4068 = vmatprep.mubr.f32.mxu0 0.0
      %4069 = vmatmul.mubr.f32.gmra.mxu0 %v277
      %v4070 = vpop.f32.mrf.mxu0
      %v4071 = vadd.f32 0.0, %v4070
      %v4072 = vpop.f32.mrf.mxu0
      %4073 = vmatprep.mubr.f32.mxu0 0.0
      %4074 = vmatmul.mubr.f32.gmra.mxu0 %v278
      %v4075 = vpop.f32.mrf.mxu0
      %v4076 = vadd.f32 0.0, %v4075
      %v4077 = vpop.f32.mrf.mxu0
      %4078 = vmatprep.mubr.f32.mxu0 0.0
      %4079 = vmatmul.mubr.f32.gmra.mxu0 %v279
      %v4080 = vpop.f32.mrf.mxu0
      %v4081 = vadd.f32 0.0, %v4080
      %v4082 = vpop.f32.mrf.mxu0
      %4083 = vmatprep.mubr.f32.mxu0 0.0
      %4084 = vmatmul.mubr.f32.gmra.mxu0 %v280
      %v4085 = vpop.f32.mrf.mxu0
      %v4086 = vadd.f32 0.0, %v4085
      %v4087 = vpop.f32.mrf.mxu0
      %4088 = vmatprep.mubr.f32.mxu0 0.0
      %4089 = vmatmul.mubr.f32.gmra.mxu0 %v281
      %v4090 = vpop.f32.mrf.mxu0
      %v4091 = vadd.f32 0.0, %v4090
      %v4092 = vpop.f32.mrf.mxu0
      %4093 = vmatprep.mubr.f32.mxu0 0.0
      %4094 = vmatmul.mubr.f32.gmra.mxu0 %v282
      %v4095 = vpop.f32.mrf.mxu0
      %v4096 = vadd.f32 0.0, %v4095
      %v4097 = vpop.f32.mrf.mxu0
      %4098 = vmatprep.mubr.f32.mxu0 0.0
      %4099 = vmatmul.mubr.f32.gmra.mxu0 %v283
      %v4100 = vpop.f32.mrf.mxu0
      %v4101 = vadd.f32 0.0, %v4100
      %v4102 = vpop.f32.mrf.mxu0
      %4103 = vmatprep.mubr.f32.mxu0 0.0
      %4104 = vmatmul.mubr.f32.gmra.mxu0 %v284
      %v4105 = vpop.f32.mrf.mxu0
      %v4106 = vadd.f32 0.0, %v4105
      %v4107 = vpop.f32.mrf.mxu0
      %4108 = vmatprep.mubr.f32.mxu0 0.0
      %4109 = vmatmul.mubr.f32.gmra.mxu0 %v285
      %v4110 = vpop.f32.mrf.mxu0
      %v4111 = vadd.f32 0.0, %v4110
      %v4112 = vpop.f32.mrf.mxu0
      %4113 = vmatprep.mubr.f32.mxu0 0.0
      %4114 = vmatmul.mubr.f32.gmra.mxu0 %v286
      %v4115 = vpop.f32.mrf.mxu0
      %v4116 = vadd.f32 0.0, %v4115
      %v4117 = vpop.f32.mrf.mxu0
      %4118 = vdwg.mxu0
      %s4119 = scalar_lea.vmem %s5, 1792
      %v4120 = vld [vmem:[%s4119] sm:$0xff]
      %v4121 = vld [vmem:[%s4119 + $0x8] sm:$0xff]
      %v4122 = vld [vmem:[%s4119 + $0x10] sm:$0xff]
      %v4123 = vld [vmem:[%s4119 + $0x18] sm:$0xff]
      %v4124 = vld [vmem:[%s4119 + $0x20] sm:$0xff]
      %v4125 = vld [vmem:[%s4119 + $0x28] sm:$0xff]
      %v4126 = vld [vmem:[%s4119 + $0x30] sm:$0xff]
      %v4127 = vld [vmem:[%s4119 + $0x38] sm:$0xff]
      %v4128 = vld [vmem:[%s4119 + $0x40] sm:$0xff]
      %v4129 = vld [vmem:[%s4119 + $0x48] sm:$0xff]
      %v4130 = vld [vmem:[%s4119 + $0x50] sm:$0xff]
      %v4131 = vld [vmem:[%s4119 + $0x58] sm:$0xff]
      %v4132 = vld [vmem:[%s4119 + $0x60] sm:$0xff]
      %v4133 = vld [vmem:[%s4119 + $0x68] sm:$0xff]
      %v4134 = vld [vmem:[%s4119 + $0x70] sm:$0xff]
      %v4135 = vld [vmem:[%s4119 + $0x78] sm:$0xff]
      %v4136 = vld [vmem:[%s4119 + $0x80] sm:$0xff]
      %v4137 = vld [vmem:[%s4119 + $0x88] sm:$0xff]
      %v4138 = vld [vmem:[%s4119 + $0x90] sm:$0xff]
      %v4139 = vld [vmem:[%s4119 + $0x98] sm:$0xff]
      %v4140 = vld [vmem:[%s4119 + $0xa0] sm:$0xff]
      %v4141 = vld [vmem:[%s4119 + $0xa8] sm:$0xff]
      %v4142 = vld [vmem:[%s4119 + $0xb0] sm:$0xff]
      %v4143 = vld [vmem:[%s4119 + $0xb8] sm:$0xff]
      %v4144 = vld [vmem:[%s4119 + $0xc0] sm:$0xff]
      %v4145 = vld [vmem:[%s4119 + $0xc8] sm:$0xff]
      %v4146 = vld [vmem:[%s4119 + $0xd0] sm:$0xff]
      %v4147 = vld [vmem:[%s4119 + $0xd8] sm:$0xff]
      %v4148 = vld [vmem:[%s4119 + $0xe0] sm:$0xff]
      %v4149 = vld [vmem:[%s4119 + $0xe8] sm:$0xff]
      %v4150 = vld [vmem:[%s4119 + $0xf0] sm:$0xff]
      %v4151 = vld [vmem:[%s4119 + $0xf8] sm:$0xff]
      %4153 = vset.pattern.permute.xlu0 0
      %4154 = vperm.xlu0 %4153, %v4120
      %v4155 = vpop.permute.xlu0 %4154
      %4158 = vset.pattern.permute.xlu0 0
      %4159 = vperm.xlu0 %4158, %v4121
      %v4160 = vpop.permute.xlu0 %4159
      %4163 = vset.pattern.permute.xlu0 0
      %4164 = vperm.xlu0 %4163, %v4122
      %v4165 = vpop.permute.xlu0 %4164
      %4168 = vset.pattern.permute.xlu0 0
      %4169 = vperm.xlu0 %4168, %v4123
      %v4170 = vpop.permute.xlu0 %4169
      %4173 = vset.pattern.permute.xlu0 0
      %4174 = vperm.xlu0 %4173, %v4124
      %v4175 = vpop.permute.xlu0 %4174
      %4178 = vset.pattern.permute.xlu0 0
      %4179 = vperm.xlu0 %4178, %v4125
      %v4180 = vpop.permute.xlu0 %4179
      %4183 = vset.pattern.permute.xlu0 0
      %4184 = vperm.xlu0 %4183, %v4126
      %v4185 = vpop.permute.xlu0 %4184
      %4188 = vset.pattern.permute.xlu0 0
      %4189 = vperm.xlu0 %4188, %v4127
      %v4190 = vpop.permute.xlu0 %4189
      %4193 = vset.pattern.permute.xlu0 0
      %4194 = vperm.xlu0 %4193, %v4128
      %v4195 = vpop.permute.xlu0 %4194
      %4198 = vset.pattern.permute.xlu0 0
      %4199 = vperm.xlu0 %4198, %v4129
      %v4200 = vpop.permute.xlu0 %4199
      %4203 = vset.pattern.permute.xlu0 0
      %4204 = vperm.xlu0 %4203, %v4130
      %v4205 = vpop.permute.xlu0 %4204
      %4208 = vset.pattern.permute.xlu0 0
      %4209 = vperm.xlu0 %4208, %v4131
      %v4210 = vpop.permute.xlu0 %4209
      %4213 = vset.pattern.permute.xlu0 0
      %4214 = vperm.xlu0 %4213, %v4132
      %v4215 = vpop.permute.xlu0 %4214
      %4218 = vset.pattern.permute.xlu0 0
      %4219 = vperm.xlu0 %4218, %v4133
      %v4220 = vpop.permute.xlu0 %4219
      %4223 = vset.pattern.permute.xlu0 0
      %4224 = vperm.xlu0 %4223, %v4134
      %v4225 = vpop.permute.xlu0 %4224
      %4228 = vset.pattern.permute.xlu0 0
      %4229 = vperm.xlu0 %4228, %v4135
      %v4230 = vpop.permute.xlu0 %4229
      %4233 = vset.pattern.permute.xlu0 0
      %4234 = vperm.xlu0 %4233, %v4136
      %v4235 = vpop.permute.xlu0 %4234
      %4238 = vset.pattern.permute.xlu0 0
      %4239 = vperm.xlu0 %4238, %v4137
      %v4240 = vpop.permute.xlu0 %4239
      %4243 = vset.pattern.permute.xlu0 0
      %4244 = vperm.xlu0 %4243, %v4138
      %v4245 = vpop.permute.xlu0 %4244
      %4248 = vset.pattern.permute.xlu0 0
      %4249 = vperm.xlu0 %4248, %v4139
      %v4250 = vpop.permute.xlu0 %4249
      %4253 = vset.pattern.permute.xlu0 0
      %4254 = vperm.xlu0 %4253, %v4140
      %v4255 = vpop.permute.xlu0 %4254
      %4258 = vset.pattern.permute.xlu0 0
      %4259 = vperm.xlu0 %4258, %v4141
      %v4260 = vpop.permute.xlu0 %4259
      %4263 = vset.pattern.permute.xlu0 0
      %4264 = vperm.xlu0 %4263, %v4142
      %v4265 = vpop.permute.xlu0 %4264
      %4268 = vset.pattern.permute.xlu0 0
      %4269 = vperm.xlu0 %4268, %v4143
      %v4270 = vpop.permute.xlu0 %4269
      %4273 = vset.pattern.permute.xlu0 0
      %4274 = vperm.xlu0 %4273, %v4144
      %v4275 = vpop.permute.xlu0 %4274
      %4278 = vset.pattern.permute.xlu0 0
      %4279 = vperm.xlu0 %4278, %v4145
      %v4280 = vpop.permute.xlu0 %4279
      %4283 = vset.pattern.permute.xlu0 0
      %4284 = vperm.xlu0 %4283, %v4146
      %v4285 = vpop.permute.xlu0 %4284
      %4288 = vset.pattern.permute.xlu0 0
      %4289 = vperm.xlu0 %4288, %v4147
      %v4290 = vpop.permute.xlu0 %4289
      %4293 = vset.pattern.permute.xlu0 0
      %4294 = vperm.xlu0 %4293, %v4148
      %v4295 = vpop.permute.xlu0 %4294
      %4298 = vset.pattern.permute.xlu0 0
      %4299 = vperm.xlu0 %4298, %v4149
      %v4300 = vpop.permute.xlu0 %4299
      %4303 = vset.pattern.permute.xlu0 0
      %4304 = vperm.xlu0 %4303, %v4150
      %v4305 = vpop.permute.xlu0 %4304
      %4308 = vset.pattern.permute.xlu0 0
      %4309 = vperm.xlu0 %4308, %v4151
      %v4310 = vpop.permute.xlu0 %4309
      %v4312 = vmul.f32 %v3971, %v4155
      %v4313 = vmul.f32 %v3976, %v4160
      %v4314 = vmul.f32 %v3981, %v4165
      %v4315 = vmul.f32 %v3986, %v4170
      %v4316 = vmul.f32 %v3991, %v4175
      %v4317 = vmul.f32 %v3996, %v4180
      %v4318 = vmul.f32 %v4001, %v4185
      %v4319 = vmul.f32 %v4006, %v4190
      %v4320 = vmul.f32 %v4011, %v4195
      %v4321 = vmul.f32 %v4016, %v4200
      %v4322 = vmul.f32 %v4021, %v4205
      %v4323 = vmul.f32 %v4026, %v4210
      %v4324 = vmul.f32 %v4031, %v4215
      %v4325 = vmul.f32 %v4036, %v4220
      %v4326 = vmul.f32 %v4041, %v4225
      %v4327 = vmul.f32 %v4046, %v4230
      %v4328 = vmul.f32 %v4051, %v4235
      %v4329 = vmul.f32 %v4056, %v4240
      %v4330 = vmul.f32 %v4061, %v4245
      %v4331 = vmul.f32 %v4066, %v4250
      %v4332 = vmul.f32 %v4071, %v4255
      %v4333 = vmul.f32 %v4076, %v4260
      %v4334 = vmul.f32 %v4081, %v4265
      %v4335 = vmul.f32 %v4086, %v4270
      %v4336 = vmul.f32 %v4091, %v4275
      %v4337 = vmul.f32 %v4096, %v4280
      %v4338 = vmul.f32 %v4101, %v4285
      %v4339 = vmul.f32 %v4106, %v4290
      %v4340 = vmul.f32 %v4111, %v4295
      %v4341 = vmul.f32 %v4116, %v4300
      %v4342 = vmul.f32 %v3961, %v4305
      %v4343 = vmul.f32 %v3966, %v4310
      %v4344 = vadd.f32 %v3845, %v4312
      %v4345 = vadd.f32 %v3846, %v4313
      %v4346 = vadd.f32 %v3847, %v4314
      %v4347 = vadd.f32 %v3848, %v4315
      %v4348 = vadd.f32 %v3849, %v4316
      %v4349 = vadd.f32 %v3850, %v4317
      %v4350 = vadd.f32 %v3851, %v4318
      %v4351 = vadd.f32 %v3852, %v4319
      %v4352 = vadd.f32 %v3853, %v4320
      %v4353 = vadd.f32 %v3854, %v4321
      %v4354 = vadd.f32 %v3855, %v4322
      %v4355 = vadd.f32 %v3856, %v4323
      %v4356 = vadd.f32 %v3857, %v4324
      %v4357 = vadd.f32 %v3858, %v4325
      %v4358 = vadd.f32 %v3859, %v4326
      %v4359 = vadd.f32 %v3860, %v4327
      %v4360 = vadd.f32 %v3861, %v4328
      %v4361 = vadd.f32 %v3862, %v4329
      %v4362 = vadd.f32 %v3863, %v4330
      %v4363 = vadd.f32 %v3864, %v4331
      %v4364 = vadd.f32 %v3865, %v4332
      %v4365 = vadd.f32 %v3866, %v4333
      %v4366 = vadd.f32 %v3867, %v4334
      %v4367 = vadd.f32 %v3868, %v4335
      %v4368 = vadd.f32 %v3869, %v4336
      %v4369 = vadd.f32 %v3870, %v4337
      %v4370 = vadd.f32 %v3871, %v4338
      %v4371 = vadd.f32 %v3872, %v4339
      %v4372 = vadd.f32 %v3873, %v4340
      %v4373 = vadd.f32 %v3874, %v4341
      %v4374 = vadd.f32 %v3875, %v4342
      %v4375 = vadd.f32 %v3876, %v4343
      %s4376 = scalar_lea.vmem %s1, 1024
      %v4377 = vld [vmem:[%s4376] sm:$0xff]
      %v4378 = vld [vmem:[%s4376 + $0x8] sm:$0xff]
      %v4379 = vld [vmem:[%s4376 + $0x10] sm:$0xff]
      %v4380 = vld [vmem:[%s4376 + $0x18] sm:$0xff]
      %v4381 = vld [vmem:[%s4376 + $0x20] sm:$0xff]
      %v4382 = vld [vmem:[%s4376 + $0x28] sm:$0xff]
      %v4383 = vld [vmem:[%s4376 + $0x30] sm:$0xff]
      %v4384 = vld [vmem:[%s4376 + $0x38] sm:$0xff]
      %v4385 = vld [vmem:[%s4376 + $0x40] sm:$0xff]
      %v4386 = vld [vmem:[%s4376 + $0x48] sm:$0xff]
      %v4387 = vld [vmem:[%s4376 + $0x50] sm:$0xff]
      %v4388 = vld [vmem:[%s4376 + $0x58] sm:$0xff]
      %v4389 = vld [vmem:[%s4376 + $0x60] sm:$0xff]
      %v4390 = vld [vmem:[%s4376 + $0x68] sm:$0xff]
      %v4391 = vld [vmem:[%s4376 + $0x70] sm:$0xff]
      %v4392 = vld [vmem:[%s4376 + $0x78] sm:$0xff]
      %4393 = vmatprep.subr.mxu0 0.0
      %4394 = vmatpush1.msra.mxu0 %v4392
      %4395 = vmatprep.subr.mxu0 0.0
      %4396 = vmatpush1.msra.mxu0 %v4391
      %4397 = vmatprep.subr.mxu0 0.0
      %4398 = vmatpush1.msra.mxu0 %v4390
      %4399 = vmatprep.subr.mxu0 0.0
      %4400 = vmatpush1.msra.mxu0 %v4389
      %4401 = vmatprep.subr.mxu0 0.0
      %4402 = vmatpush1.msra.mxu0 %v4388
      %4403 = vmatprep.subr.mxu0 0.0
      %4404 = vmatpush1.msra.mxu0 %v4387
      %4405 = vmatprep.subr.mxu0 0.0
      %4406 = vmatpush1.msra.mxu0 %v4386
      %4407 = vmatprep.subr.mxu0 0.0
      %4408 = vmatpush1.msra.mxu0 %v4385
      %4409 = vmatprep.subr.mxu0 0.0
      %4410 = vmatpush1.msra.mxu0 %v4384
      %4411 = vmatprep.subr.mxu0 0.0
      %4412 = vmatpush1.msra.mxu0 %v4383
      %4413 = vmatprep.subr.mxu0 0.0
      %4414 = vmatpush1.msra.mxu0 %v4382
      %4415 = vmatprep.subr.mxu0 0.0
      %4416 = vmatpush1.msra.mxu0 %v4381
      %4417 = vmatprep.subr.mxu0 0.0
      %4418 = vmatpush1.msra.mxu0 %v4380
      %4419 = vmatprep.subr.mxu0 0.0
      %4420 = vmatpush1.msra.mxu0 %v4379
      %4421 = vmatprep.subr.mxu0 0.0
      %4422 = vmatpush1.msra.mxu0 %v4378
      %4423 = vmatprep.subr.mxu0 0.0
      %4424 = vmatpush1.msra.mxu0 %v4377
      %4425 = vmatprep.subr.mxu0 0.0
      %4426 = vmatpush2.msra.mxu0 0.0
      %4427 = vmatprep.subr.mxu0 0.0
      %4428 = vmatpush2.msra.mxu0 0.0
      %4429 = vmatprep.subr.mxu0 0.0
      %4430 = vmatpush2.msra.mxu0 0.0
      %4431 = vmatprep.subr.mxu0 0.0
      %4432 = vmatpush2.msra.mxu0 0.0
      %4433 = vmatprep.subr.mxu0 0.0
      %4434 = vmatpush2.msra.mxu0 0.0
      %4435 = vmatprep.subr.mxu0 0.0
      %4436 = vmatpush2.msra.mxu0 0.0
      %4437 = vmatprep.subr.mxu0 0.0
      %4438 = vmatpush2.msra.mxu0 0.0
      %4439 = vmatprep.subr.mxu0 0.0
      %4440 = vmatpush2.msra.mxu0 0.0
      %4441 = vmatprep.subr.mxu0 0.0
      %4442 = vmatpush2.msra.mxu0 0.0
      %4443 = vmatprep.subr.mxu0 0.0
      %4444 = vmatpush2.msra.mxu0 0.0
      %4445 = vmatprep.subr.mxu0 0.0
      %4446 = vmatpush2.msra.mxu0 0.0
      %4447 = vmatprep.subr.mxu0 0.0
      %4448 = vmatpush2.msra.mxu0 0.0
      %4449 = vmatprep.subr.mxu0 0.0
      %4450 = vmatpush2.msra.mxu0 0.0
      %4451 = vmatprep.subr.mxu0 0.0
      %4452 = vmatpush2.msra.mxu0 0.0
      %4453 = vmatprep.subr.mxu0 0.0
      %4454 = vmatpush2.msra.mxu0 0.0
      %4455 = vmatprep.subr.mxu0 0.0
      %4456 = vmatpush2.msra.mxu0 0.0
      %4457 = vmatprep.mubr.f32.mxu0 0.0
      %4458 = vmatmul.mubr.f32.gmra.mxu0 %v255
      %v4459 = vpop.f32.mrf.mxu0
      %v4460 = vadd.f32 0.0, %v4459
      %v4461 = vpop.f32.mrf.mxu0
      %4462 = vmatprep.mubr.f32.mxu0 0.0
      %4463 = vmatmul.mubr.f32.gmra.mxu0 %v256
      %v4464 = vpop.f32.mrf.mxu0
      %v4465 = vadd.f32 0.0, %v4464
      %v4466 = vpop.f32.mrf.mxu0
      %4467 = vmatprep.mubr.f32.mxu0 0.0
      %4468 = vmatmul.mubr.f32.gmra.mxu0 %v257
      %v4469 = vpop.f32.mrf.mxu0
      %v4470 = vadd.f32 0.0, %v4469
      %v4471 = vpop.f32.mrf.mxu0
      %4472 = vmatprep.mubr.f32.mxu0 0.0
      %4473 = vmatmul.mubr.f32.gmra.mxu0 %v258
      %v4474 = vpop.f32.mrf.mxu0
      %v4475 = vadd.f32 0.0, %v4474
      %v4476 = vpop.f32.mrf.mxu0
      %4477 = vmatprep.mubr.f32.mxu0 0.0
      %4478 = vmatmul.mubr.f32.gmra.mxu0 %v259
      %v4479 = vpop.f32.mrf.mxu0
      %v4480 = vadd.f32 0.0, %v4479
      %v4481 = vpop.f32.mrf.mxu0
      %4482 = vmatprep.mubr.f32.mxu0 0.0
      %4483 = vmatmul.mubr.f32.gmra.mxu0 %v260
      %v4484 = vpop.f32.mrf.mxu0
      %v4485 = vadd.f32 0.0, %v4484
      %v4486 = vpop.f32.mrf.mxu0
      %4487 = vmatprep.mubr.f32.mxu0 0.0
      %4488 = vmatmul.mubr.f32.gmra.mxu0 %v261
      %v4489 = vpop.f32.mrf.mxu0
      %v4490 = vadd.f32 0.0, %v4489
      %v4491 = vpop.f32.mrf.mxu0
      %4492 = vmatprep.mubr.f32.mxu0 0.0
      %4493 = vmatmul.mubr.f32.gmra.mxu0 %v262
      %v4494 = vpop.f32.mrf.mxu0
      %v4495 = vadd.f32 0.0, %v4494
      %v4496 = vpop.f32.mrf.mxu0
      %4497 = vmatprep.mubr.f32.mxu0 0.0
      %4498 = vmatmul.mubr.f32.gmra.mxu0 %v263
      %v4499 = vpop.f32.mrf.mxu0
      %v4500 = vadd.f32 0.0, %v4499
      %v4501 = vpop.f32.mrf.mxu0
      %4502 = vmatprep.mubr.f32.mxu0 0.0
      %4503 = vmatmul.mubr.f32.gmra.mxu0 %v264
      %v4504 = vpop.f32.mrf.mxu0
      %v4505 = vadd.f32 0.0, %v4504
      %v4506 = vpop.f32.mrf.mxu0
      %4507 = vmatprep.mubr.f32.mxu0 0.0
      %4508 = vmatmul.mubr.f32.gmra.mxu0 %v265
      %v4509 = vpop.f32.mrf.mxu0
      %v4510 = vadd.f32 0.0, %v4509
      %v4511 = vpop.f32.mrf.mxu0
      %4512 = vmatprep.mubr.f32.mxu0 0.0
      %4513 = vmatmul.mubr.f32.gmra.mxu0 %v266
      %v4514 = vpop.f32.mrf.mxu0
      %v4515 = vadd.f32 0.0, %v4514
      %v4516 = vpop.f32.mrf.mxu0
      %4517 = vmatprep.mubr.f32.mxu0 0.0
      %4518 = vmatmul.mubr.f32.gmra.mxu0 %v267
      %v4519 = vpop.f32.mrf.mxu0
      %v4520 = vadd.f32 0.0, %v4519
      %v4521 = vpop.f32.mrf.mxu0
      %4522 = vmatprep.mubr.f32.mxu0 0.0
      %4523 = vmatmul.mubr.f32.gmra.mxu0 %v268
      %v4524 = vpop.f32.mrf.mxu0
      %v4525 = vadd.f32 0.0, %v4524
      %v4526 = vpop.f32.mrf.mxu0
      %4527 = vmatprep.mubr.f32.mxu0 0.0
      %4528 = vmatmul.mubr.f32.gmra.mxu0 %v269
      %v4529 = vpop.f32.mrf.mxu0
      %v4530 = vadd.f32 0.0, %v4529
      %v4531 = vpop.f32.mrf.mxu0
      %4532 = vmatprep.mubr.f32.mxu0 0.0
      %4533 = vmatmul.mubr.f32.gmra.mxu0 %v270
      %v4534 = vpop.f32.mrf.mxu0
      %v4535 = vadd.f32 0.0, %v4534
      %v4536 = vpop.f32.mrf.mxu0
      %4537 = vmatprep.mubr.f32.mxu0 0.0
      %4538 = vmatmul.mubr.f32.gmra.mxu0 %v271
      %v4539 = vpop.f32.mrf.mxu0
      %v4540 = vadd.f32 0.0, %v4539
      %v4541 = vpop.f32.mrf.mxu0
      %4542 = vmatprep.mubr.f32.mxu0 0.0
      %4543 = vmatmul.mubr.f32.gmra.mxu0 %v272
      %v4544 = vpop.f32.mrf.mxu0
      %v4545 = vadd.f32 0.0, %v4544
      %v4546 = vpop.f32.mrf.mxu0
      %4547 = vmatprep.mubr.f32.mxu0 0.0
      %4548 = vmatmul.mubr.f32.gmra.mxu0 %v273
      %v4549 = vpop.f32.mrf.mxu0
      %v4550 = vadd.f32 0.0, %v4549
      %v4551 = vpop.f32.mrf.mxu0
      %4552 = vmatprep.mubr.f32.mxu0 0.0
      %4553 = vmatmul.mubr.f32.gmra.mxu0 %v274
      %v4554 = vpop.f32.mrf.mxu0
      %v4555 = vadd.f32 0.0, %v4554
      %v4556 = vpop.f32.mrf.mxu0
      %4557 = vmatprep.mubr.f32.mxu0 0.0
      %4558 = vmatmul.mubr.f32.gmra.mxu0 %v275
      %v4559 = vpop.f32.mrf.mxu0
      %v4560 = vadd.f32 0.0, %v4559
      %v4561 = vpop.f32.mrf.mxu0
      %4562 = vmatprep.mubr.f32.mxu0 0.0
      %4563 = vmatmul.mubr.f32.gmra.mxu0 %v276
      %v4564 = vpop.f32.mrf.mxu0
      %v4565 = vadd.f32 0.0, %v4564
      %v4566 = vpop.f32.mrf.mxu0
      %4567 = vmatprep.mubr.f32.mxu0 0.0
      %4568 = vmatmul.mubr.f32.gmra.mxu0 %v277
      %v4569 = vpop.f32.mrf.mxu0
      %v4570 = vadd.f32 0.0, %v4569
      %v4571 = vpop.f32.mrf.mxu0
      %4572 = vmatprep.mubr.f32.mxu0 0.0
      %4573 = vmatmul.mubr.f32.gmra.mxu0 %v278
      %v4574 = vpop.f32.mrf.mxu0
      %v4575 = vadd.f32 0.0, %v4574
      %v4576 = vpop.f32.mrf.mxu0
      %4577 = vmatprep.mubr.f32.mxu0 0.0
      %4578 = vmatmul.mubr.f32.gmra.mxu0 %v279
      %v4579 = vpop.f32.mrf.mxu0
      %v4580 = vadd.f32 0.0, %v4579
      %v4581 = vpop.f32.mrf.mxu0
      %4582 = vmatprep.mubr.f32.mxu0 0.0
      %4583 = vmatmul.mubr.f32.gmra.mxu0 %v280
      %v4584 = vpop.f32.mrf.mxu0
      %v4585 = vadd.f32 0.0, %v4584
      %v4586 = vpop.f32.mrf.mxu0
      %4587 = vmatprep.mubr.f32.mxu0 0.0
      %4588 = vmatmul.mubr.f32.gmra.mxu0 %v281
      %v4589 = vpop.f32.mrf.mxu0
      %v4590 = vadd.f32 0.0, %v4589
      %v4591 = vpop.f32.mrf.mxu0
      %4592 = vmatprep.mubr.f32.mxu0 0.0
      %4593 = vmatmul.mubr.f32.gmra.mxu0 %v282
      %v4594 = vpop.f32.mrf.mxu0
      %v4595 = vadd.f32 0.0, %v4594
      %v4596 = vpop.f32.mrf.mxu0
      %4597 = vmatprep.mubr.f32.mxu0 0.0
      %4598 = vmatmul.mubr.f32.gmra.mxu0 %v283
      %v4599 = vpop.f32.mrf.mxu0
      %v4600 = vadd.f32 0.0, %v4599
      %v4601 = vpop.f32.mrf.mxu0
      %4602 = vmatprep.mubr.f32.mxu0 0.0
      %4603 = vmatmul.mubr.f32.gmra.mxu0 %v284
      %v4604 = vpop.f32.mrf.mxu0
      %v4605 = vadd.f32 0.0, %v4604
      %v4606 = vpop.f32.mrf.mxu0
      %4607 = vmatprep.mubr.f32.mxu0 0.0
      %4608 = vmatmul.mubr.f32.gmra.mxu0 %v285
      %v4609 = vpop.f32.mrf.mxu0
      %v4610 = vadd.f32 0.0, %v4609
      %v4611 = vpop.f32.mrf.mxu0
      %4612 = vmatprep.mubr.f32.mxu0 0.0
      %4613 = vmatmul.mubr.f32.gmra.mxu0 %v286
      %v4614 = vpop.f32.mrf.mxu0
      %v4615 = vadd.f32 0.0, %v4614
      %v4616 = vpop.f32.mrf.mxu0
      %4617 = vdwg.mxu0
      %v4618 = vrot.slane %v4460, 1
      %v4619 = vrot.slane %v4465, 1
      %v4620 = vrot.slane %v4470, 1
      %v4621 = vrot.slane %v4475, 1
      %v4622 = vrot.slane %v4480, 1
      %v4623 = vrot.slane %v4485, 1
      %v4624 = vrot.slane %v4490, 1
      %v4625 = vrot.slane %v4495, 1
      %v4626 = vrot.slane %v4500, 1
      %v4627 = vrot.slane %v4505, 1
      %v4628 = vrot.slane %v4510, 1
      %v4629 = vrot.slane %v4515, 1
      %v4630 = vrot.slane %v4520, 1
      %v4631 = vrot.slane %v4525, 1
      %v4632 = vrot.slane %v4530, 1
      %v4633 = vrot.slane %v4535, 1
      %v4634 = vrot.slane %v4540, 1
      %v4635 = vrot.slane %v4545, 1
      %v4636 = vrot.slane %v4550, 1
      %v4637 = vrot.slane %v4555, 1
      %v4638 = vrot.slane %v4560, 1
      %v4639 = vrot.slane %v4565, 1
      %v4640 = vrot.slane %v4570, 1
      %v4641 = vrot.slane %v4575, 1
      %v4642 = vrot.slane %v4580, 1
      %v4643 = vrot.slane %v4585, 1
      %v4644 = vrot.slane %v4590, 1
      %v4645 = vrot.slane %v4595, 1
      %v4646 = vrot.slane %v4600, 1
      %v4647 = vrot.slane %v4605, 1
      %v4648 = vrot.slane %v4610, 1
      %v4649 = vrot.slane %v4615, 1
      %v4650 = vsel %vm1624, %v4648, %v4649
      %v4651 = vsel %vm1624, %v4647, %v4648
      %v4652 = vsel %vm1624, %v4646, %v4647
      %v4653 = vsel %vm1624, %v4645, %v4646
      %v4654 = vsel %vm1624, %v4644, %v4645
      %v4655 = vsel %vm1624, %v4643, %v4644
      %v4656 = vsel %vm1624, %v4642, %v4643
      %v4657 = vsel %vm1624, %v4641, %v4642
      %v4658 = vsel %vm1624, %v4640, %v4641
      %v4659 = vsel %vm1624, %v4639, %v4640
      %v4660 = vsel %vm1624, %v4638, %v4639
      %v4661 = vsel %vm1624, %v4637, %v4638
      %v4662 = vsel %vm1624, %v4636, %v4637
      %v4663 = vsel %vm1624, %v4635, %v4636
      %v4664 = vsel %vm1624, %v4634, %v4635
      %v4665 = vsel %vm1624, %v4633, %v4634
      %v4666 = vsel %vm1624, %v4632, %v4633
      %v4667 = vsel %vm1624, %v4631, %v4632
      %v4668 = vsel %vm1624, %v4630, %v4631
      %v4669 = vsel %vm1624, %v4629, %v4630
      %v4670 = vsel %vm1624, %v4628, %v4629
      %v4671 = vsel %vm1624, %v4627, %v4628
      %v4672 = vsel %vm1624, %v4626, %v4627
      %v4673 = vsel %vm1624, %v4625, %v4626
      %v4674 = vsel %vm1624, %v4624, %v4625
      %v4675 = vsel %vm1624, %v4623, %v4624
      %v4676 = vsel %vm1624, %v4622, %v4623
      %v4677 = vsel %vm1624, %v4621, %v4622
      %v4678 = vsel %vm1624, %v4620, %v4621
      %v4679 = vsel %vm1624, %v4619, %v4620
      %v4680 = vsel %vm1624, %v4618, %v4619
      %v4681 = vsel %vm1624, %v4649, %v4618
      %s4682 = scalar_lea.vmem %s5, 2048
      %v4683 = vld [vmem:[%s4682] sm:$0xff]
      %v4684 = vld [vmem:[%s4682 + $0x8] sm:$0xff]
      %v4685 = vld [vmem:[%s4682 + $0x10] sm:$0xff]
      %v4686 = vld [vmem:[%s4682 + $0x18] sm:$0xff]
      %v4687 = vld [vmem:[%s4682 + $0x20] sm:$0xff]
      %v4688 = vld [vmem:[%s4682 + $0x28] sm:$0xff]
      %v4689 = vld [vmem:[%s4682 + $0x30] sm:$0xff]
      %v4690 = vld [vmem:[%s4682 + $0x38] sm:$0xff]
      %v4691 = vld [vmem:[%s4682 + $0x40] sm:$0xff]
      %v4692 = vld [vmem:[%s4682 + $0x48] sm:$0xff]
      %v4693 = vld [vmem:[%s4682 + $0x50] sm:$0xff]
      %v4694 = vld [vmem:[%s4682 + $0x58] sm:$0xff]
      %v4695 = vld [vmem:[%s4682 + $0x60] sm:$0xff]
      %v4696 = vld [vmem:[%s4682 + $0x68] sm:$0xff]
      %v4697 = vld [vmem:[%s4682 + $0x70] sm:$0xff]
      %v4698 = vld [vmem:[%s4682 + $0x78] sm:$0xff]
      %v4699 = vld [vmem:[%s4682 + $0x80] sm:$0xff]
      %v4700 = vld [vmem:[%s4682 + $0x88] sm:$0xff]
      %v4701 = vld [vmem:[%s4682 + $0x90] sm:$0xff]
      %v4702 = vld [vmem:[%s4682 + $0x98] sm:$0xff]
      %v4703 = vld [vmem:[%s4682 + $0xa0] sm:$0xff]
      %v4704 = vld [vmem:[%s4682 + $0xa8] sm:$0xff]
      %v4705 = vld [vmem:[%s4682 + $0xb0] sm:$0xff]
      %v4706 = vld [vmem:[%s4682 + $0xb8] sm:$0xff]
      %v4707 = vld [vmem:[%s4682 + $0xc0] sm:$0xff]
      %v4708 = vld [vmem:[%s4682 + $0xc8] sm:$0xff]
      %v4709 = vld [vmem:[%s4682 + $0xd0] sm:$0xff]
      %v4710 = vld [vmem:[%s4682 + $0xd8] sm:$0xff]
      %v4711 = vld [vmem:[%s4682 + $0xe0] sm:$0xff]
      %v4712 = vld [vmem:[%s4682 + $0xe8] sm:$0xff]
      %v4713 = vld [vmem:[%s4682 + $0xf0] sm:$0xff]
      %v4714 = vld [vmem:[%s4682 + $0xf8] sm:$0xff]
      %4716 = vset.pattern.permute.xlu0 0
      %4717 = vperm.xlu0 %4716, %v4683
      %v4718 = vpop.permute.xlu0 %4717
      %4721 = vset.pattern.permute.xlu0 0
      %4722 = vperm.xlu0 %4721, %v4684
      %v4723 = vpop.permute.xlu0 %4722
      %4726 = vset.pattern.permute.xlu0 0
      %4727 = vperm.xlu0 %4726, %v4685
      %v4728 = vpop.permute.xlu0 %4727
      %4731 = vset.pattern.permute.xlu0 0
      %4732 = vperm.xlu0 %4731, %v4686
      %v4733 = vpop.permute.xlu0 %4732
      %4736 = vset.pattern.permute.xlu0 0
      %4737 = vperm.xlu0 %4736, %v4687
      %v4738 = vpop.permute.xlu0 %4737
      %4741 = vset.pattern.permute.xlu0 0
      %4742 = vperm.xlu0 %4741, %v4688
      %v4743 = vpop.permute.xlu0 %4742
      %4746 = vset.pattern.permute.xlu0 0
      %4747 = vperm.xlu0 %4746, %v4689
      %v4748 = vpop.permute.xlu0 %4747
      %4751 = vset.pattern.permute.xlu0 0
      %4752 = vperm.xlu0 %4751, %v4690
      %v4753 = vpop.permute.xlu0 %4752
      %4756 = vset.pattern.permute.xlu0 0
      %4757 = vperm.xlu0 %4756, %v4691
      %v4758 = vpop.permute.xlu0 %4757
      %4761 = vset.pattern.permute.xlu0 0
      %4762 = vperm.xlu0 %4761, %v4692
      %v4763 = vpop.permute.xlu0 %4762
      %4766 = vset.pattern.permute.xlu0 0
      %4767 = vperm.xlu0 %4766, %v4693
      %v4768 = vpop.permute.xlu0 %4767
      %4771 = vset.pattern.permute.xlu0 0
      %4772 = vperm.xlu0 %4771, %v4694
      %v4773 = vpop.permute.xlu0 %4772
      %4776 = vset.pattern.permute.xlu0 0
      %4777 = vperm.xlu0 %4776, %v4695
      %v4778 = vpop.permute.xlu0 %4777
      %4781 = vset.pattern.permute.xlu0 0
      %4782 = vperm.xlu0 %4781, %v4696
      %v4783 = vpop.permute.xlu0 %4782
      %4786 = vset.pattern.permute.xlu0 0
      %4787 = vperm.xlu0 %4786, %v4697
      %v4788 = vpop.permute.xlu0 %4787
      %4791 = vset.pattern.permute.xlu0 0
      %4792 = vperm.xlu0 %4791, %v4698
      %v4793 = vpop.permute.xlu0 %4792
      %4796 = vset.pattern.permute.xlu0 0
      %4797 = vperm.xlu0 %4796, %v4699
      %v4798 = vpop.permute.xlu0 %4797
      %4801 = vset.pattern.permute.xlu0 0
      %4802 = vperm.xlu0 %4801, %v4700
      %v4803 = vpop.permute.xlu0 %4802
      %4806 = vset.pattern.permute.xlu0 0
      %4807 = vperm.xlu0 %4806, %v4701
      %v4808 = vpop.permute.xlu0 %4807
      %4811 = vset.pattern.permute.xlu0 0
      %4812 = vperm.xlu0 %4811, %v4702
      %v4813 = vpop.permute.xlu0 %4812
      %4816 = vset.pattern.permute.xlu0 0
      %4817 = vperm.xlu0 %4816, %v4703
      %v4818 = vpop.permute.xlu0 %4817
      %4821 = vset.pattern.permute.xlu0 0
      %4822 = vperm.xlu0 %4821, %v4704
      %v4823 = vpop.permute.xlu0 %4822
      %4826 = vset.pattern.permute.xlu0 0
      %4827 = vperm.xlu0 %4826, %v4705
      %v4828 = vpop.permute.xlu0 %4827
      %4831 = vset.pattern.permute.xlu0 0
      %4832 = vperm.xlu0 %4831, %v4706
      %v4833 = vpop.permute.xlu0 %4832
      %4836 = vset.pattern.permute.xlu0 0
      %4837 = vperm.xlu0 %4836, %v4707
      %v4838 = vpop.permute.xlu0 %4837
      %4841 = vset.pattern.permute.xlu0 0
      %4842 = vperm.xlu0 %4841, %v4708
      %v4843 = vpop.permute.xlu0 %4842
      %4846 = vset.pattern.permute.xlu0 0
      %4847 = vperm.xlu0 %4846, %v4709
      %v4848 = vpop.permute.xlu0 %4847
      %4851 = vset.pattern.permute.xlu0 0
      %4852 = vperm.xlu0 %4851, %v4710
      %v4853 = vpop.permute.xlu0 %4852
      %4856 = vset.pattern.permute.xlu0 0
      %4857 = vperm.xlu0 %4856, %v4711
      %v4858 = vpop.permute.xlu0 %4857
      %4861 = vset.pattern.permute.xlu0 0
      %4862 = vperm.xlu0 %4861, %v4712
      %v4863 = vpop.permute.xlu0 %4862
      %4866 = vset.pattern.permute.xlu0 0
      %4867 = vperm.xlu0 %4866, %v4713
      %v4868 = vpop.permute.xlu0 %4867
      %4871 = vset.pattern.permute.xlu0 0
      %4872 = vperm.xlu0 %4871, %v4714
      %v4873 = vpop.permute.xlu0 %4872
      %v4875 = vmul.f32 %v4678, %v4718
      %v4876 = vmul.f32 %v4677, %v4723
      %v4877 = vmul.f32 %v4676, %v4728
      %v4878 = vmul.f32 %v4675, %v4733
      %v4879 = vmul.f32 %v4674, %v4738
      %v4880 = vmul.f32 %v4673, %v4743
      %v4881 = vmul.f32 %v4672, %v4748
      %v4882 = vmul.f32 %v4671, %v4753
      %v4883 = vmul.f32 %v4670, %v4758
      %v4884 = vmul.f32 %v4669, %v4763
      %v4885 = vmul.f32 %v4668, %v4768
      %v4886 = vmul.f32 %v4667, %v4773
      %v4887 = vmul.f32 %v4666, %v4778
      %v4888 = vmul.f32 %v4665, %v4783
      %v4889 = vmul.f32 %v4664, %v4788
      %v4890 = vmul.f32 %v4663, %v4793
      %v4891 = vmul.f32 %v4662, %v4798
      %v4892 = vmul.f32 %v4661, %v4803
      %v4893 = vmul.f32 %v4660, %v4808
      %v4894 = vmul.f32 %v4659, %v4813
      %v4895 = vmul.f32 %v4658, %v4818
      %v4896 = vmul.f32 %v4657, %v4823
      %v4897 = vmul.f32 %v4656, %v4828
      %v4898 = vmul.f32 %v4655, %v4833
      %v4899 = vmul.f32 %v4654, %v4838
      %v4900 = vmul.f32 %v4653, %v4843
      %v4901 = vmul.f32 %v4652, %v4848
      %v4902 = vmul.f32 %v4651, %v4853
      %v4903 = vmul.f32 %v4650, %v4858
      %v4904 = vmul.f32 %v4681, %v4863
      %v4905 = vmul.f32 %v4680, %v4868
      %v4906 = vmul.f32 %v4679, %v4873
      %v4907 = vadd.f32 %v4344, %v4875
      %v4908 = vadd.f32 %v4345, %v4876
      %v4909 = vadd.f32 %v4346, %v4877
      %v4910 = vadd.f32 %v4347, %v4878
      %v4911 = vadd.f32 %v4348, %v4879
      %v4912 = vadd.f32 %v4349, %v4880
      %v4913 = vadd.f32 %v4350, %v4881
      %v4914 = vadd.f32 %v4351, %v4882
      %v4915 = vadd.f32 %v4352, %v4883
      %v4916 = vadd.f32 %v4353, %v4884
      %v4917 = vadd.f32 %v4354, %v4885
      %v4918 = vadd.f32 %v4355, %v4886
      %v4919 = vadd.f32 %v4356, %v4887
      %v4920 = vadd.f32 %v4357, %v4888
      %v4921 = vadd.f32 %v4358, %v4889
      %v4922 = vadd.f32 %v4359, %v4890
      %v4923 = vadd.f32 %v4360, %v4891
      %v4924 = vadd.f32 %v4361, %v4892
      %v4925 = vadd.f32 %v4362, %v4893
      %v4926 = vadd.f32 %v4363, %v4894
      %v4927 = vadd.f32 %v4364, %v4895
      %v4928 = vadd.f32 %v4365, %v4896
      %v4929 = vadd.f32 %v4366, %v4897
      %v4930 = vadd.f32 %v4367, %v4898
      %v4931 = vadd.f32 %v4368, %v4899
      %v4932 = vadd.f32 %v4369, %v4900
      %v4933 = vadd.f32 %v4370, %v4901
      %v4934 = vadd.f32 %v4371, %v4902
      %v4935 = vadd.f32 %v4372, %v4903
      %v4936 = vadd.f32 %v4373, %v4904
      %v4937 = vadd.f32 %v4374, %v4905
      %v4938 = vadd.f32 %v4375, %v4906
      %v4939 = vld [vmem:[%s2] sm:$0x1]
      %v4941 = vlaneseq
      %v4942 = vshrl.u32 %v4941, 7
      %v4943 = vsub.s32 0, %v4942
      %v4944 = vrot.slane %v4939, %v4943
      %v4946 = vadd.f32 %v4907, %v4944
      %v4947 = vadd.f32 %v4908, %v4944
      %v4948 = vadd.f32 %v4909, %v4944
      %v4949 = vadd.f32 %v4910, %v4944
      %v4950 = vadd.f32 %v4911, %v4944
      %v4951 = vadd.f32 %v4912, %v4944
      %v4952 = vadd.f32 %v4913, %v4944
      %v4953 = vadd.f32 %v4914, %v4944
      %v4954 = vadd.f32 %v4915, %v4944
      %v4955 = vadd.f32 %v4916, %v4944
      %v4956 = vadd.f32 %v4917, %v4944
      %v4957 = vadd.f32 %v4918, %v4944
      %v4958 = vadd.f32 %v4919, %v4944
      %v4959 = vadd.f32 %v4920, %v4944
      %v4960 = vadd.f32 %v4921, %v4944
      %v4961 = vadd.f32 %v4922, %v4944
      %v4962 = vadd.f32 %v4923, %v4944
      %v4963 = vadd.f32 %v4924, %v4944
      %v4964 = vadd.f32 %v4925, %v4944
      %v4965 = vadd.f32 %v4926, %v4944
      %v4966 = vadd.f32 %v4927, %v4944
      %v4967 = vadd.f32 %v4928, %v4944
      %v4968 = vadd.f32 %v4929, %v4944
      %v4969 = vadd.f32 %v4930, %v4944
      %v4970 = vadd.f32 %v4931, %v4944
      %v4971 = vadd.f32 %v4932, %v4944
      %v4972 = vadd.f32 %v4933, %v4944
      %v4973 = vadd.f32 %v4934, %v4944
      %v4974 = vadd.f32 %v4935, %v4944
      %v4975 = vadd.f32 %v4936, %v4944
      %v4976 = vadd.f32 %v4937, %v4944
      %v4977 = vadd.f32 %v4938, %v4944
      %v4978 = vmax.f32 %v4946, 0.0
      %v4979 = vmax.f32 %v4947, 0.0
      %v4980 = vmax.f32 %v4948, 0.0
      %v4981 = vmax.f32 %v4949, 0.0
      %v4982 = vmax.f32 %v4950, 0.0
      %v4983 = vmax.f32 %v4951, 0.0
      %v4984 = vmax.f32 %v4952, 0.0
      %v4985 = vmax.f32 %v4953, 0.0
      %v4986 = vmax.f32 %v4954, 0.0
      %v4987 = vmax.f32 %v4955, 0.0
      %v4988 = vmax.f32 %v4956, 0.0
      %v4989 = vmax.f32 %v4957, 0.0
      %v4990 = vmax.f32 %v4958, 0.0
      %v4991 = vmax.f32 %v4959, 0.0
      %v4992 = vmax.f32 %v4960, 0.0
      %v4993 = vmax.f32 %v4961, 0.0
      %v4994 = vmax.f32 %v4962, 0.0
      %v4995 = vmax.f32 %v4963, 0.0
      %v4996 = vmax.f32 %v4964, 0.0
      %v4997 = vmax.f32 %v4965, 0.0
      %v4998 = vmax.f32 %v4966, 0.0
      %v4999 = vmax.f32 %v4967, 0.0
      %v5000 = vmax.f32 %v4968, 0.0
      %v5001 = vmax.f32 %v4969, 0.0
      %v5002 = vmax.f32 %v4970, 0.0
      %v5003 = vmax.f32 %v4971, 0.0
      %v5004 = vmax.f32 %v4972, 0.0
      %v5005 = vmax.f32 %v4973, 0.0
      %v5006 = vmax.f32 %v4974, 0.0
      %v5007 = vmax.f32 %v4975, 0.0
      %v5008 = vmax.f32 %v4976, 0.0
      %v5009 = vmax.f32 %v4977, 0.0
      %v5010 = vld [vmem:[%s3] sm:$0xff]
      %v5011 = vld [vmem:[%s3 + $0x8] sm:$0xff]
      %v5012 = vld [vmem:[%s3 + $0x10] sm:$0xff]
      %v5013 = vld [vmem:[%s3 + $0x18] sm:$0xff]
      %v5014 = vld [vmem:[%s3 + $0x20] sm:$0xff]
      %v5015 = vld [vmem:[%s3 + $0x28] sm:$0xff]
      %v5016 = vld [vmem:[%s3 + $0x30] sm:$0xff]
      %v5017 = vld [vmem:[%s3 + $0x38] sm:$0xff]
      %v5018 = vld [vmem:[%s3 + $0x40] sm:$0xff]
      %v5019 = vld [vmem:[%s3 + $0x48] sm:$0xff]
      %v5020 = vld [vmem:[%s3 + $0x50] sm:$0xff]
      %v5021 = vld [vmem:[%s3 + $0x58] sm:$0xff]
      %v5022 = vld [vmem:[%s3 + $0x60] sm:$0xff]
      %v5023 = vld [vmem:[%s3 + $0x68] sm:$0xff]
      %v5024 = vld [vmem:[%s3 + $0x70] sm:$0xff]
      %v5025 = vld [vmem:[%s3 + $0x78] sm:$0xff]
      %5026 = vmatprep.subr.mxu0 0.0
      %5027 = vmatpush1.msra.mxu0 %v5025
      %5028 = vmatprep.subr.mxu0 0.0
      %5029 = vmatpush1.msra.mxu0 %v5024
      %5030 = vmatprep.subr.mxu0 0.0
      %5031 = vmatpush1.msra.mxu0 %v5023
      %5032 = vmatprep.subr.mxu0 0.0
      %5033 = vmatpush1.msra.mxu0 %v5022
      %5034 = vmatprep.subr.mxu0 0.0
      %5035 = vmatpush1.msra.mxu0 %v5021
      %5036 = vmatprep.subr.mxu0 0.0
      %5037 = vmatpush1.msra.mxu0 %v5020
      %5038 = vmatprep.subr.mxu0 0.0
      %5039 = vmatpush1.msra.mxu0 %v5019
      %5040 = vmatprep.subr.mxu0 0.0
      %5041 = vmatpush1.msra.mxu0 %v5018
      %5042 = vmatprep.subr.mxu0 0.0
      %5043 = vmatpush1.msra.mxu0 %v5017
      %5044 = vmatprep.subr.mxu0 0.0
      %5045 = vmatpush1.msra.mxu0 %v5016
      %5046 = vmatprep.subr.mxu0 0.0
      %5047 = vmatpush1.msra.mxu0 %v5015
      %5048 = vmatprep.subr.mxu0 0.0
      %5049 = vmatpush1.msra.mxu0 %v5014
      %5050 = vmatprep.subr.mxu0 0.0
      %5051 = vmatpush1.msra.mxu0 %v5013
      %5052 = vmatprep.subr.mxu0 0.0
      %5053 = vmatpush1.msra.mxu0 %v5012
      %5054 = vmatprep.subr.mxu0 0.0
      %5055 = vmatpush1.msra.mxu0 %v5011
      %5056 = vmatprep.subr.mxu0 0.0
      %5057 = vmatpush1.msra.mxu0 %v5010
      %5058 = vmatprep.subr.mxu0 0.0
      %5059 = vmatpush2.msra.mxu0 0.0
      %5060 = vmatprep.subr.mxu0 0.0
      %5061 = vmatpush2.msra.mxu0 0.0
      %5062 = vmatprep.subr.mxu0 0.0
      %5063 = vmatpush2.msra.mxu0 0.0
      %5064 = vmatprep.subr.mxu0 0.0
      %5065 = vmatpush2.msra.mxu0 0.0
      %5066 = vmatprep.subr.mxu0 0.0
      %5067 = vmatpush2.msra.mxu0 0.0
      %5068 = vmatprep.subr.mxu0 0.0
      %5069 = vmatpush2.msra.mxu0 0.0
      %5070 = vmatprep.subr.mxu0 0.0
      %5071 = vmatpush2.msra.mxu0 0.0
      %5072 = vmatprep.subr.mxu0 0.0
      %5073 = vmatpush2.msra.mxu0 0.0
      %5074 = vmatprep.subr.mxu0 0.0
      %5075 = vmatpush2.msra.mxu0 0.0
      %5076 = vmatprep.subr.mxu0 0.0
      %5077 = vmatpush2.msra.mxu0 0.0
      %5078 = vmatprep.subr.mxu0 0.0
      %5079 = vmatpush2.msra.mxu0 0.0
      %5080 = vmatprep.subr.mxu0 0.0
      %5081 = vmatpush2.msra.mxu0 0.0
      %5082 = vmatprep.subr.mxu0 0.0
      %5083 = vmatpush2.msra.mxu0 0.0
      %5084 = vmatprep.subr.mxu0 0.0
      %5085 = vmatpush2.msra.mxu0 0.0
      %5086 = vmatprep.subr.mxu0 0.0
      %5087 = vmatpush2.msra.mxu0 0.0
      %5088 = vmatprep.subr.mxu0 0.0
      %5089 = vmatpush2.msra.mxu0 0.0
      %5090 = vmatprep.mubr.f32.mxu0 0.0
      %5091 = vmatmul.mubr.f32.gmra.mxu0 %v4978
      %v5092 = vpop.f32.mrf.mxu0
      %v5093 = vadd.f32 0.0, %v5092
      %v5094 = vpop.f32.mrf.mxu0
      %5095 = vmatprep.mubr.f32.mxu0 0.0
      %5096 = vmatmul.mubr.f32.gmra.mxu0 %v4979
      %v5097 = vpop.f32.mrf.mxu0
      %v5098 = vadd.f32 0.0, %v5097
      %v5099 = vpop.f32.mrf.mxu0
      %5100 = vmatprep.mubr.f32.mxu0 0.0
      %5101 = vmatmul.mubr.f32.gmra.mxu0 %v4980
      %v5102 = vpop.f32.mrf.mxu0
      %v5103 = vadd.f32 0.0, %v5102
      %v5104 = vpop.f32.mrf.mxu0
      %5105 = vmatprep.mubr.f32.mxu0 0.0
      %5106 = vmatmul.mubr.f32.gmra.mxu0 %v4981
      %v5107 = vpop.f32.mrf.mxu0
      %v5108 = vadd.f32 0.0, %v5107
      %v5109 = vpop.f32.mrf.mxu0
      %5110 = vmatprep.mubr.f32.mxu0 0.0
      %5111 = vmatmul.mubr.f32.gmra.mxu0 %v4982
      %v5112 = vpop.f32.mrf.mxu0
      %v5113 = vadd.f32 0.0, %v5112
      %v5114 = vpop.f32.mrf.mxu0
      %5115 = vmatprep.mubr.f32.mxu0 0.0
      %5116 = vmatmul.mubr.f32.gmra.mxu0 %v4983
      %v5117 = vpop.f32.mrf.mxu0
      %v5118 = vadd.f32 0.0, %v5117
      %v5119 = vpop.f32.mrf.mxu0
      %5120 = vmatprep.mubr.f32.mxu0 0.0
      %5121 = vmatmul.mubr.f32.gmra.mxu0 %v4984
      %v5122 = vpop.f32.mrf.mxu0
      %v5123 = vadd.f32 0.0, %v5122
      %v5124 = vpop.f32.mrf.mxu0
      %5125 = vmatprep.mubr.f32.mxu0 0.0
      %5126 = vmatmul.mubr.f32.gmra.mxu0 %v4985
      %v5127 = vpop.f32.mrf.mxu0
      %v5128 = vadd.f32 0.0, %v5127
      %v5129 = vpop.f32.mrf.mxu0
      %5130 = vmatprep.mubr.f32.mxu0 0.0
      %5131 = vmatmul.mubr.f32.gmra.mxu0 %v4986
      %v5132 = vpop.f32.mrf.mxu0
      %v5133 = vadd.f32 0.0, %v5132
      %v5134 = vpop.f32.mrf.mxu0
      %5135 = vmatprep.mubr.f32.mxu0 0.0
      %5136 = vmatmul.mubr.f32.gmra.mxu0 %v4987
      %v5137 = vpop.f32.mrf.mxu0
      %v5138 = vadd.f32 0.0, %v5137
      %v5139 = vpop.f32.mrf.mxu0
      %5140 = vmatprep.mubr.f32.mxu0 0.0
      %5141 = vmatmul.mubr.f32.gmra.mxu0 %v4988
      %v5142 = vpop.f32.mrf.mxu0
      %v5143 = vadd.f32 0.0, %v5142
      %v5144 = vpop.f32.mrf.mxu0
      %5145 = vmatprep.mubr.f32.mxu0 0.0
      %5146 = vmatmul.mubr.f32.gmra.mxu0 %v4989
      %v5147 = vpop.f32.mrf.mxu0
      %v5148 = vadd.f32 0.0, %v5147
      %v5149 = vpop.f32.mrf.mxu0
      %5150 = vmatprep.mubr.f32.mxu0 0.0
      %5151 = vmatmul.mubr.f32.gmra.mxu0 %v4990
      %v5152 = vpop.f32.mrf.mxu0
      %v5153 = vadd.f32 0.0, %v5152
      %v5154 = vpop.f32.mrf.mxu0
      %5155 = vmatprep.mubr.f32.mxu0 0.0
      %5156 = vmatmul.mubr.f32.gmra.mxu0 %v4991
      %v5157 = vpop.f32.mrf.mxu0
      %v5158 = vadd.f32 0.0, %v5157
      %v5159 = vpop.f32.mrf.mxu0
      %5160 = vmatprep.mubr.f32.mxu0 0.0
      %5161 = vmatmul.mubr.f32.gmra.mxu0 %v4992
      %v5162 = vpop.f32.mrf.mxu0
      %v5163 = vadd.f32 0.0, %v5162
      %v5164 = vpop.f32.mrf.mxu0
      %5165 = vmatprep.mubr.f32.mxu0 0.0
      %5166 = vmatmul.mubr.f32.gmra.mxu0 %v4993
      %v5167 = vpop.f32.mrf.mxu0
      %v5168 = vadd.f32 0.0, %v5167
      %v5169 = vpop.f32.mrf.mxu0
      %5170 = vmatprep.mubr.f32.mxu0 0.0
      %5171 = vmatmul.mubr.f32.gmra.mxu0 %v4994
      %v5172 = vpop.f32.mrf.mxu0
      %v5173 = vadd.f32 0.0, %v5172
      %v5174 = vpop.f32.mrf.mxu0
      %5175 = vmatprep.mubr.f32.mxu0 0.0
      %5176 = vmatmul.mubr.f32.gmra.mxu0 %v4995
      %v5177 = vpop.f32.mrf.mxu0
      %v5178 = vadd.f32 0.0, %v5177
      %v5179 = vpop.f32.mrf.mxu0
      %5180 = vmatprep.mubr.f32.mxu0 0.0
      %5181 = vmatmul.mubr.f32.gmra.mxu0 %v4996
      %v5182 = vpop.f32.mrf.mxu0
      %v5183 = vadd.f32 0.0, %v5182
      %v5184 = vpop.f32.mrf.mxu0
      %5185 = vmatprep.mubr.f32.mxu0 0.0
      %5186 = vmatmul.mubr.f32.gmra.mxu0 %v4997
      %v5187 = vpop.f32.mrf.mxu0
      %v5188 = vadd.f32 0.0, %v5187
      %v5189 = vpop.f32.mrf.mxu0
      %5190 = vmatprep.mubr.f32.mxu0 0.0
      %5191 = vmatmul.mubr.f32.gmra.mxu0 %v4998
      %v5192 = vpop.f32.mrf.mxu0
      %v5193 = vadd.f32 0.0, %v5192
      %v5194 = vpop.f32.mrf.mxu0
      %5195 = vmatprep.mubr.f32.mxu0 0.0
      %5196 = vmatmul.mubr.f32.gmra.mxu0 %v4999
      %v5197 = vpop.f32.mrf.mxu0
      %v5198 = vadd.f32 0.0, %v5197
      %v5199 = vpop.f32.mrf.mxu0
      %5200 = vmatprep.mubr.f32.mxu0 0.0
      %5201 = vmatmul.mubr.f32.gmra.mxu0 %v5000
      %v5202 = vpop.f32.mrf.mxu0
      %v5203 = vadd.f32 0.0, %v5202
      %v5204 = vpop.f32.mrf.mxu0
      %5205 = vmatprep.mubr.f32.mxu0 0.0
      %5206 = vmatmul.mubr.f32.gmra.mxu0 %v5001
      %v5207 = vpop.f32.mrf.mxu0
      %v5208 = vadd.f32 0.0, %v5207
      %v5209 = vpop.f32.mrf.mxu0
      %5210 = vmatprep.mubr.f32.mxu0 0.0
      %5211 = vmatmul.mubr.f32.gmra.mxu0 %v5002
      %v5212 = vpop.f32.mrf.mxu0
      %v5213 = vadd.f32 0.0, %v5212
      %v5214 = vpop.f32.mrf.mxu0
      %5215 = vmatprep.mubr.f32.mxu0 0.0
      %5216 = vmatmul.mubr.f32.gmra.mxu0 %v5003
      %v5217 = vpop.f32.mrf.mxu0
      %v5218 = vadd.f32 0.0, %v5217
      %v5219 = vpop.f32.mrf.mxu0
      %5220 = vmatprep.mubr.f32.mxu0 0.0
      %5221 = vmatmul.mubr.f32.gmra.mxu0 %v5004
      %v5222 = vpop.f32.mrf.mxu0
      %v5223 = vadd.f32 0.0, %v5222
      %v5224 = vpop.f32.mrf.mxu0
      %5225 = vmatprep.mubr.f32.mxu0 0.0
      %5226 = vmatmul.mubr.f32.gmra.mxu0 %v5005
      %v5227 = vpop.f32.mrf.mxu0
      %v5228 = vadd.f32 0.0, %v5227
      %v5229 = vpop.f32.mrf.mxu0
      %5230 = vmatprep.mubr.f32.mxu0 0.0
      %5231 = vmatmul.mubr.f32.gmra.mxu0 %v5006
      %v5232 = vpop.f32.mrf.mxu0
      %v5233 = vadd.f32 0.0, %v5232
      %v5234 = vpop.f32.mrf.mxu0
      %5235 = vmatprep.mubr.f32.mxu0 0.0
      %5236 = vmatmul.mubr.f32.gmra.mxu0 %v5007
      %v5237 = vpop.f32.mrf.mxu0
      %v5238 = vadd.f32 0.0, %v5237
      %v5239 = vpop.f32.mrf.mxu0
      %5240 = vmatprep.mubr.f32.mxu0 0.0
      %5241 = vmatmul.mubr.f32.gmra.mxu0 %v5008
      %v5242 = vpop.f32.mrf.mxu0
      %v5243 = vadd.f32 0.0, %v5242
      %v5244 = vpop.f32.mrf.mxu0
      %5245 = vmatprep.mubr.f32.mxu0 0.0
      %5246 = vmatmul.mubr.f32.gmra.mxu0 %v5009
      %v5247 = vpop.f32.mrf.mxu0
      %v5248 = vadd.f32 0.0, %v5247
      %v5249 = vpop.f32.mrf.mxu0
      %5250 = vdwg.mxu0
      %v5251 = vrot.slane %v5093, 7
      %v5252 = vrot.slane %v5098, 7
      %v5253 = vrot.slane %v5103, 7
      %v5254 = vrot.slane %v5108, 7
      %v5255 = vrot.slane %v5113, 7
      %v5256 = vrot.slane %v5118, 7
      %v5257 = vrot.slane %v5123, 7
      %v5258 = vrot.slane %v5128, 7
      %v5259 = vrot.slane %v5133, 7
      %v5260 = vrot.slane %v5138, 7
      %v5261 = vrot.slane %v5143, 7
      %v5262 = vrot.slane %v5148, 7
      %v5263 = vrot.slane %v5153, 7
      %v5264 = vrot.slane %v5158, 7
      %v5265 = vrot.slane %v5163, 7
      %v5266 = vrot.slane %v5168, 7
      %v5267 = vrot.slane %v5173, 7
      %v5268 = vrot.slane %v5178, 7
      %v5269 = vrot.slane %v5183, 7
      %v5270 = vrot.slane %v5188, 7
      %v5271 = vrot.slane %v5193, 7
      %v5272 = vrot.slane %v5198, 7
      %v5273 = vrot.slane %v5203, 7
      %v5274 = vrot.slane %v5208, 7
      %v5275 = vrot.slane %v5213, 7
      %v5276 = vrot.slane %v5218, 7
      %v5277 = vrot.slane %v5223, 7
      %v5278 = vrot.slane %v5228, 7
      %v5279 = vrot.slane %v5233, 7
      %v5280 = vrot.slane %v5238, 7
      %v5281 = vrot.slane %v5243, 7
      %v5282 = vrot.slane %v5248, 7
      %v5283 = vsel %vm562, %v5281, %v5282
      %v5284 = vsel %vm562, %v5280, %v5281
      %v5285 = vsel %vm562, %v5279, %v5280
      %v5286 = vsel %vm562, %v5278, %v5279
      %v5287 = vsel %vm562, %v5277, %v5278
      %v5288 = vsel %vm562, %v5276, %v5277
      %v5289 = vsel %vm562, %v5275, %v5276
      %v5290 = vsel %vm562, %v5274, %v5275
      %v5291 = vsel %vm562, %v5273, %v5274
      %v5292 = vsel %vm562, %v5272, %v5273
      %v5293 = vsel %vm562, %v5271, %v5272
      %v5294 = vsel %vm562, %v5270, %v5271
      %v5295 = vsel %vm562, %v5269, %v5270
      %v5296 = vsel %vm562, %v5268, %v5269
      %v5297 = vsel %vm562, %v5267, %v5268
      %v5298 = vsel %vm562, %v5266, %v5267
      %v5299 = vsel %vm562, %v5265, %v5266
      %v5300 = vsel %vm562, %v5264, %v5265
      %v5301 = vsel %vm562, %v5263, %v5264
      %v5302 = vsel %vm562, %v5262, %v5263
      %v5303 = vsel %vm562, %v5261, %v5262
      %v5304 = vsel %vm562, %v5260, %v5261
      %v5305 = vsel %vm562, %v5259, %v5260
      %v5306 = vsel %vm562, %v5258, %v5259
      %v5307 = vsel %vm562, %v5257, %v5258
      %v5308 = vsel %vm562, %v5256, %v5257
      %v5309 = vsel %vm562, %v5255, %v5256
      %v5310 = vsel %vm562, %v5254, %v5255
      %v5311 = vsel %vm562, %v5253, %v5254
      %v5312 = vsel %vm562, %v5252, %v5253
      %v5313 = vsel %vm562, %v5251, %v5252
      %v5314 = vsel %vm562, %v5282, %v5251
      %v5315 = vmul.f32 %v5284, %v630
      %v5316 = vmul.f32 %v5283, %v635
      %v5317 = vmul.f32 %v5314, %v640
      %v5318 = vmul.f32 %v5313, %v645
      %v5319 = vmul.f32 %v5312, %v650
      %v5320 = vmul.f32 %v5311, %v655
      %v5321 = vmul.f32 %v5310, %v660
      %v5322 = vmul.f32 %v5309, %v665
      %v5323 = vmul.f32 %v5308, %v670
      %v5324 = vmul.f32 %v5307, %v675
      %v5325 = vmul.f32 %v5306, %v680
      %v5326 = vmul.f32 %v5305, %v685
      %v5327 = vmul.f32 %v5304, %v690
      %v5328 = vmul.f32 %v5303, %v695
      %v5329 = vmul.f32 %v5302, %v700
      %v5330 = vmul.f32 %v5301, %v705
      %v5331 = vmul.f32 %v5300, %v710
      %v5332 = vmul.f32 %v5299, %v715
      %v5333 = vmul.f32 %v5298, %v720
      %v5334 = vmul.f32 %v5297, %v725
      %v5335 = vmul.f32 %v5296, %v730
      %v5336 = vmul.f32 %v5295, %v735
      %v5337 = vmul.f32 %v5294, %v740
      %v5338 = vmul.f32 %v5293, %v745
      %v5339 = vmul.f32 %v5292, %v750
      %v5340 = vmul.f32 %v5291, %v755
      %v5341 = vmul.f32 %v5290, %v760
      %v5342 = vmul.f32 %v5289, %v765
      %v5343 = vmul.f32 %v5288, %v770
      %v5344 = vmul.f32 %v5287, %v775
      %v5345 = vmul.f32 %v5286, %v780
      %v5346 = vmul.f32 %v5285, %v785
      %v5347 = vadd.f32 %v5315, 0.0
      %v5348 = vadd.f32 %v5316, 0.0
      %v5349 = vadd.f32 %v5317, 0.0
      %v5350 = vadd.f32 %v5318, 0.0
      %v5351 = vadd.f32 %v5319, 0.0
      %v5352 = vadd.f32 %v5320, 0.0
      %v5353 = vadd.f32 %v5321, 0.0
      %v5354 = vadd.f32 %v5322, 0.0
      %v5355 = vadd.f32 %v5323, 0.0
      %v5356 = vadd.f32 %v5324, 0.0
      %v5357 = vadd.f32 %v5325, 0.0
      %v5358 = vadd.f32 %v5326, 0.0
      %v5359 = vadd.f32 %v5327, 0.0
      %v5360 = vadd.f32 %v5328, 0.0
      %v5361 = vadd.f32 %v5329, 0.0
      %v5362 = vadd.f32 %v5330, 0.0
      %v5363 = vadd.f32 %v5331, 0.0
      %v5364 = vadd.f32 %v5332, 0.0
      %v5365 = vadd.f32 %v5333, 0.0
      %v5366 = vadd.f32 %v5334, 0.0
      %v5367 = vadd.f32 %v5335, 0.0
      %v5368 = vadd.f32 %v5336, 0.0
      %v5369 = vadd.f32 %v5337, 0.0
      %v5370 = vadd.f32 %v5338, 0.0
      %v5371 = vadd.f32 %v5339, 0.0
      %v5372 = vadd.f32 %v5340, 0.0
      %v5373 = vadd.f32 %v5341, 0.0
      %v5374 = vadd.f32 %v5342, 0.0
      %v5375 = vadd.f32 %v5343, 0.0
      %v5376 = vadd.f32 %v5344, 0.0
      %v5377 = vadd.f32 %v5345, 0.0
      %v5378 = vadd.f32 %v5346, 0.0
      %s5379 = scalar_lea.vmem %s3, 128
      %v5380 = vld [vmem:[%s5379] sm:$0xff]
      %v5381 = vld [vmem:[%s5379 + $0x8] sm:$0xff]
      %v5382 = vld [vmem:[%s5379 + $0x10] sm:$0xff]
      %v5383 = vld [vmem:[%s5379 + $0x18] sm:$0xff]
      %v5384 = vld [vmem:[%s5379 + $0x20] sm:$0xff]
      %v5385 = vld [vmem:[%s5379 + $0x28] sm:$0xff]
      %v5386 = vld [vmem:[%s5379 + $0x30] sm:$0xff]
      %v5387 = vld [vmem:[%s5379 + $0x38] sm:$0xff]
      %v5388 = vld [vmem:[%s5379 + $0x40] sm:$0xff]
      %v5389 = vld [vmem:[%s5379 + $0x48] sm:$0xff]
      %v5390 = vld [vmem:[%s5379 + $0x50] sm:$0xff]
      %v5391 = vld [vmem:[%s5379 + $0x58] sm:$0xff]
      %v5392 = vld [vmem:[%s5379 + $0x60] sm:$0xff]
      %v5393 = vld [vmem:[%s5379 + $0x68] sm:$0xff]
      %v5394 = vld [vmem:[%s5379 + $0x70] sm:$0xff]
      %v5395 = vld [vmem:[%s5379 + $0x78] sm:$0xff]
      %5396 = vmatprep.subr.mxu0 0.0
      %5397 = vmatpush1.msra.mxu0 %v5395
      %5398 = vmatprep.subr.mxu0 0.0
      %5399 = vmatpush1.msra.mxu0 %v5394
      %5400 = vmatprep.subr.mxu0 0.0
      %5401 = vmatpush1.msra.mxu0 %v5393
      %5402 = vmatprep.subr.mxu0 0.0
      %5403 = vmatpush1.msra.mxu0 %v5392
      %5404 = vmatprep.subr.mxu0 0.0
      %5405 = vmatpush1.msra.mxu0 %v5391
      %5406 = vmatprep.subr.mxu0 0.0
      %5407 = vmatpush1.msra.mxu0 %v5390
      %5408 = vmatprep.subr.mxu0 0.0
      %5409 = vmatpush1.msra.mxu0 %v5389
      %5410 = vmatprep.subr.mxu0 0.0
      %5411 = vmatpush1.msra.mxu0 %v5388
      %5412 = vmatprep.subr.mxu0 0.0
      %5413 = vmatpush1.msra.mxu0 %v5387
      %5414 = vmatprep.subr.mxu0 0.0
      %5415 = vmatpush1.msra.mxu0 %v5386
      %5416 = vmatprep.subr.mxu0 0.0
      %5417 = vmatpush1.msra.mxu0 %v5385
      %5418 = vmatprep.subr.mxu0 0.0
      %5419 = vmatpush1.msra.mxu0 %v5384
      %5420 = vmatprep.subr.mxu0 0.0
      %5421 = vmatpush1.msra.mxu0 %v5383
      %5422 = vmatprep.subr.mxu0 0.0
      %5423 = vmatpush1.msra.mxu0 %v5382
      %5424 = vmatprep.subr.mxu0 0.0
      %5425 = vmatpush1.msra.mxu0 %v5381
      %5426 = vmatprep.subr.mxu0 0.0
      %5427 = vmatpush1.msra.mxu0 %v5380
      %5428 = vmatprep.subr.mxu0 0.0
      %5429 = vmatpush2.msra.mxu0 0.0
      %5430 = vmatprep.subr.mxu0 0.0
      %5431 = vmatpush2.msra.mxu0 0.0
      %5432 = vmatprep.subr.mxu0 0.0
      %5433 = vmatpush2.msra.mxu0 0.0
      %5434 = vmatprep.subr.mxu0 0.0
      %5435 = vmatpush2.msra.mxu0 0.0
      %5436 = vmatprep.subr.mxu0 0.0
      %5437 = vmatpush2.msra.mxu0 0.0
      %5438 = vmatprep.subr.mxu0 0.0
      %5439 = vmatpush2.msra.mxu0 0.0
      %5440 = vmatprep.subr.mxu0 0.0
      %5441 = vmatpush2.msra.mxu0 0.0
      %5442 = vmatprep.subr.mxu0 0.0
      %5443 = vmatpush2.msra.mxu0 0.0
      %5444 = vmatprep.subr.mxu0 0.0
      %5445 = vmatpush2.msra.mxu0 0.0
      %5446 = vmatprep.subr.mxu0 0.0
      %5447 = vmatpush2.msra.mxu0 0.0
      %5448 = vmatprep.subr.mxu0 0.0
      %5449 = vmatpush2.msra.mxu0 0.0
      %5450 = vmatprep.subr.mxu0 0.0
      %5451 = vmatpush2.msra.mxu0 0.0
      %5452 = vmatprep.subr.mxu0 0.0
      %5453 = vmatpush2.msra.mxu0 0.0
      %5454 = vmatprep.subr.mxu0 0.0
      %5455 = vmatpush2.msra.mxu0 0.0
      %5456 = vmatprep.subr.mxu0 0.0
      %5457 = vmatpush2.msra.mxu0 0.0
      %5458 = vmatprep.subr.mxu0 0.0
      %5459 = vmatpush2.msra.mxu0 0.0
      %5460 = vmatprep.mubr.f32.mxu0 0.0
      %5461 = vmatmul.mubr.f32.gmra.mxu0 %v4978
      %v5462 = vpop.f32.mrf.mxu0
      %v5463 = vadd.f32 0.0, %v5462
      %v5464 = vpop.f32.mrf.mxu0
      %5465 = vmatprep.mubr.f32.mxu0 0.0
      %5466 = vmatmul.mubr.f32.gmra.mxu0 %v4979
      %v5467 = vpop.f32.mrf.mxu0
      %v5468 = vadd.f32 0.0, %v5467
      %v5469 = vpop.f32.mrf.mxu0
      %5470 = vmatprep.mubr.f32.mxu0 0.0
      %5471 = vmatmul.mubr.f32.gmra.mxu0 %v4980
      %v5472 = vpop.f32.mrf.mxu0
      %v5473 = vadd.f32 0.0, %v5472
      %v5474 = vpop.f32.mrf.mxu0
      %5475 = vmatprep.mubr.f32.mxu0 0.0
      %5476 = vmatmul.mubr.f32.gmra.mxu0 %v4981
      %v5477 = vpop.f32.mrf.mxu0
      %v5478 = vadd.f32 0.0, %v5477
      %v5479 = vpop.f32.mrf.mxu0
      %5480 = vmatprep.mubr.f32.mxu0 0.0
      %5481 = vmatmul.mubr.f32.gmra.mxu0 %v4982
      %v5482 = vpop.f32.mrf.mxu0
      %v5483 = vadd.f32 0.0, %v5482
      %v5484 = vpop.f32.mrf.mxu0
      %5485 = vmatprep.mubr.f32.mxu0 0.0
      %5486 = vmatmul.mubr.f32.gmra.mxu0 %v4983
      %v5487 = vpop.f32.mrf.mxu0
      %v5488 = vadd.f32 0.0, %v5487
      %v5489 = vpop.f32.mrf.mxu0
      %5490 = vmatprep.mubr.f32.mxu0 0.0
      %5491 = vmatmul.mubr.f32.gmra.mxu0 %v4984
      %v5492 = vpop.f32.mrf.mxu0
      %v5493 = vadd.f32 0.0, %v5492
      %v5494 = vpop.f32.mrf.mxu0
      %5495 = vmatprep.mubr.f32.mxu0 0.0
      %5496 = vmatmul.mubr.f32.gmra.mxu0 %v4985
      %v5497 = vpop.f32.mrf.mxu0
      %v5498 = vadd.f32 0.0, %v5497
      %v5499 = vpop.f32.mrf.mxu0
      %5500 = vmatprep.mubr.f32.mxu0 0.0
      %5501 = vmatmul.mubr.f32.gmra.mxu0 %v4986
      %v5502 = vpop.f32.mrf.mxu0
      %v5503 = vadd.f32 0.0, %v5502
      %v5504 = vpop.f32.mrf.mxu0
      %5505 = vmatprep.mubr.f32.mxu0 0.0
      %5506 = vmatmul.mubr.f32.gmra.mxu0 %v4987
      %v5507 = vpop.f32.mrf.mxu0
      %v5508 = vadd.f32 0.0, %v5507
      %v5509 = vpop.f32.mrf.mxu0
      %5510 = vmatprep.mubr.f32.mxu0 0.0
      %5511 = vmatmul.mubr.f32.gmra.mxu0 %v4988
      %v5512 = vpop.f32.mrf.mxu0
      %v5513 = vadd.f32 0.0, %v5512
      %v5514 = vpop.f32.mrf.mxu0
      %5515 = vmatprep.mubr.f32.mxu0 0.0
      %5516 = vmatmul.mubr.f32.gmra.mxu0 %v4989
      %v5517 = vpop.f32.mrf.mxu0
      %v5518 = vadd.f32 0.0, %v5517
      %v5519 = vpop.f32.mrf.mxu0
      %5520 = vmatprep.mubr.f32.mxu0 0.0
      %5521 = vmatmul.mubr.f32.gmra.mxu0 %v4990
      %v5522 = vpop.f32.mrf.mxu0
      %v5523 = vadd.f32 0.0, %v5522
      %v5524 = vpop.f32.mrf.mxu0
      %5525 = vmatprep.mubr.f32.mxu0 0.0
      %5526 = vmatmul.mubr.f32.gmra.mxu0 %v4991
      %v5527 = vpop.f32.mrf.mxu0
      %v5528 = vadd.f32 0.0, %v5527
      %v5529 = vpop.f32.mrf.mxu0
      %5530 = vmatprep.mubr.f32.mxu0 0.0
      %5531 = vmatmul.mubr.f32.gmra.mxu0 %v4992
      %v5532 = vpop.f32.mrf.mxu0
      %v5533 = vadd.f32 0.0, %v5532
      %v5534 = vpop.f32.mrf.mxu0
      %5535 = vmatprep.mubr.f32.mxu0 0.0
      %5536 = vmatmul.mubr.f32.gmra.mxu0 %v4993
      %v5537 = vpop.f32.mrf.mxu0
      %v5538 = vadd.f32 0.0, %v5537
      %v5539 = vpop.f32.mrf.mxu0
      %5540 = vmatprep.mubr.f32.mxu0 0.0
      %5541 = vmatmul.mubr.f32.gmra.mxu0 %v4994
      %v5542 = vpop.f32.mrf.mxu0
      %v5543 = vadd.f32 0.0, %v5542
      %v5544 = vpop.f32.mrf.mxu0
      %5545 = vmatprep.mubr.f32.mxu0 0.0
      %5546 = vmatmul.mubr.f32.gmra.mxu0 %v4995
      %v5547 = vpop.f32.mrf.mxu0
      %v5548 = vadd.f32 0.0, %v5547
      %v5549 = vpop.f32.mrf.mxu0
      %5550 = vmatprep.mubr.f32.mxu0 0.0
      %5551 = vmatmul.mubr.f32.gmra.mxu0 %v4996
      %v5552 = vpop.f32.mrf.mxu0
      %v5553 = vadd.f32 0.0, %v5552
      %v5554 = vpop.f32.mrf.mxu0
      %5555 = vmatprep.mubr.f32.mxu0 0.0
      %5556 = vmatmul.mubr.f32.gmra.mxu0 %v4997
      %v5557 = vpop.f32.mrf.mxu0
      %v5558 = vadd.f32 0.0, %v5557
      %v5559 = vpop.f32.mrf.mxu0
      %5560 = vmatprep.mubr.f32.mxu0 0.0
      %5561 = vmatmul.mubr.f32.gmra.mxu0 %v4998
      %v5562 = vpop.f32.mrf.mxu0
      %v5563 = vadd.f32 0.0, %v5562
      %v5564 = vpop.f32.mrf.mxu0
      %5565 = vmatprep.mubr.f32.mxu0 0.0
      %5566 = vmatmul.mubr.f32.gmra.mxu0 %v4999
      %v5567 = vpop.f32.mrf.mxu0
      %v5568 = vadd.f32 0.0, %v5567
      %v5569 = vpop.f32.mrf.mxu0
      %5570 = vmatprep.mubr.f32.mxu0 0.0
      %5571 = vmatmul.mubr.f32.gmra.mxu0 %v5000
      %v5572 = vpop.f32.mrf.mxu0
      %v5573 = vadd.f32 0.0, %v5572
      %v5574 = vpop.f32.mrf.mxu0
      %5575 = vmatprep.mubr.f32.mxu0 0.0
      %5576 = vmatmul.mubr.f32.gmra.mxu0 %v5001
      %v5577 = vpop.f32.mrf.mxu0
      %v5578 = vadd.f32 0.0, %v5577
      %v5579 = vpop.f32.mrf.mxu0
      %5580 = vmatprep.mubr.f32.mxu0 0.0
      %5581 = vmatmul.mubr.f32.gmra.mxu0 %v5002
      %v5582 = vpop.f32.mrf.mxu0
      %v5583 = vadd.f32 0.0, %v5582
      %v5584 = vpop.f32.mrf.mxu0
      %5585 = vmatprep.mubr.f32.mxu0 0.0
      %5586 = vmatmul.mubr.f32.gmra.mxu0 %v5003
      %v5587 = vpop.f32.mrf.mxu0
      %v5588 = vadd.f32 0.0, %v5587
      %v5589 = vpop.f32.mrf.mxu0
      %5590 = vmatprep.mubr.f32.mxu0 0.0
      %5591 = vmatmul.mubr.f32.gmra.mxu0 %v5004
      %v5592 = vpop.f32.mrf.mxu0
      %v5593 = vadd.f32 0.0, %v5592
      %v5594 = vpop.f32.mrf.mxu0
      %5595 = vmatprep.mubr.f32.mxu0 0.0
      %5596 = vmatmul.mubr.f32.gmra.mxu0 %v5005
      %v5597 = vpop.f32.mrf.mxu0
      %v5598 = vadd.f32 0.0, %v5597
      %v5599 = vpop.f32.mrf.mxu0
      %5600 = vmatprep.mubr.f32.mxu0 0.0
      %5601 = vmatmul.mubr.f32.gmra.mxu0 %v5006
      %v5602 = vpop.f32.mrf.mxu0
      %v5603 = vadd.f32 0.0, %v5602
      %v5604 = vpop.f32.mrf.mxu0
      %5605 = vmatprep.mubr.f32.mxu0 0.0
      %5606 = vmatmul.mubr.f32.gmra.mxu0 %v5007
      %v5607 = vpop.f32.mrf.mxu0
      %v5608 = vadd.f32 0.0, %v5607
      %v5609 = vpop.f32.mrf.mxu0
      %5610 = vmatprep.mubr.f32.mxu0 0.0
      %5611 = vmatmul.mubr.f32.gmra.mxu0 %v5008
      %v5612 = vpop.f32.mrf.mxu0
      %v5613 = vadd.f32 0.0, %v5612
      %v5614 = vpop.f32.mrf.mxu0
      %5615 = vmatprep.mubr.f32.mxu0 0.0
      %5616 = vmatmul.mubr.f32.gmra.mxu0 %v5009
      %v5617 = vpop.f32.mrf.mxu0
      %v5618 = vadd.f32 0.0, %v5617
      %v5619 = vpop.f32.mrf.mxu0
      %5620 = vdwg.mxu0
      %v5621 = vmul.f32 %v5613, %v1129
      %v5622 = vmul.f32 %v5618, %v1134
      %v5623 = vmul.f32 %v5463, %v1139
      %v5624 = vmul.f32 %v5468, %v1144
      %v5625 = vmul.f32 %v5473, %v1149
      %v5626 = vmul.f32 %v5478, %v1154
      %v5627 = vmul.f32 %v5483, %v1159
      %v5628 = vmul.f32 %v5488, %v1164
      %v5629 = vmul.f32 %v5493, %v1169
      %v5630 = vmul.f32 %v5498, %v1174
      %v5631 = vmul.f32 %v5503, %v1179
      %v5632 = vmul.f32 %v5508, %v1184
      %v5633 = vmul.f32 %v5513, %v1189
      %v5634 = vmul.f32 %v5518, %v1194
      %v5635 = vmul.f32 %v5523, %v1199
      %v5636 = vmul.f32 %v5528, %v1204
      %v5637 = vmul.f32 %v5533, %v1209
      %v5638 = vmul.f32 %v5538, %v1214
      %v5639 = vmul.f32 %v5543, %v1219
      %v5640 = vmul.f32 %v5548, %v1224
      %v5641 = vmul.f32 %v5553, %v1229
      %v5642 = vmul.f32 %v5558, %v1234
      %v5643 = vmul.f32 %v5563, %v1239
      %v5644 = vmul.f32 %v5568, %v1244
      %v5645 = vmul.f32 %v5573, %v1249
      %v5646 = vmul.f32 %v5578, %v1254
      %v5647 = vmul.f32 %v5583, %v1259
      %v5648 = vmul.f32 %v5588, %v1264
      %v5649 = vmul.f32 %v5593, %v1269
      %v5650 = vmul.f32 %v5598, %v1274
      %v5651 = vmul.f32 %v5603, %v1279
      %v5652 = vmul.f32 %v5608, %v1284
      %v5653 = vadd.f32 %v5347, %v5621
      %v5654 = vadd.f32 %v5348, %v5622
      %v5655 = vadd.f32 %v5349, %v5623
      %v5656 = vadd.f32 %v5350, %v5624
      %v5657 = vadd.f32 %v5351, %v5625
      %v5658 = vadd.f32 %v5352, %v5626
      %v5659 = vadd.f32 %v5353, %v5627
      %v5660 = vadd.f32 %v5354, %v5628
      %v5661 = vadd.f32 %v5355, %v5629
      %v5662 = vadd.f32 %v5356, %v5630
      %v5663 = vadd.f32 %v5357, %v5631
      %v5664 = vadd.f32 %v5358, %v5632
      %v5665 = vadd.f32 %v5359, %v5633
      %v5666 = vadd.f32 %v5360, %v5634
      %v5667 = vadd.f32 %v5361, %v5635
      %v5668 = vadd.f32 %v5362, %v5636
      %v5669 = vadd.f32 %v5363, %v5637
      %v5670 = vadd.f32 %v5364, %v5638
      %v5671 = vadd.f32 %v5365, %v5639
      %v5672 = vadd.f32 %v5366, %v5640
      %v5673 = vadd.f32 %v5367, %v5641
      %v5674 = vadd.f32 %v5368, %v5642
      %v5675 = vadd.f32 %v5369, %v5643
      %v5676 = vadd.f32 %v5370, %v5644
      %v5677 = vadd.f32 %v5371, %v5645
      %v5678 = vadd.f32 %v5372, %v5646
      %v5679 = vadd.f32 %v5373, %v5647
      %v5680 = vadd.f32 %v5374, %v5648
      %v5681 = vadd.f32 %v5375, %v5649
      %v5682 = vadd.f32 %v5376, %v5650
      %v5683 = vadd.f32 %v5377, %v5651
      %v5684 = vadd.f32 %v5378, %v5652
      %s5685 = scalar_lea.vmem %s3, 256
      %v5686 = vld [vmem:[%s5685] sm:$0xff]
      %v5687 = vld [vmem:[%s5685 + $0x8] sm:$0xff]
      %v5688 = vld [vmem:[%s5685 + $0x10] sm:$0xff]
      %v5689 = vld [vmem:[%s5685 + $0x18] sm:$0xff]
      %v5690 = vld [vmem:[%s5685 + $0x20] sm:$0xff]
      %v5691 = vld [vmem:[%s5685 + $0x28] sm:$0xff]
      %v5692 = vld [vmem:[%s5685 + $0x30] sm:$0xff]
      %v5693 = vld [vmem:[%s5685 + $0x38] sm:$0xff]
      %v5694 = vld [vmem:[%s5685 + $0x40] sm:$0xff]
      %v5695 = vld [vmem:[%s5685 + $0x48] sm:$0xff]
      %v5696 = vld [vmem:[%s5685 + $0x50] sm:$0xff]
      %v5697 = vld [vmem:[%s5685 + $0x58] sm:$0xff]
      %v5698 = vld [vmem:[%s5685 + $0x60] sm:$0xff]
      %v5699 = vld [vmem:[%s5685 + $0x68] sm:$0xff]
      %v5700 = vld [vmem:[%s5685 + $0x70] sm:$0xff]
      %v5701 = vld [vmem:[%s5685 + $0x78] sm:$0xff]
      %5702 = vmatprep.subr.mxu0 0.0
      %5703 = vmatpush1.msra.mxu0 %v5701
      %5704 = vmatprep.subr.mxu0 0.0
      %5705 = vmatpush1.msra.mxu0 %v5700
      %5706 = vmatprep.subr.mxu0 0.0
      %5707 = vmatpush1.msra.mxu0 %v5699
      %5708 = vmatprep.subr.mxu0 0.0
      %5709 = vmatpush1.msra.mxu0 %v5698
      %5710 = vmatprep.subr.mxu0 0.0
      %5711 = vmatpush1.msra.mxu0 %v5697
      %5712 = vmatprep.subr.mxu0 0.0
      %5713 = vmatpush1.msra.mxu0 %v5696
      %5714 = vmatprep.subr.mxu0 0.0
      %5715 = vmatpush1.msra.mxu0 %v5695
      %5716 = vmatprep.subr.mxu0 0.0
      %5717 = vmatpush1.msra.mxu0 %v5694
      %5718 = vmatprep.subr.mxu0 0.0
      %5719 = vmatpush1.msra.mxu0 %v5693
      %5720 = vmatprep.subr.mxu0 0.0
      %5721 = vmatpush1.msra.mxu0 %v5692
      %5722 = vmatprep.subr.mxu0 0.0
      %5723 = vmatpush1.msra.mxu0 %v5691
      %5724 = vmatprep.subr.mxu0 0.0
      %5725 = vmatpush1.msra.mxu0 %v5690
      %5726 = vmatprep.subr.mxu0 0.0
      %5727 = vmatpush1.msra.mxu0 %v5689
      %5728 = vmatprep.subr.mxu0 0.0
      %5729 = vmatpush1.msra.mxu0 %v5688
      %5730 = vmatprep.subr.mxu0 0.0
      %5731 = vmatpush1.msra.mxu0 %v5687
      %5732 = vmatprep.subr.mxu0 0.0
      %5733 = vmatpush1.msra.mxu0 %v5686
      %5734 = vmatprep.subr.mxu0 0.0
      %5735 = vmatpush2.msra.mxu0 0.0
      %5736 = vmatprep.subr.mxu0 0.0
      %5737 = vmatpush2.msra.mxu0 0.0
      %5738 = vmatprep.subr.mxu0 0.0
      %5739 = vmatpush2.msra.mxu0 0.0
      %5740 = vmatprep.subr.mxu0 0.0
      %5741 = vmatpush2.msra.mxu0 0.0
      %5742 = vmatprep.subr.mxu0 0.0
      %5743 = vmatpush2.msra.mxu0 0.0
      %5744 = vmatprep.subr.mxu0 0.0
      %5745 = vmatpush2.msra.mxu0 0.0
      %5746 = vmatprep.subr.mxu0 0.0
      %5747 = vmatpush2.msra.mxu0 0.0
      %5748 = vmatprep.subr.mxu0 0.0
      %5749 = vmatpush2.msra.mxu0 0.0
      %5750 = vmatprep.subr.mxu0 0.0
      %5751 = vmatpush2.msra.mxu0 0.0
      %5752 = vmatprep.subr.mxu0 0.0
      %5753 = vmatpush2.msra.mxu0 0.0
      %5754 = vmatprep.subr.mxu0 0.0
      %5755 = vmatpush2.msra.mxu0 0.0
      %5756 = vmatprep.subr.mxu0 0.0
      %5757 = vmatpush2.msra.mxu0 0.0
      %5758 = vmatprep.subr.mxu0 0.0
      %5759 = vmatpush2.msra.mxu0 0.0
      %5760 = vmatprep.subr.mxu0 0.0
      %5761 = vmatpush2.msra.mxu0 0.0
      %5762 = vmatprep.subr.mxu0 0.0
      %5763 = vmatpush2.msra.mxu0 0.0
      %5764 = vmatprep.subr.mxu0 0.0
      %5765 = vmatpush2.msra.mxu0 0.0
      %5766 = vmatprep.mubr.f32.mxu0 0.0
      %5767 = vmatmul.mubr.f32.gmra.mxu0 %v4978
      %v5768 = vpop.f32.mrf.mxu0
      %v5769 = vadd.f32 0.0, %v5768
      %v5770 = vpop.f32.mrf.mxu0
      %5771 = vmatprep.mubr.f32.mxu0 0.0
      %5772 = vmatmul.mubr.f32.gmra.mxu0 %v4979
      %v5773 = vpop.f32.mrf.mxu0
      %v5774 = vadd.f32 0.0, %v5773
      %v5775 = vpop.f32.mrf.mxu0
      %5776 = vmatprep.mubr.f32.mxu0 0.0
      %5777 = vmatmul.mubr.f32.gmra.mxu0 %v4980
      %v5778 = vpop.f32.mrf.mxu0
      %v5779 = vadd.f32 0.0, %v5778
      %v5780 = vpop.f32.mrf.mxu0
      %5781 = vmatprep.mubr.f32.mxu0 0.0
      %5782 = vmatmul.mubr.f32.gmra.mxu0 %v4981
      %v5783 = vpop.f32.mrf.mxu0
      %v5784 = vadd.f32 0.0, %v5783
      %v5785 = vpop.f32.mrf.mxu0
      %5786 = vmatprep.mubr.f32.mxu0 0.0
      %5787 = vmatmul.mubr.f32.gmra.mxu0 %v4982
      %v5788 = vpop.f32.mrf.mxu0
      %v5789 = vadd.f32 0.0, %v5788
      %v5790 = vpop.f32.mrf.mxu0
      %5791 = vmatprep.mubr.f32.mxu0 0.0
      %5792 = vmatmul.mubr.f32.gmra.mxu0 %v4983
      %v5793 = vpop.f32.mrf.mxu0
      %v5794 = vadd.f32 0.0, %v5793
      %v5795 = vpop.f32.mrf.mxu0
      %5796 = vmatprep.mubr.f32.mxu0 0.0
      %5797 = vmatmul.mubr.f32.gmra.mxu0 %v4984
      %v5798 = vpop.f32.mrf.mxu0
      %v5799 = vadd.f32 0.0, %v5798
      %v5800 = vpop.f32.mrf.mxu0
      %5801 = vmatprep.mubr.f32.mxu0 0.0
      %5802 = vmatmul.mubr.f32.gmra.mxu0 %v4985
      %v5803 = vpop.f32.mrf.mxu0
      %v5804 = vadd.f32 0.0, %v5803
      %v5805 = vpop.f32.mrf.mxu0
      %5806 = vmatprep.mubr.f32.mxu0 0.0
      %5807 = vmatmul.mubr.f32.gmra.mxu0 %v4986
      %v5808 = vpop.f32.mrf.mxu0
      %v5809 = vadd.f32 0.0, %v5808
      %v5810 = vpop.f32.mrf.mxu0
      %5811 = vmatprep.mubr.f32.mxu0 0.0
      %5812 = vmatmul.mubr.f32.gmra.mxu0 %v4987
      %v5813 = vpop.f32.mrf.mxu0
      %v5814 = vadd.f32 0.0, %v5813
      %v5815 = vpop.f32.mrf.mxu0
      %5816 = vmatprep.mubr.f32.mxu0 0.0
      %5817 = vmatmul.mubr.f32.gmra.mxu0 %v4988
      %v5818 = vpop.f32.mrf.mxu0
      %v5819 = vadd.f32 0.0, %v5818
      %v5820 = vpop.f32.mrf.mxu0
      %5821 = vmatprep.mubr.f32.mxu0 0.0
      %5822 = vmatmul.mubr.f32.gmra.mxu0 %v4989
      %v5823 = vpop.f32.mrf.mxu0
      %v5824 = vadd.f32 0.0, %v5823
      %v5825 = vpop.f32.mrf.mxu0
      %5826 = vmatprep.mubr.f32.mxu0 0.0
      %5827 = vmatmul.mubr.f32.gmra.mxu0 %v4990
      %v5828 = vpop.f32.mrf.mxu0
      %v5829 = vadd.f32 0.0, %v5828
      %v5830 = vpop.f32.mrf.mxu0
      %5831 = vmatprep.mubr.f32.mxu0 0.0
      %5832 = vmatmul.mubr.f32.gmra.mxu0 %v4991
      %v5833 = vpop.f32.mrf.mxu0
      %v5834 = vadd.f32 0.0, %v5833
      %v5835 = vpop.f32.mrf.mxu0
      %5836 = vmatprep.mubr.f32.mxu0 0.0
      %5837 = vmatmul.mubr.f32.gmra.mxu0 %v4992
      %v5838 = vpop.f32.mrf.mxu0
      %v5839 = vadd.f32 0.0, %v5838
      %v5840 = vpop.f32.mrf.mxu0
      %5841 = vmatprep.mubr.f32.mxu0 0.0
      %5842 = vmatmul.mubr.f32.gmra.mxu0 %v4993
      %v5843 = vpop.f32.mrf.mxu0
      %v5844 = vadd.f32 0.0, %v5843
      %v5845 = vpop.f32.mrf.mxu0
      %5846 = vmatprep.mubr.f32.mxu0 0.0
      %5847 = vmatmul.mubr.f32.gmra.mxu0 %v4994
      %v5848 = vpop.f32.mrf.mxu0
      %v5849 = vadd.f32 0.0, %v5848
      %v5850 = vpop.f32.mrf.mxu0
      %5851 = vmatprep.mubr.f32.mxu0 0.0
      %5852 = vmatmul.mubr.f32.gmra.mxu0 %v4995
      %v5853 = vpop.f32.mrf.mxu0
      %v5854 = vadd.f32 0.0, %v5853
      %v5855 = vpop.f32.mrf.mxu0
      %5856 = vmatprep.mubr.f32.mxu0 0.0
      %5857 = vmatmul.mubr.f32.gmra.mxu0 %v4996
      %v5858 = vpop.f32.mrf.mxu0
      %v5859 = vadd.f32 0.0, %v5858
      %v5860 = vpop.f32.mrf.mxu0
      %5861 = vmatprep.mubr.f32.mxu0 0.0
      %5862 = vmatmul.mubr.f32.gmra.mxu0 %v4997
      %v5863 = vpop.f32.mrf.mxu0
      %v5864 = vadd.f32 0.0, %v5863
      %v5865 = vpop.f32.mrf.mxu0
      %5866 = vmatprep.mubr.f32.mxu0 0.0
      %5867 = vmatmul.mubr.f32.gmra.mxu0 %v4998
      %v5868 = vpop.f32.mrf.mxu0
      %v5869 = vadd.f32 0.0, %v5868
      %v5870 = vpop.f32.mrf.mxu0
      %5871 = vmatprep.mubr.f32.mxu0 0.0
      %5872 = vmatmul.mubr.f32.gmra.mxu0 %v4999
      %v5873 = vpop.f32.mrf.mxu0
      %v5874 = vadd.f32 0.0, %v5873
      %v5875 = vpop.f32.mrf.mxu0
      %5876 = vmatprep.mubr.f32.mxu0 0.0
      %5877 = vmatmul.mubr.f32.gmra.mxu0 %v5000
      %v5878 = vpop.f32.mrf.mxu0
      %v5879 = vadd.f32 0.0, %v5878
      %v5880 = vpop.f32.mrf.mxu0
      %5881 = vmatprep.mubr.f32.mxu0 0.0
      %5882 = vmatmul.mubr.f32.gmra.mxu0 %v5001
      %v5883 = vpop.f32.mrf.mxu0
      %v5884 = vadd.f32 0.0, %v5883
      %v5885 = vpop.f32.mrf.mxu0
      %5886 = vmatprep.mubr.f32.mxu0 0.0
      %5887 = vmatmul.mubr.f32.gmra.mxu0 %v5002
      %v5888 = vpop.f32.mrf.mxu0
      %v5889 = vadd.f32 0.0, %v5888
      %v5890 = vpop.f32.mrf.mxu0
      %5891 = vmatprep.mubr.f32.mxu0 0.0
      %5892 = vmatmul.mubr.f32.gmra.mxu0 %v5003
      %v5893 = vpop.f32.mrf.mxu0
      %v5894 = vadd.f32 0.0, %v5893
      %v5895 = vpop.f32.mrf.mxu0
      %5896 = vmatprep.mubr.f32.mxu0 0.0
      %5897 = vmatmul.mubr.f32.gmra.mxu0 %v5004
      %v5898 = vpop.f32.mrf.mxu0
      %v5899 = vadd.f32 0.0, %v5898
      %v5900 = vpop.f32.mrf.mxu0
      %5901 = vmatprep.mubr.f32.mxu0 0.0
      %5902 = vmatmul.mubr.f32.gmra.mxu0 %v5005
      %v5903 = vpop.f32.mrf.mxu0
      %v5904 = vadd.f32 0.0, %v5903
      %v5905 = vpop.f32.mrf.mxu0
      %5906 = vmatprep.mubr.f32.mxu0 0.0
      %5907 = vmatmul.mubr.f32.gmra.mxu0 %v5006
      %v5908 = vpop.f32.mrf.mxu0
      %v5909 = vadd.f32 0.0, %v5908
      %v5910 = vpop.f32.mrf.mxu0
      %5911 = vmatprep.mubr.f32.mxu0 0.0
      %5912 = vmatmul.mubr.f32.gmra.mxu0 %v5007
      %v5913 = vpop.f32.mrf.mxu0
      %v5914 = vadd.f32 0.0, %v5913
      %v5915 = vpop.f32.mrf.mxu0
      %5916 = vmatprep.mubr.f32.mxu0 0.0
      %5917 = vmatmul.mubr.f32.gmra.mxu0 %v5008
      %v5918 = vpop.f32.mrf.mxu0
      %v5919 = vadd.f32 0.0, %v5918
      %v5920 = vpop.f32.mrf.mxu0
      %5921 = vmatprep.mubr.f32.mxu0 0.0
      %5922 = vmatmul.mubr.f32.gmra.mxu0 %v5009
      %v5923 = vpop.f32.mrf.mxu0
      %v5924 = vadd.f32 0.0, %v5923
      %v5925 = vpop.f32.mrf.mxu0
      %5926 = vdwg.mxu0
      %v5927 = vrot.slane %v5769, 1
      %v5928 = vrot.slane %v5774, 1
      %v5929 = vrot.slane %v5779, 1
      %v5930 = vrot.slane %v5784, 1
      %v5931 = vrot.slane %v5789, 1
      %v5932 = vrot.slane %v5794, 1
      %v5933 = vrot.slane %v5799, 1
      %v5934 = vrot.slane %v5804, 1
      %v5935 = vrot.slane %v5809, 1
      %v5936 = vrot.slane %v5814, 1
      %v5937 = vrot.slane %v5819, 1
      %v5938 = vrot.slane %v5824, 1
      %v5939 = vrot.slane %v5829, 1
      %v5940 = vrot.slane %v5834, 1
      %v5941 = vrot.slane %v5839, 1
      %v5942 = vrot.slane %v5844, 1
      %v5943 = vrot.slane %v5849, 1
      %v5944 = vrot.slane %v5854, 1
      %v5945 = vrot.slane %v5859, 1
      %v5946 = vrot.slane %v5864, 1
      %v5947 = vrot.slane %v5869, 1
      %v5948 = vrot.slane %v5874, 1
      %v5949 = vrot.slane %v5879, 1
      %v5950 = vrot.slane %v5884, 1
      %v5951 = vrot.slane %v5889, 1
      %v5952 = vrot.slane %v5894, 1
      %v5953 = vrot.slane %v5899, 1
      %v5954 = vrot.slane %v5904, 1
      %v5955 = vrot.slane %v5909, 1
      %v5956 = vrot.slane %v5914, 1
      %v5957 = vrot.slane %v5919, 1
      %v5958 = vrot.slane %v5924, 1
      %v5959 = vsel %vm1624, %v5957, %v5958
      %v5960 = vsel %vm1624, %v5956, %v5957
      %v5961 = vsel %vm1624, %v5955, %v5956
      %v5962 = vsel %vm1624, %v5954, %v5955
      %v5963 = vsel %vm1624, %v5953, %v5954
      %v5964 = vsel %vm1624, %v5952, %v5953
      %v5965 = vsel %vm1624, %v5951, %v5952
      %v5966 = vsel %vm1624, %v5950, %v5951
      %v5967 = vsel %vm1624, %v5949, %v5950
      %v5968 = vsel %vm1624, %v5948, %v5949
      %v5969 = vsel %vm1624, %v5947, %v5948
      %v5970 = vsel %vm1624, %v5946, %v5947
      %v5971 = vsel %vm1624, %v5945, %v5946
      %v5972 = vsel %vm1624, %v5944, %v5945
      %v5973 = vsel %vm1624, %v5943, %v5944
      %v5974 = vsel %vm1624, %v5942, %v5943
      %v5975 = vsel %vm1624, %v5941, %v5942
      %v5976 = vsel %vm1624, %v5940, %v5941
      %v5977 = vsel %vm1624, %v5939, %v5940
      %v5978 = vsel %vm1624, %v5938, %v5939
      %v5979 = vsel %vm1624, %v5937, %v5938
      %v5980 = vsel %vm1624, %v5936, %v5937
      %v5981 = vsel %vm1624, %v5935, %v5936
      %v5982 = vsel %vm1624, %v5934, %v5935
      %v5983 = vsel %vm1624, %v5933, %v5934
      %v5984 = vsel %vm1624, %v5932, %v5933
      %v5985 = vsel %vm1624, %v5931, %v5932
      %v5986 = vsel %vm1624, %v5930, %v5931
      %v5987 = vsel %vm1624, %v5929, %v5930
      %v5988 = vsel %vm1624, %v5928, %v5929
      %v5989 = vsel %vm1624, %v5927, %v5928
      %v5990 = vsel %vm1624, %v5958, %v5927
      %v5991 = vmul.f32 %v5959, %v1693
      %v5992 = vmul.f32 %v5990, %v1698
      %v5993 = vmul.f32 %v5989, %v1703
      %v5994 = vmul.f32 %v5988, %v1708
      %v5995 = vmul.f32 %v5987, %v1713
      %v5996 = vmul.f32 %v5986, %v1718
      %v5997 = vmul.f32 %v5985, %v1723
      %v5998 = vmul.f32 %v5984, %v1728
      %v5999 = vmul.f32 %v5983, %v1733
      %v6000 = vmul.f32 %v5982, %v1738
      %v6001 = vmul.f32 %v5981, %v1743
      %v6002 = vmul.f32 %v5980, %v1748
      %v6003 = vmul.f32 %v5979, %v1753
      %v6004 = vmul.f32 %v5978, %v1758
      %v6005 = vmul.f32 %v5977, %v1763
      %v6006 = vmul.f32 %v5976, %v1768
      %v6007 = vmul.f32 %v5975, %v1773
      %v6008 = vmul.f32 %v5974, %v1778
      %v6009 = vmul.f32 %v5973, %v1783
      %v6010 = vmul.f32 %v5972, %v1788
      %v6011 = vmul.f32 %v5971, %v1793
      %v6012 = vmul.f32 %v5970, %v1798
      %v6013 = vmul.f32 %v5969, %v1803
      %v6014 = vmul.f32 %v5968, %v1808
      %v6015 = vmul.f32 %v5967, %v1813
      %v6016 = vmul.f32 %v5966, %v1818
      %v6017 = vmul.f32 %v5965, %v1823
      %v6018 = vmul.f32 %v5964, %v1828
      %v6019 = vmul.f32 %v5963, %v1833
      %v6020 = vmul.f32 %v5962, %v1838
      %v6021 = vmul.f32 %v5961, %v1843
      %v6022 = vmul.f32 %v5960, %v1848
      %v6023 = vadd.f32 %v5653, %v5991
      %v6024 = vadd.f32 %v5654, %v5992
      %v6025 = vadd.f32 %v5655, %v5993
      %v6026 = vadd.f32 %v5656, %v5994
      %v6027 = vadd.f32 %v5657, %v5995
      %v6028 = vadd.f32 %v5658, %v5996
      %v6029 = vadd.f32 %v5659, %v5997
      %v6030 = vadd.f32 %v5660, %v5998
      %v6031 = vadd.f32 %v5661, %v5999
      %v6032 = vadd.f32 %v5662, %v6000
      %v6033 = vadd.f32 %v5663, %v6001
      %v6034 = vadd.f32 %v5664, %v6002
      %v6035 = vadd.f32 %v5665, %v6003
      %v6036 = vadd.f32 %v5666, %v6004
      %v6037 = vadd.f32 %v5667, %v6005
      %v6038 = vadd.f32 %v5668, %v6006
      %v6039 = vadd.f32 %v5669, %v6007
      %v6040 = vadd.f32 %v5670, %v6008
      %v6041 = vadd.f32 %v5671, %v6009
      %v6042 = vadd.f32 %v5672, %v6010
      %v6043 = vadd.f32 %v5673, %v6011
      %v6044 = vadd.f32 %v5674, %v6012
      %v6045 = vadd.f32 %v5675, %v6013
      %v6046 = vadd.f32 %v5676, %v6014
      %v6047 = vadd.f32 %v5677, %v6015
      %v6048 = vadd.f32 %v5678, %v6016
      %v6049 = vadd.f32 %v5679, %v6017
      %v6050 = vadd.f32 %v5680, %v6018
      %v6051 = vadd.f32 %v5681, %v6019
      %v6052 = vadd.f32 %v5682, %v6020
      %v6053 = vadd.f32 %v5683, %v6021
      %v6054 = vadd.f32 %v5684, %v6022
      %s6055 = scalar_lea.vmem %s3, 384
      %v6056 = vld [vmem:[%s6055] sm:$0xff]
      %v6057 = vld [vmem:[%s6055 + $0x8] sm:$0xff]
      %v6058 = vld [vmem:[%s6055 + $0x10] sm:$0xff]
      %v6059 = vld [vmem:[%s6055 + $0x18] sm:$0xff]
      %v6060 = vld [vmem:[%s6055 + $0x20] sm:$0xff]
      %v6061 = vld [vmem:[%s6055 + $0x28] sm:$0xff]
      %v6062 = vld [vmem:[%s6055 + $0x30] sm:$0xff]
      %v6063 = vld [vmem:[%s6055 + $0x38] sm:$0xff]
      %v6064 = vld [vmem:[%s6055 + $0x40] sm:$0xff]
      %v6065 = vld [vmem:[%s6055 + $0x48] sm:$0xff]
      %v6066 = vld [vmem:[%s6055 + $0x50] sm:$0xff]
      %v6067 = vld [vmem:[%s6055 + $0x58] sm:$0xff]
      %v6068 = vld [vmem:[%s6055 + $0x60] sm:$0xff]
      %v6069 = vld [vmem:[%s6055 + $0x68] sm:$0xff]
      %v6070 = vld [vmem:[%s6055 + $0x70] sm:$0xff]
      %v6071 = vld [vmem:[%s6055 + $0x78] sm:$0xff]
      %6072 = vmatprep.subr.mxu0 0.0
      %6073 = vmatpush1.msra.mxu0 %v6071
      %6074 = vmatprep.subr.mxu0 0.0
      %6075 = vmatpush1.msra.mxu0 %v6070
      %6076 = vmatprep.subr.mxu0 0.0
      %6077 = vmatpush1.msra.mxu0 %v6069
      %6078 = vmatprep.subr.mxu0 0.0
      %6079 = vmatpush1.msra.mxu0 %v6068
      %6080 = vmatprep.subr.mxu0 0.0
      %6081 = vmatpush1.msra.mxu0 %v6067
      %6082 = vmatprep.subr.mxu0 0.0
      %6083 = vmatpush1.msra.mxu0 %v6066
      %6084 = vmatprep.subr.mxu0 0.0
      %6085 = vmatpush1.msra.mxu0 %v6065
      %6086 = vmatprep.subr.mxu0 0.0
      %6087 = vmatpush1.msra.mxu0 %v6064
      %6088 = vmatprep.subr.mxu0 0.0
      %6089 = vmatpush1.msra.mxu0 %v6063
      %6090 = vmatprep.subr.mxu0 0.0
      %6091 = vmatpush1.msra.mxu0 %v6062
      %6092 = vmatprep.subr.mxu0 0.0
      %6093 = vmatpush1.msra.mxu0 %v6061
      %6094 = vmatprep.subr.mxu0 0.0
      %6095 = vmatpush1.msra.mxu0 %v6060
      %6096 = vmatprep.subr.mxu0 0.0
      %6097 = vmatpush1.msra.mxu0 %v6059
      %6098 = vmatprep.subr.mxu0 0.0
      %6099 = vmatpush1.msra.mxu0 %v6058
      %6100 = vmatprep.subr.mxu0 0.0
      %6101 = vmatpush1.msra.mxu0 %v6057
      %6102 = vmatprep.subr.mxu0 0.0
      %6103 = vmatpush1.msra.mxu0 %v6056
      %6104 = vmatprep.subr.mxu0 0.0
      %6105 = vmatpush2.msra.mxu0 0.0
      %6106 = vmatprep.subr.mxu0 0.0
      %6107 = vmatpush2.msra.mxu0 0.0
      %6108 = vmatprep.subr.mxu0 0.0
      %6109 = vmatpush2.msra.mxu0 0.0
      %6110 = vmatprep.subr.mxu0 0.0
      %6111 = vmatpush2.msra.mxu0 0.0
      %6112 = vmatprep.subr.mxu0 0.0
      %6113 = vmatpush2.msra.mxu0 0.0
      %6114 = vmatprep.subr.mxu0 0.0
      %6115 = vmatpush2.msra.mxu0 0.0
      %6116 = vmatprep.subr.mxu0 0.0
      %6117 = vmatpush2.msra.mxu0 0.0
      %6118 = vmatprep.subr.mxu0 0.0
      %6119 = vmatpush2.msra.mxu0 0.0
      %6120 = vmatprep.subr.mxu0 0.0
      %6121 = vmatpush2.msra.mxu0 0.0
      %6122 = vmatprep.subr.mxu0 0.0
      %6123 = vmatpush2.msra.mxu0 0.0
      %6124 = vmatprep.subr.mxu0 0.0
      %6125 = vmatpush2.msra.mxu0 0.0
      %6126 = vmatprep.subr.mxu0 0.0
      %6127 = vmatpush2.msra.mxu0 0.0
      %6128 = vmatprep.subr.mxu0 0.0
      %6129 = vmatpush2.msra.mxu0 0.0
      %6130 = vmatprep.subr.mxu0 0.0
      %6131 = vmatpush2.msra.mxu0 0.0
      %6132 = vmatprep.subr.mxu0 0.0
      %6133 = vmatpush2.msra.mxu0 0.0
      %6134 = vmatprep.subr.mxu0 0.0
      %6135 = vmatpush2.msra.mxu0 0.0
      %6136 = vmatprep.mubr.f32.mxu0 0.0
      %6137 = vmatmul.mubr.f32.gmra.mxu0 %v4978
      %v6138 = vpop.f32.mrf.mxu0
      %v6139 = vadd.f32 0.0, %v6138
      %v6140 = vpop.f32.mrf.mxu0
      %6141 = vmatprep.mubr.f32.mxu0 0.0
      %6142 = vmatmul.mubr.f32.gmra.mxu0 %v4979
      %v6143 = vpop.f32.mrf.mxu0
      %v6144 = vadd.f32 0.0, %v6143
      %v6145 = vpop.f32.mrf.mxu0
      %6146 = vmatprep.mubr.f32.mxu0 0.0
      %6147 = vmatmul.mubr.f32.gmra.mxu0 %v4980
      %v6148 = vpop.f32.mrf.mxu0
      %v6149 = vadd.f32 0.0, %v6148
      %v6150 = vpop.f32.mrf.mxu0
      %6151 = vmatprep.mubr.f32.mxu0 0.0
      %6152 = vmatmul.mubr.f32.gmra.mxu0 %v4981
      %v6153 = vpop.f32.mrf.mxu0
      %v6154 = vadd.f32 0.0, %v6153
      %v6155 = vpop.f32.mrf.mxu0
      %6156 = vmatprep.mubr.f32.mxu0 0.0
      %6157 = vmatmul.mubr.f32.gmra.mxu0 %v4982
      %v6158 = vpop.f32.mrf.mxu0
      %v6159 = vadd.f32 0.0, %v6158
      %v6160 = vpop.f32.mrf.mxu0
      %6161 = vmatprep.mubr.f32.mxu0 0.0
      %6162 = vmatmul.mubr.f32.gmra.mxu0 %v4983
      %v6163 = vpop.f32.mrf.mxu0
      %v6164 = vadd.f32 0.0, %v6163
      %v6165 = vpop.f32.mrf.mxu0
      %6166 = vmatprep.mubr.f32.mxu0 0.0
      %6167 = vmatmul.mubr.f32.gmra.mxu0 %v4984
      %v6168 = vpop.f32.mrf.mxu0
      %v6169 = vadd.f32 0.0, %v6168
      %v6170 = vpop.f32.mrf.mxu0
      %6171 = vmatprep.mubr.f32.mxu0 0.0
      %6172 = vmatmul.mubr.f32.gmra.mxu0 %v4985
      %v6173 = vpop.f32.mrf.mxu0
      %v6174 = vadd.f32 0.0, %v6173
      %v6175 = vpop.f32.mrf.mxu0
      %6176 = vmatprep.mubr.f32.mxu0 0.0
      %6177 = vmatmul.mubr.f32.gmra.mxu0 %v4986
      %v6178 = vpop.f32.mrf.mxu0
      %v6179 = vadd.f32 0.0, %v6178
      %v6180 = vpop.f32.mrf.mxu0
      %6181 = vmatprep.mubr.f32.mxu0 0.0
      %6182 = vmatmul.mubr.f32.gmra.mxu0 %v4987
      %v6183 = vpop.f32.mrf.mxu0
      %v6184 = vadd.f32 0.0, %v6183
      %v6185 = vpop.f32.mrf.mxu0
      %6186 = vmatprep.mubr.f32.mxu0 0.0
      %6187 = vmatmul.mubr.f32.gmra.mxu0 %v4988
      %v6188 = vpop.f32.mrf.mxu0
      %v6189 = vadd.f32 0.0, %v6188
      %v6190 = vpop.f32.mrf.mxu0
      %6191 = vmatprep.mubr.f32.mxu0 0.0
      %6192 = vmatmul.mubr.f32.gmra.mxu0 %v4989
      %v6193 = vpop.f32.mrf.mxu0
      %v6194 = vadd.f32 0.0, %v6193
      %v6195 = vpop.f32.mrf.mxu0
      %6196 = vmatprep.mubr.f32.mxu0 0.0
      %6197 = vmatmul.mubr.f32.gmra.mxu0 %v4990
      %v6198 = vpop.f32.mrf.mxu0
      %v6199 = vadd.f32 0.0, %v6198
      %v6200 = vpop.f32.mrf.mxu0
      %6201 = vmatprep.mubr.f32.mxu0 0.0
      %6202 = vmatmul.mubr.f32.gmra.mxu0 %v4991
      %v6203 = vpop.f32.mrf.mxu0
      %v6204 = vadd.f32 0.0, %v6203
      %v6205 = vpop.f32.mrf.mxu0
      %6206 = vmatprep.mubr.f32.mxu0 0.0
      %6207 = vmatmul.mubr.f32.gmra.mxu0 %v4992
      %v6208 = vpop.f32.mrf.mxu0
      %v6209 = vadd.f32 0.0, %v6208
      %v6210 = vpop.f32.mrf.mxu0
      %6211 = vmatprep.mubr.f32.mxu0 0.0
      %6212 = vmatmul.mubr.f32.gmra.mxu0 %v4993
      %v6213 = vpop.f32.mrf.mxu0
      %v6214 = vadd.f32 0.0, %v6213
      %v6215 = vpop.f32.mrf.mxu0
      %6216 = vmatprep.mubr.f32.mxu0 0.0
      %6217 = vmatmul.mubr.f32.gmra.mxu0 %v4994
      %v6218 = vpop.f32.mrf.mxu0
      %v6219 = vadd.f32 0.0, %v6218
      %v6220 = vpop.f32.mrf.mxu0
      %6221 = vmatprep.mubr.f32.mxu0 0.0
      %6222 = vmatmul.mubr.f32.gmra.mxu0 %v4995
      %v6223 = vpop.f32.mrf.mxu0
      %v6224 = vadd.f32 0.0, %v6223
      %v6225 = vpop.f32.mrf.mxu0
      %6226 = vmatprep.mubr.f32.mxu0 0.0
      %6227 = vmatmul.mubr.f32.gmra.mxu0 %v4996
      %v6228 = vpop.f32.mrf.mxu0
      %v6229 = vadd.f32 0.0, %v6228
      %v6230 = vpop.f32.mrf.mxu0
      %6231 = vmatprep.mubr.f32.mxu0 0.0
      %6232 = vmatmul.mubr.f32.gmra.mxu0 %v4997
      %v6233 = vpop.f32.mrf.mxu0
      %v6234 = vadd.f32 0.0, %v6233
      %v6235 = vpop.f32.mrf.mxu0
      %6236 = vmatprep.mubr.f32.mxu0 0.0
      %6237 = vmatmul.mubr.f32.gmra.mxu0 %v4998
      %v6238 = vpop.f32.mrf.mxu0
      %v6239 = vadd.f32 0.0, %v6238
      %v6240 = vpop.f32.mrf.mxu0
      %6241 = vmatprep.mubr.f32.mxu0 0.0
      %6242 = vmatmul.mubr.f32.gmra.mxu0 %v4999
      %v6243 = vpop.f32.mrf.mxu0
      %v6244 = vadd.f32 0.0, %v6243
      %v6245 = vpop.f32.mrf.mxu0
      %6246 = vmatprep.mubr.f32.mxu0 0.0
      %6247 = vmatmul.mubr.f32.gmra.mxu0 %v5000
      %v6248 = vpop.f32.mrf.mxu0
      %v6249 = vadd.f32 0.0, %v6248
      %v6250 = vpop.f32.mrf.mxu0
      %6251 = vmatprep.mubr.f32.mxu0 0.0
      %6252 = vmatmul.mubr.f32.gmra.mxu0 %v5001
      %v6253 = vpop.f32.mrf.mxu0
      %v6254 = vadd.f32 0.0, %v6253
      %v6255 = vpop.f32.mrf.mxu0
      %6256 = vmatprep.mubr.f32.mxu0 0.0
      %6257 = vmatmul.mubr.f32.gmra.mxu0 %v5002
      %v6258 = vpop.f32.mrf.mxu0
      %v6259 = vadd.f32 0.0, %v6258
      %v6260 = vpop.f32.mrf.mxu0
      %6261 = vmatprep.mubr.f32.mxu0 0.0
      %6262 = vmatmul.mubr.f32.gmra.mxu0 %v5003
      %v6263 = vpop.f32.mrf.mxu0
      %v6264 = vadd.f32 0.0, %v6263
      %v6265 = vpop.f32.mrf.mxu0
      %6266 = vmatprep.mubr.f32.mxu0 0.0
      %6267 = vmatmul.mubr.f32.gmra.mxu0 %v5004
      %v6268 = vpop.f32.mrf.mxu0
      %v6269 = vadd.f32 0.0, %v6268
      %v6270 = vpop.f32.mrf.mxu0
      %6271 = vmatprep.mubr.f32.mxu0 0.0
      %6272 = vmatmul.mubr.f32.gmra.mxu0 %v5005
      %v6273 = vpop.f32.mrf.mxu0
      %v6274 = vadd.f32 0.0, %v6273
      %v6275 = vpop.f32.mrf.mxu0
      %6276 = vmatprep.mubr.f32.mxu0 0.0
      %6277 = vmatmul.mubr.f32.gmra.mxu0 %v5006
      %v6278 = vpop.f32.mrf.mxu0
      %v6279 = vadd.f32 0.0, %v6278
      %v6280 = vpop.f32.mrf.mxu0
      %6281 = vmatprep.mubr.f32.mxu0 0.0
      %6282 = vmatmul.mubr.f32.gmra.mxu0 %v5007
      %v6283 = vpop.f32.mrf.mxu0
      %v6284 = vadd.f32 0.0, %v6283
      %v6285 = vpop.f32.mrf.mxu0
      %6286 = vmatprep.mubr.f32.mxu0 0.0
      %6287 = vmatmul.mubr.f32.gmra.mxu0 %v5008
      %v6288 = vpop.f32.mrf.mxu0
      %v6289 = vadd.f32 0.0, %v6288
      %v6290 = vpop.f32.mrf.mxu0
      %6291 = vmatprep.mubr.f32.mxu0 0.0
      %6292 = vmatmul.mubr.f32.gmra.mxu0 %v5009
      %v6293 = vpop.f32.mrf.mxu0
      %v6294 = vadd.f32 0.0, %v6293
      %v6295 = vpop.f32.mrf.mxu0
      %6296 = vdwg.mxu0
      %v6297 = vrot.slane %v6139, 7
      %v6298 = vrot.slane %v6144, 7
      %v6299 = vrot.slane %v6149, 7
      %v6300 = vrot.slane %v6154, 7
      %v6301 = vrot.slane %v6159, 7
      %v6302 = vrot.slane %v6164, 7
      %v6303 = vrot.slane %v6169, 7
      %v6304 = vrot.slane %v6174, 7
      %v6305 = vrot.slane %v6179, 7
      %v6306 = vrot.slane %v6184, 7
      %v6307 = vrot.slane %v6189, 7
      %v6308 = vrot.slane %v6194, 7
      %v6309 = vrot.slane %v6199, 7
      %v6310 = vrot.slane %v6204, 7
      %v6311 = vrot.slane %v6209, 7
      %v6312 = vrot.slane %v6214, 7
      %v6313 = vrot.slane %v6219, 7
      %v6314 = vrot.slane %v6224, 7
      %v6315 = vrot.slane %v6229, 7
      %v6316 = vrot.slane %v6234, 7
      %v6317 = vrot.slane %v6239, 7
      %v6318 = vrot.slane %v6244, 7
      %v6319 = vrot.slane %v6249, 7
      %v6320 = vrot.slane %v6254, 7
      %v6321 = vrot.slane %v6259, 7
      %v6322 = vrot.slane %v6264, 7
      %v6323 = vrot.slane %v6269, 7
      %v6324 = vrot.slane %v6274, 7
      %v6325 = vrot.slane %v6279, 7
      %v6326 = vrot.slane %v6284, 7
      %v6327 = vrot.slane %v6289, 7
      %v6328 = vrot.slane %v6294, 7
      %v6329 = vsel %vm562, %v6327, %v6328
      %v6330 = vsel %vm562, %v6326, %v6327
      %v6331 = vsel %vm562, %v6325, %v6326
      %v6332 = vsel %vm562, %v6324, %v6325
      %v6333 = vsel %vm562, %v6323, %v6324
      %v6334 = vsel %vm562, %v6322, %v6323
      %v6335 = vsel %vm562, %v6321, %v6322
      %v6336 = vsel %vm562, %v6320, %v6321
      %v6337 = vsel %vm562, %v6319, %v6320
      %v6338 = vsel %vm562, %v6318, %v6319
      %v6339 = vsel %vm562, %v6317, %v6318
      %v6340 = vsel %vm562, %v6316, %v6317
      %v6341 = vsel %vm562, %v6315, %v6316
      %v6342 = vsel %vm562, %v6314, %v6315
      %v6343 = vsel %vm562, %v6313, %v6314
      %v6344 = vsel %vm562, %v6312, %v6313
      %v6345 = vsel %vm562, %v6311, %v6312
      %v6346 = vsel %vm562, %v6310, %v6311
      %v6347 = vsel %vm562, %v6309, %v6310
      %v6348 = vsel %vm562, %v6308, %v6309
      %v6349 = vsel %vm562, %v6307, %v6308
      %v6350 = vsel %vm562, %v6306, %v6307
      %v6351 = vsel %vm562, %v6305, %v6306
      %v6352 = vsel %vm562, %v6304, %v6305
      %v6353 = vsel %vm562, %v6303, %v6304
      %v6354 = vsel %vm562, %v6302, %v6303
      %v6355 = vsel %vm562, %v6301, %v6302
      %v6356 = vsel %vm562, %v6300, %v6301
      %v6357 = vsel %vm562, %v6299, %v6300
      %v6358 = vsel %vm562, %v6298, %v6299
      %v6359 = vsel %vm562, %v6297, %v6298
      %v6360 = vsel %vm562, %v6328, %v6297
      %v6361 = vmul.f32 %v6360, %v2256
      %v6362 = vmul.f32 %v6359, %v2261
      %v6363 = vmul.f32 %v6358, %v2266
      %v6364 = vmul.f32 %v6357, %v2271
      %v6365 = vmul.f32 %v6356, %v2276
      %v6366 = vmul.f32 %v6355, %v2281
      %v6367 = vmul.f32 %v6354, %v2286
      %v6368 = vmul.f32 %v6353, %v2291
      %v6369 = vmul.f32 %v6352, %v2296
      %v6370 = vmul.f32 %v6351, %v2301
      %v6371 = vmul.f32 %v6350, %v2306
      %v6372 = vmul.f32 %v6349, %v2311
      %v6373 = vmul.f32 %v6348, %v2316
      %v6374 = vmul.f32 %v6347, %v2321
      %v6375 = vmul.f32 %v6346, %v2326
      %v6376 = vmul.f32 %v6345, %v2331
      %v6377 = vmul.f32 %v6344, %v2336
      %v6378 = vmul.f32 %v6343, %v2341
      %v6379 = vmul.f32 %v6342, %v2346
      %v6380 = vmul.f32 %v6341, %v2351
      %v6381 = vmul.f32 %v6340, %v2356
      %v6382 = vmul.f32 %v6339, %v2361
      %v6383 = vmul.f32 %v6338, %v2366
      %v6384 = vmul.f32 %v6337, %v2371
      %v6385 = vmul.f32 %v6336, %v2376
      %v6386 = vmul.f32 %v6335, %v2381
      %v6387 = vmul.f32 %v6334, %v2386
      %v6388 = vmul.f32 %v6333, %v2391
      %v6389 = vmul.f32 %v6332, %v2396
      %v6390 = vmul.f32 %v6331, %v2401
      %v6391 = vmul.f32 %v6330, %v2406
      %v6392 = vmul.f32 %v6329, %v2411
      %v6393 = vadd.f32 %v6023, %v6361
      %v6394 = vadd.f32 %v6024, %v6362
      %v6395 = vadd.f32 %v6025, %v6363
      %v6396 = vadd.f32 %v6026, %v6364
      %v6397 = vadd.f32 %v6027, %v6365
      %v6398 = vadd.f32 %v6028, %v6366
      %v6399 = vadd.f32 %v6029, %v6367
      %v6400 = vadd.f32 %v6030, %v6368
      %v6401 = vadd.f32 %v6031, %v6369
      %v6402 = vadd.f32 %v6032, %v6370
      %v6403 = vadd.f32 %v6033, %v6371
      %v6404 = vadd.f32 %v6034, %v6372
      %v6405 = vadd.f32 %v6035, %v6373
      %v6406 = vadd.f32 %v6036, %v6374
      %v6407 = vadd.f32 %v6037, %v6375
      %v6408 = vadd.f32 %v6038, %v6376
      %v6409 = vadd.f32 %v6039, %v6377
      %v6410 = vadd.f32 %v6040, %v6378
      %v6411 = vadd.f32 %v6041, %v6379
      %v6412 = vadd.f32 %v6042, %v6380
      %v6413 = vadd.f32 %v6043, %v6381
      %v6414 = vadd.f32 %v6044, %v6382
      %v6415 = vadd.f32 %v6045, %v6383
      %v6416 = vadd.f32 %v6046, %v6384
      %v6417 = vadd.f32 %v6047, %v6385
      %v6418 = vadd.f32 %v6048, %v6386
      %v6419 = vadd.f32 %v6049, %v6387
      %v6420 = vadd.f32 %v6050, %v6388
      %v6421 = vadd.f32 %v6051, %v6389
      %v6422 = vadd.f32 %v6052, %v6390
      %v6423 = vadd.f32 %v6053, %v6391
      %v6424 = vadd.f32 %v6054, %v6392
      %s6425 = scalar_lea.vmem %s3, 512
      %v6426 = vld [vmem:[%s6425] sm:$0xff]
      %v6427 = vld [vmem:[%s6425 + $0x8] sm:$0xff]
      %v6428 = vld [vmem:[%s6425 + $0x10] sm:$0xff]
      %v6429 = vld [vmem:[%s6425 + $0x18] sm:$0xff]
      %v6430 = vld [vmem:[%s6425 + $0x20] sm:$0xff]
      %v6431 = vld [vmem:[%s6425 + $0x28] sm:$0xff]
      %v6432 = vld [vmem:[%s6425 + $0x30] sm:$0xff]
      %v6433 = vld [vmem:[%s6425 + $0x38] sm:$0xff]
      %v6434 = vld [vmem:[%s6425 + $0x40] sm:$0xff]
      %v6435 = vld [vmem:[%s6425 + $0x48] sm:$0xff]
      %v6436 = vld [vmem:[%s6425 + $0x50] sm:$0xff]
      %v6437 = vld [vmem:[%s6425 + $0x58] sm:$0xff]
      %v6438 = vld [vmem:[%s6425 + $0x60] sm:$0xff]
      %v6439 = vld [vmem:[%s6425 + $0x68] sm:$0xff]
      %v6440 = vld [vmem:[%s6425 + $0x70] sm:$0xff]
      %v6441 = vld [vmem:[%s6425 + $0x78] sm:$0xff]
      %6442 = vmatprep.subr.mxu0 0.0
      %6443 = vmatpush1.msra.mxu0 %v6441
      %6444 = vmatprep.subr.mxu0 0.0
      %6445 = vmatpush1.msra.mxu0 %v6440
      %6446 = vmatprep.subr.mxu0 0.0
      %6447 = vmatpush1.msra.mxu0 %v6439
      %6448 = vmatprep.subr.mxu0 0.0
      %6449 = vmatpush1.msra.mxu0 %v6438
      %6450 = vmatprep.subr.mxu0 0.0
      %6451 = vmatpush1.msra.mxu0 %v6437
      %6452 = vmatprep.subr.mxu0 0.0
      %6453 = vmatpush1.msra.mxu0 %v6436
      %6454 = vmatprep.subr.mxu0 0.0
      %6455 = vmatpush1.msra.mxu0 %v6435
      %6456 = vmatprep.subr.mxu0 0.0
      %6457 = vmatpush1.msra.mxu0 %v6434
      %6458 = vmatprep.subr.mxu0 0.0
      %6459 = vmatpush1.msra.mxu0 %v6433
      %6460 = vmatprep.subr.mxu0 0.0
      %6461 = vmatpush1.msra.mxu0 %v6432
      %6462 = vmatprep.subr.mxu0 0.0
      %6463 = vmatpush1.msra.mxu0 %v6431
      %6464 = vmatprep.subr.mxu0 0.0
      %6465 = vmatpush1.msra.mxu0 %v6430
      %6466 = vmatprep.subr.mxu0 0.0
      %6467 = vmatpush1.msra.mxu0 %v6429
      %6468 = vmatprep.subr.mxu0 0.0
      %6469 = vmatpush1.msra.mxu0 %v6428
      %6470 = vmatprep.subr.mxu0 0.0
      %6471 = vmatpush1.msra.mxu0 %v6427
      %6472 = vmatprep.subr.mxu0 0.0
      %6473 = vmatpush1.msra.mxu0 %v6426
      %6474 = vmatprep.subr.mxu0 0.0
      %6475 = vmatpush2.msra.mxu0 0.0
      %6476 = vmatprep.subr.mxu0 0.0
      %6477 = vmatpush2.msra.mxu0 0.0
      %6478 = vmatprep.subr.mxu0 0.0
      %6479 = vmatpush2.msra.mxu0 0.0
      %6480 = vmatprep.subr.mxu0 0.0
      %6481 = vmatpush2.msra.mxu0 0.0
      %6482 = vmatprep.subr.mxu0 0.0
      %6483 = vmatpush2.msra.mxu0 0.0
      %6484 = vmatprep.subr.mxu0 0.0
      %6485 = vmatpush2.msra.mxu0 0.0
      %6486 = vmatprep.subr.mxu0 0.0
      %6487 = vmatpush2.msra.mxu0 0.0
      %6488 = vmatprep.subr.mxu0 0.0
      %6489 = vmatpush2.msra.mxu0 0.0
      %6490 = vmatprep.subr.mxu0 0.0
      %6491 = vmatpush2.msra.mxu0 0.0
      %6492 = vmatprep.subr.mxu0 0.0
      %6493 = vmatpush2.msra.mxu0 0.0
      %6494 = vmatprep.subr.mxu0 0.0
      %6495 = vmatpush2.msra.mxu0 0.0
      %6496 = vmatprep.subr.mxu0 0.0
      %6497 = vmatpush2.msra.mxu0 0.0
      %6498 = vmatprep.subr.mxu0 0.0
      %6499 = vmatpush2.msra.mxu0 0.0
      %6500 = vmatprep.subr.mxu0 0.0
      %6501 = vmatpush2.msra.mxu0 0.0
      %6502 = vmatprep.subr.mxu0 0.0
      %6503 = vmatpush2.msra.mxu0 0.0
      %6504 = vmatprep.subr.mxu0 0.0
      %6505 = vmatpush2.msra.mxu0 0.0
      %6506 = vmatprep.mubr.f32.mxu0 0.0
      %6507 = vmatmul.mubr.f32.gmra.mxu0 %v4978
      %v6508 = vpop.f32.mrf.mxu0
      %v6509 = vadd.f32 0.0, %v6508
      %v6510 = vpop.f32.mrf.mxu0
      %6511 = vmatprep.mubr.f32.mxu0 0.0
      %6512 = vmatmul.mubr.f32.gmra.mxu0 %v4979
      %v6513 = vpop.f32.mrf.mxu0
      %v6514 = vadd.f32 0.0, %v6513
      %v6515 = vpop.f32.mrf.mxu0
      %6516 = vmatprep.mubr.f32.mxu0 0.0
      %6517 = vmatmul.mubr.f32.gmra.mxu0 %v4980
      %v6518 = vpop.f32.mrf.mxu0
      %v6519 = vadd.f32 0.0, %v6518
      %v6520 = vpop.f32.mrf.mxu0
      %6521 = vmatprep.mubr.f32.mxu0 0.0
      %6522 = vmatmul.mubr.f32.gmra.mxu0 %v4981
      %v6523 = vpop.f32.mrf.mxu0
      %v6524 = vadd.f32 0.0, %v6523
      %v6525 = vpop.f32.mrf.mxu0
      %6526 = vmatprep.mubr.f32.mxu0 0.0
      %6527 = vmatmul.mubr.f32.gmra.mxu0 %v4982
      %v6528 = vpop.f32.mrf.mxu0
      %v6529 = vadd.f32 0.0, %v6528
      %v6530 = vpop.f32.mrf.mxu0
      %6531 = vmatprep.mubr.f32.mxu0 0.0
      %6532 = vmatmul.mubr.f32.gmra.mxu0 %v4983
      %v6533 = vpop.f32.mrf.mxu0
      %v6534 = vadd.f32 0.0, %v6533
      %v6535 = vpop.f32.mrf.mxu0
      %6536 = vmatprep.mubr.f32.mxu0 0.0
      %6537 = vmatmul.mubr.f32.gmra.mxu0 %v4984
      %v6538 = vpop.f32.mrf.mxu0
      %v6539 = vadd.f32 0.0, %v6538
      %v6540 = vpop.f32.mrf.mxu0
      %6541 = vmatprep.mubr.f32.mxu0 0.0
      %6542 = vmatmul.mubr.f32.gmra.mxu0 %v4985
      %v6543 = vpop.f32.mrf.mxu0
      %v6544 = vadd.f32 0.0, %v6543
      %v6545 = vpop.f32.mrf.mxu0
      %6546 = vmatprep.mubr.f32.mxu0 0.0
      %6547 = vmatmul.mubr.f32.gmra.mxu0 %v4986
      %v6548 = vpop.f32.mrf.mxu0
      %v6549 = vadd.f32 0.0, %v6548
      %v6550 = vpop.f32.mrf.mxu0
      %6551 = vmatprep.mubr.f32.mxu0 0.0
      %6552 = vmatmul.mubr.f32.gmra.mxu0 %v4987
      %v6553 = vpop.f32.mrf.mxu0
      %v6554 = vadd.f32 0.0, %v6553
      %v6555 = vpop.f32.mrf.mxu0
      %6556 = vmatprep.mubr.f32.mxu0 0.0
      %6557 = vmatmul.mubr.f32.gmra.mxu0 %v4988
      %v6558 = vpop.f32.mrf.mxu0
      %v6559 = vadd.f32 0.0, %v6558
      %v6560 = vpop.f32.mrf.mxu0
      %6561 = vmatprep.mubr.f32.mxu0 0.0
      %6562 = vmatmul.mubr.f32.gmra.mxu0 %v4989
      %v6563 = vpop.f32.mrf.mxu0
      %v6564 = vadd.f32 0.0, %v6563
      %v6565 = vpop.f32.mrf.mxu0
      %6566 = vmatprep.mubr.f32.mxu0 0.0
      %6567 = vmatmul.mubr.f32.gmra.mxu0 %v4990
      %v6568 = vpop.f32.mrf.mxu0
      %v6569 = vadd.f32 0.0, %v6568
      %v6570 = vpop.f32.mrf.mxu0
      %6571 = vmatprep.mubr.f32.mxu0 0.0
      %6572 = vmatmul.mubr.f32.gmra.mxu0 %v4991
      %v6573 = vpop.f32.mrf.mxu0
      %v6574 = vadd.f32 0.0, %v6573
      %v6575 = vpop.f32.mrf.mxu0
      %6576 = vmatprep.mubr.f32.mxu0 0.0
      %6577 = vmatmul.mubr.f32.gmra.mxu0 %v4992
      %v6578 = vpop.f32.mrf.mxu0
      %v6579 = vadd.f32 0.0, %v6578
      %v6580 = vpop.f32.mrf.mxu0
      %6581 = vmatprep.mubr.f32.mxu0 0.0
      %6582 = vmatmul.mubr.f32.gmra.mxu0 %v4993
      %v6583 = vpop.f32.mrf.mxu0
      %v6584 = vadd.f32 0.0, %v6583
      %v6585 = vpop.f32.mrf.mxu0
      %6586 = vmatprep.mubr.f32.mxu0 0.0
      %6587 = vmatmul.mubr.f32.gmra.mxu0 %v4994
      %v6588 = vpop.f32.mrf.mxu0
      %v6589 = vadd.f32 0.0, %v6588
      %v6590 = vpop.f32.mrf.mxu0
      %6591 = vmatprep.mubr.f32.mxu0 0.0
      %6592 = vmatmul.mubr.f32.gmra.mxu0 %v4995
      %v6593 = vpop.f32.mrf.mxu0
      %v6594 = vadd.f32 0.0, %v6593
      %v6595 = vpop.f32.mrf.mxu0
      %6596 = vmatprep.mubr.f32.mxu0 0.0
      %6597 = vmatmul.mubr.f32.gmra.mxu0 %v4996
      %v6598 = vpop.f32.mrf.mxu0
      %v6599 = vadd.f32 0.0, %v6598
      %v6600 = vpop.f32.mrf.mxu0
      %6601 = vmatprep.mubr.f32.mxu0 0.0
      %6602 = vmatmul.mubr.f32.gmra.mxu0 %v4997
      %v6603 = vpop.f32.mrf.mxu0
      %v6604 = vadd.f32 0.0, %v6603
      %v6605 = vpop.f32.mrf.mxu0
      %6606 = vmatprep.mubr.f32.mxu0 0.0
      %6607 = vmatmul.mubr.f32.gmra.mxu0 %v4998
      %v6608 = vpop.f32.mrf.mxu0
      %v6609 = vadd.f32 0.0, %v6608
      %v6610 = vpop.f32.mrf.mxu0
      %6611 = vmatprep.mubr.f32.mxu0 0.0
      %6612 = vmatmul.mubr.f32.gmra.mxu0 %v4999
      %v6613 = vpop.f32.mrf.mxu0
      %v6614 = vadd.f32 0.0, %v6613
      %v6615 = vpop.f32.mrf.mxu0
      %6616 = vmatprep.mubr.f32.mxu0 0.0
      %6617 = vmatmul.mubr.f32.gmra.mxu0 %v5000
      %v6618 = vpop.f32.mrf.mxu0
      %v6619 = vadd.f32 0.0, %v6618
      %v6620 = vpop.f32.mrf.mxu0
      %6621 = vmatprep.mubr.f32.mxu0 0.0
      %6622 = vmatmul.mubr.f32.gmra.mxu0 %v5001
      %v6623 = vpop.f32.mrf.mxu0
      %v6624 = vadd.f32 0.0, %v6623
      %v6625 = vpop.f32.mrf.mxu0
      %6626 = vmatprep.mubr.f32.mxu0 0.0
      %6627 = vmatmul.mubr.f32.gmra.mxu0 %v5002
      %v6628 = vpop.f32.mrf.mxu0
      %v6629 = vadd.f32 0.0, %v6628
      %v6630 = vpop.f32.mrf.mxu0
      %6631 = vmatprep.mubr.f32.mxu0 0.0
      %6632 = vmatmul.mubr.f32.gmra.mxu0 %v5003
      %v6633 = vpop.f32.mrf.mxu0
      %v6634 = vadd.f32 0.0, %v6633
      %v6635 = vpop.f32.mrf.mxu0
      %6636 = vmatprep.mubr.f32.mxu0 0.0
      %6637 = vmatmul.mubr.f32.gmra.mxu0 %v5004
      %v6638 = vpop.f32.mrf.mxu0
      %v6639 = vadd.f32 0.0, %v6638
      %v6640 = vpop.f32.mrf.mxu0
      %6641 = vmatprep.mubr.f32.mxu0 0.0
      %6642 = vmatmul.mubr.f32.gmra.mxu0 %v5005
      %v6643 = vpop.f32.mrf.mxu0
      %v6644 = vadd.f32 0.0, %v6643
      %v6645 = vpop.f32.mrf.mxu0
      %6646 = vmatprep.mubr.f32.mxu0 0.0
      %6647 = vmatmul.mubr.f32.gmra.mxu0 %v5006
      %v6648 = vpop.f32.mrf.mxu0
      %v6649 = vadd.f32 0.0, %v6648
      %v6650 = vpop.f32.mrf.mxu0
      %6651 = vmatprep.mubr.f32.mxu0 0.0
      %6652 = vmatmul.mubr.f32.gmra.mxu0 %v5007
      %v6653 = vpop.f32.mrf.mxu0
      %v6654 = vadd.f32 0.0, %v6653
      %v6655 = vpop.f32.mrf.mxu0
      %6656 = vmatprep.mubr.f32.mxu0 0.0
      %6657 = vmatmul.mubr.f32.gmra.mxu0 %v5008
      %v6658 = vpop.f32.mrf.mxu0
      %v6659 = vadd.f32 0.0, %v6658
      %v6660 = vpop.f32.mrf.mxu0
      %6661 = vmatprep.mubr.f32.mxu0 0.0
      %6662 = vmatmul.mubr.f32.gmra.mxu0 %v5009
      %v6663 = vpop.f32.mrf.mxu0
      %v6664 = vadd.f32 0.0, %v6663
      %v6665 = vpop.f32.mrf.mxu0
      %6666 = vdwg.mxu0
      %v6667 = vadd.f32 %v6393, %v6509
      %v6668 = vadd.f32 %v6394, %v6514
      %v6669 = vadd.f32 %v6395, %v6519
      %v6670 = vadd.f32 %v6396, %v6524
      %v6671 = vadd.f32 %v6397, %v6529
      %v6672 = vadd.f32 %v6398, %v6534
      %v6673 = vadd.f32 %v6399, %v6539
      %v6674 = vadd.f32 %v6400, %v6544
      %v6675 = vadd.f32 %v6401, %v6549
      %v6676 = vadd.f32 %v6402, %v6554
      %v6677 = vadd.f32 %v6403, %v6559
      %v6678 = vadd.f32 %v6404, %v6564
      %v6679 = vadd.f32 %v6405, %v6569
      %v6680 = vadd.f32 %v6406, %v6574
      %v6681 = vadd.f32 %v6407, %v6579
      %v6682 = vadd.f32 %v6408, %v6584
      %v6683 = vadd.f32 %v6409, %v6589
      %v6684 = vadd.f32 %v6410, %v6594
      %v6685 = vadd.f32 %v6411, %v6599
      %v6686 = vadd.f32 %v6412, %v6604
      %v6687 = vadd.f32 %v6413, %v6609
      %v6688 = vadd.f32 %v6414, %v6614
      %v6689 = vadd.f32 %v6415, %v6619
      %v6690 = vadd.f32 %v6416, %v6624
      %v6691 = vadd.f32 %v6417, %v6629
      %v6692 = vadd.f32 %v6418, %v6634
      %v6693 = vadd.f32 %v6419, %v6639
      %v6694 = vadd.f32 %v6420, %v6644
      %v6695 = vadd.f32 %v6421, %v6649
      %v6696 = vadd.f32 %v6422, %v6654
      %v6697 = vadd.f32 %v6423, %v6659
      %v6698 = vadd.f32 %v6424, %v6664
      %s6699 = scalar_lea.vmem %s3, 640
      %v6700 = vld [vmem:[%s6699] sm:$0xff]
      %v6701 = vld [vmem:[%s6699 + $0x8] sm:$0xff]
      %v6702 = vld [vmem:[%s6699 + $0x10] sm:$0xff]
      %v6703 = vld [vmem:[%s6699 + $0x18] sm:$0xff]
      %v6704 = vld [vmem:[%s6699 + $0x20] sm:$0xff]
      %v6705 = vld [vmem:[%s6699 + $0x28] sm:$0xff]
      %v6706 = vld [vmem:[%s6699 + $0x30] sm:$0xff]
      %v6707 = vld [vmem:[%s6699 + $0x38] sm:$0xff]
      %v6708 = vld [vmem:[%s6699 + $0x40] sm:$0xff]
      %v6709 = vld [vmem:[%s6699 + $0x48] sm:$0xff]
      %v6710 = vld [vmem:[%s6699 + $0x50] sm:$0xff]
      %v6711 = vld [vmem:[%s6699 + $0x58] sm:$0xff]
      %v6712 = vld [vmem:[%s6699 + $0x60] sm:$0xff]
      %v6713 = vld [vmem:[%s6699 + $0x68] sm:$0xff]
      %v6714 = vld [vmem:[%s6699 + $0x70] sm:$0xff]
      %v6715 = vld [vmem:[%s6699 + $0x78] sm:$0xff]
      %6716 = vmatprep.subr.mxu0 0.0
      %6717 = vmatpush1.msra.mxu0 %v6715
      %6718 = vmatprep.subr.mxu0 0.0
      %6719 = vmatpush1.msra.mxu0 %v6714
      %6720 = vmatprep.subr.mxu0 0.0
      %6721 = vmatpush1.msra.mxu0 %v6713
      %6722 = vmatprep.subr.mxu0 0.0
      %6723 = vmatpush1.msra.mxu0 %v6712
      %6724 = vmatprep.subr.mxu0 0.0
      %6725 = vmatpush1.msra.mxu0 %v6711
      %6726 = vmatprep.subr.mxu0 0.0
      %6727 = vmatpush1.msra.mxu0 %v6710
      %6728 = vmatprep.subr.mxu0 0.0
      %6729 = vmatpush1.msra.mxu0 %v6709
      %6730 = vmatprep.subr.mxu0 0.0
      %6731 = vmatpush1.msra.mxu0 %v6708
      %6732 = vmatprep.subr.mxu0 0.0
      %6733 = vmatpush1.msra.mxu0 %v6707
      %6734 = vmatprep.subr.mxu0 0.0
      %6735 = vmatpush1.msra.mxu0 %v6706
      %6736 = vmatprep.subr.mxu0 0.0
      %6737 = vmatpush1.msra.mxu0 %v6705
      %6738 = vmatprep.subr.mxu0 0.0
      %6739 = vmatpush1.msra.mxu0 %v6704
      %6740 = vmatprep.subr.mxu0 0.0
      %6741 = vmatpush1.msra.mxu0 %v6703
      %6742 = vmatprep.subr.mxu0 0.0
      %6743 = vmatpush1.msra.mxu0 %v6702
      %6744 = vmatprep.subr.mxu0 0.0
      %6745 = vmatpush1.msra.mxu0 %v6701
      %6746 = vmatprep.subr.mxu0 0.0
      %6747 = vmatpush1.msra.mxu0 %v6700
      %6748 = vmatprep.subr.mxu0 0.0
      %6749 = vmatpush2.msra.mxu0 0.0
      %6750 = vmatprep.subr.mxu0 0.0
      %6751 = vmatpush2.msra.mxu0 0.0
      %6752 = vmatprep.subr.mxu0 0.0
      %6753 = vmatpush2.msra.mxu0 0.0
      %6754 = vmatprep.subr.mxu0 0.0
      %6755 = vmatpush2.msra.mxu0 0.0
      %6756 = vmatprep.subr.mxu0 0.0
      %6757 = vmatpush2.msra.mxu0 0.0
      %6758 = vmatprep.subr.mxu0 0.0
      %6759 = vmatpush2.msra.mxu0 0.0
      %6760 = vmatprep.subr.mxu0 0.0
      %6761 = vmatpush2.msra.mxu0 0.0
      %6762 = vmatprep.subr.mxu0 0.0
      %6763 = vmatpush2.msra.mxu0 0.0
      %6764 = vmatprep.subr.mxu0 0.0
      %6765 = vmatpush2.msra.mxu0 0.0
      %6766 = vmatprep.subr.mxu0 0.0
      %6767 = vmatpush2.msra.mxu0 0.0
      %6768 = vmatprep.subr.mxu0 0.0
      %6769 = vmatpush2.msra.mxu0 0.0
      %6770 = vmatprep.subr.mxu0 0.0
      %6771 = vmatpush2.msra.mxu0 0.0
      %6772 = vmatprep.subr.mxu0 0.0
      %6773 = vmatpush2.msra.mxu0 0.0
      %6774 = vmatprep.subr.mxu0 0.0
      %6775 = vmatpush2.msra.mxu0 0.0
      %6776 = vmatprep.subr.mxu0 0.0
      %6777 = vmatpush2.msra.mxu0 0.0
      %6778 = vmatprep.subr.mxu0 0.0
      %6779 = vmatpush2.msra.mxu0 0.0
      %6780 = vmatprep.mubr.f32.mxu0 0.0
      %6781 = vmatmul.mubr.f32.gmra.mxu0 %v4978
      %v6782 = vpop.f32.mrf.mxu0
      %v6783 = vadd.f32 0.0, %v6782
      %v6784 = vpop.f32.mrf.mxu0
      %6785 = vmatprep.mubr.f32.mxu0 0.0
      %6786 = vmatmul.mubr.f32.gmra.mxu0 %v4979
      %v6787 = vpop.f32.mrf.mxu0
      %v6788 = vadd.f32 0.0, %v6787
      %v6789 = vpop.f32.mrf.mxu0
      %6790 = vmatprep.mubr.f32.mxu0 0.0
      %6791 = vmatmul.mubr.f32.gmra.mxu0 %v4980
      %v6792 = vpop.f32.mrf.mxu0
      %v6793 = vadd.f32 0.0, %v6792
      %v6794 = vpop.f32.mrf.mxu0
      %6795 = vmatprep.mubr.f32.mxu0 0.0
      %6796 = vmatmul.mubr.f32.gmra.mxu0 %v4981
      %v6797 = vpop.f32.mrf.mxu0
      %v6798 = vadd.f32 0.0, %v6797
      %v6799 = vpop.f32.mrf.mxu0
      %6800 = vmatprep.mubr.f32.mxu0 0.0
      %6801 = vmatmul.mubr.f32.gmra.mxu0 %v4982
      %v6802 = vpop.f32.mrf.mxu0
      %v6803 = vadd.f32 0.0, %v6802
      %v6804 = vpop.f32.mrf.mxu0
      %6805 = vmatprep.mubr.f32.mxu0 0.0
      %6806 = vmatmul.mubr.f32.gmra.mxu0 %v4983
      %v6807 = vpop.f32.mrf.mxu0
      %v6808 = vadd.f32 0.0, %v6807
      %v6809 = vpop.f32.mrf.mxu0
      %6810 = vmatprep.mubr.f32.mxu0 0.0
      %6811 = vmatmul.mubr.f32.gmra.mxu0 %v4984
      %v6812 = vpop.f32.mrf.mxu0
      %v6813 = vadd.f32 0.0, %v6812
      %v6814 = vpop.f32.mrf.mxu0
      %6815 = vmatprep.mubr.f32.mxu0 0.0
      %6816 = vmatmul.mubr.f32.gmra.mxu0 %v4985
      %v6817 = vpop.f32.mrf.mxu0
      %v6818 = vadd.f32 0.0, %v6817
      %v6819 = vpop.f32.mrf.mxu0
      %6820 = vmatprep.mubr.f32.mxu0 0.0
      %6821 = vmatmul.mubr.f32.gmra.mxu0 %v4986
      %v6822 = vpop.f32.mrf.mxu0
      %v6823 = vadd.f32 0.0, %v6822
      %v6824 = vpop.f32.mrf.mxu0
      %6825 = vmatprep.mubr.f32.mxu0 0.0
      %6826 = vmatmul.mubr.f32.gmra.mxu0 %v4987
      %v6827 = vpop.f32.mrf.mxu0
      %v6828 = vadd.f32 0.0, %v6827
      %v6829 = vpop.f32.mrf.mxu0
      %6830 = vmatprep.mubr.f32.mxu0 0.0
      %6831 = vmatmul.mubr.f32.gmra.mxu0 %v4988
      %v6832 = vpop.f32.mrf.mxu0
      %v6833 = vadd.f32 0.0, %v6832
      %v6834 = vpop.f32.mrf.mxu0
      %6835 = vmatprep.mubr.f32.mxu0 0.0
      %6836 = vmatmul.mubr.f32.gmra.mxu0 %v4989
      %v6837 = vpop.f32.mrf.mxu0
      %v6838 = vadd.f32 0.0, %v6837
      %v6839 = vpop.f32.mrf.mxu0
      %6840 = vmatprep.mubr.f32.mxu0 0.0
      %6841 = vmatmul.mubr.f32.gmra.mxu0 %v4990
      %v6842 = vpop.f32.mrf.mxu0
      %v6843 = vadd.f32 0.0, %v6842
      %v6844 = vpop.f32.mrf.mxu0
      %6845 = vmatprep.mubr.f32.mxu0 0.0
      %6846 = vmatmul.mubr.f32.gmra.mxu0 %v4991
      %v6847 = vpop.f32.mrf.mxu0
      %v6848 = vadd.f32 0.0, %v6847
      %v6849 = vpop.f32.mrf.mxu0
      %6850 = vmatprep.mubr.f32.mxu0 0.0
      %6851 = vmatmul.mubr.f32.gmra.mxu0 %v4992
      %v6852 = vpop.f32.mrf.mxu0
      %v6853 = vadd.f32 0.0, %v6852
      %v6854 = vpop.f32.mrf.mxu0
      %6855 = vmatprep.mubr.f32.mxu0 0.0
      %6856 = vmatmul.mubr.f32.gmra.mxu0 %v4993
      %v6857 = vpop.f32.mrf.mxu0
      %v6858 = vadd.f32 0.0, %v6857
      %v6859 = vpop.f32.mrf.mxu0
      %6860 = vmatprep.mubr.f32.mxu0 0.0
      %6861 = vmatmul.mubr.f32.gmra.mxu0 %v4994
      %v6862 = vpop.f32.mrf.mxu0
      %v6863 = vadd.f32 0.0, %v6862
      %v6864 = vpop.f32.mrf.mxu0
      %6865 = vmatprep.mubr.f32.mxu0 0.0
      %6866 = vmatmul.mubr.f32.gmra.mxu0 %v4995
      %v6867 = vpop.f32.mrf.mxu0
      %v6868 = vadd.f32 0.0, %v6867
      %v6869 = vpop.f32.mrf.mxu0
      %6870 = vmatprep.mubr.f32.mxu0 0.0
      %6871 = vmatmul.mubr.f32.gmra.mxu0 %v4996
      %v6872 = vpop.f32.mrf.mxu0
      %v6873 = vadd.f32 0.0, %v6872
      %v6874 = vpop.f32.mrf.mxu0
      %6875 = vmatprep.mubr.f32.mxu0 0.0
      %6876 = vmatmul.mubr.f32.gmra.mxu0 %v4997
      %v6877 = vpop.f32.mrf.mxu0
      %v6878 = vadd.f32 0.0, %v6877
      %v6879 = vpop.f32.mrf.mxu0
      %6880 = vmatprep.mubr.f32.mxu0 0.0
      %6881 = vmatmul.mubr.f32.gmra.mxu0 %v4998
      %v6882 = vpop.f32.mrf.mxu0
      %v6883 = vadd.f32 0.0, %v6882
      %v6884 = vpop.f32.mrf.mxu0
      %6885 = vmatprep.mubr.f32.mxu0 0.0
      %6886 = vmatmul.mubr.f32.gmra.mxu0 %v4999
      %v6887 = vpop.f32.mrf.mxu0
      %v6888 = vadd.f32 0.0, %v6887
      %v6889 = vpop.f32.mrf.mxu0
      %6890 = vmatprep.mubr.f32.mxu0 0.0
      %6891 = vmatmul.mubr.f32.gmra.mxu0 %v5000
      %v6892 = vpop.f32.mrf.mxu0
      %v6893 = vadd.f32 0.0, %v6892
      %v6894 = vpop.f32.mrf.mxu0
      %6895 = vmatprep.mubr.f32.mxu0 0.0
      %6896 = vmatmul.mubr.f32.gmra.mxu0 %v5001
      %v6897 = vpop.f32.mrf.mxu0
      %v6898 = vadd.f32 0.0, %v6897
      %v6899 = vpop.f32.mrf.mxu0
      %6900 = vmatprep.mubr.f32.mxu0 0.0
      %6901 = vmatmul.mubr.f32.gmra.mxu0 %v5002
      %v6902 = vpop.f32.mrf.mxu0
      %v6903 = vadd.f32 0.0, %v6902
      %v6904 = vpop.f32.mrf.mxu0
      %6905 = vmatprep.mubr.f32.mxu0 0.0
      %6906 = vmatmul.mubr.f32.gmra.mxu0 %v5003
      %v6907 = vpop.f32.mrf.mxu0
      %v6908 = vadd.f32 0.0, %v6907
      %v6909 = vpop.f32.mrf.mxu0
      %6910 = vmatprep.mubr.f32.mxu0 0.0
      %6911 = vmatmul.mubr.f32.gmra.mxu0 %v5004
      %v6912 = vpop.f32.mrf.mxu0
      %v6913 = vadd.f32 0.0, %v6912
      %v6914 = vpop.f32.mrf.mxu0
      %6915 = vmatprep.mubr.f32.mxu0 0.0
      %6916 = vmatmul.mubr.f32.gmra.mxu0 %v5005
      %v6917 = vpop.f32.mrf.mxu0
      %v6918 = vadd.f32 0.0, %v6917
      %v6919 = vpop.f32.mrf.mxu0
      %6920 = vmatprep.mubr.f32.mxu0 0.0
      %6921 = vmatmul.mubr.f32.gmra.mxu0 %v5006
      %v6922 = vpop.f32.mrf.mxu0
      %v6923 = vadd.f32 0.0, %v6922
      %v6924 = vpop.f32.mrf.mxu0
      %6925 = vmatprep.mubr.f32.mxu0 0.0
      %6926 = vmatmul.mubr.f32.gmra.mxu0 %v5007
      %v6927 = vpop.f32.mrf.mxu0
      %v6928 = vadd.f32 0.0, %v6927
      %v6929 = vpop.f32.mrf.mxu0
      %6930 = vmatprep.mubr.f32.mxu0 0.0
      %6931 = vmatmul.mubr.f32.gmra.mxu0 %v5008
      %v6932 = vpop.f32.mrf.mxu0
      %v6933 = vadd.f32 0.0, %v6932
      %v6934 = vpop.f32.mrf.mxu0
      %6935 = vmatprep.mubr.f32.mxu0 0.0
      %6936 = vmatmul.mubr.f32.gmra.mxu0 %v5009
      %v6937 = vpop.f32.mrf.mxu0
      %v6938 = vadd.f32 0.0, %v6937
      %v6939 = vpop.f32.mrf.mxu0
      %6940 = vdwg.mxu0
      %v6941 = vrot.slane %v6783, 1
      %v6942 = vrot.slane %v6788, 1
      %v6943 = vrot.slane %v6793, 1
      %v6944 = vrot.slane %v6798, 1
      %v6945 = vrot.slane %v6803, 1
      %v6946 = vrot.slane %v6808, 1
      %v6947 = vrot.slane %v6813, 1
      %v6948 = vrot.slane %v6818, 1
      %v6949 = vrot.slane %v6823, 1
      %v6950 = vrot.slane %v6828, 1
      %v6951 = vrot.slane %v6833, 1
      %v6952 = vrot.slane %v6838, 1
      %v6953 = vrot.slane %v6843, 1
      %v6954 = vrot.slane %v6848, 1
      %v6955 = vrot.slane %v6853, 1
      %v6956 = vrot.slane %v6858, 1
      %v6957 = vrot.slane %v6863, 1
      %v6958 = vrot.slane %v6868, 1
      %v6959 = vrot.slane %v6873, 1
      %v6960 = vrot.slane %v6878, 1
      %v6961 = vrot.slane %v6883, 1
      %v6962 = vrot.slane %v6888, 1
      %v6963 = vrot.slane %v6893, 1
      %v6964 = vrot.slane %v6898, 1
      %v6965 = vrot.slane %v6903, 1
      %v6966 = vrot.slane %v6908, 1
      %v6967 = vrot.slane %v6913, 1
      %v6968 = vrot.slane %v6918, 1
      %v6969 = vrot.slane %v6923, 1
      %v6970 = vrot.slane %v6928, 1
      %v6971 = vrot.slane %v6933, 1
      %v6972 = vrot.slane %v6938, 1
      %v6973 = vsel %vm1624, %v6971, %v6972
      %v6974 = vsel %vm1624, %v6970, %v6971
      %v6975 = vsel %vm1624, %v6969, %v6970
      %v6976 = vsel %vm1624, %v6968, %v6969
      %v6977 = vsel %vm1624, %v6967, %v6968
      %v6978 = vsel %vm1624, %v6966, %v6967
      %v6979 = vsel %vm1624, %v6965, %v6966
      %v6980 = vsel %vm1624, %v6964, %v6965
      %v6981 = vsel %vm1624, %v6963, %v6964
      %v6982 = vsel %vm1624, %v6962, %v6963
      %v6983 = vsel %vm1624, %v6961, %v6962
      %v6984 = vsel %vm1624, %v6960, %v6961
      %v6985 = vsel %vm1624, %v6959, %v6960
      %v6986 = vsel %vm1624, %v6958, %v6959
      %v6987 = vsel %vm1624, %v6957, %v6958
      %v6988 = vsel %vm1624, %v6956, %v6957
      %v6989 = vsel %vm1624, %v6955, %v6956
      %v6990 = vsel %vm1624, %v6954, %v6955
      %v6991 = vsel %vm1624, %v6953, %v6954
      %v6992 = vsel %vm1624, %v6952, %v6953
      %v6993 = vsel %vm1624, %v6951, %v6952
      %v6994 = vsel %vm1624, %v6950, %v6951
      %v6995 = vsel %vm1624, %v6949, %v6950
      %v6996 = vsel %vm1624, %v6948, %v6949
      %v6997 = vsel %vm1624, %v6947, %v6948
      %v6998 = vsel %vm1624, %v6946, %v6947
      %v6999 = vsel %vm1624, %v6945, %v6946
      %v7000 = vsel %vm1624, %v6944, %v6945
      %v7001 = vsel %vm1624, %v6943, %v6944
      %v7002 = vsel %vm1624, %v6942, %v6943
      %v7003 = vsel %vm1624, %v6941, %v6942
      %v7004 = vsel %vm1624, %v6972, %v6941
      %v7005 = vmul.f32 %v7003, %v3093
      %v7006 = vmul.f32 %v7002, %v3098
      %v7007 = vmul.f32 %v7001, %v3103
      %v7008 = vmul.f32 %v7000, %v3108
      %v7009 = vmul.f32 %v6999, %v3113
      %v7010 = vmul.f32 %v6998, %v3118
      %v7011 = vmul.f32 %v6997, %v3123
      %v7012 = vmul.f32 %v6996, %v3128
      %v7013 = vmul.f32 %v6995, %v3133
      %v7014 = vmul.f32 %v6994, %v3138
      %v7015 = vmul.f32 %v6993, %v3143
      %v7016 = vmul.f32 %v6992, %v3148
      %v7017 = vmul.f32 %v6991, %v3153
      %v7018 = vmul.f32 %v6990, %v3158
      %v7019 = vmul.f32 %v6989, %v3163
      %v7020 = vmul.f32 %v6988, %v3168
      %v7021 = vmul.f32 %v6987, %v3173
      %v7022 = vmul.f32 %v6986, %v3178
      %v7023 = vmul.f32 %v6985, %v3183
      %v7024 = vmul.f32 %v6984, %v3188
      %v7025 = vmul.f32 %v6983, %v3193
      %v7026 = vmul.f32 %v6982, %v3198
      %v7027 = vmul.f32 %v6981, %v3203
      %v7028 = vmul.f32 %v6980, %v3208
      %v7029 = vmul.f32 %v6979, %v3213
      %v7030 = vmul.f32 %v6978, %v3218
      %v7031 = vmul.f32 %v6977, %v3223
      %v7032 = vmul.f32 %v6976, %v3228
      %v7033 = vmul.f32 %v6975, %v3233
      %v7034 = vmul.f32 %v6974, %v3238
      %v7035 = vmul.f32 %v6973, %v3243
      %v7036 = vmul.f32 %v7004, %v3248
      %v7037 = vadd.f32 %v6667, %v7005
      %v7038 = vadd.f32 %v6668, %v7006
      %v7039 = vadd.f32 %v6669, %v7007
      %v7040 = vadd.f32 %v6670, %v7008
      %v7041 = vadd.f32 %v6671, %v7009
      %v7042 = vadd.f32 %v6672, %v7010
      %v7043 = vadd.f32 %v6673, %v7011
      %v7044 = vadd.f32 %v6674, %v7012
      %v7045 = vadd.f32 %v6675, %v7013
      %v7046 = vadd.f32 %v6676, %v7014
      %v7047 = vadd.f32 %v6677, %v7015
      %v7048 = vadd.f32 %v6678, %v7016
      %v7049 = vadd.f32 %v6679, %v7017
      %v7050 = vadd.f32 %v6680, %v7018
      %v7051 = vadd.f32 %v6681, %v7019
      %v7052 = vadd.f32 %v6682, %v7020
      %v7053 = vadd.f32 %v6683, %v7021
      %v7054 = vadd.f32 %v6684, %v7022
      %v7055 = vadd.f32 %v6685, %v7023
      %v7056 = vadd.f32 %v6686, %v7024
      %v7057 = vadd.f32 %v6687, %v7025
      %v7058 = vadd.f32 %v6688, %v7026
      %v7059 = vadd.f32 %v6689, %v7027
      %v7060 = vadd.f32 %v6690, %v7028
      %v7061 = vadd.f32 %v6691, %v7029
      %v7062 = vadd.f32 %v6692, %v7030
      %v7063 = vadd.f32 %v6693, %v7031
      %v7064 = vadd.f32 %v6694, %v7032
      %v7065 = vadd.f32 %v6695, %v7033
      %v7066 = vadd.f32 %v6696, %v7034
      %v7067 = vadd.f32 %v6697, %v7035
      %v7068 = vadd.f32 %v6698, %v7036
      %s7069 = scalar_lea.vmem %s3, 768
      %v7070 = vld [vmem:[%s7069] sm:$0xff]
      %v7071 = vld [vmem:[%s7069 + $0x8] sm:$0xff]
      %v7072 = vld [vmem:[%s7069 + $0x10] sm:$0xff]
      %v7073 = vld [vmem:[%s7069 + $0x18] sm:$0xff]
      %v7074 = vld [vmem:[%s7069 + $0x20] sm:$0xff]
      %v7075 = vld [vmem:[%s7069 + $0x28] sm:$0xff]
      %v7076 = vld [vmem:[%s7069 + $0x30] sm:$0xff]
      %v7077 = vld [vmem:[%s7069 + $0x38] sm:$0xff]
      %v7078 = vld [vmem:[%s7069 + $0x40] sm:$0xff]
      %v7079 = vld [vmem:[%s7069 + $0x48] sm:$0xff]
      %v7080 = vld [vmem:[%s7069 + $0x50] sm:$0xff]
      %v7081 = vld [vmem:[%s7069 + $0x58] sm:$0xff]
      %v7082 = vld [vmem:[%s7069 + $0x60] sm:$0xff]
      %v7083 = vld [vmem:[%s7069 + $0x68] sm:$0xff]
      %v7084 = vld [vmem:[%s7069 + $0x70] sm:$0xff]
      %v7085 = vld [vmem:[%s7069 + $0x78] sm:$0xff]
      %7086 = vmatprep.subr.mxu0 0.0
      %7087 = vmatpush1.msra.mxu0 %v7085
      %7088 = vmatprep.subr.mxu0 0.0
      %7089 = vmatpush1.msra.mxu0 %v7084
      %7090 = vmatprep.subr.mxu0 0.0
      %7091 = vmatpush1.msra.mxu0 %v7083
      %7092 = vmatprep.subr.mxu0 0.0
      %7093 = vmatpush1.msra.mxu0 %v7082
      %7094 = vmatprep.subr.mxu0 0.0
      %7095 = vmatpush1.msra.mxu0 %v7081
      %7096 = vmatprep.subr.mxu0 0.0
      %7097 = vmatpush1.msra.mxu0 %v7080
      %7098 = vmatprep.subr.mxu0 0.0
      %7099 = vmatpush1.msra.mxu0 %v7079
      %7100 = vmatprep.subr.mxu0 0.0
      %7101 = vmatpush1.msra.mxu0 %v7078
      %7102 = vmatprep.subr.mxu0 0.0
      %7103 = vmatpush1.msra.mxu0 %v7077
      %7104 = vmatprep.subr.mxu0 0.0
      %7105 = vmatpush1.msra.mxu0 %v7076
      %7106 = vmatprep.subr.mxu0 0.0
      %7107 = vmatpush1.msra.mxu0 %v7075
      %7108 = vmatprep.subr.mxu0 0.0
      %7109 = vmatpush1.msra.mxu0 %v7074
      %7110 = vmatprep.subr.mxu0 0.0
      %7111 = vmatpush1.msra.mxu0 %v7073
      %7112 = vmatprep.subr.mxu0 0.0
      %7113 = vmatpush1.msra.mxu0 %v7072
      %7114 = vmatprep.subr.mxu0 0.0
      %7115 = vmatpush1.msra.mxu0 %v7071
      %7116 = vmatprep.subr.mxu0 0.0
      %7117 = vmatpush1.msra.mxu0 %v7070
      %7118 = vmatprep.subr.mxu0 0.0
      %7119 = vmatpush2.msra.mxu0 0.0
      %7120 = vmatprep.subr.mxu0 0.0
      %7121 = vmatpush2.msra.mxu0 0.0
      %7122 = vmatprep.subr.mxu0 0.0
      %7123 = vmatpush2.msra.mxu0 0.0
      %7124 = vmatprep.subr.mxu0 0.0
      %7125 = vmatpush2.msra.mxu0 0.0
      %7126 = vmatprep.subr.mxu0 0.0
      %7127 = vmatpush2.msra.mxu0 0.0
      %7128 = vmatprep.subr.mxu0 0.0
      %7129 = vmatpush2.msra.mxu0 0.0
      %7130 = vmatprep.subr.mxu0 0.0
      %7131 = vmatpush2.msra.mxu0 0.0
      %7132 = vmatprep.subr.mxu0 0.0
      %7133 = vmatpush2.msra.mxu0 0.0
      %7134 = vmatprep.subr.mxu0 0.0
      %7135 = vmatpush2.msra.mxu0 0.0
      %7136 = vmatprep.subr.mxu0 0.0
      %7137 = vmatpush2.msra.mxu0 0.0
      %7138 = vmatprep.subr.mxu0 0.0
      %7139 = vmatpush2.msra.mxu0 0.0
      %7140 = vmatprep.subr.mxu0 0.0
      %7141 = vmatpush2.msra.mxu0 0.0
      %7142 = vmatprep.subr.mxu0 0.0
      %7143 = vmatpush2.msra.mxu0 0.0
      %7144 = vmatprep.subr.mxu0 0.0
      %7145 = vmatpush2.msra.mxu0 0.0
      %7146 = vmatprep.subr.mxu0 0.0
      %7147 = vmatpush2.msra.mxu0 0.0
      %7148 = vmatprep.subr.mxu0 0.0
      %7149 = vmatpush2.msra.mxu0 0.0
      %7150 = vmatprep.mubr.f32.mxu0 0.0
      %7151 = vmatmul.mubr.f32.gmra.mxu0 %v4978
      %v7152 = vpop.f32.mrf.mxu0
      %v7153 = vadd.f32 0.0, %v7152
      %v7154 = vpop.f32.mrf.mxu0
      %7155 = vmatprep.mubr.f32.mxu0 0.0
      %7156 = vmatmul.mubr.f32.gmra.mxu0 %v4979
      %v7157 = vpop.f32.mrf.mxu0
      %v7158 = vadd.f32 0.0, %v7157
      %v7159 = vpop.f32.mrf.mxu0
      %7160 = vmatprep.mubr.f32.mxu0 0.0
      %7161 = vmatmul.mubr.f32.gmra.mxu0 %v4980
      %v7162 = vpop.f32.mrf.mxu0
      %v7163 = vadd.f32 0.0, %v7162
      %v7164 = vpop.f32.mrf.mxu0
      %7165 = vmatprep.mubr.f32.mxu0 0.0
      %7166 = vmatmul.mubr.f32.gmra.mxu0 %v4981
      %v7167 = vpop.f32.mrf.mxu0
      %v7168 = vadd.f32 0.0, %v7167
      %v7169 = vpop.f32.mrf.mxu0
      %7170 = vmatprep.mubr.f32.mxu0 0.0
      %7171 = vmatmul.mubr.f32.gmra.mxu0 %v4982
      %v7172 = vpop.f32.mrf.mxu0
      %v7173 = vadd.f32 0.0, %v7172
      %v7174 = vpop.f32.mrf.mxu0
      %7175 = vmatprep.mubr.f32.mxu0 0.0
      %7176 = vmatmul.mubr.f32.gmra.mxu0 %v4983
      %v7177 = vpop.f32.mrf.mxu0
      %v7178 = vadd.f32 0.0, %v7177
      %v7179 = vpop.f32.mrf.mxu0
      %7180 = vmatprep.mubr.f32.mxu0 0.0
      %7181 = vmatmul.mubr.f32.gmra.mxu0 %v4984
      %v7182 = vpop.f32.mrf.mxu0
      %v7183 = vadd.f32 0.0, %v7182
      %v7184 = vpop.f32.mrf.mxu0
      %7185 = vmatprep.mubr.f32.mxu0 0.0
      %7186 = vmatmul.mubr.f32.gmra.mxu0 %v4985
      %v7187 = vpop.f32.mrf.mxu0
      %v7188 = vadd.f32 0.0, %v7187
      %v7189 = vpop.f32.mrf.mxu0
      %7190 = vmatprep.mubr.f32.mxu0 0.0
      %7191 = vmatmul.mubr.f32.gmra.mxu0 %v4986
      %v7192 = vpop.f32.mrf.mxu0
      %v7193 = vadd.f32 0.0, %v7192
      %v7194 = vpop.f32.mrf.mxu0
      %7195 = vmatprep.mubr.f32.mxu0 0.0
      %7196 = vmatmul.mubr.f32.gmra.mxu0 %v4987
      %v7197 = vpop.f32.mrf.mxu0
      %v7198 = vadd.f32 0.0, %v7197
      %v7199 = vpop.f32.mrf.mxu0
      %7200 = vmatprep.mubr.f32.mxu0 0.0
      %7201 = vmatmul.mubr.f32.gmra.mxu0 %v4988
      %v7202 = vpop.f32.mrf.mxu0
      %v7203 = vadd.f32 0.0, %v7202
      %v7204 = vpop.f32.mrf.mxu0
      %7205 = vmatprep.mubr.f32.mxu0 0.0
      %7206 = vmatmul.mubr.f32.gmra.mxu0 %v4989
      %v7207 = vpop.f32.mrf.mxu0
      %v7208 = vadd.f32 0.0, %v7207
      %v7209 = vpop.f32.mrf.mxu0
      %7210 = vmatprep.mubr.f32.mxu0 0.0
      %7211 = vmatmul.mubr.f32.gmra.mxu0 %v4990
      %v7212 = vpop.f32.mrf.mxu0
      %v7213 = vadd.f32 0.0, %v7212
      %v7214 = vpop.f32.mrf.mxu0
      %7215 = vmatprep.mubr.f32.mxu0 0.0
      %7216 = vmatmul.mubr.f32.gmra.mxu0 %v4991
      %v7217 = vpop.f32.mrf.mxu0
      %v7218 = vadd.f32 0.0, %v7217
      %v7219 = vpop.f32.mrf.mxu0
      %7220 = vmatprep.mubr.f32.mxu0 0.0
      %7221 = vmatmul.mubr.f32.gmra.mxu0 %v4992
      %v7222 = vpop.f32.mrf.mxu0
      %v7223 = vadd.f32 0.0, %v7222
      %v7224 = vpop.f32.mrf.mxu0
      %7225 = vmatprep.mubr.f32.mxu0 0.0
      %7226 = vmatmul.mubr.f32.gmra.mxu0 %v4993
      %v7227 = vpop.f32.mrf.mxu0
      %v7228 = vadd.f32 0.0, %v7227
      %v7229 = vpop.f32.mrf.mxu0
      %7230 = vmatprep.mubr.f32.mxu0 0.0
      %7231 = vmatmul.mubr.f32.gmra.mxu0 %v4994
      %v7232 = vpop.f32.mrf.mxu0
      %v7233 = vadd.f32 0.0, %v7232
      %v7234 = vpop.f32.mrf.mxu0
      %7235 = vmatprep.mubr.f32.mxu0 0.0
      %7236 = vmatmul.mubr.f32.gmra.mxu0 %v4995
      %v7237 = vpop.f32.mrf.mxu0
      %v7238 = vadd.f32 0.0, %v7237
      %v7239 = vpop.f32.mrf.mxu0
      %7240 = vmatprep.mubr.f32.mxu0 0.0
      %7241 = vmatmul.mubr.f32.gmra.mxu0 %v4996
      %v7242 = vpop.f32.mrf.mxu0
      %v7243 = vadd.f32 0.0, %v7242
      %v7244 = vpop.f32.mrf.mxu0
      %7245 = vmatprep.mubr.f32.mxu0 0.0
      %7246 = vmatmul.mubr.f32.gmra.mxu0 %v4997
      %v7247 = vpop.f32.mrf.mxu0
      %v7248 = vadd.f32 0.0, %v7247
      %v7249 = vpop.f32.mrf.mxu0
      %7250 = vmatprep.mubr.f32.mxu0 0.0
      %7251 = vmatmul.mubr.f32.gmra.mxu0 %v4998
      %v7252 = vpop.f32.mrf.mxu0
      %v7253 = vadd.f32 0.0, %v7252
      %v7254 = vpop.f32.mrf.mxu0
      %7255 = vmatprep.mubr.f32.mxu0 0.0
      %7256 = vmatmul.mubr.f32.gmra.mxu0 %v4999
      %v7257 = vpop.f32.mrf.mxu0
      %v7258 = vadd.f32 0.0, %v7257
      %v7259 = vpop.f32.mrf.mxu0
      %7260 = vmatprep.mubr.f32.mxu0 0.0
      %7261 = vmatmul.mubr.f32.gmra.mxu0 %v5000
      %v7262 = vpop.f32.mrf.mxu0
      %v7263 = vadd.f32 0.0, %v7262
      %v7264 = vpop.f32.mrf.mxu0
      %7265 = vmatprep.mubr.f32.mxu0 0.0
      %7266 = vmatmul.mubr.f32.gmra.mxu0 %v5001
      %v7267 = vpop.f32.mrf.mxu0
      %v7268 = vadd.f32 0.0, %v7267
      %v7269 = vpop.f32.mrf.mxu0
      %7270 = vmatprep.mubr.f32.mxu0 0.0
      %7271 = vmatmul.mubr.f32.gmra.mxu0 %v5002
      %v7272 = vpop.f32.mrf.mxu0
      %v7273 = vadd.f32 0.0, %v7272
      %v7274 = vpop.f32.mrf.mxu0
      %7275 = vmatprep.mubr.f32.mxu0 0.0
      %7276 = vmatmul.mubr.f32.gmra.mxu0 %v5003
      %v7277 = vpop.f32.mrf.mxu0
      %v7278 = vadd.f32 0.0, %v7277
      %v7279 = vpop.f32.mrf.mxu0
      %7280 = vmatprep.mubr.f32.mxu0 0.0
      %7281 = vmatmul.mubr.f32.gmra.mxu0 %v5004
      %v7282 = vpop.f32.mrf.mxu0
      %v7283 = vadd.f32 0.0, %v7282
      %v7284 = vpop.f32.mrf.mxu0
      %7285 = vmatprep.mubr.f32.mxu0 0.0
      %7286 = vmatmul.mubr.f32.gmra.mxu0 %v5005
      %v7287 = vpop.f32.mrf.mxu0
      %v7288 = vadd.f32 0.0, %v7287
      %v7289 = vpop.f32.mrf.mxu0
      %7290 = vmatprep.mubr.f32.mxu0 0.0
      %7291 = vmatmul.mubr.f32.gmra.mxu0 %v5006
      %v7292 = vpop.f32.mrf.mxu0
      %v7293 = vadd.f32 0.0, %v7292
      %v7294 = vpop.f32.mrf.mxu0
      %7295 = vmatprep.mubr.f32.mxu0 0.0
      %7296 = vmatmul.mubr.f32.gmra.mxu0 %v5007
      %v7297 = vpop.f32.mrf.mxu0
      %v7298 = vadd.f32 0.0, %v7297
      %v7299 = vpop.f32.mrf.mxu0
      %7300 = vmatprep.mubr.f32.mxu0 0.0
      %7301 = vmatmul.mubr.f32.gmra.mxu0 %v5008
      %v7302 = vpop.f32.mrf.mxu0
      %v7303 = vadd.f32 0.0, %v7302
      %v7304 = vpop.f32.mrf.mxu0
      %7305 = vmatprep.mubr.f32.mxu0 0.0
      %7306 = vmatmul.mubr.f32.gmra.mxu0 %v5009
      %v7307 = vpop.f32.mrf.mxu0
      %v7308 = vadd.f32 0.0, %v7307
      %v7309 = vpop.f32.mrf.mxu0
      %7310 = vdwg.mxu0
      %v7311 = vrot.slane %v7153, 7
      %v7312 = vrot.slane %v7158, 7
      %v7313 = vrot.slane %v7163, 7
      %v7314 = vrot.slane %v7168, 7
      %v7315 = vrot.slane %v7173, 7
      %v7316 = vrot.slane %v7178, 7
      %v7317 = vrot.slane %v7183, 7
      %v7318 = vrot.slane %v7188, 7
      %v7319 = vrot.slane %v7193, 7
      %v7320 = vrot.slane %v7198, 7
      %v7321 = vrot.slane %v7203, 7
      %v7322 = vrot.slane %v7208, 7
      %v7323 = vrot.slane %v7213, 7
      %v7324 = vrot.slane %v7218, 7
      %v7325 = vrot.slane %v7223, 7
      %v7326 = vrot.slane %v7228, 7
      %v7327 = vrot.slane %v7233, 7
      %v7328 = vrot.slane %v7238, 7
      %v7329 = vrot.slane %v7243, 7
      %v7330 = vrot.slane %v7248, 7
      %v7331 = vrot.slane %v7253, 7
      %v7332 = vrot.slane %v7258, 7
      %v7333 = vrot.slane %v7263, 7
      %v7334 = vrot.slane %v7268, 7
      %v7335 = vrot.slane %v7273, 7
      %v7336 = vrot.slane %v7278, 7
      %v7337 = vrot.slane %v7283, 7
      %v7338 = vrot.slane %v7288, 7
      %v7339 = vrot.slane %v7293, 7
      %v7340 = vrot.slane %v7298, 7
      %v7341 = vrot.slane %v7303, 7
      %v7342 = vrot.slane %v7308, 7
      %v7343 = vsel %vm562, %v7341, %v7342
      %v7344 = vsel %vm562, %v7340, %v7341
      %v7345 = vsel %vm562, %v7339, %v7340
      %v7346 = vsel %vm562, %v7338, %v7339
      %v7347 = vsel %vm562, %v7337, %v7338
      %v7348 = vsel %vm562, %v7336, %v7337
      %v7349 = vsel %vm562, %v7335, %v7336
      %v7350 = vsel %vm562, %v7334, %v7335
      %v7351 = vsel %vm562, %v7333, %v7334
      %v7352 = vsel %vm562, %v7332, %v7333
      %v7353 = vsel %vm562, %v7331, %v7332
      %v7354 = vsel %vm562, %v7330, %v7331
      %v7355 = vsel %vm562, %v7329, %v7330
      %v7356 = vsel %vm562, %v7328, %v7329
      %v7357 = vsel %vm562, %v7327, %v7328
      %v7358 = vsel %vm562, %v7326, %v7327
      %v7359 = vsel %vm562, %v7325, %v7326
      %v7360 = vsel %vm562, %v7324, %v7325
      %v7361 = vsel %vm562, %v7323, %v7324
      %v7362 = vsel %vm562, %v7322, %v7323
      %v7363 = vsel %vm562, %v7321, %v7322
      %v7364 = vsel %vm562, %v7320, %v7321
      %v7365 = vsel %vm562, %v7319, %v7320
      %v7366 = vsel %vm562, %v7318, %v7319
      %v7367 = vsel %vm562, %v7317, %v7318
      %v7368 = vsel %vm562, %v7316, %v7317
      %v7369 = vsel %vm562, %v7315, %v7316
      %v7370 = vsel %vm562, %v7314, %v7315
      %v7371 = vsel %vm562, %v7313, %v7314
      %v7372 = vsel %vm562, %v7312, %v7313
      %v7373 = vsel %vm562, %v7311, %v7312
      %v7374 = vsel %vm562, %v7342, %v7311
      %v7375 = vmul.f32 %v7372, %v3656
      %v7376 = vmul.f32 %v7371, %v3661
      %v7377 = vmul.f32 %v7370, %v3666
      %v7378 = vmul.f32 %v7369, %v3671
      %v7379 = vmul.f32 %v7368, %v3676
      %v7380 = vmul.f32 %v7367, %v3681
      %v7381 = vmul.f32 %v7366, %v3686
      %v7382 = vmul.f32 %v7365, %v3691
      %v7383 = vmul.f32 %v7364, %v3696
      %v7384 = vmul.f32 %v7363, %v3701
      %v7385 = vmul.f32 %v7362, %v3706
      %v7386 = vmul.f32 %v7361, %v3711
      %v7387 = vmul.f32 %v7360, %v3716
      %v7388 = vmul.f32 %v7359, %v3721
      %v7389 = vmul.f32 %v7358, %v3726
      %v7390 = vmul.f32 %v7357, %v3731
      %v7391 = vmul.f32 %v7356, %v3736
      %v7392 = vmul.f32 %v7355, %v3741
      %v7393 = vmul.f32 %v7354, %v3746
      %v7394 = vmul.f32 %v7353, %v3751
      %v7395 = vmul.f32 %v7352, %v3756
      %v7396 = vmul.f32 %v7351, %v3761
      %v7397 = vmul.f32 %v7350, %v3766
      %v7398 = vmul.f32 %v7349, %v3771
      %v7399 = vmul.f32 %v7348, %v3776
      %v7400 = vmul.f32 %v7347, %v3781
      %v7401 = vmul.f32 %v7346, %v3786
      %v7402 = vmul.f32 %v7345, %v3791
      %v7403 = vmul.f32 %v7344, %v3796
      %v7404 = vmul.f32 %v7343, %v3801
      %v7405 = vmul.f32 %v7374, %v3806
      %v7406 = vmul.f32 %v7373, %v3811
      %v7407 = vadd.f32 %v7037, %v7375
      %v7408 = vadd.f32 %v7038, %v7376
      %v7409 = vadd.f32 %v7039, %v7377
      %v7410 = vadd.f32 %v7040, %v7378
      %v7411 = vadd.f32 %v7041, %v7379
      %v7412 = vadd.f32 %v7042, %v7380
      %v7413 = vadd.f32 %v7043, %v7381
      %v7414 = vadd.f32 %v7044, %v7382
      %v7415 = vadd.f32 %v7045, %v7383
      %v7416 = vadd.f32 %v7046, %v7384
      %v7417 = vadd.f32 %v7047, %v7385
      %v7418 = vadd.f32 %v7048, %v7386
      %v7419 = vadd.f32 %v7049, %v7387
      %v7420 = vadd.f32 %v7050, %v7388
      %v7421 = vadd.f32 %v7051, %v7389
      %v7422 = vadd.f32 %v7052, %v7390
      %v7423 = vadd.f32 %v7053, %v7391
      %v7424 = vadd.f32 %v7054, %v7392
      %v7425 = vadd.f32 %v7055, %v7393
      %v7426 = vadd.f32 %v7056, %v7394
      %v7427 = vadd.f32 %v7057, %v7395
      %v7428 = vadd.f32 %v7058, %v7396
      %v7429 = vadd.f32 %v7059, %v7397
      %v7430 = vadd.f32 %v7060, %v7398
      %v7431 = vadd.f32 %v7061, %v7399
      %v7432 = vadd.f32 %v7062, %v7400
      %v7433 = vadd.f32 %v7063, %v7401
      %v7434 = vadd.f32 %v7064, %v7402
      %v7435 = vadd.f32 %v7065, %v7403
      %v7436 = vadd.f32 %v7066, %v7404
      %v7437 = vadd.f32 %v7067, %v7405
      %v7438 = vadd.f32 %v7068, %v7406
      %s7439 = scalar_lea.vmem %s3, 896
      %v7440 = vld [vmem:[%s7439] sm:$0xff]
      %v7441 = vld [vmem:[%s7439 + $0x8] sm:$0xff]
      %v7442 = vld [vmem:[%s7439 + $0x10] sm:$0xff]
      %v7443 = vld [vmem:[%s7439 + $0x18] sm:$0xff]
      %v7444 = vld [vmem:[%s7439 + $0x20] sm:$0xff]
      %v7445 = vld [vmem:[%s7439 + $0x28] sm:$0xff]
      %v7446 = vld [vmem:[%s7439 + $0x30] sm:$0xff]
      %v7447 = vld [vmem:[%s7439 + $0x38] sm:$0xff]
      %v7448 = vld [vmem:[%s7439 + $0x40] sm:$0xff]
      %v7449 = vld [vmem:[%s7439 + $0x48] sm:$0xff]
      %v7450 = vld [vmem:[%s7439 + $0x50] sm:$0xff]
      %v7451 = vld [vmem:[%s7439 + $0x58] sm:$0xff]
      %v7452 = vld [vmem:[%s7439 + $0x60] sm:$0xff]
      %v7453 = vld [vmem:[%s7439 + $0x68] sm:$0xff]
      %v7454 = vld [vmem:[%s7439 + $0x70] sm:$0xff]
      %v7455 = vld [vmem:[%s7439 + $0x78] sm:$0xff]
      %7456 = vmatprep.subr.mxu0 0.0
      %7457 = vmatpush1.msra.mxu0 %v7455
      %7458 = vmatprep.subr.mxu0 0.0
      %7459 = vmatpush1.msra.mxu0 %v7454
      %7460 = vmatprep.subr.mxu0 0.0
      %7461 = vmatpush1.msra.mxu0 %v7453
      %7462 = vmatprep.subr.mxu0 0.0
      %7463 = vmatpush1.msra.mxu0 %v7452
      %7464 = vmatprep.subr.mxu0 0.0
      %7465 = vmatpush1.msra.mxu0 %v7451
      %7466 = vmatprep.subr.mxu0 0.0
      %7467 = vmatpush1.msra.mxu0 %v7450
      %7468 = vmatprep.subr.mxu0 0.0
      %7469 = vmatpush1.msra.mxu0 %v7449
      %7470 = vmatprep.subr.mxu0 0.0
      %7471 = vmatpush1.msra.mxu0 %v7448
      %7472 = vmatprep.subr.mxu0 0.0
      %7473 = vmatpush1.msra.mxu0 %v7447
      %7474 = vmatprep.subr.mxu0 0.0
      %7475 = vmatpush1.msra.mxu0 %v7446
      %7476 = vmatprep.subr.mxu0 0.0
      %7477 = vmatpush1.msra.mxu0 %v7445
      %7478 = vmatprep.subr.mxu0 0.0
      %7479 = vmatpush1.msra.mxu0 %v7444
      %7480 = vmatprep.subr.mxu0 0.0
      %7481 = vmatpush1.msra.mxu0 %v7443
      %7482 = vmatprep.subr.mxu0 0.0
      %7483 = vmatpush1.msra.mxu0 %v7442
      %7484 = vmatprep.subr.mxu0 0.0
      %7485 = vmatpush1.msra.mxu0 %v7441
      %7486 = vmatprep.subr.mxu0 0.0
      %7487 = vmatpush1.msra.mxu0 %v7440
      %7488 = vmatprep.subr.mxu0 0.0
      %7489 = vmatpush2.msra.mxu0 0.0
      %7490 = vmatprep.subr.mxu0 0.0
      %7491 = vmatpush2.msra.mxu0 0.0
      %7492 = vmatprep.subr.mxu0 0.0
      %7493 = vmatpush2.msra.mxu0 0.0
      %7494 = vmatprep.subr.mxu0 0.0
      %7495 = vmatpush2.msra.mxu0 0.0
      %7496 = vmatprep.subr.mxu0 0.0
      %7497 = vmatpush2.msra.mxu0 0.0
      %7498 = vmatprep.subr.mxu0 0.0
      %7499 = vmatpush2.msra.mxu0 0.0
      %7500 = vmatprep.subr.mxu0 0.0
      %7501 = vmatpush2.msra.mxu0 0.0
      %7502 = vmatprep.subr.mxu0 0.0
      %7503 = vmatpush2.msra.mxu0 0.0
      %7504 = vmatprep.subr.mxu0 0.0
      %7505 = vmatpush2.msra.mxu0 0.0
      %7506 = vmatprep.subr.mxu0 0.0
      %7507 = vmatpush2.msra.mxu0 0.0
      %7508 = vmatprep.subr.mxu0 0.0
      %7509 = vmatpush2.msra.mxu0 0.0
      %7510 = vmatprep.subr.mxu0 0.0
      %7511 = vmatpush2.msra.mxu0 0.0
      %7512 = vmatprep.subr.mxu0 0.0
      %7513 = vmatpush2.msra.mxu0 0.0
      %7514 = vmatprep.subr.mxu0 0.0
      %7515 = vmatpush2.msra.mxu0 0.0
      %7516 = vmatprep.subr.mxu0 0.0
      %7517 = vmatpush2.msra.mxu0 0.0
      %7518 = vmatprep.subr.mxu0 0.0
      %7519 = vmatpush2.msra.mxu0 0.0
      %7520 = vmatprep.mubr.f32.mxu0 0.0
      %7521 = vmatmul.mubr.f32.gmra.mxu0 %v4978
      %v7522 = vpop.f32.mrf.mxu0
      %v7523 = vadd.f32 0.0, %v7522
      %v7524 = vpop.f32.mrf.mxu0
      %7525 = vmatprep.mubr.f32.mxu0 0.0
      %7526 = vmatmul.mubr.f32.gmra.mxu0 %v4979
      %v7527 = vpop.f32.mrf.mxu0
      %v7528 = vadd.f32 0.0, %v7527
      %v7529 = vpop.f32.mrf.mxu0
      %7530 = vmatprep.mubr.f32.mxu0 0.0
      %7531 = vmatmul.mubr.f32.gmra.mxu0 %v4980
      %v7532 = vpop.f32.mrf.mxu0
      %v7533 = vadd.f32 0.0, %v7532
      %v7534 = vpop.f32.mrf.mxu0
      %7535 = vmatprep.mubr.f32.mxu0 0.0
      %7536 = vmatmul.mubr.f32.gmra.mxu0 %v4981
      %v7537 = vpop.f32.mrf.mxu0
      %v7538 = vadd.f32 0.0, %v7537
      %v7539 = vpop.f32.mrf.mxu0
      %7540 = vmatprep.mubr.f32.mxu0 0.0
      %7541 = vmatmul.mubr.f32.gmra.mxu0 %v4982
      %v7542 = vpop.f32.mrf.mxu0
      %v7543 = vadd.f32 0.0, %v7542
      %v7544 = vpop.f32.mrf.mxu0
      %7545 = vmatprep.mubr.f32.mxu0 0.0
      %7546 = vmatmul.mubr.f32.gmra.mxu0 %v4983
      %v7547 = vpop.f32.mrf.mxu0
      %v7548 = vadd.f32 0.0, %v7547
      %v7549 = vpop.f32.mrf.mxu0
      %7550 = vmatprep.mubr.f32.mxu0 0.0
      %7551 = vmatmul.mubr.f32.gmra.mxu0 %v4984
      %v7552 = vpop.f32.mrf.mxu0
      %v7553 = vadd.f32 0.0, %v7552
      %v7554 = vpop.f32.mrf.mxu0
      %7555 = vmatprep.mubr.f32.mxu0 0.0
      %7556 = vmatmul.mubr.f32.gmra.mxu0 %v4985
      %v7557 = vpop.f32.mrf.mxu0
      %v7558 = vadd.f32 0.0, %v7557
      %v7559 = vpop.f32.mrf.mxu0
      %7560 = vmatprep.mubr.f32.mxu0 0.0
      %7561 = vmatmul.mubr.f32.gmra.mxu0 %v4986
      %v7562 = vpop.f32.mrf.mxu0
      %v7563 = vadd.f32 0.0, %v7562
      %v7564 = vpop.f32.mrf.mxu0
      %7565 = vmatprep.mubr.f32.mxu0 0.0
      %7566 = vmatmul.mubr.f32.gmra.mxu0 %v4987
      %v7567 = vpop.f32.mrf.mxu0
      %v7568 = vadd.f32 0.0, %v7567
      %v7569 = vpop.f32.mrf.mxu0
      %7570 = vmatprep.mubr.f32.mxu0 0.0
      %7571 = vmatmul.mubr.f32.gmra.mxu0 %v4988
      %v7572 = vpop.f32.mrf.mxu0
      %v7573 = vadd.f32 0.0, %v7572
      %v7574 = vpop.f32.mrf.mxu0
      %7575 = vmatprep.mubr.f32.mxu0 0.0
      %7576 = vmatmul.mubr.f32.gmra.mxu0 %v4989
      %v7577 = vpop.f32.mrf.mxu0
      %v7578 = vadd.f32 0.0, %v7577
      %v7579 = vpop.f32.mrf.mxu0
      %7580 = vmatprep.mubr.f32.mxu0 0.0
      %7581 = vmatmul.mubr.f32.gmra.mxu0 %v4990
      %v7582 = vpop.f32.mrf.mxu0
      %v7583 = vadd.f32 0.0, %v7582
      %v7584 = vpop.f32.mrf.mxu0
      %7585 = vmatprep.mubr.f32.mxu0 0.0
      %7586 = vmatmul.mubr.f32.gmra.mxu0 %v4991
      %v7587 = vpop.f32.mrf.mxu0
      %v7588 = vadd.f32 0.0, %v7587
      %v7589 = vpop.f32.mrf.mxu0
      %7590 = vmatprep.mubr.f32.mxu0 0.0
      %7591 = vmatmul.mubr.f32.gmra.mxu0 %v4992
      %v7592 = vpop.f32.mrf.mxu0
      %v7593 = vadd.f32 0.0, %v7592
      %v7594 = vpop.f32.mrf.mxu0
      %7595 = vmatprep.mubr.f32.mxu0 0.0
      %7596 = vmatmul.mubr.f32.gmra.mxu0 %v4993
      %v7597 = vpop.f32.mrf.mxu0
      %v7598 = vadd.f32 0.0, %v7597
      %v7599 = vpop.f32.mrf.mxu0
      %7600 = vmatprep.mubr.f32.mxu0 0.0
      %7601 = vmatmul.mubr.f32.gmra.mxu0 %v4994
      %v7602 = vpop.f32.mrf.mxu0
      %v7603 = vadd.f32 0.0, %v7602
      %v7604 = vpop.f32.mrf.mxu0
      %7605 = vmatprep.mubr.f32.mxu0 0.0
      %7606 = vmatmul.mubr.f32.gmra.mxu0 %v4995
      %v7607 = vpop.f32.mrf.mxu0
      %v7608 = vadd.f32 0.0, %v7607
      %v7609 = vpop.f32.mrf.mxu0
      %7610 = vmatprep.mubr.f32.mxu0 0.0
      %7611 = vmatmul.mubr.f32.gmra.mxu0 %v4996
      %v7612 = vpop.f32.mrf.mxu0
      %v7613 = vadd.f32 0.0, %v7612
      %v7614 = vpop.f32.mrf.mxu0
      %7615 = vmatprep.mubr.f32.mxu0 0.0
      %7616 = vmatmul.mubr.f32.gmra.mxu0 %v4997
      %v7617 = vpop.f32.mrf.mxu0
      %v7618 = vadd.f32 0.0, %v7617
      %v7619 = vpop.f32.mrf.mxu0
      %7620 = vmatprep.mubr.f32.mxu0 0.0
      %7621 = vmatmul.mubr.f32.gmra.mxu0 %v4998
      %v7622 = vpop.f32.mrf.mxu0
      %v7623 = vadd.f32 0.0, %v7622
      %v7624 = vpop.f32.mrf.mxu0
      %7625 = vmatprep.mubr.f32.mxu0 0.0
      %7626 = vmatmul.mubr.f32.gmra.mxu0 %v4999
      %v7627 = vpop.f32.mrf.mxu0
      %v7628 = vadd.f32 0.0, %v7627
      %v7629 = vpop.f32.mrf.mxu0
      %7630 = vmatprep.mubr.f32.mxu0 0.0
      %7631 = vmatmul.mubr.f32.gmra.mxu0 %v5000
      %v7632 = vpop.f32.mrf.mxu0
      %v7633 = vadd.f32 0.0, %v7632
      %v7634 = vpop.f32.mrf.mxu0
      %7635 = vmatprep.mubr.f32.mxu0 0.0
      %7636 = vmatmul.mubr.f32.gmra.mxu0 %v5001
      %v7637 = vpop.f32.mrf.mxu0
      %v7638 = vadd.f32 0.0, %v7637
      %v7639 = vpop.f32.mrf.mxu0
      %7640 = vmatprep.mubr.f32.mxu0 0.0
      %7641 = vmatmul.mubr.f32.gmra.mxu0 %v5002
      %v7642 = vpop.f32.mrf.mxu0
      %v7643 = vadd.f32 0.0, %v7642
      %v7644 = vpop.f32.mrf.mxu0
      %7645 = vmatprep.mubr.f32.mxu0 0.0
      %7646 = vmatmul.mubr.f32.gmra.mxu0 %v5003
      %v7647 = vpop.f32.mrf.mxu0
      %v7648 = vadd.f32 0.0, %v7647
      %v7649 = vpop.f32.mrf.mxu0
      %7650 = vmatprep.mubr.f32.mxu0 0.0
      %7651 = vmatmul.mubr.f32.gmra.mxu0 %v5004
      %v7652 = vpop.f32.mrf.mxu0
      %v7653 = vadd.f32 0.0, %v7652
      %v7654 = vpop.f32.mrf.mxu0
      %7655 = vmatprep.mubr.f32.mxu0 0.0
      %7656 = vmatmul.mubr.f32.gmra.mxu0 %v5005
      %v7657 = vpop.f32.mrf.mxu0
      %v7658 = vadd.f32 0.0, %v7657
      %v7659 = vpop.f32.mrf.mxu0
      %7660 = vmatprep.mubr.f32.mxu0 0.0
      %7661 = vmatmul.mubr.f32.gmra.mxu0 %v5006
      %v7662 = vpop.f32.mrf.mxu0
      %v7663 = vadd.f32 0.0, %v7662
      %v7664 = vpop.f32.mrf.mxu0
      %7665 = vmatprep.mubr.f32.mxu0 0.0
      %7666 = vmatmul.mubr.f32.gmra.mxu0 %v5007
      %v7667 = vpop.f32.mrf.mxu0
      %v7668 = vadd.f32 0.0, %v7667
      %v7669 = vpop.f32.mrf.mxu0
      %7670 = vmatprep.mubr.f32.mxu0 0.0
      %7671 = vmatmul.mubr.f32.gmra.mxu0 %v5008
      %v7672 = vpop.f32.mrf.mxu0
      %v7673 = vadd.f32 0.0, %v7672
      %v7674 = vpop.f32.mrf.mxu0
      %7675 = vmatprep.mubr.f32.mxu0 0.0
      %7676 = vmatmul.mubr.f32.gmra.mxu0 %v5009
      %v7677 = vpop.f32.mrf.mxu0
      %v7678 = vadd.f32 0.0, %v7677
      %v7679 = vpop.f32.mrf.mxu0
      %7680 = vdwg.mxu0
      %v7681 = vmul.f32 %v7533, %v4155
      %v7682 = vmul.f32 %v7538, %v4160
      %v7683 = vmul.f32 %v7543, %v4165
      %v7684 = vmul.f32 %v7548, %v4170
      %v7685 = vmul.f32 %v7553, %v4175
      %v7686 = vmul.f32 %v7558, %v4180
      %v7687 = vmul.f32 %v7563, %v4185
      %v7688 = vmul.f32 %v7568, %v4190
      %v7689 = vmul.f32 %v7573, %v4195
      %v7690 = vmul.f32 %v7578, %v4200
      %v7691 = vmul.f32 %v7583, %v4205
      %v7692 = vmul.f32 %v7588, %v4210
      %v7693 = vmul.f32 %v7593, %v4215
      %v7694 = vmul.f32 %v7598, %v4220
      %v7695 = vmul.f32 %v7603, %v4225
      %v7696 = vmul.f32 %v7608, %v4230
      %v7697 = vmul.f32 %v7613, %v4235
      %v7698 = vmul.f32 %v7618, %v4240
      %v7699 = vmul.f32 %v7623, %v4245
      %v7700 = vmul.f32 %v7628, %v4250
      %v7701 = vmul.f32 %v7633, %v4255
      %v7702 = vmul.f32 %v7638, %v4260
      %v7703 = vmul.f32 %v7643, %v4265
      %v7704 = vmul.f32 %v7648, %v4270
      %v7705 = vmul.f32 %v7653, %v4275
      %v7706 = vmul.f32 %v7658, %v4280
      %v7707 = vmul.f32 %v7663, %v4285
      %v7708 = vmul.f32 %v7668, %v4290
      %v7709 = vmul.f32 %v7673, %v4295
      %v7710 = vmul.f32 %v7678, %v4300
      %v7711 = vmul.f32 %v7523, %v4305
      %v7712 = vmul.f32 %v7528, %v4310
      %v7713 = vadd.f32 %v7407, %v7681
      %v7714 = vadd.f32 %v7408, %v7682
      %v7715 = vadd.f32 %v7409, %v7683
      %v7716 = vadd.f32 %v7410, %v7684
      %v7717 = vadd.f32 %v7411, %v7685
      %v7718 = vadd.f32 %v7412, %v7686
      %v7719 = vadd.f32 %v7413, %v7687
      %v7720 = vadd.f32 %v7414, %v7688
      %v7721 = vadd.f32 %v7415, %v7689
      %v7722 = vadd.f32 %v7416, %v7690
      %v7723 = vadd.f32 %v7417, %v7691
      %v7724 = vadd.f32 %v7418, %v7692
      %v7725 = vadd.f32 %v7419, %v7693
      %v7726 = vadd.f32 %v7420, %v7694
      %v7727 = vadd.f32 %v7421, %v7695
      %v7728 = vadd.f32 %v7422, %v7696
      %v7729 = vadd.f32 %v7423, %v7697
      %v7730 = vadd.f32 %v7424, %v7698
      %v7731 = vadd.f32 %v7425, %v7699
      %v7732 = vadd.f32 %v7426, %v7700
      %v7733 = vadd.f32 %v7427, %v7701
      %v7734 = vadd.f32 %v7428, %v7702
      %v7735 = vadd.f32 %v7429, %v7703
      %v7736 = vadd.f32 %v7430, %v7704
      %v7737 = vadd.f32 %v7431, %v7705
      %v7738 = vadd.f32 %v7432, %v7706
      %v7739 = vadd.f32 %v7433, %v7707
      %v7740 = vadd.f32 %v7434, %v7708
      %v7741 = vadd.f32 %v7435, %v7709
      %v7742 = vadd.f32 %v7436, %v7710
      %v7743 = vadd.f32 %v7437, %v7711
      %v7744 = vadd.f32 %v7438, %v7712
      %s7745 = scalar_lea.vmem %s3, 1024
      %v7746 = vld [vmem:[%s7745] sm:$0xff]
      %v7747 = vld [vmem:[%s7745 + $0x8] sm:$0xff]
      %v7748 = vld [vmem:[%s7745 + $0x10] sm:$0xff]
      %v7749 = vld [vmem:[%s7745 + $0x18] sm:$0xff]
      %v7750 = vld [vmem:[%s7745 + $0x20] sm:$0xff]
      %v7751 = vld [vmem:[%s7745 + $0x28] sm:$0xff]
      %v7752 = vld [vmem:[%s7745 + $0x30] sm:$0xff]
      %v7753 = vld [vmem:[%s7745 + $0x38] sm:$0xff]
      %v7754 = vld [vmem:[%s7745 + $0x40] sm:$0xff]
      %v7755 = vld [vmem:[%s7745 + $0x48] sm:$0xff]
      %v7756 = vld [vmem:[%s7745 + $0x50] sm:$0xff]
      %v7757 = vld [vmem:[%s7745 + $0x58] sm:$0xff]
      %v7758 = vld [vmem:[%s7745 + $0x60] sm:$0xff]
      %v7759 = vld [vmem:[%s7745 + $0x68] sm:$0xff]
      %v7760 = vld [vmem:[%s7745 + $0x70] sm:$0xff]
      %v7761 = vld [vmem:[%s7745 + $0x78] sm:$0xff]
      %7762 = vmatprep.subr.mxu0 0.0
      %7763 = vmatpush1.msra.mxu0 %v7761
      %7764 = vmatprep.subr.mxu0 0.0
      %7765 = vmatpush1.msra.mxu0 %v7760
      %7766 = vmatprep.subr.mxu0 0.0
      %7767 = vmatpush1.msra.mxu0 %v7759
      %7768 = vmatprep.subr.mxu0 0.0
      %7769 = vmatpush1.msra.mxu0 %v7758
      %7770 = vmatprep.subr.mxu0 0.0
      %7771 = vmatpush1.msra.mxu0 %v7757
      %7772 = vmatprep.subr.mxu0 0.0
      %7773 = vmatpush1.msra.mxu0 %v7756
      %7774 = vmatprep.subr.mxu0 0.0
      %7775 = vmatpush1.msra.mxu0 %v7755
      %7776 = vmatprep.subr.mxu0 0.0
      %7777 = vmatpush1.msra.mxu0 %v7754
      %7778 = vmatprep.subr.mxu0 0.0
      %7779 = vmatpush1.msra.mxu0 %v7753
      %7780 = vmatprep.subr.mxu0 0.0
      %7781 = vmatpush1.msra.mxu0 %v7752
      %7782 = vmatprep.subr.mxu0 0.0
      %7783 = vmatpush1.msra.mxu0 %v7751
      %7784 = vmatprep.subr.mxu0 0.0
      %7785 = vmatpush1.msra.mxu0 %v7750
      %7786 = vmatprep.subr.mxu0 0.0
      %7787 = vmatpush1.msra.mxu0 %v7749
      %7788 = vmatprep.subr.mxu0 0.0
      %7789 = vmatpush1.msra.mxu0 %v7748
      %7790 = vmatprep.subr.mxu0 0.0
      %7791 = vmatpush1.msra.mxu0 %v7747
      %7792 = vmatprep.subr.mxu0 0.0
      %7793 = vmatpush1.msra.mxu0 %v7746
      %7794 = vmatprep.subr.mxu0 0.0
      %7795 = vmatpush2.msra.mxu0 0.0
      %7796 = vmatprep.subr.mxu0 0.0
      %7797 = vmatpush2.msra.mxu0 0.0
      %7798 = vmatprep.subr.mxu0 0.0
      %7799 = vmatpush2.msra.mxu0 0.0
      %7800 = vmatprep.subr.mxu0 0.0
      %7801 = vmatpush2.msra.mxu0 0.0
      %7802 = vmatprep.subr.mxu0 0.0
      %7803 = vmatpush2.msra.mxu0 0.0
      %7804 = vmatprep.subr.mxu0 0.0
      %7805 = vmatpush2.msra.mxu0 0.0
      %7806 = vmatprep.subr.mxu0 0.0
      %7807 = vmatpush2.msra.mxu0 0.0
      %7808 = vmatprep.subr.mxu0 0.0
      %7809 = vmatpush2.msra.mxu0 0.0
      %7810 = vmatprep.subr.mxu0 0.0
      %7811 = vmatpush2.msra.mxu0 0.0
      %7812 = vmatprep.subr.mxu0 0.0
      %7813 = vmatpush2.msra.mxu0 0.0
      %7814 = vmatprep.subr.mxu0 0.0
      %7815 = vmatpush2.msra.mxu0 0.0
      %7816 = vmatprep.subr.mxu0 0.0
      %7817 = vmatpush2.msra.mxu0 0.0
      %7818 = vmatprep.subr.mxu0 0.0
      %7819 = vmatpush2.msra.mxu0 0.0
      %7820 = vmatprep.subr.mxu0 0.0
      %7821 = vmatpush2.msra.mxu0 0.0
      %7822 = vmatprep.subr.mxu0 0.0
      %7823 = vmatpush2.msra.mxu0 0.0
      %7824 = vmatprep.subr.mxu0 0.0
      %7825 = vmatpush2.msra.mxu0 0.0
      %7826 = vmatprep.mubr.f32.mxu0 0.0
      %7827 = vmatmul.mubr.f32.gmra.mxu0 %v4978
      %v7828 = vpop.f32.mrf.mxu0
      %v7829 = vadd.f32 0.0, %v7828
      %v7830 = vpop.f32.mrf.mxu0
      %7831 = vmatprep.mubr.f32.mxu0 0.0
      %7832 = vmatmul.mubr.f32.gmra.mxu0 %v4979
      %v7833 = vpop.f32.mrf.mxu0
      %v7834 = vadd.f32 0.0, %v7833
      %v7835 = vpop.f32.mrf.mxu0
      %7836 = vmatprep.mubr.f32.mxu0 0.0
      %7837 = vmatmul.mubr.f32.gmra.mxu0 %v4980
      %v7838 = vpop.f32.mrf.mxu0
      %v7839 = vadd.f32 0.0, %v7838
      %v7840 = vpop.f32.mrf.mxu0
      %7841 = vmatprep.mubr.f32.mxu0 0.0
      %7842 = vmatmul.mubr.f32.gmra.mxu0 %v4981
      %v7843 = vpop.f32.mrf.mxu0
      %v7844 = vadd.f32 0.0, %v7843
      %v7845 = vpop.f32.mrf.mxu0
      %7846 = vmatprep.mubr.f32.mxu0 0.0
      %7847 = vmatmul.mubr.f32.gmra.mxu0 %v4982
      %v7848 = vpop.f32.mrf.mxu0
      %v7849 = vadd.f32 0.0, %v7848
      %v7850 = vpop.f32.mrf.mxu0
      %7851 = vmatprep.mubr.f32.mxu0 0.0
      %7852 = vmatmul.mubr.f32.gmra.mxu0 %v4983
      %v7853 = vpop.f32.mrf.mxu0
      %v7854 = vadd.f32 0.0, %v7853
      %v7855 = vpop.f32.mrf.mxu0
      %7856 = vmatprep.mubr.f32.mxu0 0.0
      %7857 = vmatmul.mubr.f32.gmra.mxu0 %v4984
      %v7858 = vpop.f32.mrf.mxu0
      %v7859 = vadd.f32 0.0, %v7858
      %v7860 = vpop.f32.mrf.mxu0
      %7861 = vmatprep.mubr.f32.mxu0 0.0
      %7862 = vmatmul.mubr.f32.gmra.mxu0 %v4985
      %v7863 = vpop.f32.mrf.mxu0
      %v7864 = vadd.f32 0.0, %v7863
      %v7865 = vpop.f32.mrf.mxu0
      %7866 = vmatprep.mubr.f32.mxu0 0.0
      %7867 = vmatmul.mubr.f32.gmra.mxu0 %v4986
      %v7868 = vpop.f32.mrf.mxu0
      %v7869 = vadd.f32 0.0, %v7868
      %v7870 = vpop.f32.mrf.mxu0
      %7871 = vmatprep.mubr.f32.mxu0 0.0
      %7872 = vmatmul.mubr.f32.gmra.mxu0 %v4987
      %v7873 = vpop.f32.mrf.mxu0
      %v7874 = vadd.f32 0.0, %v7873
      %v7875 = vpop.f32.mrf.mxu0
      %7876 = vmatprep.mubr.f32.mxu0 0.0
      %7877 = vmatmul.mubr.f32.gmra.mxu0 %v4988
      %v7878 = vpop.f32.mrf.mxu0
      %v7879 = vadd.f32 0.0, %v7878
      %v7880 = vpop.f32.mrf.mxu0
      %7881 = vmatprep.mubr.f32.mxu0 0.0
      %7882 = vmatmul.mubr.f32.gmra.mxu0 %v4989
      %v7883 = vpop.f32.mrf.mxu0
      %v7884 = vadd.f32 0.0, %v7883
      %v7885 = vpop.f32.mrf.mxu0
      %7886 = vmatprep.mubr.f32.mxu0 0.0
      %7887 = vmatmul.mubr.f32.gmra.mxu0 %v4990
      %v7888 = vpop.f32.mrf.mxu0
      %v7889 = vadd.f32 0.0, %v7888
      %v7890 = vpop.f32.mrf.mxu0
      %7891 = vmatprep.mubr.f32.mxu0 0.0
      %7892 = vmatmul.mubr.f32.gmra.mxu0 %v4991
      %v7893 = vpop.f32.mrf.mxu0
      %v7894 = vadd.f32 0.0, %v7893
      %v7895 = vpop.f32.mrf.mxu0
      %7896 = vmatprep.mubr.f32.mxu0 0.0
      %7897 = vmatmul.mubr.f32.gmra.mxu0 %v4992
      %v7898 = vpop.f32.mrf.mxu0
      %v7899 = vadd.f32 0.0, %v7898
      %v7900 = vpop.f32.mrf.mxu0
      %7901 = vmatprep.mubr.f32.mxu0 0.0
      %7902 = vmatmul.mubr.f32.gmra.mxu0 %v4993
      %v7903 = vpop.f32.mrf.mxu0
      %v7904 = vadd.f32 0.0, %v7903
      %v7905 = vpop.f32.mrf.mxu0
      %7906 = vmatprep.mubr.f32.mxu0 0.0
      %7907 = vmatmul.mubr.f32.gmra.mxu0 %v4994
      %v7908 = vpop.f32.mrf.mxu0
      %v7909 = vadd.f32 0.0, %v7908
      %v7910 = vpop.f32.mrf.mxu0
      %7911 = vmatprep.mubr.f32.mxu0 0.0
      %7912 = vmatmul.mubr.f32.gmra.mxu0 %v4995
      %v7913 = vpop.f32.mrf.mxu0
      %v7914 = vadd.f32 0.0, %v7913
      %v7915 = vpop.f32.mrf.mxu0
      %7916 = vmatprep.mubr.f32.mxu0 0.0
      %7917 = vmatmul.mubr.f32.gmra.mxu0 %v4996
      %v7918 = vpop.f32.mrf.mxu0
      %v7919 = vadd.f32 0.0, %v7918
      %v7920 = vpop.f32.mrf.mxu0
      %7921 = vmatprep.mubr.f32.mxu0 0.0
      %7922 = vmatmul.mubr.f32.gmra.mxu0 %v4997
      %v7923 = vpop.f32.mrf.mxu0
      %v7924 = vadd.f32 0.0, %v7923
      %v7925 = vpop.f32.mrf.mxu0
      %7926 = vmatprep.mubr.f32.mxu0 0.0
      %7927 = vmatmul.mubr.f32.gmra.mxu0 %v4998
      %v7928 = vpop.f32.mrf.mxu0
      %v7929 = vadd.f32 0.0, %v7928
      %v7930 = vpop.f32.mrf.mxu0
      %7931 = vmatprep.mubr.f32.mxu0 0.0
      %7932 = vmatmul.mubr.f32.gmra.mxu0 %v4999
      %v7933 = vpop.f32.mrf.mxu0
      %v7934 = vadd.f32 0.0, %v7933
      %v7935 = vpop.f32.mrf.mxu0
      %7936 = vmatprep.mubr.f32.mxu0 0.0
      %7937 = vmatmul.mubr.f32.gmra.mxu0 %v5000
      %v7938 = vpop.f32.mrf.mxu0
      %v7939 = vadd.f32 0.0, %v7938
      %v7940 = vpop.f32.mrf.mxu0
      %7941 = vmatprep.mubr.f32.mxu0 0.0
      %7942 = vmatmul.mubr.f32.gmra.mxu0 %v5001
      %v7943 = vpop.f32.mrf.mxu0
      %v7944 = vadd.f32 0.0, %v7943
      %v7945 = vpop.f32.mrf.mxu0
      %7946 = vmatprep.mubr.f32.mxu0 0.0
      %7947 = vmatmul.mubr.f32.gmra.mxu0 %v5002
      %v7948 = vpop.f32.mrf.mxu0
      %v7949 = vadd.f32 0.0, %v7948
      %v7950 = vpop.f32.mrf.mxu0
      %7951 = vmatprep.mubr.f32.mxu0 0.0
      %7952 = vmatmul.mubr.f32.gmra.mxu0 %v5003
      %v7953 = vpop.f32.mrf.mxu0
      %v7954 = vadd.f32 0.0, %v7953
      %v7955 = vpop.f32.mrf.mxu0
      %7956 = vmatprep.mubr.f32.mxu0 0.0
      %7957 = vmatmul.mubr.f32.gmra.mxu0 %v5004
      %v7958 = vpop.f32.mrf.mxu0
      %v7959 = vadd.f32 0.0, %v7958
      %v7960 = vpop.f32.mrf.mxu0
      %7961 = vmatprep.mubr.f32.mxu0 0.0
      %7962 = vmatmul.mubr.f32.gmra.mxu0 %v5005
      %v7963 = vpop.f32.mrf.mxu0
      %v7964 = vadd.f32 0.0, %v7963
      %v7965 = vpop.f32.mrf.mxu0
      %7966 = vmatprep.mubr.f32.mxu0 0.0
      %7967 = vmatmul.mubr.f32.gmra.mxu0 %v5006
      %v7968 = vpop.f32.mrf.mxu0
      %v7969 = vadd.f32 0.0, %v7968
      %v7970 = vpop.f32.mrf.mxu0
      %7971 = vmatprep.mubr.f32.mxu0 0.0
      %7972 = vmatmul.mubr.f32.gmra.mxu0 %v5007
      %v7973 = vpop.f32.mrf.mxu0
      %v7974 = vadd.f32 0.0, %v7973
      %v7975 = vpop.f32.mrf.mxu0
      %7976 = vmatprep.mubr.f32.mxu0 0.0
      %7977 = vmatmul.mubr.f32.gmra.mxu0 %v5008
      %v7978 = vpop.f32.mrf.mxu0
      %v7979 = vadd.f32 0.0, %v7978
      %v7980 = vpop.f32.mrf.mxu0
      %7981 = vmatprep.mubr.f32.mxu0 0.0
      %7982 = vmatmul.mubr.f32.gmra.mxu0 %v5009
      %v7983 = vpop.f32.mrf.mxu0
      %v7984 = vadd.f32 0.0, %v7983
      %v7985 = vpop.f32.mrf.mxu0
      %7986 = vdwg.mxu0
      %v7987 = vrot.slane %v7829, 1
      %v7988 = vrot.slane %v7834, 1
      %v7989 = vrot.slane %v7839, 1
      %v7990 = vrot.slane %v7844, 1
      %v7991 = vrot.slane %v7849, 1
      %v7992 = vrot.slane %v7854, 1
      %v7993 = vrot.slane %v7859, 1
      %v7994 = vrot.slane %v7864, 1
      %v7995 = vrot.slane %v7869, 1
      %v7996 = vrot.slane %v7874, 1
      %v7997 = vrot.slane %v7879, 1
      %v7998 = vrot.slane %v7884, 1
      %v7999 = vrot.slane %v7889, 1
      %v8000 = vrot.slane %v7894, 1
      %v8001 = vrot.slane %v7899, 1
      %v8002 = vrot.slane %v7904, 1
      %v8003 = vrot.slane %v7909, 1
      %v8004 = vrot.slane %v7914, 1
      %v8005 = vrot.slane %v7919, 1
      %v8006 = vrot.slane %v7924, 1
      %v8007 = vrot.slane %v7929, 1
      %v8008 = vrot.slane %v7934, 1
      %v8009 = vrot.slane %v7939, 1
      %v8010 = vrot.slane %v7944, 1
      %v8011 = vrot.slane %v7949, 1
      %v8012 = vrot.slane %v7954, 1
      %v8013 = vrot.slane %v7959, 1
      %v8014 = vrot.slane %v7964, 1
      %v8015 = vrot.slane %v7969, 1
      %v8016 = vrot.slane %v7974, 1
      %v8017 = vrot.slane %v7979, 1
      %v8018 = vrot.slane %v7984, 1
      %v8019 = vsel %vm1624, %v8017, %v8018
      %v8020 = vsel %vm1624, %v8016, %v8017
      %v8021 = vsel %vm1624, %v8015, %v8016
      %v8022 = vsel %vm1624, %v8014, %v8015
      %v8023 = vsel %vm1624, %v8013, %v8014
      %v8024 = vsel %vm1624, %v8012, %v8013
      %v8025 = vsel %vm1624, %v8011, %v8012
      %v8026 = vsel %vm1624, %v8010, %v8011
      %v8027 = vsel %vm1624, %v8009, %v8010
      %v8028 = vsel %vm1624, %v8008, %v8009
      %v8029 = vsel %vm1624, %v8007, %v8008
      %v8030 = vsel %vm1624, %v8006, %v8007
      %v8031 = vsel %vm1624, %v8005, %v8006
      %v8032 = vsel %vm1624, %v8004, %v8005
      %v8033 = vsel %vm1624, %v8003, %v8004
      %v8034 = vsel %vm1624, %v8002, %v8003
      %v8035 = vsel %vm1624, %v8001, %v8002
      %v8036 = vsel %vm1624, %v8000, %v8001
      %v8037 = vsel %vm1624, %v7999, %v8000
      %v8038 = vsel %vm1624, %v7998, %v7999
      %v8039 = vsel %vm1624, %v7997, %v7998
      %v8040 = vsel %vm1624, %v7996, %v7997
      %v8041 = vsel %vm1624, %v7995, %v7996
      %v8042 = vsel %vm1624, %v7994, %v7995
      %v8043 = vsel %vm1624, %v7993, %v7994
      %v8044 = vsel %vm1624, %v7992, %v7993
      %v8045 = vsel %vm1624, %v7991, %v7992
      %v8046 = vsel %vm1624, %v7990, %v7991
      %v8047 = vsel %vm1624, %v7989, %v7990
      %v8048 = vsel %vm1624, %v7988, %v7989
      %v8049 = vsel %vm1624, %v7987, %v7988
      %v8050 = vsel %vm1624, %v8018, %v7987
      %v8051 = vmul.f32 %v8047, %v4718
      %v8052 = vmul.f32 %v8046, %v4723
      %v8053 = vmul.f32 %v8045, %v4728
      %v8054 = vmul.f32 %v8044, %v4733
      %v8055 = vmul.f32 %v8043, %v4738
      %v8056 = vmul.f32 %v8042, %v4743
      %v8057 = vmul.f32 %v8041, %v4748
      %v8058 = vmul.f32 %v8040, %v4753
      %v8059 = vmul.f32 %v8039, %v4758
      %v8060 = vmul.f32 %v8038, %v4763
      %v8061 = vmul.f32 %v8037, %v4768
      %v8062 = vmul.f32 %v8036, %v4773
      %v8063 = vmul.f32 %v8035, %v4778
      %v8064 = vmul.f32 %v8034, %v4783
      %v8065 = vmul.f32 %v8033, %v4788
      %v8066 = vmul.f32 %v8032, %v4793
      %v8067 = vmul.f32 %v8031, %v4798
      %v8068 = vmul.f32 %v8030, %v4803
      %v8069 = vmul.f32 %v8029, %v4808
      %v8070 = vmul.f32 %v8028, %v4813
      %v8071 = vmul.f32 %v8027, %v4818
      %v8072 = vmul.f32 %v8026, %v4823
      %v8073 = vmul.f32 %v8025, %v4828
      %v8074 = vmul.f32 %v8024, %v4833
      %v8075 = vmul.f32 %v8023, %v4838
      %v8076 = vmul.f32 %v8022, %v4843
      %v8077 = vmul.f32 %v8021, %v4848
      %v8078 = vmul.f32 %v8020, %v4853
      %v8079 = vmul.f32 %v8019, %v4858
      %v8080 = vmul.f32 %v8050, %v4863
      %v8081 = vmul.f32 %v8049, %v4868
      %v8082 = vmul.f32 %v8048, %v4873
      %v8083 = vadd.f32 %v7713, %v8051
      %v8084 = vadd.f32 %v7714, %v8052
      %v8085 = vadd.f32 %v7715, %v8053
      %v8086 = vadd.f32 %v7716, %v8054
      %v8087 = vadd.f32 %v7717, %v8055
      %v8088 = vadd.f32 %v7718, %v8056
      %v8089 = vadd.f32 %v7719, %v8057
      %v8090 = vadd.f32 %v7720, %v8058
      %v8091 = vadd.f32 %v7721, %v8059
      %v8092 = vadd.f32 %v7722, %v8060
      %v8093 = vadd.f32 %v7723, %v8061
      %v8094 = vadd.f32 %v7724, %v8062
      %v8095 = vadd.f32 %v7725, %v8063
      %v8096 = vadd.f32 %v7726, %v8064
      %v8097 = vadd.f32 %v7727, %v8065
      %v8098 = vadd.f32 %v7728, %v8066
      %v8099 = vadd.f32 %v7729, %v8067
      %v8100 = vadd.f32 %v7730, %v8068
      %v8101 = vadd.f32 %v7731, %v8069
      %v8102 = vadd.f32 %v7732, %v8070
      %v8103 = vadd.f32 %v7733, %v8071
      %v8104 = vadd.f32 %v7734, %v8072
      %v8105 = vadd.f32 %v7735, %v8073
      %v8106 = vadd.f32 %v7736, %v8074
      %v8107 = vadd.f32 %v7737, %v8075
      %v8108 = vadd.f32 %v7738, %v8076
      %v8109 = vadd.f32 %v7739, %v8077
      %v8110 = vadd.f32 %v7740, %v8078
      %v8111 = vadd.f32 %v7741, %v8079
      %v8112 = vadd.f32 %v7742, %v8080
      %v8113 = vadd.f32 %v7743, %v8081
      %v8114 = vadd.f32 %v7744, %v8082
      %v8115 = vld [vmem:[%s4] sm:$0x1]
      %v8117 = vlaneseq
      %v8118 = vshrl.u32 %v8117, 7
      %v8119 = vsub.s32 0, %v8118
      %v8120 = vrot.slane %v8115, %v8119
      %v8122 = vadd.f32 %v8083, %v8120
      %v8123 = vadd.f32 %v8084, %v8120
      %v8124 = vadd.f32 %v8085, %v8120
      %v8125 = vadd.f32 %v8086, %v8120
      %v8126 = vadd.f32 %v8087, %v8120
      %v8127 = vadd.f32 %v8088, %v8120
      %v8128 = vadd.f32 %v8089, %v8120
      %v8129 = vadd.f32 %v8090, %v8120
      %v8130 = vadd.f32 %v8091, %v8120
      %v8131 = vadd.f32 %v8092, %v8120
      %v8132 = vadd.f32 %v8093, %v8120
      %v8133 = vadd.f32 %v8094, %v8120
      %v8134 = vadd.f32 %v8095, %v8120
      %v8135 = vadd.f32 %v8096, %v8120
      %v8136 = vadd.f32 %v8097, %v8120
      %v8137 = vadd.f32 %v8098, %v8120
      %v8138 = vadd.f32 %v8099, %v8120
      %v8139 = vadd.f32 %v8100, %v8120
      %v8140 = vadd.f32 %v8101, %v8120
      %v8141 = vadd.f32 %v8102, %v8120
      %v8142 = vadd.f32 %v8103, %v8120
      %v8143 = vadd.f32 %v8104, %v8120
      %v8144 = vadd.f32 %v8105, %v8120
      %v8145 = vadd.f32 %v8106, %v8120
      %v8146 = vadd.f32 %v8107, %v8120
      %v8147 = vadd.f32 %v8108, %v8120
      %v8148 = vadd.f32 %v8109, %v8120
      %v8149 = vadd.f32 %v8110, %v8120
      %v8150 = vadd.f32 %v8111, %v8120
      %v8151 = vadd.f32 %v8112, %v8120
      %v8152 = vadd.f32 %v8113, %v8120
      %v8153 = vadd.f32 %v8114, %v8120
      %v8154 = vadd.f32 %v8122, %v255
      %v8155 = vadd.f32 %v8123, %v256
      %v8156 = vadd.f32 %v8124, %v257
      %v8157 = vadd.f32 %v8125, %v258
      %v8158 = vadd.f32 %v8126, %v259
      %v8159 = vadd.f32 %v8127, %v260
      %v8160 = vadd.f32 %v8128, %v261
      %v8161 = vadd.f32 %v8129, %v262
      %v8162 = vadd.f32 %v8130, %v263
      %v8163 = vadd.f32 %v8131, %v264
      %v8164 = vadd.f32 %v8132, %v265
      %v8165 = vadd.f32 %v8133, %v266
      %v8166 = vadd.f32 %v8134, %v267
      %v8167 = vadd.f32 %v8135, %v268
      %v8168 = vadd.f32 %v8136, %v269
      %v8169 = vadd.f32 %v8137, %v270
      %v8170 = vadd.f32 %v8138, %v271
      %v8171 = vadd.f32 %v8139, %v272
      %v8172 = vadd.f32 %v8140, %v273
      %v8173 = vadd.f32 %v8141, %v274
      %v8174 = vadd.f32 %v8142, %v275
      %v8175 = vadd.f32 %v8143, %v276
      %v8176 = vadd.f32 %v8144, %v277
      %v8177 = vadd.f32 %v8145, %v278
      %v8178 = vadd.f32 %v8146, %v279
      %v8179 = vadd.f32 %v8147, %v280
      %v8180 = vadd.f32 %v8148, %v281
      %v8181 = vadd.f32 %v8149, %v282
      %v8182 = vadd.f32 %v8150, %v283
      %v8183 = vadd.f32 %v8151, %v284
      %v8184 = vadd.f32 %v8152, %v285
      %v8185 = vadd.f32 %v8153, %v286
      %8186 = vst [vmem:[%s253] sm:$0xff] %v8154
      %8187 = vst [vmem:[%s253 + $0x8] sm:$0xff] %v8155
      %8188 = vst [vmem:[%s253 + $0x10] sm:$0xff] %v8156
      %8189 = vst [vmem:[%s253 + $0x18] sm:$0xff] %v8157
      %8190 = vst [vmem:[%s253 + $0x20] sm:$0xff] %v8158
      %8191 = vst [vmem:[%s253 + $0x28] sm:$0xff] %v8159
      %8192 = vst [vmem:[%s253 + $0x30] sm:$0xff] %v8160
      %8193 = vst [vmem:[%s253 + $0x38] sm:$0xff] %v8161
      %8194 = vst [vmem:[%s253 + $0x40] sm:$0xff] %v8162
      %8195 = vst [vmem:[%s253 + $0x48] sm:$0xff] %v8163
      %8196 = vst [vmem:[%s253 + $0x50] sm:$0xff] %v8164
      %8197 = vst [vmem:[%s253 + $0x58] sm:$0xff] %v8165
      %8198 = vst [vmem:[%s253 + $0x60] sm:$0xff] %v8166
      %8199 = vst [vmem:[%s253 + $0x68] sm:$0xff] %v8167
      %8200 = vst [vmem:[%s253 + $0x70] sm:$0xff] %v8168
      %8201 = vst [vmem:[%s253 + $0x78] sm:$0xff] %v8169
      %8202 = vst [vmem:[%s253 + $0x80] sm:$0xff] %v8170
      %8203 = vst [vmem:[%s253 + $0x88] sm:$0xff] %v8171
      %8204 = vst [vmem:[%s253 + $0x90] sm:$0xff] %v8172
      %8205 = vst [vmem:[%s253 + $0x98] sm:$0xff] %v8173
      %8206 = vst [vmem:[%s253 + $0xa0] sm:$0xff] %v8174
      %8207 = vst [vmem:[%s253 + $0xa8] sm:$0xff] %v8175
      %8208 = vst [vmem:[%s253 + $0xb0] sm:$0xff] %v8176
      %8209 = vst [vmem:[%s253 + $0xb8] sm:$0xff] %v8177
      %8210 = vst [vmem:[%s253 + $0xc0] sm:$0xff] %v8178
      %8211 = vst [vmem:[%s253 + $0xc8] sm:$0xff] %v8179
      %8212 = vst [vmem:[%s253 + $0xd0] sm:$0xff] %v8180
      %8213 = vst [vmem:[%s253 + $0xd8] sm:$0xff] %v8181
      %8214 = vst [vmem:[%s253 + $0xe0] sm:$0xff] %v8182
      %8215 = vst [vmem:[%s253 + $0xe8] sm:$0xff] %v8183
      %8216 = vst [vmem:[%s253 + $0xf0] sm:$0xff] %v8184
      %8217 = vst [vmem:[%s253 + $0xf8] sm:$0xff] %v8185
      %s8218 = smul.u32 32, %s17
      %p8219 = scmp.lt.s32.totalorder %s8218, 63
      %s8220 = scalar_select %p8219, %s8218, 63
      %s8221 = smul.addr %s8220, 8
      %s8222 = scalar_lea.vmem %s6, %s8221
      // Predicated region
      $region45: #{resblock_forward.1} parent=43 // pred_check
        %p8223 = pneg %p166
      $region46: #{resblock_forward.1} parent=43 // pred_check_branch
        %8225 = sbr.rel (%p8223) target = $region48
      $region47: #{resblock_forward.1} parent=43 // pred_region
        %s8226 = smul.u32 32, %s17
      $region48: #{resblock_forward.1} parent=43 // pred_fallthru
        _
    $region44: #{resblock_forward.1} parent=5 // pred_fallthru
      _
    %p8227 = scmp.le.s32.totalorder 2, %s12
    // Predicated region
    $region49: #{resblock_forward.1} parent=5 // pred_check
      %p8228 = pneg %p8227
    $region50: #{resblock_forward.1} parent=5 // pred_check_branch
      %8230 = sbr.rel (%p8228) target = $region52
    $region51: #{resblock_forward.1} parent=5 // pred_region
      %s8231 = ssub.s32 %s12, 2
      // Predicated region
      $region53: #{resblock_forward.1} parent=51 // pred_check
        %p8232 = pneg %p172
      $region54: #{resblock_forward.1} parent=51 // pred_check_branch
        %8234 = sbr.rel (%p8232) target = $region56
      $region55: #{resblock_forward.1} parent=51 // pred_region
        %s8235 = smul.u32 32, %s18
        %p8236 = scmp.lt.s32.totalorder %s8235, 63
        %s8237 = scalar_select %p8236, %s8235, 63
        %s8238 = smul.addr %s8237, 8
        %s8239 = scalar_lea.vmem %s6, %s8238
      $region56: #{resblock_forward.1} parent=51 // pred_fallthru
        _
    $region52: #{resblock_forward.1} parent=5 // pred_fallthru
      _
  $region6: #{resblock_forward.1} parent=0 // loop_footer
    %s16 = sadd.s32 1, %s12
  $region7: #{resblock_forward.1} parent=0 // loop_footer_branch
    %11 = sbr.rel target = $region3
  $region8: #{resblock_forward.1} parent=0 // loop_exit
    _

</llo_original>
